<compile_context>
chip_gen: v7x
topology: tpu7x:2x2x1
jax: 0.10.0
libtpu: 0.0.40
codegen_flags: <defaults>
</compile_context>

<pallas_src>
import jax
import jax.numpy as jnp
from jax.experimental import pallas as pl
from jax.experimental.pallas import tpu as pltpu

_MXU_DTYPE = jnp.bfloat16          # all MXU operands (accumulate in f32)

# Static per-layer plan, specialized to 3x28x28 inputs (shapes from NeuralNet).
#   conv:   w = input width (post-upsample width for fold_up convs),
#           pad = lane-side zero padding folded into the banded weights
#   pool:   h/w/c of the pooled activation's input
#   up:     nearest-x2 row duplication + row_pad zero rows (lane part folded
#           into the next conv's weights)
#   rowpad: 2 zero rows top/bottom (transposed conv not preceded by an upsample)
_PLAN = (
    ("conv", dict(key="c1", w=28, cin=3,  cout=8,  pad=0, relu=True,  transpose=False, fold_bn=True)),
    ("conv", dict(key="c2", w=26, cin=8,  cout=16, pad=0, relu=True,  transpose=False)),
    ("pool", dict(h=24, w=24, c=16)),
    ("conv", dict(key="c3", w=12, cin=16, cout=16, pad=0, relu=True,  transpose=False)),
    ("conv", dict(key="c4", w=10, cin=16, cout=32, pad=0, relu=True,  transpose=False)),
    ("conv", dict(key="c5", w=8,  cin=32, cout=32, pad=0, relu=True,  transpose=False)),
    ("pool", dict(h=6, w=6, c=32)),
    ("up",   dict(h=3, row_pad=2)),
    ("conv", dict(key="t1", w=6,  cin=32, cout=32, pad=2, relu=True,  transpose=True, fold_up=True)),
    ("rowpad", dict(h=8)),
    ("conv", dict(key="t2", w=8,  cin=32, cout=16, pad=2, relu=True,  transpose=True)),
    ("rowpad", dict(h=10)),
    ("conv", dict(key="t3", w=10, cin=16, cout=16, pad=2, relu=True,  transpose=True)),
    ("up",   dict(h=12, row_pad=2)),
    ("conv", dict(key="t4", w=24, cin=16, cout=8,  pad=2, relu=True,  transpose=True, fold_up=True)),
    ("rowpad", dict(h=26)),
    ("conv", dict(key="t5", w=26, cin=8,  cout=1,  pad=2, relu=False, transpose=True)),
)


# ---------------------------------------------------------------------------
# Fused Pallas kernel: the whole forward for one image, VMEM resident.
# ---------------------------------------------------------------------------
def _fused_forward_kernel(*refs):
    x_ref = refs[0]
    o_ref = refs[-2]
    pad_ref = refs[-1]                 # VMEM scratch for row padding (no MXU op)
    ops = refs[1:-2]

    pos = 0

    def take(n):
        nonlocal pos
        out = ops[pos:pos + n]
        pos += n
        return out

    a = x_ref[...]                                       # (28, 28*3) f32
    for kind, cfg in _PLAN:
        if kind == "conv":
            w_ref, b_ref = take(2)
            ho = a.shape[0] - 2
            ab = a.astype(_MXU_DTYPE)                    # cast once, slice 3x
            acc = jnp.dot(ab[0:ho], w_ref[0], preferred_element_type=jnp.float32)
            acc = acc + jnp.dot(ab[1:ho + 1], w_ref[1], preferred_element_type=jnp.float32)
            acc = acc + jnp.dot(ab[2:ho + 2], w_ref[2], preferred_element_type=jnp.float32)
            acc = acc + b_ref[...]
            a = jnp.maximum(acc, 0.0) if cfg["relu"] else acc
        elif kind == "pool":
            p_ref, s0_ref, s1_ref = take(3)
            rm = jnp.maximum(a[:-1, :], a[1:, :]).astype(_MXU_DTYPE)   # 2x1 row max
            m = jnp.maximum(                              # 1x2 col max via exact 0/1 selects
                jnp.dot(rm, s0_ref[...], preferred_element_type=jnp.float32),
                jnp.dot(rm, s1_ref[...], preferred_element_type=jnp.float32))
            a = jnp.dot(p_ref[...], m.astype(_MXU_DTYPE),
                        preferred_element_type=jnp.float32)
        elif kind == "up":
            # Row duplication + 2 zero rows (lane upsample is folded into the
            # following transposed conv's banded weights).
            (r_ref,) = take(1)
            a = jnp.dot(r_ref[...], a.astype(_MXU_DTYPE),
                        preferred_element_type=jnp.float32)
        else:  # "rowpad": 2 zero rows top/bottom composed in VMEM scratch
            h, wc = a.shape
            z2 = jnp.zeros((2, wc), jnp.float32)
            pad_ref[0:2, 0:wc] = z2
            pad_ref[2:2 + h, 0:wc] = a
            pad_ref[2 + h:4 + h, 0:wc] = z2
            a = pad_ref[0:h + 4, 0:wc]
    o_ref[...] = a.astype(o_ref.dtype)                   # (28, 28)


# ---------------------------------------------------------------------------
# Parameter preparation (trace-time / one-off glue, all plain JAX)
# ---------------------------------------------------------------------------
def _banded_conv_weight(w_eff, w_in, pad):
    """w_eff: (3, 3, cin, cout) HWIO.  Returns (3, w_in*cin, wo*cout) with
    out[kh, w*cin+ci, wo*cout+co] = w_eff[kh, w-wo+pad, ci, co] (0 when the tap
    is out of range), so a 3x3 valid conv over the lane-zero-padded row-major
    (H, W*cin) slab becomes  sum_kh  a[kh:kh+Ho] @ out[kh]."""
    cin, cout = w_eff.shape[2], w_eff.shape[3]
    wo = w_in + 2 * pad - 2
    per_kh = []
    for kh in range(3):
        m = jnp.zeros((w_in * cin, wo * cout), jnp.float32)
        for kw in range(3):
            sel = jnp.eye(w_in, wo, k=pad - kw, dtype=jnp.float32)   # band: w = wo + kw - pad
            m = m + jnp.einsum("wv,cd->wcvd", sel, w_eff[kh, kw]).reshape(
                w_in * cin, wo * cout)
        per_kh.append(m)
    return jnp.stack(per_kh, axis=0)


def _pool_mats(h, w, c):
    """MaxPool2d(2,2) on (h, w*c): rm = max(a[:-1], a[1:]);
    out = P @ max(rm @ S0, rm @ S1) with exact 0/1 selection matrices."""
    p = (jnp.arange(h - 1)[None, :] == 2 * jnp.arange(h // 2)[:, None]).astype(jnp.float32)
    j = jnp.arange((w // 2) * c)
    src0 = (j // c) * (2 * c) + (j % c)
    i = jnp.arange(w * c)[:, None]
    s0 = (i == src0[None, :]).astype(jnp.float32)
    s1 = (i == (src0 + c)[None, :]).astype(jnp.float32)
    return p, s0, s1


def _up_row_mat(h, row_pad):
    """Nearest-x2 row duplication plus `row_pad` zero rows top/bottom: a' = R @ a."""
    r = jnp.arange(2 * h + 2 * row_pad)
    src_r = (r - row_pad) // 2
    valid = (r >= row_pad) & (r < row_pad + 2 * h)
    return ((jnp.arange(h)[None, :] == src_r[:, None]) & valid[:, None]).astype(jnp.float32)


def _up_col_mat(w, c):
    """Nearest-x2 lane duplication matrix C (w*c, 2w*c); folded into the next
    conv's banded weights at prepare time (never shipped to the kernel)."""
    i = jnp.arange(w * c)[:, None]
    j = jnp.arange(2 * w * c)[None, :]
    return ((i % c == j % c) & (i // c == (j // c) // 2)).astype(jnp.float32)


def prepare_params(p, eps=1e-5):
    """Fold eval-mode BatchNorm into conv1, turn every (transposed) conv into
    banded bf16 matmul weights + tiled f32 biases (lane-upsample folded into
    t1/t4), and build bf16 0/1 pool / upsample-row matrices.  Returns a flat
    tuple in _PLAN order."""
    s = p["bn_gamma"] / jnp.sqrt(p["bn_var"] + eps)
    t = p["bn_beta"] - p["bn_mean"] * s
    flat = []
    for kind, cfg in _PLAN:
        if kind == "conv":
            w_raw = p[cfg["key"] + "_w"]
            b_eff = p[cfg["key"] + "_b"]
            if cfg["transpose"]:
                # ConvTranspose2d(k=3, s=1, p=0) == valid conv of the 2-zero-
                # padded input with spatially flipped, in/out-swapped weights.
                w_eff = jnp.transpose(w_raw, (2, 3, 0, 1))[::-1, ::-1, :, :]
            else:
                w_eff = jnp.transpose(w_raw, (2, 3, 1, 0))            # (kh,kw,ci,co)
            if cfg.get("fold_bn"):
                w_eff = w_eff * s[None, None, :, None]
                b_eff = b_eff + jnp.einsum("oihw,i->o", w_raw, t)
            wo = cfg["w"] + 2 * cfg["pad"] - 2
            wb = _banded_conv_weight(w_eff, cfg["w"], cfg["pad"])     # f32 (3, w*cin, wo*cout)
            if cfg.get("fold_up"):
                cmat = _up_col_mat(cfg["w"] // 2, cfg["cin"])          # (w/2*cin, w*cin)
                wb = jnp.einsum("kv,hvn->hkn", cmat, wb)               # halves K
            flat += [wb.astype(_MXU_DTYPE),
                     jnp.tile(b_eff, wo).reshape(1, wo * cfg["cout"]).astype(jnp.float32)]
        elif kind == "pool":
            flat += [m.astype(_MXU_DTYPE) for m in _pool_mats(cfg["h"], cfg["w"], cfg["c"])]
        elif kind == "up":
            flat += [_up_row_mat(cfg["h"], cfg["row_pad"]).astype(_MXU_DTYPE)]
        # "rowpad": no parameters (handled with the VMEM scratch in-kernel)
    return tuple(flat)


def init_params(key):
    """Deterministic parameters with PyTorch layouts (shapes from NeuralNet)."""
    keys = iter(jax.random.split(key, 64))

    def nrm(shape, scale=0.1):
        return scale * jax.random.normal(next(keys), shape, jnp.float32)

    p = {}
    # BatchNorm2d(3) eval-mode running stats.
    p["bn_gamma"] = 1.0 + nrm((3,))
    p["bn_beta"] = nrm((3,))
    p["bn_mean"] = jnp.zeros((3,), jnp.float32)
    p["bn_var"] = jnp.ones((3,), jnp.float32)
    # Conv2d: (Cout, Cin, 3, 3)
    for name, (co, ci) in zip(["c1", "c2", "c3", "c4", "c5"],
                              [(8, 3), (16, 8), (16, 16), (32, 16), (32, 32)]):
        p[name + "_w"] = nrm((co, ci, 3, 3))
        p[name + "_b"] = nrm((co,))
    # ConvTranspose2d: (Cin, Cout, 3, 3)
    for name, (ci, co) in zip(["t1", "t2", "t3", "t4", "t5"],
                              [(32, 32), (32, 16), (16, 16), (16, 8), (8, 1)]):
        p[name + "_w"] = nrm((ci, co, 3, 3))
        p[name + "_b"] = nrm((co,))
    return p


# ---------------------------------------------------------------------------
# Forward pass (== NeuralNet.pipeline, inference semantics)
# ---------------------------------------------------------------------------
@jax.jit
def neuralnet_forward(x_nchw, prepared):
    n, c, h, w = x_nchw.shape
    assert (c, h, w) == (3, 28, 28), "fused plan is specialized to 3x28x28 inputs"
    # NCHW -> per-image lane-dense (H, W*C) slab (lane index = w*C + c).
    x = jnp.transpose(x_nchw, (0, 2, 3, 1)).reshape(n, h, w * c).astype(jnp.float32)

    in_specs = [pl.BlockSpec((None, h, w * c), lambda i: (i, 0, 0))]
    for arr in prepared:
        zeros = (0,) * arr.ndim
        # Constant block index -> fetched once, kept VMEM-resident across steps.
        in_specs.append(pl.BlockSpec(arr.shape, lambda i, _z=zeros: _z))

    y = pl.pallas_call(
        _fused_forward_kernel,
        out_shape=jax.ShapeDtypeStruct((n, 28, 28), jnp.float32),
        grid=(n,),
        in_specs=in_specs,
        out_specs=pl.BlockSpec((None, 28, 28), lambda i: (i, 0, 0)),
        scratch_shapes=[pltpu.VMEM((32, 256), jnp.float32)],   # rowpad compose buffer
        compiler_params=pltpu.CompilerParams(
            dimension_semantics=("parallel",),          # 2 images -> 2 cores on v7x
            vmem_limit_bytes=32 * 1024 * 1024,          # ~2.5 MiB of constants actually used
        ),
    )(x, *prepared)
    return y.reshape(n, 1, 28, 28)                      # NCHW


if __name__ == "__main__":
    key = jax.random.PRNGKey(0)
    k_x, k_p = jax.random.split(key)
    # Pipeline starts with BatchNorm2d(3)/Conv2d(3, ...), so input is (N, 3, 28, 28).
    x = jax.random.normal(k_x, (2, 3, 28, 28), jnp.float32)
    raw_params = init_params(k_p)
    prepared = prepare_params(raw_params)

    y = neuralnet_forward(x, prepared)
    y = jax.block_until_ready(y)

    assert y.shape == (2, 1, 28, 28), y.shape
    assert y.dtype == jnp.float32
    assert bool(jnp.all(jnp.isfinite(y)))
    print("KERNEL_OK")
</pallas_src>

<mosaic_0001>
module attributes {stable_mosaic.version = 11 : i64} {
  func.func @_fused_forward_kernel(%arg0: i32, %arg1: memref<1x28x84xf32, #tpu.memory_space<vmem>>, %arg2: memref<3x84x208xbf16, #tpu.memory_space<vmem>>, %arg3: memref<1x208xf32, #tpu.memory_space<vmem>>, %arg4: memref<3x208x384xbf16, #tpu.memory_space<vmem>>, %arg5: memref<1x384xf32, #tpu.memory_space<vmem>>, %arg6: memref<12x23xbf16, #tpu.memory_space<vmem>>, %arg7: memref<384x192xbf16, #tpu.memory_space<vmem>>, %arg8: memref<384x192xbf16, #tpu.memory_space<vmem>>, %arg9: memref<3x192x160xbf16, #tpu.memory_space<vmem>>, %arg10: memref<1x160xf32, #tpu.memory_space<vmem>>, %arg11: memref<3x160x256xbf16, #tpu.memory_space<vmem>>, %arg12: memref<1x256xf32, #tpu.memory_space<vmem>>, %arg13: memref<3x256x192xbf16, #tpu.memory_space<vmem>>, %arg14: memref<1x192xf32, #tpu.memory_space<vmem>>, %arg15: memref<3x5xbf16, #tpu.memory_space<vmem>>, %arg16: memref<192x96xbf16, #tpu.memory_space<vmem>>, %arg17: memref<192x96xbf16, #tpu.memory_space<vmem>>, %arg18: memref<10x3xbf16, #tpu.memory_space<vmem>>, %arg19: memref<3x96x256xbf16, #tpu.memory_space<vmem>>, %arg20: memref<1x256xf32, #tpu.memory_space<vmem>>, %arg21: memref<3x256x160xbf16, #tpu.memory_space<vmem>>, %arg22: memref<1x160xf32, #tpu.memory_space<vmem>>, %arg23: memref<3x160x192xbf16, #tpu.memory_space<vmem>>, %arg24: memref<1x192xf32, #tpu.memory_space<vmem>>, %arg25: memref<28x12xbf16, #tpu.memory_space<vmem>>, %arg26: memref<3x192x208xbf16, #tpu.memory_space<vmem>>, %arg27: memref<1x208xf32, #tpu.memory_space<vmem>>, %arg28: memref<3x208x28xbf16, #tpu.memory_space<vmem>>, %arg29: memref<1x28xf32, #tpu.memory_space<vmem>>, %arg30: memref<1x28x28xf32, #tpu.memory_space<vmem>>, %arg31: memref<32x256xf32, #tpu.memory_space<vmem>>) attributes {dimension_semantics = [#tpu.dimension_semantics<parallel>], iteration_bounds = array<i64: 2>, scalar_prefetch = 0 : i64, scratch_operands = 1 : i64, tpu.core_type = #tpu.core_type<tc>, window_params = [{transform_indices = @transform_0, window_bounds = array<i64: 1, 28, 84>}, {pipeline_mode = #tpu.pipeline_mode<synchronous>, transform_indices = @transform_1, window_bounds = array<i64: 3, 84, 208>}, {pipeline_mode = #tpu.pipeline_mode<synchronous>, transform_indices = @transform_2, window_bounds = array<i64: 1, 208>}, {pipeline_mode = #tpu.pipeline_mode<synchronous>, transform_indices = @transform_3, window_bounds = array<i64: 3, 208, 384>}, {pipeline_mode = #tpu.pipeline_mode<synchronous>, transform_indices = @transform_4, window_bounds = array<i64: 1, 384>}, {pipeline_mode = #tpu.pipeline_mode<synchronous>, transform_indices = @transform_5, window_bounds = array<i64: 12, 23>}, {pipeline_mode = #tpu.pipeline_mode<synchronous>, transform_indices = @transform_6, window_bounds = array<i64: 384, 192>}, {pipeline_mode = #tpu.pipeline_mode<synchronous>, transform_indices = @transform_7, window_bounds = array<i64: 384, 192>}, {pipeline_mode = #tpu.pipeline_mode<synchronous>, transform_indices = @transform_8, window_bounds = array<i64: 3, 192, 160>}, {pipeline_mode = #tpu.pipeline_mode<synchronous>, transform_indices = @transform_9, window_bounds = array<i64: 1, 160>}, {pipeline_mode = #tpu.pipeline_mode<synchronous>, transform_indices = @transform_10, window_bounds = array<i64: 3, 160, 256>}, {pipeline_mode = #tpu.pipeline_mode<synchronous>, transform_indices = @transform_11, window_bounds = array<i64: 1, 256>}, {pipeline_mode = #tpu.pipeline_mode<synchronous>, transform_indices = @transform_12, window_bounds = array<i64: 3, 256, 192>}, {pipeline_mode = #tpu.pipeline_mode<synchronous>, transform_indices = @transform_13, window_bounds = array<i64: 1, 192>}, {pipeline_mode = #tpu.pipeline_mode<synchronous>, transform_indices = @transform_14, window_bounds = array<i64: 3, 5>}, {pipeline_mode = #tpu.pipeline_mode<synchronous>, transform_indices = @transform_15, window_bounds = array<i64: 192, 96>}, {pipeline_mode = #tpu.pipeline_mode<synchronous>, transform_indices = @transform_16, window_bounds = array<i64: 192, 96>}, {pipeline_mode = #tpu.pipeline_mode<synchronous>, transform_indices = @transform_17, window_bounds = array<i64: 10, 3>}, {pipeline_mode = #tpu.pipeline_mode<synchronous>, transform_indices = @transform_18, window_bounds = array<i64: 3, 96, 256>}, {pipeline_mode = #tpu.pipeline_mode<synchronous>, transform_indices = @transform_19, window_bounds = array<i64: 1, 256>}, {pipeline_mode = #tpu.pipeline_mode<synchronous>, transform_indices = @transform_20, window_bounds = array<i64: 3, 256, 160>}, {pipeline_mode = #tpu.pipeline_mode<synchronous>, transform_indices = @transform_21, window_bounds = array<i64: 1, 160>}, {pipeline_mode = #tpu.pipeline_mode<synchronous>, transform_indices = @transform_22, window_bounds = array<i64: 3, 160, 192>}, {pipeline_mode = #tpu.pipeline_mode<synchronous>, transform_indices = @transform_23, window_bounds = array<i64: 1, 192>}, {pipeline_mode = #tpu.pipeline_mode<synchronous>, transform_indices = @transform_24, window_bounds = array<i64: 28, 12>}, {pipeline_mode = #tpu.pipeline_mode<synchronous>, transform_indices = @transform_25, window_bounds = array<i64: 3, 192, 208>}, {pipeline_mode = #tpu.pipeline_mode<synchronous>, transform_indices = @transform_26, window_bounds = array<i64: 1, 208>}, {pipeline_mode = #tpu.pipeline_mode<synchronous>, transform_indices = @transform_27, window_bounds = array<i64: 3, 208, 28>}, {pipeline_mode = #tpu.pipeline_mode<synchronous>, transform_indices = @transform_28, window_bounds = array<i64: 1, 28>}, {transform_indices = @transform_29, window_bounds = array<i64: 1, 28, 28>}]} {
    %c0 = arith.constant 0 : index
    %c0_0 = arith.constant 0 : index
    %c0_1 = arith.constant 0 : index
    %0 = vector.load %arg1[%c0, %c0_0, %c0_1] : memref<1x28x84xf32, #tpu.memory_space<vmem>>, vector<1x28x84xf32>
    %1 = vector.shape_cast %0 : vector<1x28x84xf32> to vector<28x84xf32>
    %2 = arith.truncf %1 : vector<28x84xf32> to vector<28x84xbf16>
    %3 = vector.extract_strided_slice %2 {offsets = [0, 0], sizes = [26, 84], strides = [1, 1]} : vector<28x84xbf16> to vector<26x84xbf16>
    %c0_2 = arith.constant 0 : index
    %c0_3 = arith.constant 0 : index
    %c0_4 = arith.constant 0 : index
    %4 = vector.load %arg2[%c0_2, %c0_3, %c0_4] : memref<3x84x208xbf16, #tpu.memory_space<vmem>>, vector<1x84x208xbf16>
    %5 = vector.shape_cast %4 : vector<1x84x208xbf16> to vector<84x208xbf16>
    %cst = arith.constant dense<0.000000e+00> : vector<26x208xf32>
    %6 = tpu.matmul %3, %5, %cst {dimension_numbers = #tpu.dot_dimension_numbers<[1], [0], [0], [1], [0, 0, 1, 1], [], []>} : vector<26x84xbf16>, vector<84x208xbf16>, vector<26x208xf32> -> vector<26x208xf32>
    %7 = vector.extract_strided_slice %2 {offsets = [1, 0], sizes = [26, 84], strides = [1, 1]} : vector<28x84xbf16> to vector<26x84xbf16>
    %c1 = arith.constant 1 : index
    %c0_5 = arith.constant 0 : index
    %c0_6 = arith.constant 0 : index
    %8 = vector.load %arg2[%c1, %c0_5, %c0_6] : memref<3x84x208xbf16, #tpu.memory_space<vmem>>, vector<1x84x208xbf16>
    %9 = vector.shape_cast %8 : vector<1x84x208xbf16> to vector<84x208xbf16>
    %cst_7 = arith.constant dense<0.000000e+00> : vector<26x208xf32>
    %10 = tpu.matmul %7, %9, %cst_7 {dimension_numbers = #tpu.dot_dimension_numbers<[1], [0], [0], [1], [0, 0, 1, 1], [], []>} : vector<26x84xbf16>, vector<84x208xbf16>, vector<26x208xf32> -> vector<26x208xf32>
    %11 = arith.addf %6, %10 : vector<26x208xf32>
    %12 = vector.extract_strided_slice %2 {offsets = [2, 0], sizes = [26, 84], strides = [1, 1]} : vector<28x84xbf16> to vector<26x84xbf16>
    %c2 = arith.constant 2 : index
    %c0_8 = arith.constant 0 : index
    %c0_9 = arith.constant 0 : index
    %13 = vector.load %arg2[%c2, %c0_8, %c0_9] : memref<3x84x208xbf16, #tpu.memory_space<vmem>>, vector<1x84x208xbf16>
    %14 = vector.shape_cast %13 : vector<1x84x208xbf16> to vector<84x208xbf16>
    %cst_10 = arith.constant dense<0.000000e+00> : vector<26x208xf32>
    %15 = tpu.matmul %12, %14, %cst_10 {dimension_numbers = #tpu.dot_dimension_numbers<[1], [0], [0], [1], [0, 0, 1, 1], [], []>} : vector<26x84xbf16>, vector<84x208xbf16>, vector<26x208xf32> -> vector<26x208xf32>
    %16 = arith.addf %11, %15 : vector<26x208xf32>
    %c0_11 = arith.constant 0 : index
    %c0_12 = arith.constant 0 : index
    %17 = vector.load %arg3[%c0_11, %c0_12] : memref<1x208xf32, #tpu.memory_space<vmem>>, vector<1x208xf32>
    %18 = vector.broadcast %17 : vector<1x208xf32> to vector<26x208xf32>
    %19 = arith.addf %16, %18 : vector<26x208xf32>
    %cst_13 = arith.constant 0.000000e+00 : f32
    %20 = vector.broadcast %cst_13 : f32 to vector<26x208xf32>
    %21 = arith.maximumf %19, %20 : vector<26x208xf32>
    %22 = arith.truncf %21 : vector<26x208xf32> to vector<26x208xbf16>
    %23 = vector.extract_strided_slice %22 {offsets = [0, 0], sizes = [24, 208], strides = [1, 1]} : vector<26x208xbf16> to vector<24x208xbf16>
    %c0_14 = arith.constant 0 : index
    %c0_15 = arith.constant 0 : index
    %c0_16 = arith.constant 0 : index
    %24 = vector.load %arg4[%c0_14, %c0_15, %c0_16] : memref<3x208x384xbf16, #tpu.memory_space<vmem>>, vector<1x208x384xbf16>
    %25 = vector.shape_cast %24 : vector<1x208x384xbf16> to vector<208x384xbf16>
    %cst_17 = arith.constant dense<0.000000e+00> : vector<24x384xf32>
    %26 = tpu.matmul %23, %25, %cst_17 {dimension_numbers = #tpu.dot_dimension_numbers<[1], [0], [0], [1], [0, 0, 1, 1], [], []>} : vector<24x208xbf16>, vector<208x384xbf16>, vector<24x384xf32> -> vector<24x384xf32>
    %27 = vector.extract_strided_slice %22 {offsets = [1, 0], sizes = [24, 208], strides = [1, 1]} : vector<26x208xbf16> to vector<24x208xbf16>
    %c1_18 = arith.constant 1 : index
    %c0_19 = arith.constant 0 : index
    %c0_20 = arith.constant 0 : index
    %28 = vector.load %arg4[%c1_18, %c0_19, %c0_20] : memref<3x208x384xbf16, #tpu.memory_space<vmem>>, vector<1x208x384xbf16>
    %29 = vector.shape_cast %28 : vector<1x208x384xbf16> to vector<208x384xbf16>
    %cst_21 = arith.constant dense<0.000000e+00> : vector<24x384xf32>
    %30 = tpu.matmul %27, %29, %cst_21 {dimension_numbers = #tpu.dot_dimension_numbers<[1], [0], [0], [1], [0, 0, 1, 1], [], []>} : vector<24x208xbf16>, vector<208x384xbf16>, vector<24x384xf32> -> vector<24x384xf32>
    %31 = arith.addf %26, %30 : vector<24x384xf32>
    %32 = vector.extract_strided_slice %22 {offsets = [2, 0], sizes = [24, 208], strides = [1, 1]} : vector<26x208xbf16> to vector<24x208xbf16>
    %c2_22 = arith.constant 2 : index
    %c0_23 = arith.constant 0 : index
    %c0_24 = arith.constant 0 : index
    %33 = vector.load %arg4[%c2_22, %c0_23, %c0_24] : memref<3x208x384xbf16, #tpu.memory_space<vmem>>, vector<1x208x384xbf16>
    %34 = vector.shape_cast %33 : vector<1x208x384xbf16> to vector<208x384xbf16>
    %cst_25 = arith.constant dense<0.000000e+00> : vector<24x384xf32>
    %35 = tpu.matmul %32, %34, %cst_25 {dimension_numbers = #tpu.dot_dimension_numbers<[1], [0], [0], [1], [0, 0, 1, 1], [], []>} : vector<24x208xbf16>, vector<208x384xbf16>, vector<24x384xf32> -> vector<24x384xf32>
    %36 = arith.addf %31, %35 : vector<24x384xf32>
    %c0_26 = arith.constant 0 : index
    %c0_27 = arith.constant 0 : index
    %37 = vector.load %arg5[%c0_26, %c0_27] : memref<1x384xf32, #tpu.memory_space<vmem>>, vector<1x384xf32>
    %38 = vector.broadcast %37 : vector<1x384xf32> to vector<24x384xf32>
    %39 = arith.addf %36, %38 : vector<24x384xf32>
    %cst_28 = arith.constant 0.000000e+00 : f32
    %40 = vector.broadcast %cst_28 : f32 to vector<24x384xf32>
    %41 = arith.maximumf %39, %40 : vector<24x384xf32>
    %42 = vector.extract_strided_slice %41 {offsets = [0, 0], sizes = [23, 384], strides = [1, 1]} : vector<24x384xf32> to vector<23x384xf32>
    %43 = vector.extract_strided_slice %41 {offsets = [1, 0], sizes = [23, 384], strides = [1, 1]} : vector<24x384xf32> to vector<23x384xf32>
    %44 = arith.maximumf %42, %43 : vector<23x384xf32>
    %45 = arith.truncf %44 : vector<23x384xf32> to vector<23x384xbf16>
    %c0_29 = arith.constant 0 : index
    %c0_30 = arith.constant 0 : index
    %46 = vector.load %arg7[%c0_29, %c0_30] : memref<384x192xbf16, #tpu.memory_space<vmem>>, vector<384x192xbf16>
    %cst_31 = arith.constant dense<0.000000e+00> : vector<23x192xf32>
    %47 = tpu.matmul %45, %46, %cst_31 {dimension_numbers = #tpu.dot_dimension_numbers<[1], [0], [0], [1], [0, 0, 1, 1], [], []>} : vector<23x384xbf16>, vector<384x192xbf16>, vector<23x192xf32> -> vector<23x192xf32>
    %c0_32 = arith.constant 0 : index
    %c0_33 = arith.constant 0 : index
    %48 = vector.load %arg8[%c0_32, %c0_33] : memref<384x192xbf16, #tpu.memory_space<vmem>>, vector<384x192xbf16>
    %cst_34 = arith.constant dense<0.000000e+00> : vector<23x192xf32>
    %49 = tpu.matmul %45, %48, %cst_34 {dimension_numbers = #tpu.dot_dimension_numbers<[1], [0], [0], [1], [0, 0, 1, 1], [], []>} : vector<23x384xbf16>, vector<384x192xbf16>, vector<23x192xf32> -> vector<23x192xf32>
    %50 = arith.maximumf %47, %49 : vector<23x192xf32>
    %c0_35 = arith.constant 0 : index
    %c0_36 = arith.constant 0 : index
    %51 = vector.load %arg6[%c0_35, %c0_36] : memref<12x23xbf16, #tpu.memory_space<vmem>>, vector<12x23xbf16>
    %52 = arith.truncf %50 : vector<23x192xf32> to vector<23x192xbf16>
    %cst_37 = arith.constant dense<0.000000e+00> : vector<12x192xf32>
    %53 = tpu.matmul %51, %52, %cst_37 {dimension_numbers = #tpu.dot_dimension_numbers<[1], [0], [0], [1], [0, 0, 1, 1], [], []>} : vector<12x23xbf16>, vector<23x192xbf16>, vector<12x192xf32> -> vector<12x192xf32>
    %54 = arith.truncf %53 : vector<12x192xf32> to vector<12x192xbf16>
    %55 = vector.extract_strided_slice %54 {offsets = [0, 0], sizes = [10, 192], strides = [1, 1]} : vector<12x192xbf16> to vector<10x192xbf16>
    %c0_38 = arith.constant 0 : index
    %c0_39 = arith.constant 0 : index
    %c0_40 = arith.constant 0 : index
    %56 = vector.load %arg9[%c0_38, %c0_39, %c0_40] : memref<3x192x160xbf16, #tpu.memory_space<vmem>>, vector<1x192x160xbf16>
    %57 = vector.shape_cast %56 : vector<1x192x160xbf16> to vector<192x160xbf16>
    %cst_41 = arith.constant dense<0.000000e+00> : vector<10x160xf32>
    %58 = tpu.matmul %55, %57, %cst_41 {dimension_numbers = #tpu.dot_dimension_numbers<[1], [0], [0], [1], [0, 0, 1, 1], [], []>} : vector<10x192xbf16>, vector<192x160xbf16>, vector<10x160xf32> -> vector<10x160xf32>
    %59 = vector.extract_strided_slice %54 {offsets = [1, 0], sizes = [10, 192], strides = [1, 1]} : vector<12x192xbf16> to vector<10x192xbf16>
    %c1_42 = arith.constant 1 : index
    %c0_43 = arith.constant 0 : index
    %c0_44 = arith.constant 0 : index
    %60 = vector.load %arg9[%c1_42, %c0_43, %c0_44] : memref<3x192x160xbf16, #tpu.memory_space<vmem>>, vector<1x192x160xbf16>
    %61 = vector.shape_cast %60 : vector<1x192x160xbf16> to vector<192x160xbf16>
    %cst_45 = arith.constant dense<0.000000e+00> : vector<10x160xf32>
    %62 = tpu.matmul %59, %61, %cst_45 {dimension_numbers = #tpu.dot_dimension_numbers<[1], [0], [0], [1], [0, 0, 1, 1], [], []>} : vector<10x192xbf16>, vector<192x160xbf16>, vector<10x160xf32> -> vector<10x160xf32>
    %63 = arith.addf %58, %62 : vector<10x160xf32>
    %64 = vector.extract_strided_slice %54 {offsets = [2, 0], sizes = [10, 192], strides = [1, 1]} : vector<12x192xbf16> to vector<10x192xbf16>
    %c2_46 = arith.constant 2 : index
    %c0_47 = arith.constant 0 : index
    %c0_48 = arith.constant 0 : index
    %65 = vector.load %arg9[%c2_46, %c0_47, %c0_48] : memref<3x192x160xbf16, #tpu.memory_space<vmem>>, vector<1x192x160xbf16>
    %66 = vector.shape_cast %65 : vector<1x192x160xbf16> to vector<192x160xbf16>
    %cst_49 = arith.constant dense<0.000000e+00> : vector<10x160xf32>
    %67 = tpu.matmul %64, %66, %cst_49 {dimension_numbers = #tpu.dot_dimension_numbers<[1], [0], [0], [1], [0, 0, 1, 1], [], []>} : vector<10x192xbf16>, vector<192x160xbf16>, vector<10x160xf32> -> vector<10x160xf32>
    %68 = arith.addf %63, %67 : vector<10x160xf32>
    %c0_50 = arith.constant 0 : index
    %c0_51 = arith.constant 0 : index
    %69 = vector.load %arg10[%c0_50, %c0_51] : memref<1x160xf32, #tpu.memory_space<vmem>>, vector<1x160xf32>
    %70 = vector.broadcast %69 : vector<1x160xf32> to vector<10x160xf32>
    %71 = arith.addf %68, %70 : vector<10x160xf32>
    %cst_52 = arith.constant 0.000000e+00 : f32
    %72 = vector.broadcast %cst_52 : f32 to vector<10x160xf32>
    %73 = arith.maximumf %71, %72 : vector<10x160xf32>
    %74 = arith.truncf %73 : vector<10x160xf32> to vector<10x160xbf16>
    %75 = vector.extract_strided_slice %74 {offsets = [0, 0], sizes = [8, 160], strides = [1, 1]} : vector<10x160xbf16> to vector<8x160xbf16>
    %c0_53 = arith.constant 0 : index
    %c0_54 = arith.constant 0 : index
    %c0_55 = arith.constant 0 : index
    %76 = vector.load %arg11[%c0_53, %c0_54, %c0_55] : memref<3x160x256xbf16, #tpu.memory_space<vmem>>, vector<1x160x256xbf16>
    %77 = vector.shape_cast %76 : vector<1x160x256xbf16> to vector<160x256xbf16>
    %cst_56 = arith.constant dense<0.000000e+00> : vector<8x256xf32>
    %78 = tpu.matmul %75, %77, %cst_56 {dimension_numbers = #tpu.dot_dimension_numbers<[1], [0], [0], [1], [0, 0, 1, 1], [], []>} : vector<8x160xbf16>, vector<160x256xbf16>, vector<8x256xf32> -> vector<8x256xf32>
    %79 = vector.extract_strided_slice %74 {offsets = [1, 0], sizes = [8, 160], strides = [1, 1]} : vector<10x160xbf16> to vector<8x160xbf16>
    %c1_57 = arith.constant 1 : index
    %c0_58 = arith.constant 0 : index
    %c0_59 = arith.constant 0 : index
    %80 = vector.load %arg11[%c1_57, %c0_58, %c0_59] : memref<3x160x256xbf16, #tpu.memory_space<vmem>>, vector<1x160x256xbf16>
    %81 = vector.shape_cast %80 : vector<1x160x256xbf16> to vector<160x256xbf16>
    %cst_60 = arith.constant dense<0.000000e+00> : vector<8x256xf32>
    %82 = tpu.matmul %79, %81, %cst_60 {dimension_numbers = #tpu.dot_dimension_numbers<[1], [0], [0], [1], [0, 0, 1, 1], [], []>} : vector<8x160xbf16>, vector<160x256xbf16>, vector<8x256xf32> -> vector<8x256xf32>
    %83 = arith.addf %78, %82 : vector<8x256xf32>
    %84 = vector.extract_strided_slice %74 {offsets = [2, 0], sizes = [8, 160], strides = [1, 1]} : vector<10x160xbf16> to vector<8x160xbf16>
    %c2_61 = arith.constant 2 : index
    %c0_62 = arith.constant 0 : index
    %c0_63 = arith.constant 0 : index
    %85 = vector.load %arg11[%c2_61, %c0_62, %c0_63] : memref<3x160x256xbf16, #tpu.memory_space<vmem>>, vector<1x160x256xbf16>
    %86 = vector.shape_cast %85 : vector<1x160x256xbf16> to vector<160x256xbf16>
    %cst_64 = arith.constant dense<0.000000e+00> : vector<8x256xf32>
    %87 = tpu.matmul %84, %86, %cst_64 {dimension_numbers = #tpu.dot_dimension_numbers<[1], [0], [0], [1], [0, 0, 1, 1], [], []>} : vector<8x160xbf16>, vector<160x256xbf16>, vector<8x256xf32> -> vector<8x256xf32>
    %88 = arith.addf %83, %87 : vector<8x256xf32>
    %c0_65 = arith.constant 0 : index
    %c0_66 = arith.constant 0 : index
    %89 = vector.load %arg12[%c0_65, %c0_66] : memref<1x256xf32, #tpu.memory_space<vmem>>, vector<1x256xf32>
    %90 = vector.broadcast %89 : vector<1x256xf32> to vector<8x256xf32>
    %91 = arith.addf %88, %90 : vector<8x256xf32>
    %cst_67 = arith.constant 0.000000e+00 : f32
    %92 = vector.broadcast %cst_67 : f32 to vector<8x256xf32>
    %93 = arith.maximumf %91, %92 : vector<8x256xf32>
    %94 = arith.truncf %93 : vector<8x256xf32> to vector<8x256xbf16>
    %95 = vector.extract_strided_slice %94 {offsets = [0, 0], sizes = [6, 256], strides = [1, 1]} : vector<8x256xbf16> to vector<6x256xbf16>
    %c0_68 = arith.constant 0 : index
    %c0_69 = arith.constant 0 : index
    %c0_70 = arith.constant 0 : index
    %96 = vector.load %arg13[%c0_68, %c0_69, %c0_70] : memref<3x256x192xbf16, #tpu.memory_space<vmem>>, vector<1x256x192xbf16>
    %97 = vector.shape_cast %96 : vector<1x256x192xbf16> to vector<256x192xbf16>
    %cst_71 = arith.constant dense<0.000000e+00> : vector<6x192xf32>
    %98 = tpu.matmul %95, %97, %cst_71 {dimension_numbers = #tpu.dot_dimension_numbers<[1], [0], [0], [1], [0, 0, 1, 1], [], []>} : vector<6x256xbf16>, vector<256x192xbf16>, vector<6x192xf32> -> vector<6x192xf32>
    %99 = vector.extract_strided_slice %94 {offsets = [1, 0], sizes = [6, 256], strides = [1, 1]} : vector<8x256xbf16> to vector<6x256xbf16>
    %c1_72 = arith.constant 1 : index
    %c0_73 = arith.constant 0 : index
    %c0_74 = arith.constant 0 : index
    %100 = vector.load %arg13[%c1_72, %c0_73, %c0_74] : memref<3x256x192xbf16, #tpu.memory_space<vmem>>, vector<1x256x192xbf16>
    %101 = vector.shape_cast %100 : vector<1x256x192xbf16> to vector<256x192xbf16>
    %cst_75 = arith.constant dense<0.000000e+00> : vector<6x192xf32>
    %102 = tpu.matmul %99, %101, %cst_75 {dimension_numbers = #tpu.dot_dimension_numbers<[1], [0], [0], [1], [0, 0, 1, 1], [], []>} : vector<6x256xbf16>, vector<256x192xbf16>, vector<6x192xf32> -> vector<6x192xf32>
    %103 = arith.addf %98, %102 : vector<6x192xf32>
    %104 = vector.extract_strided_slice %94 {offsets = [2, 0], sizes = [6, 256], strides = [1, 1]} : vector<8x256xbf16> to vector<6x256xbf16>
    %c2_76 = arith.constant 2 : index
    %c0_77 = arith.constant 0 : index
    %c0_78 = arith.constant 0 : index
    %105 = vector.load %arg13[%c2_76, %c0_77, %c0_78] : memref<3x256x192xbf16, #tpu.memory_space<vmem>>, vector<1x256x192xbf16>
    %106 = vector.shape_cast %105 : vector<1x256x192xbf16> to vector<256x192xbf16>
    %cst_79 = arith.constant dense<0.000000e+00> : vector<6x192xf32>
    %107 = tpu.matmul %104, %106, %cst_79 {dimension_numbers = #tpu.dot_dimension_numbers<[1], [0], [0], [1], [0, 0, 1, 1], [], []>} : vector<6x256xbf16>, vector<256x192xbf16>, vector<6x192xf32> -> vector<6x192xf32>
    %108 = arith.addf %103, %107 : vector<6x192xf32>
    %c0_80 = arith.constant 0 : index
    %c0_81 = arith.constant 0 : index
    %109 = vector.load %arg14[%c0_80, %c0_81] : memref<1x192xf32, #tpu.memory_space<vmem>>, vector<1x192xf32>
    %110 = vector.broadcast %109 : vector<1x192xf32> to vector<6x192xf32>
    %111 = arith.addf %108, %110 : vector<6x192xf32>
    %cst_82 = arith.constant 0.000000e+00 : f32
    %112 = vector.broadcast %cst_82 : f32 to vector<6x192xf32>
    %113 = arith.maximumf %111, %112 : vector<6x192xf32>
    %114 = vector.extract_strided_slice %113 {offsets = [0, 0], sizes = [5, 192], strides = [1, 1]} : vector<6x192xf32> to vector<5x192xf32>
    %115 = vector.extract_strided_slice %113 {offsets = [1, 0], sizes = [5, 192], strides = [1, 1]} : vector<6x192xf32> to vector<5x192xf32>
    %116 = arith.maximumf %114, %115 : vector<5x192xf32>
    %117 = arith.truncf %116 : vector<5x192xf32> to vector<5x192xbf16>
    %c0_83 = arith.constant 0 : index
    %c0_84 = arith.constant 0 : index
    %118 = vector.load %arg16[%c0_83, %c0_84] : memref<192x96xbf16, #tpu.memory_space<vmem>>, vector<192x96xbf16>
    %cst_85 = arith.constant dense<0.000000e+00> : vector<5x96xf32>
    %119 = tpu.matmul %117, %118, %cst_85 {dimension_numbers = #tpu.dot_dimension_numbers<[1], [0], [0], [1], [0, 0, 1, 1], [], []>} : vector<5x192xbf16>, vector<192x96xbf16>, vector<5x96xf32> -> vector<5x96xf32>
    %c0_86 = arith.constant 0 : index
    %c0_87 = arith.constant 0 : index
    %120 = vector.load %arg17[%c0_86, %c0_87] : memref<192x96xbf16, #tpu.memory_space<vmem>>, vector<192x96xbf16>
    %cst_88 = arith.constant dense<0.000000e+00> : vector<5x96xf32>
    %121 = tpu.matmul %117, %120, %cst_88 {dimension_numbers = #tpu.dot_dimension_numbers<[1], [0], [0], [1], [0, 0, 1, 1], [], []>} : vector<5x192xbf16>, vector<192x96xbf16>, vector<5x96xf32> -> vector<5x96xf32>
    %122 = arith.maximumf %119, %121 : vector<5x96xf32>
    %c0_89 = arith.constant 0 : index
    %c0_90 = arith.constant 0 : index
    %123 = vector.load %arg15[%c0_89, %c0_90] : memref<3x5xbf16, #tpu.memory_space<vmem>>, vector<3x5xbf16>
    %124 = arith.truncf %122 : vector<5x96xf32> to vector<5x96xbf16>
    %cst_91 = arith.constant dense<0.000000e+00> : vector<3x96xf32>
    %125 = tpu.matmul %123, %124, %cst_91 {dimension_numbers = #tpu.dot_dimension_numbers<[1], [0], [0], [1], [0, 0, 1, 1], [], []>} : vector<3x5xbf16>, vector<5x96xbf16>, vector<3x96xf32> -> vector<3x96xf32>
    %c0_92 = arith.constant 0 : index
    %c0_93 = arith.constant 0 : index
    %126 = vector.load %arg18[%c0_92, %c0_93] : memref<10x3xbf16, #tpu.memory_space<vmem>>, vector<10x3xbf16>
    %127 = arith.truncf %125 : vector<3x96xf32> to vector<3x96xbf16>
    %cst_94 = arith.constant dense<0.000000e+00> : vector<10x96xf32>
    %128 = tpu.matmul %126, %127, %cst_94 {dimension_numbers = #tpu.dot_dimension_numbers<[1], [0], [0], [1], [0, 0, 1, 1], [], []>} : vector<10x3xbf16>, vector<3x96xbf16>, vector<10x96xf32> -> vector<10x96xf32>
    %129 = arith.truncf %128 : vector<10x96xf32> to vector<10x96xbf16>
    %130 = vector.extract_strided_slice %129 {offsets = [0, 0], sizes = [8, 96], strides = [1, 1]} : vector<10x96xbf16> to vector<8x96xbf16>
    %c0_95 = arith.constant 0 : index
    %c0_96 = arith.constant 0 : index
    %c0_97 = arith.constant 0 : index
    %131 = vector.load %arg19[%c0_95, %c0_96, %c0_97] : memref<3x96x256xbf16, #tpu.memory_space<vmem>>, vector<1x96x256xbf16>
    %132 = vector.shape_cast %131 : vector<1x96x256xbf16> to vector<96x256xbf16>
    %cst_98 = arith.constant dense<0.000000e+00> : vector<8x256xf32>
    %133 = tpu.matmul %130, %132, %cst_98 {dimension_numbers = #tpu.dot_dimension_numbers<[1], [0], [0], [1], [0, 0, 1, 1], [], []>} : vector<8x96xbf16>, vector<96x256xbf16>, vector<8x256xf32> -> vector<8x256xf32>
    %134 = vector.extract_strided_slice %129 {offsets = [1, 0], sizes = [8, 96], strides = [1, 1]} : vector<10x96xbf16> to vector<8x96xbf16>
    %c1_99 = arith.constant 1 : index
    %c0_100 = arith.constant 0 : index
    %c0_101 = arith.constant 0 : index
    %135 = vector.load %arg19[%c1_99, %c0_100, %c0_101] : memref<3x96x256xbf16, #tpu.memory_space<vmem>>, vector<1x96x256xbf16>
    %136 = vector.shape_cast %135 : vector<1x96x256xbf16> to vector<96x256xbf16>
    %cst_102 = arith.constant dense<0.000000e+00> : vector<8x256xf32>
    %137 = tpu.matmul %134, %136, %cst_102 {dimension_numbers = #tpu.dot_dimension_numbers<[1], [0], [0], [1], [0, 0, 1, 1], [], []>} : vector<8x96xbf16>, vector<96x256xbf16>, vector<8x256xf32> -> vector<8x256xf32>
    %138 = arith.addf %133, %137 : vector<8x256xf32>
    %139 = vector.extract_strided_slice %129 {offsets = [2, 0], sizes = [8, 96], strides = [1, 1]} : vector<10x96xbf16> to vector<8x96xbf16>
    %c2_103 = arith.constant 2 : index
    %c0_104 = arith.constant 0 : index
    %c0_105 = arith.constant 0 : index
    %140 = vector.load %arg19[%c2_103, %c0_104, %c0_105] : memref<3x96x256xbf16, #tpu.memory_space<vmem>>, vector<1x96x256xbf16>
    %141 = vector.shape_cast %140 : vector<1x96x256xbf16> to vector<96x256xbf16>
    %cst_106 = arith.constant dense<0.000000e+00> : vector<8x256xf32>
    %142 = tpu.matmul %139, %141, %cst_106 {dimension_numbers = #tpu.dot_dimension_numbers<[1], [0], [0], [1], [0, 0, 1, 1], [], []>} : vector<8x96xbf16>, vector<96x256xbf16>, vector<8x256xf32> -> vector<8x256xf32>
    %143 = arith.addf %138, %142 : vector<8x256xf32>
    %c0_107 = arith.constant 0 : index
    %c0_108 = arith.constant 0 : index
    %144 = vector.load %arg20[%c0_107, %c0_108] : memref<1x256xf32, #tpu.memory_space<vmem>>, vector<1x256xf32>
    %145 = vector.broadcast %144 : vector<1x256xf32> to vector<8x256xf32>
    %146 = arith.addf %143, %145 : vector<8x256xf32>
    %cst_109 = arith.constant 0.000000e+00 : f32
    %147 = vector.broadcast %cst_109 : f32 to vector<8x256xf32>
    %148 = arith.maximumf %146, %147 : vector<8x256xf32>
    %cst_110 = arith.constant 0.000000e+00 : f32
    %149 = vector.broadcast %cst_110 : f32 to vector<2x256xf32>
    %c0_111 = arith.constant 0 : index
    %c0_112 = arith.constant 0 : index
    %150 = vector.load %arg31[%c0_111, %c0_112] : memref<32x256xf32, #tpu.memory_space<vmem>>, vector<2x256xf32>
    tpu.vector_store %arg31[%c0_111, %c0_112], %149 {strides = array<i32>} : memref<32x256xf32, #tpu.memory_space<vmem>>, vector<2x256xf32>,
    %c2_113 = arith.constant 2 : index
    %c0_114 = arith.constant 0 : index
    %151 = vector.load %arg31[%c2_113, %c0_114] : memref<32x256xf32, #tpu.memory_space<vmem>>, vector<8x256xf32>
    tpu.vector_store %arg31[%c2_113, %c0_114], %148 {strides = array<i32>} : memref<32x256xf32, #tpu.memory_space<vmem>>, vector<8x256xf32>,
    %c10 = arith.constant 10 : index
    %c0_115 = arith.constant 0 : index
    %152 = vector.load %arg31[%c10, %c0_115] : memref<32x256xf32, #tpu.memory_space<vmem>>, vector<2x256xf32>
    tpu.vector_store %arg31[%c10, %c0_115], %149 {strides = array<i32>} : memref<32x256xf32, #tpu.memory_space<vmem>>, vector<2x256xf32>,
    %c0_116 = arith.constant 0 : index
    %c0_117 = arith.constant 0 : index
    %153 = vector.load %arg31[%c0_116, %c0_117] : memref<32x256xf32, #tpu.memory_space<vmem>>, vector<12x256xf32>
    %154 = arith.truncf %153 : vector<12x256xf32> to vector<12x256xbf16>
    %155 = vector.extract_strided_slice %154 {offsets = [0, 0], sizes = [10, 256], strides = [1, 1]} : vector<12x256xbf16> to vector<10x256xbf16>
    %c0_118 = arith.constant 0 : index
    %c0_119 = arith.constant 0 : index
    %c0_120 = arith.constant 0 : index
    %156 = vector.load %arg21[%c0_118, %c0_119, %c0_120] : memref<3x256x160xbf16, #tpu.memory_space<vmem>>, vector<1x256x160xbf16>
    %157 = vector.shape_cast %156 : vector<1x256x160xbf16> to vector<256x160xbf16>
    %cst_121 = arith.constant dense<0.000000e+00> : vector<10x160xf32>
    %158 = tpu.matmul %155, %157, %cst_121 {dimension_numbers = #tpu.dot_dimension_numbers<[1], [0], [0], [1], [0, 0, 1, 1], [], []>} : vector<10x256xbf16>, vector<256x160xbf16>, vector<10x160xf32> -> vector<10x160xf32>
    %159 = vector.extract_strided_slice %154 {offsets = [1, 0], sizes = [10, 256], strides = [1, 1]} : vector<12x256xbf16> to vector<10x256xbf16>
    %c1_122 = arith.constant 1 : index
    %c0_123 = arith.constant 0 : index
    %c0_124 = arith.constant 0 : index
    %160 = vector.load %arg21[%c1_122, %c0_123, %c0_124] : memref<3x256x160xbf16, #tpu.memory_space<vmem>>, vector<1x256x160xbf16>
    %161 = vector.shape_cast %160 : vector<1x256x160xbf16> to vector<256x160xbf16>
    %cst_125 = arith.constant dense<0.000000e+00> : vector<10x160xf32>
    %162 = tpu.matmul %159, %161, %cst_125 {dimension_numbers = #tpu.dot_dimension_numbers<[1], [0], [0], [1], [0, 0, 1, 1], [], []>} : vector<10x256xbf16>, vector<256x160xbf16>, vector<10x160xf32> -> vector<10x160xf32>
    %163 = arith.addf %158, %162 : vector<10x160xf32>
    %164 = vector.extract_strided_slice %154 {offsets = [2, 0], sizes = [10, 256], strides = [1, 1]} : vector<12x256xbf16> to vector<10x256xbf16>
    %c2_126 = arith.constant 2 : index
    %c0_127 = arith.constant 0 : index
    %c0_128 = arith.constant 0 : index
    %165 = vector.load %arg21[%c2_126, %c0_127, %c0_128] : memref<3x256x160xbf16, #tpu.memory_space<vmem>>, vector<1x256x160xbf16>
    %166 = vector.shape_cast %165 : vector<1x256x160xbf16> to vector<256x160xbf16>
    %cst_129 = arith.constant dense<0.000000e+00> : vector<10x160xf32>
    %167 = tpu.matmul %164, %166, %cst_129 {dimension_numbers = #tpu.dot_dimension_numbers<[1], [0], [0], [1], [0, 0, 1, 1], [], []>} : vector<10x256xbf16>, vector<256x160xbf16>, vector<10x160xf32> -> vector<10x160xf32>
    %168 = arith.addf %163, %167 : vector<10x160xf32>
    %c0_130 = arith.constant 0 : index
    %c0_131 = arith.constant 0 : index
    %169 = vector.load %arg22[%c0_130, %c0_131] : memref<1x160xf32, #tpu.memory_space<vmem>>, vector<1x160xf32>
    %170 = vector.broadcast %169 : vector<1x160xf32> to vector<10x160xf32>
    %171 = arith.addf %168, %170 : vector<10x160xf32>
    %cst_132 = arith.constant 0.000000e+00 : f32
    %172 = vector.broadcast %cst_132 : f32 to vector<10x160xf32>
    %173 = arith.maximumf %171, %172 : vector<10x160xf32>
    %cst_133 = arith.constant 0.000000e+00 : f32
    %174 = vector.broadcast %cst_133 : f32 to vector<2x160xf32>
    %c0_134 = arith.constant 0 : index
    %c0_135 = arith.constant 0 : index
    %175 = vector.load %arg31[%c0_134, %c0_135] : memref<32x256xf32, #tpu.memory_space<vmem>>, vector<2x160xf32>
    tpu.vector_store %arg31[%c0_134, %c0_135], %174 {strides = array<i32>} : memref<32x256xf32, #tpu.memory_space<vmem>>, vector<2x160xf32>,
    %c2_136 = arith.constant 2 : index
    %c0_137 = arith.constant 0 : index
    %176 = vector.load %arg31[%c2_136, %c0_137] : memref<32x256xf32, #tpu.memory_space<vmem>>, vector<10x160xf32>
    tpu.vector_store %arg31[%c2_136, %c0_137], %173 {strides = array<i32>} : memref<32x256xf32, #tpu.memory_space<vmem>>, vector<10x160xf32>,
    %c12 = arith.constant 12 : index
    %c0_138 = arith.constant 0 : index
    %177 = vector.load %arg31[%c12, %c0_138] : memref<32x256xf32, #tpu.memory_space<vmem>>, vector<2x160xf32>
    tpu.vector_store %arg31[%c12, %c0_138], %174 {strides = array<i32>} : memref<32x256xf32, #tpu.memory_space<vmem>>, vector<2x160xf32>,
    %c0_139 = arith.constant 0 : index
    %c0_140 = arith.constant 0 : index
    %178 = vector.load %arg31[%c0_139, %c0_140] : memref<32x256xf32, #tpu.memory_space<vmem>>, vector<14x160xf32>
    %179 = arith.truncf %178 : vector<14x160xf32> to vector<14x160xbf16>
    %180 = vector.extract_strided_slice %179 {offsets = [0, 0], sizes = [12, 160], strides = [1, 1]} : vector<14x160xbf16> to vector<12x160xbf16>
    %c0_141 = arith.constant 0 : index
    %c0_142 = arith.constant 0 : index
    %c0_143 = arith.constant 0 : index
    %181 = vector.load %arg23[%c0_141, %c0_142, %c0_143] : memref<3x160x192xbf16, #tpu.memory_space<vmem>>, vector<1x160x192xbf16>
    %182 = vector.shape_cast %181 : vector<1x160x192xbf16> to vector<160x192xbf16>
    %cst_144 = arith.constant dense<0.000000e+00> : vector<12x192xf32>
    %183 = tpu.matmul %180, %182, %cst_144 {dimension_numbers = #tpu.dot_dimension_numbers<[1], [0], [0], [1], [0, 0, 1, 1], [], []>} : vector<12x160xbf16>, vector<160x192xbf16>, vector<12x192xf32> -> vector<12x192xf32>
    %184 = vector.extract_strided_slice %179 {offsets = [1, 0], sizes = [12, 160], strides = [1, 1]} : vector<14x160xbf16> to vector<12x160xbf16>
    %c1_145 = arith.constant 1 : index
    %c0_146 = arith.constant 0 : index
    %c0_147 = arith.constant 0 : index
    %185 = vector.load %arg23[%c1_145, %c0_146, %c0_147] : memref<3x160x192xbf16, #tpu.memory_space<vmem>>, vector<1x160x192xbf16>
    %186 = vector.shape_cast %185 : vector<1x160x192xbf16> to vector<160x192xbf16>
    %cst_148 = arith.constant dense<0.000000e+00> : vector<12x192xf32>
    %187 = tpu.matmul %184, %186, %cst_148 {dimension_numbers = #tpu.dot_dimension_numbers<[1], [0], [0], [1], [0, 0, 1, 1], [], []>} : vector<12x160xbf16>, vector<160x192xbf16>, vector<12x192xf32> -> vector<12x192xf32>
    %188 = arith.addf %183, %187 : vector<12x192xf32>
    %189 = vector.extract_strided_slice %179 {offsets = [2, 0], sizes = [12, 160], strides = [1, 1]} : vector<14x160xbf16> to vector<12x160xbf16>
    %c2_149 = arith.constant 2 : index
    %c0_150 = arith.constant 0 : index
    %c0_151 = arith.constant 0 : index
    %190 = vector.load %arg23[%c2_149, %c0_150, %c0_151] : memref<3x160x192xbf16, #tpu.memory_space<vmem>>, vector<1x160x192xbf16>
    %191 = vector.shape_cast %190 : vector<1x160x192xbf16> to vector<160x192xbf16>
    %cst_152 = arith.constant dense<0.000000e+00> : vector<12x192xf32>
    %192 = tpu.matmul %189, %191, %cst_152 {dimension_numbers = #tpu.dot_dimension_numbers<[1], [0], [0], [1], [0, 0, 1, 1], [], []>} : vector<12x160xbf16>, vector<160x192xbf16>, vector<12x192xf32> -> vector<12x192xf32>
    %193 = arith.addf %188, %192 : vector<12x192xf32>
    %c0_153 = arith.constant 0 : index
    %c0_154 = arith.constant 0 : index
    %194 = vector.load %arg24[%c0_153, %c0_154] : memref<1x192xf32, #tpu.memory_space<vmem>>, vector<1x192xf32>
    %195 = vector.broadcast %194 : vector<1x192xf32> to vector<12x192xf32>
    %196 = arith.addf %193, %195 : vector<12x192xf32>
    %cst_155 = arith.constant 0.000000e+00 : f32
    %197 = vector.broadcast %cst_155 : f32 to vector<12x192xf32>
    %198 = arith.maximumf %196, %197 : vector<12x192xf32>
    %c0_156 = arith.constant 0 : index
    %c0_157 = arith.constant 0 : index
    %199 = vector.load %arg25[%c0_156, %c0_157] : memref<28x12xbf16, #tpu.memory_space<vmem>>, vector<28x12xbf16>
    %200 = arith.truncf %198 : vector<12x192xf32> to vector<12x192xbf16>
    %cst_158 = arith.constant dense<0.000000e+00> : vector<28x192xf32>
    %201 = tpu.matmul %199, %200, %cst_158 {dimension_numbers = #tpu.dot_dimension_numbers<[1], [0], [0], [1], [0, 0, 1, 1], [], []>} : vector<28x12xbf16>, vector<12x192xbf16>, vector<28x192xf32> -> vector<28x192xf32>
    %202 = arith.truncf %201 : vector<28x192xf32> to vector<28x192xbf16>
    %203 = vector.extract_strided_slice %202 {offsets = [0, 0], sizes = [26, 192], strides = [1, 1]} : vector<28x192xbf16> to vector<26x192xbf16>
    %c0_159 = arith.constant 0 : index
    %c0_160 = arith.constant 0 : index
    %c0_161 = arith.constant 0 : index
    %204 = vector.load %arg26[%c0_159, %c0_160, %c0_161] : memref<3x192x208xbf16, #tpu.memory_space<vmem>>, vector<1x192x208xbf16>
    %205 = vector.shape_cast %204 : vector<1x192x208xbf16> to vector<192x208xbf16>
    %cst_162 = arith.constant dense<0.000000e+00> : vector<26x208xf32>
    %206 = tpu.matmul %203, %205, %cst_162 {dimension_numbers = #tpu.dot_dimension_numbers<[1], [0], [0], [1], [0, 0, 1, 1], [], []>} : vector<26x192xbf16>, vector<192x208xbf16>, vector<26x208xf32> -> vector<26x208xf32>
    %207 = vector.extract_strided_slice %202 {offsets = [1, 0], sizes = [26, 192], strides = [1, 1]} : vector<28x192xbf16> to vector<26x192xbf16>
    %c1_163 = arith.constant 1 : index
    %c0_164 = arith.constant 0 : index
    %c0_165 = arith.constant 0 : index
    %208 = vector.load %arg26[%c1_163, %c0_164, %c0_165] : memref<3x192x208xbf16, #tpu.memory_space<vmem>>, vector<1x192x208xbf16>
    %209 = vector.shape_cast %208 : vector<1x192x208xbf16> to vector<192x208xbf16>
    %cst_166 = arith.constant dense<0.000000e+00> : vector<26x208xf32>
    %210 = tpu.matmul %207, %209, %cst_166 {dimension_numbers = #tpu.dot_dimension_numbers<[1], [0], [0], [1], [0, 0, 1, 1], [], []>} : vector<26x192xbf16>, vector<192x208xbf16>, vector<26x208xf32> -> vector<26x208xf32>
    %211 = arith.addf %206, %210 : vector<26x208xf32>
    %212 = vector.extract_strided_slice %202 {offsets = [2, 0], sizes = [26, 192], strides = [1, 1]} : vector<28x192xbf16> to vector<26x192xbf16>
    %c2_167 = arith.constant 2 : index
    %c0_168 = arith.constant 0 : index
    %c0_169 = arith.constant 0 : index
    %213 = vector.load %arg26[%c2_167, %c0_168, %c0_169] : memref<3x192x208xbf16, #tpu.memory_space<vmem>>, vector<1x192x208xbf16>
    %214 = vector.shape_cast %213 : vector<1x192x208xbf16> to vector<192x208xbf16>
    %cst_170 = arith.constant dense<0.000000e+00> : vector<26x208xf32>
    %215 = tpu.matmul %212, %214, %cst_170 {dimension_numbers = #tpu.dot_dimension_numbers<[1], [0], [0], [1], [0, 0, 1, 1], [], []>} : vector<26x192xbf16>, vector<192x208xbf16>, vector<26x208xf32> -> vector<26x208xf32>
    %216 = arith.addf %211, %215 : vector<26x208xf32>
    %c0_171 = arith.constant 0 : index
    %c0_172 = arith.constant 0 : index
    %217 = vector.load %arg27[%c0_171, %c0_172] : memref<1x208xf32, #tpu.memory_space<vmem>>, vector<1x208xf32>
    %218 = vector.broadcast %217 : vector<1x208xf32> to vector<26x208xf32>
    %219 = arith.addf %216, %218 : vector<26x208xf32>
    %cst_173 = arith.constant 0.000000e+00 : f32
    %220 = vector.broadcast %cst_173 : f32 to vector<26x208xf32>
    %221 = arith.maximumf %219, %220 : vector<26x208xf32>
    %cst_174 = arith.constant 0.000000e+00 : f32
    %222 = vector.broadcast %cst_174 : f32 to vector<2x208xf32>
    %c0_175 = arith.constant 0 : index
    %c0_176 = arith.constant 0 : index
    %223 = vector.load %arg31[%c0_175, %c0_176] : memref<32x256xf32, #tpu.memory_space<vmem>>, vector<2x208xf32>
    tpu.vector_store %arg31[%c0_175, %c0_176], %222 {strides = array<i32>} : memref<32x256xf32, #tpu.memory_space<vmem>>, vector<2x208xf32>,
    %c2_177 = arith.constant 2 : index
    %c0_178 = arith.constant 0 : index
    %224 = vector.load %arg31[%c2_177, %c0_178] : memref<32x256xf32, #tpu.memory_space<vmem>>, vector<26x208xf32>
    tpu.vector_store %arg31[%c2_177, %c0_178], %221 {strides = array<i32>} : memref<32x256xf32, #tpu.memory_space<vmem>>, vector<26x208xf32>,
    %c28 = arith.constant 28 : index
    %c0_179 = arith.constant 0 : index
    %225 = vector.load %arg31[%c28, %c0_179] : memref<32x256xf32, #tpu.memory_space<vmem>>, vector<2x208xf32>
    tpu.vector_store %arg31[%c28, %c0_179], %222 {strides = array<i32>} : memref<32x256xf32, #tpu.memory_space<vmem>>, vector<2x208xf32>,
    %c0_180 = arith.constant 0 : index
    %c0_181 = arith.constant 0 : index
    %226 = vector.load %arg31[%c0_180, %c0_181] : memref<32x256xf32, #tpu.memory_space<vmem>>, vector<30x208xf32>
    %227 = arith.truncf %226 : vector<30x208xf32> to vector<30x208xbf16>
    %228 = vector.extract_strided_slice %227 {offsets = [0, 0], sizes = [28, 208], strides = [1, 1]} : vector<30x208xbf16> to vector<28x208xbf16>
    %c0_182 = arith.constant 0 : index
    %c0_183 = arith.constant 0 : index
    %c0_184 = arith.constant 0 : index
    %229 = vector.load %arg28[%c0_182, %c0_183, %c0_184] : memref<3x208x28xbf16, #tpu.memory_space<vmem>>, vector<1x208x28xbf16>
    %230 = vector.shape_cast %229 : vector<1x208x28xbf16> to vector<208x28xbf16>
    %cst_185 = arith.constant dense<0.000000e+00> : vector<28x28xf32>
    %231 = tpu.matmul %228, %230, %cst_185 {dimension_numbers = #tpu.dot_dimension_numbers<[1], [0], [0], [1], [0, 0, 1, 1], [], []>} : vector<28x208xbf16>, vector<208x28xbf16>, vector<28x28xf32> -> vector<28x28xf32>
    %232 = vector.extract_strided_slice %227 {offsets = [1, 0], sizes = [28, 208], strides = [1, 1]} : vector<30x208xbf16> to vector<28x208xbf16>
    %c1_186 = arith.constant 1 : index
    %c0_187 = arith.constant 0 : index
    %c0_188 = arith.constant 0 : index
    %233 = vector.load %arg28[%c1_186, %c0_187, %c0_188] : memref<3x208x28xbf16, #tpu.memory_space<vmem>>, vector<1x208x28xbf16>
    %234 = vector.shape_cast %233 : vector<1x208x28xbf16> to vector<208x28xbf16>
    %cst_189 = arith.constant dense<0.000000e+00> : vector<28x28xf32>
    %235 = tpu.matmul %232, %234, %cst_189 {dimension_numbers = #tpu.dot_dimension_numbers<[1], [0], [0], [1], [0, 0, 1, 1], [], []>} : vector<28x208xbf16>, vector<208x28xbf16>, vector<28x28xf32> -> vector<28x28xf32>
    %236 = arith.addf %231, %235 : vector<28x28xf32>
    %237 = vector.extract_strided_slice %227 {offsets = [2, 0], sizes = [28, 208], strides = [1, 1]} : vector<30x208xbf16> to vector<28x208xbf16>
    %c2_190 = arith.constant 2 : index
    %c0_191 = arith.constant 0 : index
    %c0_192 = arith.constant 0 : index
    %238 = vector.load %arg28[%c2_190, %c0_191, %c0_192] : memref<3x208x28xbf16, #tpu.memory_space<vmem>>, vector<1x208x28xbf16>
    %239 = vector.shape_cast %238 : vector<1x208x28xbf16> to vector<208x28xbf16>
    %cst_193 = arith.constant dense<0.000000e+00> : vector<28x28xf32>
    %240 = tpu.matmul %237, %239, %cst_193 {dimension_numbers = #tpu.dot_dimension_numbers<[1], [0], [0], [1], [0, 0, 1, 1], [], []>} : vector<28x208xbf16>, vector<208x28xbf16>, vector<28x28xf32> -> vector<28x28xf32>
    %241 = arith.addf %236, %240 : vector<28x28xf32>
    %c0_194 = arith.constant 0 : index
    %c0_195 = arith.constant 0 : index
    %242 = vector.load %arg29[%c0_194, %c0_195] : memref<1x28xf32, #tpu.memory_space<vmem>>, vector<1x28xf32>
    %243 = vector.broadcast %242 : vector<1x28xf32> to vector<28x28xf32>
    %244 = arith.addf %241, %243 : vector<28x28xf32>
    %c0_196 = arith.constant 0 : index
    %c0_197 = arith.constant 0 : index
    %c0_198 = arith.constant 0 : index
    %245 = vector.load %arg30[%c0_196, %c0_197, %c0_198] : memref<1x28x28xf32, #tpu.memory_space<vmem>>, vector<1x28x28xf32>
    %246 = vector.shape_cast %245 : vector<1x28x28xf32> to vector<28x28xf32>
    %247 = vector.shape_cast %244 : vector<28x28xf32> to vector<1x28x28xf32>
    tpu.vector_store %arg30[%c0_196, %c0_197, %c0_198], %247 {strides = array<i32>} : memref<1x28x28xf32, #tpu.memory_space<vmem>>, vector<1x28x28xf32>,
    return
  }
  func.func @transform_0(%arg0: i32) -> (i32, i32, i32) {
    %c0_i32 = arith.constant 0 : i32
    %c0_i32_0 = arith.constant 0 : i32
    %c0_i32_1 = arith.constant 0 : i32
    return %arg0, %c0_i32, %c0_i32_0 : i32, i32, i32
  }
  func.func @transform_1(%arg0: i32) -> (i32, i32, i32) {
    %c0_i32 = arith.constant 0 : i32
    %c0_i32_0 = arith.constant 0 : i32
    %c0_i32_1 = arith.constant 0 : i32
    %c0_i32_2 = arith.constant 0 : i32
    return %c0_i32, %c0_i32_0, %c0_i32_1 : i32, i32, i32
  }
  func.func @transform_2(%arg0: i32) -> (i32, i32) {
    %c0_i32 = arith.constant 0 : i32
    %c0_i32_0 = arith.constant 0 : i32
    %c0_i32_1 = arith.constant 0 : i32
    return %c0_i32, %c0_i32_0 : i32, i32
  }
  func.func @transform_3(%arg0: i32) -> (i32, i32, i32) {
    %c0_i32 = arith.constant 0 : i32
    %c0_i32_0 = arith.constant 0 : i32
    %c0_i32_1 = arith.constant 0 : i32
    %c0_i32_2 = arith.constant 0 : i32
    return %c0_i32, %c0_i32_0, %c0_i32_1 : i32, i32, i32
  }
  func.func @transform_4(%arg0: i32) -> (i32, i32) {
    %c0_i32 = arith.constant 0 : i32
    %c0_i32_0 = arith.constant 0 : i32
    %c0_i32_1 = arith.constant 0 : i32
    return %c0_i32, %c0_i32_0 : i32, i32
  }
  func.func @transform_5(%arg0: i32) -> (i32, i32) {
    %c0_i32 = arith.constant 0 : i32
    %c0_i32_0 = arith.constant 0 : i32
    %c0_i32_1 = arith.constant 0 : i32
    return %c0_i32, %c0_i32_0 : i32, i32
  }
  func.func @transform_6(%arg0: i32) -> (i32, i32) {
    %c0_i32 = arith.constant 0 : i32
    %c0_i32_0 = arith.constant 0 : i32
    %c0_i32_1 = arith.constant 0 : i32
    return %c0_i32, %c0_i32_0 : i32, i32
  }
  func.func @transform_7(%arg0: i32) -> (i32, i32) {
    %c0_i32 = arith.constant 0 : i32
    %c0_i32_0 = arith.constant 0 : i32
    %c0_i32_1 = arith.constant 0 : i32
    return %c0_i32, %c0_i32_0 : i32, i32
  }
  func.func @transform_8(%arg0: i32) -> (i32, i32, i32) {
    %c0_i32 = arith.constant 0 : i32
    %c0_i32_0 = arith.constant 0 : i32
    %c0_i32_1 = arith.constant 0 : i32
    %c0_i32_2 = arith.constant 0 : i32
    return %c0_i32, %c0_i32_0, %c0_i32_1 : i32, i32, i32
  }
  func.func @transform_9(%arg0: i32) -> (i32, i32) {
    %c0_i32 = arith.constant 0 : i32
    %c0_i32_0 = arith.constant 0 : i32
    %c0_i32_1 = arith.constant 0 : i32
    return %c0_i32, %c0_i32_0 : i32, i32
  }
  func.func @transform_10(%arg0: i32) -> (i32, i32, i32) {
    %c0_i32 = arith.constant 0 : i32
    %c0_i32_0 = arith.constant 0 : i32
    %c0_i32_1 = arith.constant 0 : i32
    %c0_i32_2 = arith.constant 0 : i32
    return %c0_i32, %c0_i32_0, %c0_i32_1 : i32, i32, i32
  }
  func.func @transform_11(%arg0: i32) -> (i32, i32) {
    %c0_i32 = arith.constant 0 : i32
    %c0_i32_0 = arith.constant 0 : i32
    %c0_i32_1 = arith.constant 0 : i32
    return %c0_i32, %c0_i32_0 : i32, i32
  }
  func.func @transform_12(%arg0: i32) -> (i32, i32, i32) {
    %c0_i32 = arith.constant 0 : i32
    %c0_i32_0 = arith.constant 0 : i32
    %c0_i32_1 = arith.constant 0 : i32
    %c0_i32_2 = arith.constant 0 : i32
    return %c0_i32, %c0_i32_0, %c0_i32_1 : i32, i32, i32
  }
  func.func @transform_13(%arg0: i32) -> (i32, i32) {
    %c0_i32 = arith.constant 0 : i32
    %c0_i32_0 = arith.constant 0 : i32
    %c0_i32_1 = arith.constant 0 : i32
    return %c0_i32, %c0_i32_0 : i32, i32
  }
  func.func @transform_14(%arg0: i32) -> (i32, i32) {
    %c0_i32 = arith.constant 0 : i32
    %c0_i32_0 = arith.constant 0 : i32
    %c0_i32_1 = arith.constant 0 : i32
    return %c0_i32, %c0_i32_0 : i32, i32
  }
  func.func @transform_15(%arg0: i32) -> (i32, i32) {
    %c0_i32 = arith.constant 0 : i32
    %c0_i32_0 = arith.constant 0 : i32
    %c0_i32_1 = arith.constant 0 : i32
    return %c0_i32, %c0_i32_0 : i32, i32
  }
  func.func @transform_16(%arg0: i32) -> (i32, i32) {
    %c0_i32 = arith.constant 0 : i32
    %c0_i32_0 = arith.constant 0 : i32
    %c0_i32_1 = arith.constant 0 : i32
    return %c0_i32, %c0_i32_0 : i32, i32
  }
  func.func @transform_17(%arg0: i32) -> (i32, i32) {
    %c0_i32 = arith.constant 0 : i32
    %c0_i32_0 = arith.constant 0 : i32
    %c0_i32_1 = arith.constant 0 : i32
    return %c0_i32, %c0_i32_0 : i32, i32
  }
  func.func @transform_18(%arg0: i32) -> (i32, i32, i32) {
    %c0_i32 = arith.constant 0 : i32
    %c0_i32_0 = arith.constant 0 : i32
    %c0_i32_1 = arith.constant 0 : i32
    %c0_i32_2 = arith.constant 0 : i32
    return %c0_i32, %c0_i32_0, %c0_i32_1 : i32, i32, i32
  }
  func.func @transform_19(%arg0: i32) -> (i32, i32) {
    %c0_i32 = arith.constant 0 : i32
    %c0_i32_0 = arith.constant 0 : i32
    %c0_i32_1 = arith.constant 0 : i32
    return %c0_i32, %c0_i32_0 : i32, i32
  }
  func.func @transform_20(%arg0: i32) -> (i32, i32, i32) {
    %c0_i32 = arith.constant 0 : i32
    %c0_i32_0 = arith.constant 0 : i32
    %c0_i32_1 = arith.constant 0 : i32
    %c0_i32_2 = arith.constant 0 : i32
    return %c0_i32, %c0_i32_0, %c0_i32_1 : i32, i32, i32
  }
  func.func @transform_21(%arg0: i32) -> (i32, i32) {
    %c0_i32 = arith.constant 0 : i32
    %c0_i32_0 = arith.constant 0 : i32
    %c0_i32_1 = arith.constant 0 : i32
    return %c0_i32, %c0_i32_0 : i32, i32
  }
  func.func @transform_22(%arg0: i32) -> (i32, i32, i32) {
    %c0_i32 = arith.constant 0 : i32
    %c0_i32_0 = arith.constant 0 : i32
    %c0_i32_1 = arith.constant 0 : i32
    %c0_i32_2 = arith.constant 0 : i32
    return %c0_i32, %c0_i32_0, %c0_i32_1 : i32, i32, i32
  }
  func.func @transform_23(%arg0: i32) -> (i32, i32) {
    %c0_i32 = arith.constant 0 : i32
    %c0_i32_0 = arith.constant 0 : i32
    %c0_i32_1 = arith.constant 0 : i32
    return %c0_i32, %c0_i32_0 : i32, i32
  }
  func.func @transform_24(%arg0: i32) -> (i32, i32) {
    %c0_i32 = arith.constant 0 : i32
    %c0_i32_0 = arith.constant 0 : i32
    %c0_i32_1 = arith.constant 0 : i32
    return %c0_i32, %c0_i32_0 : i32, i32
  }
  func.func @transform_25(%arg0: i32) -> (i32, i32, i32) {
    %c0_i32 = arith.constant 0 : i32
    %c0_i32_0 = arith.constant 0 : i32
    %c0_i32_1 = arith.constant 0 : i32
    %c0_i32_2 = arith.constant 0 : i32
    return %c0_i32, %c0_i32_0, %c0_i32_1 : i32, i32, i32
  }
  func.func @transform_26(%arg0: i32) -> (i32, i32) {
    %c0_i32 = arith.constant 0 : i32
    %c0_i32_0 = arith.constant 0 : i32
    %c0_i32_1 = arith.constant 0 : i32
    return %c0_i32, %c0_i32_0 : i32, i32
  }
  func.func @transform_27(%arg0: i32) -> (i32, i32, i32) {
    %c0_i32 = arith.constant 0 : i32
    %c0_i32_0 = arith.constant 0 : i32
    %c0_i32_1 = arith.constant 0 : i32
    %c0_i32_2 = arith.constant 0 : i32
    return %c0_i32, %c0_i32_0, %c0_i32_1 : i32, i32, i32
  }
  func.func @transform_28(%arg0: i32) -> (i32, i32) {
    %c0_i32 = arith.constant 0 : i32
    %c0_i32_0 = arith.constant 0 : i32
    %c0_i32_1 = arith.constant 0 : i32
    return %c0_i32, %c0_i32_0 : i32, i32
  }
  func.func @transform_29(%arg0: i32) -> (i32, i32, i32) {
    %c0_i32 = arith.constant 0 : i32
    %c0_i32_0 = arith.constant 0 : i32
    %c0_i32_1 = arith.constant 0 : i32
    return %arg0, %c0_i32, %c0_i32_0 : i32, i32, i32
  }
}

</mosaic_0001>

<llo_original>
// kernel: neuralnet_forward.1
$region0: #{neuralnet_forward.1}
  #allocation0 [shape = 'u32[]', space=smem, size = 0x4, offset = 0x4, fixed_abs, tag = 'smem constant byte address 0x4 - core index']
  #allocation1 [shape = 'u32[144,128]{1,0:T(1,128)}', space=vmem, size = 0x12000, scoped, tag = 'internal scratch']
  #allocation2 [shape = 'f32[32,256]{1,0:T(8,128)}', space=vmem, size = 0x8000, scoped, tag = 'scratch operand']
  %s0 = inlined_call_operand.smem [shape: u32[30], index: -1, kind: input, shape index: {}]
  %s1 = sld [smem:[%s0]]
  %s2 = scalar_lea.smem %s0, 1
  %s3 = sld [smem:[%s2]]
  %s4 = scalar_lea.smem %s0, 2
  %s5 = sld [smem:[%s4]]
  %s6 = scalar_lea.smem %s0, 3
  %s7 = sld [smem:[%s6]]
  %s8 = scalar_lea.smem %s0, 4
  %s9 = sld [smem:[%s8]]
  %s10 = scalar_lea.smem %s0, 5
  %s11 = sld [smem:[%s10]]
  %s12 = scalar_lea.smem %s0, 6
  %s13 = sld [smem:[%s12]]
  %s14 = scalar_lea.smem %s0, 7
  %s15 = sld [smem:[%s14]]
  %s16 = scalar_lea.smem %s0, 8
  %s17 = sld [smem:[%s16]]
  %s18 = scalar_lea.smem %s0, 9
  %s19 = sld [smem:[%s18]]
  %s20 = scalar_lea.smem %s0, 10
  %s21 = sld [smem:[%s20]]
  %s22 = scalar_lea.smem %s0, 11
  %s23 = sld [smem:[%s22]]
  %s24 = scalar_lea.smem %s0, 12
  %s25 = sld [smem:[%s24]]
  %s26 = scalar_lea.smem %s0, 13
  %s27 = sld [smem:[%s26]]
  %s28 = scalar_lea.smem %s0, 14
  %s29 = sld [smem:[%s28]]
  %s30 = scalar_lea.smem %s0, 15
  %s31 = sld [smem:[%s30]]
  %s32 = scalar_lea.smem %s0, 16
  %s33 = sld [smem:[%s32]]
  %s34 = scalar_lea.smem %s0, 17
  %s35 = sld [smem:[%s34]]
  %s36 = scalar_lea.smem %s0, 18
  %s37 = sld [smem:[%s36]]
  %s38 = scalar_lea.smem %s0, 19
  %s39 = sld [smem:[%s38]]
  %s40 = scalar_lea.smem %s0, 20
  %s41 = sld [smem:[%s40]]
  %s42 = scalar_lea.smem %s0, 21
  %s43 = sld [smem:[%s42]]
  %s44 = scalar_lea.smem %s0, 22
  %s45 = sld [smem:[%s44]]
  %s46 = scalar_lea.smem %s0, 23
  %s47 = sld [smem:[%s46]]
  %s48 = scalar_lea.smem %s0, 24
  %s49 = sld [smem:[%s48]]
  %s50 = scalar_lea.smem %s0, 25
  %s51 = sld [smem:[%s50]]
  %s52 = scalar_lea.smem %s0, 26
  %s53 = sld [smem:[%s52]]
  %s54 = scalar_lea.smem %s0, 27
  %s55 = sld [smem:[%s54]]
  %s56 = scalar_lea.smem %s0, 28
  %s57 = sld [smem:[%s56]]
  %s58 = scalar_lea.smem %s0, 29
  %s59 = sld [smem:[%s58]]
  %s60 = sld [smem:[#allocation0]]
  $region149: #{neuralnet_forward.1} parent=0
    _
  %s62 = ssub.s32 1, %s60
  %s63 = scalar_select 0, %s62, %s60
  loop: start=0, step=1, limit=4
  $region2: #{neuralnet_forward.1} parent=0 // loop_pre_header
    _
  $region3: #{neuralnet_forward.1} parent=0 // loop_header
    %s65 = sphi 0, %s69
    %p66 = scmp.ge.s32.totalorder %s65, 4
    %s75 = sphi 0, %s77
    %s78 = sphi 0, %s75
    %s79 = sphi 0, %s78
    %s95 = sphi 0, %s79
    %s99 = sphi 0, %s99
    %s101 = sphi 0, %s99
    %s102 = sphi 0, %s101
    %s116 = sphi 0, %s102
    %s120 = sphi 0, %s120
    %s122 = sphi 0, %s120
    %s123 = sphi 0, %s122
    %s137 = sphi 0, %s123
    %s141 = sphi 0, %s141
    %s143 = sphi 0, %s141
    %s144 = sphi 0, %s143
    %s158 = sphi 0, %s144
    %s162 = sphi 0, %s162
    %s164 = sphi 0, %s162
    %s165 = sphi 0, %s164
    %s179 = sphi 0, %s165
    %s183 = sphi 0, %s183
    %s185 = sphi 0, %s183
    %s186 = sphi 0, %s185
    %s200 = sphi 0, %s186
    %s204 = sphi 0, %s204
    %s206 = sphi 0, %s204
    %s207 = sphi 0, %s206
    %s221 = sphi 0, %s207
    %s225 = sphi 0, %s225
    %s227 = sphi 0, %s225
    %s228 = sphi 0, %s227
    %s242 = sphi 0, %s228
    %s246 = sphi 0, %s246
    %s248 = sphi 0, %s246
    %s249 = sphi 0, %s248
    %s263 = sphi 0, %s249
    %s267 = sphi 0, %s267
    %s269 = sphi 0, %s267
    %s270 = sphi 0, %s269
    %s284 = sphi 0, %s270
    %s288 = sphi 0, %s288
    %s290 = sphi 0, %s288
    %s291 = sphi 0, %s290
    %s305 = sphi 0, %s291
    %s309 = sphi 0, %s309
    %s311 = sphi 0, %s309
    %s312 = sphi 0, %s311
    %s326 = sphi 0, %s312
    %s330 = sphi 0, %s330
    %s332 = sphi 0, %s330
    %s333 = sphi 0, %s332
    %s347 = sphi 0, %s333
    %s351 = sphi 0, %s351
    %s353 = sphi 0, %s351
    %s354 = sphi 0, %s353
    %s368 = sphi 0, %s354
    %s372 = sphi 0, %s372
    %s374 = sphi 0, %s372
    %s375 = sphi 0, %s374
    %s389 = sphi 0, %s375
    %s393 = sphi 0, %s393
    %s395 = sphi 0, %s393
    %s396 = sphi 0, %s395
    %s410 = sphi 0, %s396
    %s414 = sphi 0, %s414
    %s416 = sphi 0, %s414
    %s417 = sphi 0, %s416
    %s431 = sphi 0, %s417
    %s435 = sphi 0, %s435
    %s437 = sphi 0, %s435
    %s438 = sphi 0, %s437
    %s452 = sphi 0, %s438
    %s456 = sphi 0, %s456
    %s458 = sphi 0, %s456
    %s459 = sphi 0, %s458
    %s473 = sphi 0, %s459
    %s477 = sphi 0, %s477
    %s479 = sphi 0, %s477
    %s480 = sphi 0, %s479
    %s494 = sphi 0, %s480
    %s498 = sphi 0, %s498
    %s500 = sphi 0, %s498
    %s501 = sphi 0, %s500
    %s515 = sphi 0, %s501
    %s519 = sphi 0, %s519
    %s521 = sphi 0, %s519
    %s522 = sphi 0, %s521
    %s536 = sphi 0, %s522
    %s540 = sphi 0, %s540
    %s542 = sphi 0, %s540
    %s543 = sphi 0, %s542
    %s557 = sphi 0, %s543
    %s561 = sphi 0, %s561
    %s563 = sphi 0, %s561
    %s564 = sphi 0, %s563
    %s578 = sphi 0, %s564
    %s582 = sphi 0, %s582
    %s584 = sphi 0, %s582
    %s585 = sphi 0, %s584
    %s599 = sphi 0, %s585
    %s603 = sphi 0, %s603
    %s605 = sphi 0, %s603
    %s606 = sphi 0, %s605
    %s620 = sphi 0, %s606
    %s624 = sphi 0, %s624
    %s626 = sphi 0, %s624
    %s627 = sphi 0, %s626
    %s641 = sphi 0, %s627
    %s645 = sphi 0, %s645
    %s647 = sphi 0, %s645
    %s648 = sphi 0, %s647
    %s662 = sphi 0, %s648
    %s666 = sphi 0, %s666
    %s668 = sphi 0, %s666
    %s669 = sphi 0, %s668
    %s683 = sphi 0, %s669
    %s689 = sphi 0, %s691
    %s692 = sphi 0, %s689
    %s693 = sphi 0, %s692
    %s709 = sphi 0, %s693
  $region4: #{neuralnet_forward.1} parent=0 // loop_header_branch
    %68 = sbr.rel (%p66) target = $region8
  $region5: #{neuralnet_forward.1} parent=0 // loop_body
    %s70 = ssub.s32 %s65, 1
    %s71 = ssub.s32 %s65, 2
    %s72 = sadd.s32 %s65, 1
    %s73 = ssub.s32 %s65, %s72
    %p74 = scmp.eq.s32.totalorder %s73, 0
    %s76 = sadd.s32 %s75, 1
    %s77 = scalar_select %p74, %s75, %s76
    %p80 = pneg %p74
    %p81 = scmp.eq.s32.totalorder %s65, 1
    %p82 = por %p80, %p81
    %p83 = scmp.ne.s32.totalorder %s75, %s78
    %p84 = scmp.eq.s32.totalorder %s65, 0
    %p85 = por %p83, %p84
    %p86 = scmp.ne.s32.totalorder %s75, %s78
    %p87 = scmp.eq.s32.totalorder %s70, 1
    %p88 = por %p86, %p87
    %p89 = scmp.ne.s32.totalorder %s78, %s79
    %p90 = scmp.eq.s32.totalorder %s70, 0
    %p91 = por %p89, %p90
    %p92 = scmp.ne.s32.totalorder %s78, %s79
    %p93 = scmp.eq.s32.totalorder %s71, 1
    %p94 = por %p92, %p93
    %p96 = scmp.ne.s32.totalorder %s79, %s95
    %p97 = scmp.eq.s32.totalorder %s71, 0
    %p98 = por %p96, %p97
    %s100 = sadd.s32 %s99, 1
    %p103 = scmp.eq.s32.totalorder %s65, 1
    %p104 = scmp.ne.s32.totalorder %s99, %s101
    %p105 = scmp.eq.s32.totalorder %s65, 0
    %p106 = por %p104, %p105
    %p107 = scmp.ne.s32.totalorder %s99, %s101
    %p108 = scmp.eq.s32.totalorder %s70, 1
    %p109 = por %p107, %p108
    %p110 = scmp.ne.s32.totalorder %s101, %s102
    %p111 = scmp.eq.s32.totalorder %s70, 0
    %p112 = por %p110, %p111
    %p113 = scmp.ne.s32.totalorder %s101, %s102
    %p114 = scmp.eq.s32.totalorder %s71, 1
    %p115 = por %p113, %p114
    %p117 = scmp.ne.s32.totalorder %s102, %s116
    %p118 = scmp.eq.s32.totalorder %s71, 0
    %p119 = por %p117, %p118
    %s121 = sadd.s32 %s120, 1
    %p124 = scmp.eq.s32.totalorder %s65, 1
    %p125 = scmp.ne.s32.totalorder %s120, %s122
    %p126 = scmp.eq.s32.totalorder %s65, 0
    %p127 = por %p125, %p126
    %p128 = scmp.ne.s32.totalorder %s120, %s122
    %p129 = scmp.eq.s32.totalorder %s70, 1
    %p130 = por %p128, %p129
    %p131 = scmp.ne.s32.totalorder %s122, %s123
    %p132 = scmp.eq.s32.totalorder %s70, 0
    %p133 = por %p131, %p132
    %p134 = scmp.ne.s32.totalorder %s122, %s123
    %p135 = scmp.eq.s32.totalorder %s71, 1
    %p136 = por %p134, %p135
    %p138 = scmp.ne.s32.totalorder %s123, %s137
    %p139 = scmp.eq.s32.totalorder %s71, 0
    %p140 = por %p138, %p139
    %s142 = sadd.s32 %s141, 1
    %p145 = scmp.eq.s32.totalorder %s65, 1
    %p146 = scmp.ne.s32.totalorder %s141, %s143
    %p147 = scmp.eq.s32.totalorder %s65, 0
    %p148 = por %p146, %p147
    %p149 = scmp.ne.s32.totalorder %s141, %s143
    %p150 = scmp.eq.s32.totalorder %s70, 1
    %p151 = por %p149, %p150
    %p152 = scmp.ne.s32.totalorder %s143, %s144
    %p153 = scmp.eq.s32.totalorder %s70, 0
    %p154 = por %p152, %p153
    %p155 = scmp.ne.s32.totalorder %s143, %s144
    %p156 = scmp.eq.s32.totalorder %s71, 1
    %p157 = por %p155, %p156
    %p159 = scmp.ne.s32.totalorder %s144, %s158
    %p160 = scmp.eq.s32.totalorder %s71, 0
    %p161 = por %p159, %p160
    %s163 = sadd.s32 %s162, 1
    %p166 = scmp.eq.s32.totalorder %s65, 1
    %p167 = scmp.ne.s32.totalorder %s162, %s164
    %p168 = scmp.eq.s32.totalorder %s65, 0
    %p169 = por %p167, %p168
    %p170 = scmp.ne.s32.totalorder %s162, %s164
    %p171 = scmp.eq.s32.totalorder %s70, 1
    %p172 = por %p170, %p171
    %p173 = scmp.ne.s32.totalorder %s164, %s165
    %p174 = scmp.eq.s32.totalorder %s70, 0
    %p175 = por %p173, %p174
    %p176 = scmp.ne.s32.totalorder %s164, %s165
    %p177 = scmp.eq.s32.totalorder %s71, 1
    %p178 = por %p176, %p177
    %p180 = scmp.ne.s32.totalorder %s165, %s179
    %p181 = scmp.eq.s32.totalorder %s71, 0
    %p182 = por %p180, %p181
    %s184 = sadd.s32 %s183, 1
    %p187 = scmp.eq.s32.totalorder %s65, 1
    %p188 = scmp.ne.s32.totalorder %s183, %s185
    %p189 = scmp.eq.s32.totalorder %s65, 0
    %p190 = por %p188, %p189
    %p191 = scmp.ne.s32.totalorder %s183, %s185
    %p192 = scmp.eq.s32.totalorder %s70, 1
    %p193 = por %p191, %p192
    %p194 = scmp.ne.s32.totalorder %s185, %s186
    %p195 = scmp.eq.s32.totalorder %s70, 0
    %p196 = por %p194, %p195
    %p197 = scmp.ne.s32.totalorder %s185, %s186
    %p198 = scmp.eq.s32.totalorder %s71, 1
    %p199 = por %p197, %p198
    %p201 = scmp.ne.s32.totalorder %s186, %s200
    %p202 = scmp.eq.s32.totalorder %s71, 0
    %p203 = por %p201, %p202
    %s205 = sadd.s32 %s204, 1
    %p208 = scmp.eq.s32.totalorder %s65, 1
    %p209 = scmp.ne.s32.totalorder %s204, %s206
    %p210 = scmp.eq.s32.totalorder %s65, 0
    %p211 = por %p209, %p210
    %p212 = scmp.ne.s32.totalorder %s204, %s206
    %p213 = scmp.eq.s32.totalorder %s70, 1
    %p214 = por %p212, %p213
    %p215 = scmp.ne.s32.totalorder %s206, %s207
    %p216 = scmp.eq.s32.totalorder %s70, 0
    %p217 = por %p215, %p216
    %p218 = scmp.ne.s32.totalorder %s206, %s207
    %p219 = scmp.eq.s32.totalorder %s71, 1
    %p220 = por %p218, %p219
    %p222 = scmp.ne.s32.totalorder %s207, %s221
    %p223 = scmp.eq.s32.totalorder %s71, 0
    %p224 = por %p222, %p223
    %s226 = sadd.s32 %s225, 1
    %p229 = scmp.eq.s32.totalorder %s65, 1
    %p230 = scmp.ne.s32.totalorder %s225, %s227
    %p231 = scmp.eq.s32.totalorder %s65, 0
    %p232 = por %p230, %p231
    %p233 = scmp.ne.s32.totalorder %s225, %s227
    %p234 = scmp.eq.s32.totalorder %s70, 1
    %p235 = por %p233, %p234
    %p236 = scmp.ne.s32.totalorder %s227, %s228
    %p237 = scmp.eq.s32.totalorder %s70, 0
    %p238 = por %p236, %p237
    %p239 = scmp.ne.s32.totalorder %s227, %s228
    %p240 = scmp.eq.s32.totalorder %s71, 1
    %p241 = por %p239, %p240
    %p243 = scmp.ne.s32.totalorder %s228, %s242
    %p244 = scmp.eq.s32.totalorder %s71, 0
    %p245 = por %p243, %p244
    %s247 = sadd.s32 %s246, 1
    %p250 = scmp.eq.s32.totalorder %s65, 1
    %p251 = scmp.ne.s32.totalorder %s246, %s248
    %p252 = scmp.eq.s32.totalorder %s65, 0
    %p253 = por %p251, %p252
    %p254 = scmp.ne.s32.totalorder %s246, %s248
    %p255 = scmp.eq.s32.totalorder %s70, 1
    %p256 = por %p254, %p255
    %p257 = scmp.ne.s32.totalorder %s248, %s249
    %p258 = scmp.eq.s32.totalorder %s70, 0
    %p259 = por %p257, %p258
    %p260 = scmp.ne.s32.totalorder %s248, %s249
    %p261 = scmp.eq.s32.totalorder %s71, 1
    %p262 = por %p260, %p261
    %p264 = scmp.ne.s32.totalorder %s249, %s263
    %p265 = scmp.eq.s32.totalorder %s71, 0
    %p266 = por %p264, %p265
    %s268 = sadd.s32 %s267, 1
    %p271 = scmp.eq.s32.totalorder %s65, 1
    %p272 = scmp.ne.s32.totalorder %s267, %s269
    %p273 = scmp.eq.s32.totalorder %s65, 0
    %p274 = por %p272, %p273
    %p275 = scmp.ne.s32.totalorder %s267, %s269
    %p276 = scmp.eq.s32.totalorder %s70, 1
    %p277 = por %p275, %p276
    %p278 = scmp.ne.s32.totalorder %s269, %s270
    %p279 = scmp.eq.s32.totalorder %s70, 0
    %p280 = por %p278, %p279
    %p281 = scmp.ne.s32.totalorder %s269, %s270
    %p282 = scmp.eq.s32.totalorder %s71, 1
    %p283 = por %p281, %p282
    %p285 = scmp.ne.s32.totalorder %s270, %s284
    %p286 = scmp.eq.s32.totalorder %s71, 0
    %p287 = por %p285, %p286
    %s289 = sadd.s32 %s288, 1
    %p292 = scmp.eq.s32.totalorder %s65, 1
    %p293 = scmp.ne.s32.totalorder %s288, %s290
    %p294 = scmp.eq.s32.totalorder %s65, 0
    %p295 = por %p293, %p294
    %p296 = scmp.ne.s32.totalorder %s288, %s290
    %p297 = scmp.eq.s32.totalorder %s70, 1
    %p298 = por %p296, %p297
    %p299 = scmp.ne.s32.totalorder %s290, %s291
    %p300 = scmp.eq.s32.totalorder %s70, 0
    %p301 = por %p299, %p300
    %p302 = scmp.ne.s32.totalorder %s290, %s291
    %p303 = scmp.eq.s32.totalorder %s71, 1
    %p304 = por %p302, %p303
    %p306 = scmp.ne.s32.totalorder %s291, %s305
    %p307 = scmp.eq.s32.totalorder %s71, 0
    %p308 = por %p306, %p307
    %s310 = sadd.s32 %s309, 1
    %p313 = scmp.eq.s32.totalorder %s65, 1
    %p314 = scmp.ne.s32.totalorder %s309, %s311
    %p315 = scmp.eq.s32.totalorder %s65, 0
    %p316 = por %p314, %p315
    %p317 = scmp.ne.s32.totalorder %s309, %s311
    %p318 = scmp.eq.s32.totalorder %s70, 1
    %p319 = por %p317, %p318
    %p320 = scmp.ne.s32.totalorder %s311, %s312
    %p321 = scmp.eq.s32.totalorder %s70, 0
    %p322 = por %p320, %p321
    %p323 = scmp.ne.s32.totalorder %s311, %s312
    %p324 = scmp.eq.s32.totalorder %s71, 1
    %p325 = por %p323, %p324
    %p327 = scmp.ne.s32.totalorder %s312, %s326
    %p328 = scmp.eq.s32.totalorder %s71, 0
    %p329 = por %p327, %p328
    %s331 = sadd.s32 %s330, 1
    %p334 = scmp.eq.s32.totalorder %s65, 1
    %p335 = scmp.ne.s32.totalorder %s330, %s332
    %p336 = scmp.eq.s32.totalorder %s65, 0
    %p337 = por %p335, %p336
    %p338 = scmp.ne.s32.totalorder %s330, %s332
    %p339 = scmp.eq.s32.totalorder %s70, 1
    %p340 = por %p338, %p339
    %p341 = scmp.ne.s32.totalorder %s332, %s333
    %p342 = scmp.eq.s32.totalorder %s70, 0
    %p343 = por %p341, %p342
    %p344 = scmp.ne.s32.totalorder %s332, %s333
    %p345 = scmp.eq.s32.totalorder %s71, 1
    %p346 = por %p344, %p345
    %p348 = scmp.ne.s32.totalorder %s333, %s347
    %p349 = scmp.eq.s32.totalorder %s71, 0
    %p350 = por %p348, %p349
    %s352 = sadd.s32 %s351, 1
    %p355 = scmp.eq.s32.totalorder %s65, 1
    %p356 = scmp.ne.s32.totalorder %s351, %s353
    %p357 = scmp.eq.s32.totalorder %s65, 0
    %p358 = por %p356, %p357
    %p359 = scmp.ne.s32.totalorder %s351, %s353
    %p360 = scmp.eq.s32.totalorder %s70, 1
    %p361 = por %p359, %p360
    %p362 = scmp.ne.s32.totalorder %s353, %s354
    %p363 = scmp.eq.s32.totalorder %s70, 0
    %p364 = por %p362, %p363
    %p365 = scmp.ne.s32.totalorder %s353, %s354
    %p366 = scmp.eq.s32.totalorder %s71, 1
    %p367 = por %p365, %p366
    %p369 = scmp.ne.s32.totalorder %s354, %s368
    %p370 = scmp.eq.s32.totalorder %s71, 0
    %p371 = por %p369, %p370
    %s373 = sadd.s32 %s372, 1
    %p376 = scmp.eq.s32.totalorder %s65, 1
    %p377 = scmp.ne.s32.totalorder %s372, %s374
    %p378 = scmp.eq.s32.totalorder %s65, 0
    %p379 = por %p377, %p378
    %p380 = scmp.ne.s32.totalorder %s372, %s374
    %p381 = scmp.eq.s32.totalorder %s70, 1
    %p382 = por %p380, %p381
    %p383 = scmp.ne.s32.totalorder %s374, %s375
    %p384 = scmp.eq.s32.totalorder %s70, 0
    %p385 = por %p383, %p384
    %p386 = scmp.ne.s32.totalorder %s374, %s375
    %p387 = scmp.eq.s32.totalorder %s71, 1
    %p388 = por %p386, %p387
    %p390 = scmp.ne.s32.totalorder %s375, %s389
    %p391 = scmp.eq.s32.totalorder %s71, 0
    %p392 = por %p390, %p391
    %s394 = sadd.s32 %s393, 1
    %p397 = scmp.eq.s32.totalorder %s65, 1
    %p398 = scmp.ne.s32.totalorder %s393, %s395
    %p399 = scmp.eq.s32.totalorder %s65, 0
    %p400 = por %p398, %p399
    %p401 = scmp.ne.s32.totalorder %s393, %s395
    %p402 = scmp.eq.s32.totalorder %s70, 1
    %p403 = por %p401, %p402
    %p404 = scmp.ne.s32.totalorder %s395, %s396
    %p405 = scmp.eq.s32.totalorder %s70, 0
    %p406 = por %p404, %p405
    %p407 = scmp.ne.s32.totalorder %s395, %s396
    %p408 = scmp.eq.s32.totalorder %s71, 1
    %p409 = por %p407, %p408
    %p411 = scmp.ne.s32.totalorder %s396, %s410
    %p412 = scmp.eq.s32.totalorder %s71, 0
    %p413 = por %p411, %p412
    %s415 = sadd.s32 %s414, 1
    %p418 = scmp.eq.s32.totalorder %s65, 1
    %p419 = scmp.ne.s32.totalorder %s414, %s416
    %p420 = scmp.eq.s32.totalorder %s65, 0
    %p421 = por %p419, %p420
    %p422 = scmp.ne.s32.totalorder %s414, %s416
    %p423 = scmp.eq.s32.totalorder %s70, 1
    %p424 = por %p422, %p423
    %p425 = scmp.ne.s32.totalorder %s416, %s417
    %p426 = scmp.eq.s32.totalorder %s70, 0
    %p427 = por %p425, %p426
    %p428 = scmp.ne.s32.totalorder %s416, %s417
    %p429 = scmp.eq.s32.totalorder %s71, 1
    %p430 = por %p428, %p429
    %p432 = scmp.ne.s32.totalorder %s417, %s431
    %p433 = scmp.eq.s32.totalorder %s71, 0
    %p434 = por %p432, %p433
    %s436 = sadd.s32 %s435, 1
    %p439 = scmp.eq.s32.totalorder %s65, 1
    %p440 = scmp.ne.s32.totalorder %s435, %s437
    %p441 = scmp.eq.s32.totalorder %s65, 0
    %p442 = por %p440, %p441
    %p443 = scmp.ne.s32.totalorder %s435, %s437
    %p444 = scmp.eq.s32.totalorder %s70, 1
    %p445 = por %p443, %p444
    %p446 = scmp.ne.s32.totalorder %s437, %s438
    %p447 = scmp.eq.s32.totalorder %s70, 0
    %p448 = por %p446, %p447
    %p449 = scmp.ne.s32.totalorder %s437, %s438
    %p450 = scmp.eq.s32.totalorder %s71, 1
    %p451 = por %p449, %p450
    %p453 = scmp.ne.s32.totalorder %s438, %s452
    %p454 = scmp.eq.s32.totalorder %s71, 0
    %p455 = por %p453, %p454
    %s457 = sadd.s32 %s456, 1
    %p460 = scmp.eq.s32.totalorder %s65, 1
    %p461 = scmp.ne.s32.totalorder %s456, %s458
    %p462 = scmp.eq.s32.totalorder %s65, 0
    %p463 = por %p461, %p462
    %p464 = scmp.ne.s32.totalorder %s456, %s458
    %p465 = scmp.eq.s32.totalorder %s70, 1
    %p466 = por %p464, %p465
    %p467 = scmp.ne.s32.totalorder %s458, %s459
    %p468 = scmp.eq.s32.totalorder %s70, 0
    %p469 = por %p467, %p468
    %p470 = scmp.ne.s32.totalorder %s458, %s459
    %p471 = scmp.eq.s32.totalorder %s71, 1
    %p472 = por %p470, %p471
    %p474 = scmp.ne.s32.totalorder %s459, %s473
    %p475 = scmp.eq.s32.totalorder %s71, 0
    %p476 = por %p474, %p475
    %s478 = sadd.s32 %s477, 1
    %p481 = scmp.eq.s32.totalorder %s65, 1
    %p482 = scmp.ne.s32.totalorder %s477, %s479
    %p483 = scmp.eq.s32.totalorder %s65, 0
    %p484 = por %p482, %p483
    %p485 = scmp.ne.s32.totalorder %s477, %s479
    %p486 = scmp.eq.s32.totalorder %s70, 1
    %p487 = por %p485, %p486
    %p488 = scmp.ne.s32.totalorder %s479, %s480
    %p489 = scmp.eq.s32.totalorder %s70, 0
    %p490 = por %p488, %p489
    %p491 = scmp.ne.s32.totalorder %s479, %s480
    %p492 = scmp.eq.s32.totalorder %s71, 1
    %p493 = por %p491, %p492
    %p495 = scmp.ne.s32.totalorder %s480, %s494
    %p496 = scmp.eq.s32.totalorder %s71, 0
    %p497 = por %p495, %p496
    %s499 = sadd.s32 %s498, 1
    %p502 = scmp.eq.s32.totalorder %s65, 1
    %p503 = scmp.ne.s32.totalorder %s498, %s500
    %p504 = scmp.eq.s32.totalorder %s65, 0
    %p505 = por %p503, %p504
    %p506 = scmp.ne.s32.totalorder %s498, %s500
    %p507 = scmp.eq.s32.totalorder %s70, 1
    %p508 = por %p506, %p507
    %p509 = scmp.ne.s32.totalorder %s500, %s501
    %p510 = scmp.eq.s32.totalorder %s70, 0
    %p511 = por %p509, %p510
    %p512 = scmp.ne.s32.totalorder %s500, %s501
    %p513 = scmp.eq.s32.totalorder %s71, 1
    %p514 = por %p512, %p513
    %p516 = scmp.ne.s32.totalorder %s501, %s515
    %p517 = scmp.eq.s32.totalorder %s71, 0
    %p518 = por %p516, %p517
    %s520 = sadd.s32 %s519, 1
    %p523 = scmp.eq.s32.totalorder %s65, 1
    %p524 = scmp.ne.s32.totalorder %s519, %s521
    %p525 = scmp.eq.s32.totalorder %s65, 0
    %p526 = por %p524, %p525
    %p527 = scmp.ne.s32.totalorder %s519, %s521
    %p528 = scmp.eq.s32.totalorder %s70, 1
    %p529 = por %p527, %p528
    %p530 = scmp.ne.s32.totalorder %s521, %s522
    %p531 = scmp.eq.s32.totalorder %s70, 0
    %p532 = por %p530, %p531
    %p533 = scmp.ne.s32.totalorder %s521, %s522
    %p534 = scmp.eq.s32.totalorder %s71, 1
    %p535 = por %p533, %p534
    %p537 = scmp.ne.s32.totalorder %s522, %s536
    %p538 = scmp.eq.s32.totalorder %s71, 0
    %p539 = por %p537, %p538
    %s541 = sadd.s32 %s540, 1
    %p544 = scmp.eq.s32.totalorder %s65, 1
    %p545 = scmp.ne.s32.totalorder %s540, %s542
    %p546 = scmp.eq.s32.totalorder %s65, 0
    %p547 = por %p545, %p546
    %p548 = scmp.ne.s32.totalorder %s540, %s542
    %p549 = scmp.eq.s32.totalorder %s70, 1
    %p550 = por %p548, %p549
    %p551 = scmp.ne.s32.totalorder %s542, %s543
    %p552 = scmp.eq.s32.totalorder %s70, 0
    %p553 = por %p551, %p552
    %p554 = scmp.ne.s32.totalorder %s542, %s543
    %p555 = scmp.eq.s32.totalorder %s71, 1
    %p556 = por %p554, %p555
    %p558 = scmp.ne.s32.totalorder %s543, %s557
    %p559 = scmp.eq.s32.totalorder %s71, 0
    %p560 = por %p558, %p559
    %s562 = sadd.s32 %s561, 1
    %p565 = scmp.eq.s32.totalorder %s65, 1
    %p566 = scmp.ne.s32.totalorder %s561, %s563
    %p567 = scmp.eq.s32.totalorder %s65, 0
    %p568 = por %p566, %p567
    %p569 = scmp.ne.s32.totalorder %s561, %s563
    %p570 = scmp.eq.s32.totalorder %s70, 1
    %p571 = por %p569, %p570
    %p572 = scmp.ne.s32.totalorder %s563, %s564
    %p573 = scmp.eq.s32.totalorder %s70, 0
    %p574 = por %p572, %p573
    %p575 = scmp.ne.s32.totalorder %s563, %s564
    %p576 = scmp.eq.s32.totalorder %s71, 1
    %p577 = por %p575, %p576
    %p579 = scmp.ne.s32.totalorder %s564, %s578
    %p580 = scmp.eq.s32.totalorder %s71, 0
    %p581 = por %p579, %p580
    %s583 = sadd.s32 %s582, 1
    %p586 = scmp.eq.s32.totalorder %s65, 1
    %p587 = scmp.ne.s32.totalorder %s582, %s584
    %p588 = scmp.eq.s32.totalorder %s65, 0
    %p589 = por %p587, %p588
    %p590 = scmp.ne.s32.totalorder %s582, %s584
    %p591 = scmp.eq.s32.totalorder %s70, 1
    %p592 = por %p590, %p591
    %p593 = scmp.ne.s32.totalorder %s584, %s585
    %p594 = scmp.eq.s32.totalorder %s70, 0
    %p595 = por %p593, %p594
    %p596 = scmp.ne.s32.totalorder %s584, %s585
    %p597 = scmp.eq.s32.totalorder %s71, 1
    %p598 = por %p596, %p597
    %p600 = scmp.ne.s32.totalorder %s585, %s599
    %p601 = scmp.eq.s32.totalorder %s71, 0
    %p602 = por %p600, %p601
    %s604 = sadd.s32 %s603, 1
    %p607 = scmp.eq.s32.totalorder %s65, 1
    %p608 = scmp.ne.s32.totalorder %s603, %s605
    %p609 = scmp.eq.s32.totalorder %s65, 0
    %p610 = por %p608, %p609
    %p611 = scmp.ne.s32.totalorder %s603, %s605
    %p612 = scmp.eq.s32.totalorder %s70, 1
    %p613 = por %p611, %p612
    %p614 = scmp.ne.s32.totalorder %s605, %s606
    %p615 = scmp.eq.s32.totalorder %s70, 0
    %p616 = por %p614, %p615
    %p617 = scmp.ne.s32.totalorder %s605, %s606
    %p618 = scmp.eq.s32.totalorder %s71, 1
    %p619 = por %p617, %p618
    %p621 = scmp.ne.s32.totalorder %s606, %s620
    %p622 = scmp.eq.s32.totalorder %s71, 0
    %p623 = por %p621, %p622
    %s625 = sadd.s32 %s624, 1
    %p628 = scmp.eq.s32.totalorder %s65, 1
    %p629 = scmp.ne.s32.totalorder %s624, %s626
    %p630 = scmp.eq.s32.totalorder %s65, 0
    %p631 = por %p629, %p630
    %p632 = scmp.ne.s32.totalorder %s624, %s626
    %p633 = scmp.eq.s32.totalorder %s70, 1
    %p634 = por %p632, %p633
    %p635 = scmp.ne.s32.totalorder %s626, %s627
    %p636 = scmp.eq.s32.totalorder %s70, 0
    %p637 = por %p635, %p636
    %p638 = scmp.ne.s32.totalorder %s626, %s627
    %p639 = scmp.eq.s32.totalorder %s71, 1
    %p640 = por %p638, %p639
    %p642 = scmp.ne.s32.totalorder %s627, %s641
    %p643 = scmp.eq.s32.totalorder %s71, 0
    %p644 = por %p642, %p643
    %s646 = sadd.s32 %s645, 1
    %p649 = scmp.eq.s32.totalorder %s65, 1
    %p650 = scmp.ne.s32.totalorder %s645, %s647
    %p651 = scmp.eq.s32.totalorder %s65, 0
    %p652 = por %p650, %p651
    %p653 = scmp.ne.s32.totalorder %s645, %s647
    %p654 = scmp.eq.s32.totalorder %s70, 1
    %p655 = por %p653, %p654
    %p656 = scmp.ne.s32.totalorder %s647, %s648
    %p657 = scmp.eq.s32.totalorder %s70, 0
    %p658 = por %p656, %p657
    %p659 = scmp.ne.s32.totalorder %s647, %s648
    %p660 = scmp.eq.s32.totalorder %s71, 1
    %p661 = por %p659, %p660
    %p663 = scmp.ne.s32.totalorder %s648, %s662
    %p664 = scmp.eq.s32.totalorder %s71, 0
    %p665 = por %p663, %p664
    %s667 = sadd.s32 %s666, 1
    %p670 = scmp.eq.s32.totalorder %s65, 1
    %p671 = scmp.ne.s32.totalorder %s666, %s668
    %p672 = scmp.eq.s32.totalorder %s65, 0
    %p673 = por %p671, %p672
    %p674 = scmp.ne.s32.totalorder %s666, %s668
    %p675 = scmp.eq.s32.totalorder %s70, 1
    %p676 = por %p674, %p675
    %p677 = scmp.ne.s32.totalorder %s668, %s669
    %p678 = scmp.eq.s32.totalorder %s70, 0
    %p679 = por %p677, %p678
    %p680 = scmp.ne.s32.totalorder %s668, %s669
    %p681 = scmp.eq.s32.totalorder %s71, 1
    %p682 = por %p680, %p681
    %p684 = scmp.ne.s32.totalorder %s669, %s683
    %p685 = scmp.eq.s32.totalorder %s71, 0
    %p686 = por %p684, %p685
    %s687 = ssub.s32 %s65, %s72
    %p688 = scmp.eq.s32.totalorder %s687, 0
    %s690 = sadd.s32 %s689, 1
    %s691 = scalar_select %p688, %s689, %s690
    %p694 = pneg %p688
    %p695 = scmp.eq.s32.totalorder %s65, 1
    %p696 = por %p694, %p695
    %p697 = scmp.ne.s32.totalorder %s689, %s692
    %p698 = scmp.eq.s32.totalorder %s65, 0
    %p699 = por %p697, %p698
    %p700 = scmp.ne.s32.totalorder %s689, %s692
    %p701 = scmp.eq.s32.totalorder %s70, 1
    %p702 = por %p700, %p701
    %p703 = scmp.ne.s32.totalorder %s692, %s693
    %p704 = scmp.eq.s32.totalorder %s70, 0
    %p705 = por %p703, %p704
    %p706 = scmp.ne.s32.totalorder %s692, %s693
    %p707 = scmp.eq.s32.totalorder %s71, 1
    %p708 = por %p706, %p707
    %p710 = scmp.ne.s32.totalorder %s693, %s709
    %p711 = scmp.eq.s32.totalorder %s71, 0
    %p712 = por %p710, %p711
    %p713 = scmp.le.s32.totalorder 1, %s65
    %p714 = scmp.lt.s32.totalorder %s65, 3
    %p715 = pnand %p713, %p714
    %p716 = pneg %p715
    // Predicated region
    $region9: #{neuralnet_forward.1} parent=5 // pred_check
      _
    $region10: #{neuralnet_forward.1} parent=5 // pred_check_branch
      %718 = sbr.rel (%p715) target = $region12
    $region11: #{neuralnet_forward.1} parent=5 // pred_region
      %s719 = ssub.s32 %s65, 1
      // Predicated region
      $region13: #{neuralnet_forward.1} parent=11 // pred_check
        %p720 = pneg %p112
      $region14: #{neuralnet_forward.1} parent=11 // pred_check_branch
        %722 = sbr.rel (%p720) target = $region16
      $region15: #{neuralnet_forward.1} parent=11 // pred_region
        _
      $region16: #{neuralnet_forward.1} parent=11 // pred_fallthru
        _
      // Predicated region
      $region17: #{neuralnet_forward.1} parent=11 // pred_check
        %p723 = pneg %p133
      $region18: #{neuralnet_forward.1} parent=11 // pred_check_branch
        %725 = sbr.rel (%p723) target = $region20
      $region19: #{neuralnet_forward.1} parent=11 // pred_region
        _
      $region20: #{neuralnet_forward.1} parent=11 // pred_fallthru
        _
      // Predicated region
      $region21: #{neuralnet_forward.1} parent=11 // pred_check
        %p726 = pneg %p154
      $region22: #{neuralnet_forward.1} parent=11 // pred_check_branch
        %728 = sbr.rel (%p726) target = $region24
      $region23: #{neuralnet_forward.1} parent=11 // pred_region
        _
      $region24: #{neuralnet_forward.1} parent=11 // pred_fallthru
        _
      // Predicated region
      $region25: #{neuralnet_forward.1} parent=11 // pred_check
        %p729 = pneg %p175
      $region26: #{neuralnet_forward.1} parent=11 // pred_check_branch
        %731 = sbr.rel (%p729) target = $region28
      $region27: #{neuralnet_forward.1} parent=11 // pred_region
        _
      $region28: #{neuralnet_forward.1} parent=11 // pred_fallthru
        _
      // Predicated region
      $region29: #{neuralnet_forward.1} parent=11 // pred_check
        %p732 = pneg %p196
      $region30: #{neuralnet_forward.1} parent=11 // pred_check_branch
        %734 = sbr.rel (%p732) target = $region32
      $region31: #{neuralnet_forward.1} parent=11 // pred_region
        _
      $region32: #{neuralnet_forward.1} parent=11 // pred_fallthru
        _
      // Predicated region
      $region33: #{neuralnet_forward.1} parent=11 // pred_check
        %p735 = pneg %p217
      $region34: #{neuralnet_forward.1} parent=11 // pred_check_branch
        %737 = sbr.rel (%p735) target = $region36
      $region35: #{neuralnet_forward.1} parent=11 // pred_region
        _
      $region36: #{neuralnet_forward.1} parent=11 // pred_fallthru
        _
      // Predicated region
      $region37: #{neuralnet_forward.1} parent=11 // pred_check
        %p738 = pneg %p238
      $region38: #{neuralnet_forward.1} parent=11 // pred_check_branch
        %740 = sbr.rel (%p738) target = $region40
      $region39: #{neuralnet_forward.1} parent=11 // pred_region
        _
      $region40: #{neuralnet_forward.1} parent=11 // pred_fallthru
        _
      // Predicated region
      $region41: #{neuralnet_forward.1} parent=11 // pred_check
        %p741 = pneg %p259
      $region42: #{neuralnet_forward.1} parent=11 // pred_check_branch
        %743 = sbr.rel (%p741) target = $region44
      $region43: #{neuralnet_forward.1} parent=11 // pred_region
        _
      $region44: #{neuralnet_forward.1} parent=11 // pred_fallthru
        _
      // Predicated region
      $region45: #{neuralnet_forward.1} parent=11 // pred_check
        %p744 = pneg %p280
      $region46: #{neuralnet_forward.1} parent=11 // pred_check_branch
        %746 = sbr.rel (%p744) target = $region48
      $region47: #{neuralnet_forward.1} parent=11 // pred_region
        _
      $region48: #{neuralnet_forward.1} parent=11 // pred_fallthru
        _
      // Predicated region
      $region49: #{neuralnet_forward.1} parent=11 // pred_check
        %p747 = pneg %p301
      $region50: #{neuralnet_forward.1} parent=11 // pred_check_branch
        %749 = sbr.rel (%p747) target = $region52
      $region51: #{neuralnet_forward.1} parent=11 // pred_region
        _
      $region52: #{neuralnet_forward.1} parent=11 // pred_fallthru
        _
      // Predicated region
      $region53: #{neuralnet_forward.1} parent=11 // pred_check
        %p750 = pneg %p322
      $region54: #{neuralnet_forward.1} parent=11 // pred_check_branch
        %752 = sbr.rel (%p750) target = $region56
      $region55: #{neuralnet_forward.1} parent=11 // pred_region
        _
      $region56: #{neuralnet_forward.1} parent=11 // pred_fallthru
        _
      // Predicated region
      $region57: #{neuralnet_forward.1} parent=11 // pred_check
        %p753 = pneg %p343
      $region58: #{neuralnet_forward.1} parent=11 // pred_check_branch
        %755 = sbr.rel (%p753) target = $region60
      $region59: #{neuralnet_forward.1} parent=11 // pred_region
        _
      $region60: #{neuralnet_forward.1} parent=11 // pred_fallthru
        _
      // Predicated region
      $region61: #{neuralnet_forward.1} parent=11 // pred_check
        %p756 = pneg %p364
      $region62: #{neuralnet_forward.1} parent=11 // pred_check_branch
        %758 = sbr.rel (%p756) target = $region64
      $region63: #{neuralnet_forward.1} parent=11 // pred_region
        _
      $region64: #{neuralnet_forward.1} parent=11 // pred_fallthru
        _
      // Predicated region
      $region65: #{neuralnet_forward.1} parent=11 // pred_check
        %p759 = pneg %p385
      $region66: #{neuralnet_forward.1} parent=11 // pred_check_branch
        %761 = sbr.rel (%p759) target = $region68
      $region67: #{neuralnet_forward.1} parent=11 // pred_region
        _
      $region68: #{neuralnet_forward.1} parent=11 // pred_fallthru
        _
      // Predicated region
      $region69: #{neuralnet_forward.1} parent=11 // pred_check
        %p762 = pneg %p406
      $region70: #{neuralnet_forward.1} parent=11 // pred_check_branch
        %764 = sbr.rel (%p762) target = $region72
      $region71: #{neuralnet_forward.1} parent=11 // pred_region
        _
      $region72: #{neuralnet_forward.1} parent=11 // pred_fallthru
        _
      // Predicated region
      $region73: #{neuralnet_forward.1} parent=11 // pred_check
        %p765 = pneg %p427
      $region74: #{neuralnet_forward.1} parent=11 // pred_check_branch
        %767 = sbr.rel (%p765) target = $region76
      $region75: #{neuralnet_forward.1} parent=11 // pred_region
        _
      $region76: #{neuralnet_forward.1} parent=11 // pred_fallthru
        _
      // Predicated region
      $region77: #{neuralnet_forward.1} parent=11 // pred_check
        %p768 = pneg %p448
      $region78: #{neuralnet_forward.1} parent=11 // pred_check_branch
        %770 = sbr.rel (%p768) target = $region80
      $region79: #{neuralnet_forward.1} parent=11 // pred_region
        _
      $region80: #{neuralnet_forward.1} parent=11 // pred_fallthru
        _
      // Predicated region
      $region81: #{neuralnet_forward.1} parent=11 // pred_check
        %p771 = pneg %p469
      $region82: #{neuralnet_forward.1} parent=11 // pred_check_branch
        %773 = sbr.rel (%p771) target = $region84
      $region83: #{neuralnet_forward.1} parent=11 // pred_region
        _
      $region84: #{neuralnet_forward.1} parent=11 // pred_fallthru
        _
      // Predicated region
      $region85: #{neuralnet_forward.1} parent=11 // pred_check
        %p774 = pneg %p490
      $region86: #{neuralnet_forward.1} parent=11 // pred_check_branch
        %776 = sbr.rel (%p774) target = $region88
      $region87: #{neuralnet_forward.1} parent=11 // pred_region
        _
      $region88: #{neuralnet_forward.1} parent=11 // pred_fallthru
        _
      // Predicated region
      $region89: #{neuralnet_forward.1} parent=11 // pred_check
        %p777 = pneg %p511
      $region90: #{neuralnet_forward.1} parent=11 // pred_check_branch
        %779 = sbr.rel (%p777) target = $region92
      $region91: #{neuralnet_forward.1} parent=11 // pred_region
        _
      $region92: #{neuralnet_forward.1} parent=11 // pred_fallthru
        _
      // Predicated region
      $region93: #{neuralnet_forward.1} parent=11 // pred_check
        %p780 = pneg %p532
      $region94: #{neuralnet_forward.1} parent=11 // pred_check_branch
        %782 = sbr.rel (%p780) target = $region96
      $region95: #{neuralnet_forward.1} parent=11 // pred_region
        _
      $region96: #{neuralnet_forward.1} parent=11 // pred_fallthru
        _
      // Predicated region
      $region97: #{neuralnet_forward.1} parent=11 // pred_check
        %p783 = pneg %p553
      $region98: #{neuralnet_forward.1} parent=11 // pred_check_branch
        %785 = sbr.rel (%p783) target = $region100
      $region99: #{neuralnet_forward.1} parent=11 // pred_region
        _
      $region100: #{neuralnet_forward.1} parent=11 // pred_fallthru
        _
      // Predicated region
      $region101: #{neuralnet_forward.1} parent=11 // pred_check
        %p786 = pneg %p574
      $region102: #{neuralnet_forward.1} parent=11 // pred_check_branch
        %788 = sbr.rel (%p786) target = $region104
      $region103: #{neuralnet_forward.1} parent=11 // pred_region
        _
      $region104: #{neuralnet_forward.1} parent=11 // pred_fallthru
        _
      // Predicated region
      $region105: #{neuralnet_forward.1} parent=11 // pred_check
        %p789 = pneg %p595
      $region106: #{neuralnet_forward.1} parent=11 // pred_check_branch
        %791 = sbr.rel (%p789) target = $region108
      $region107: #{neuralnet_forward.1} parent=11 // pred_region
        _
      $region108: #{neuralnet_forward.1} parent=11 // pred_fallthru
        _
      // Predicated region
      $region109: #{neuralnet_forward.1} parent=11 // pred_check
        %p792 = pneg %p616
      $region110: #{neuralnet_forward.1} parent=11 // pred_check_branch
        %794 = sbr.rel (%p792) target = $region112
      $region111: #{neuralnet_forward.1} parent=11 // pred_region
        _
      $region112: #{neuralnet_forward.1} parent=11 // pred_fallthru
        _
      // Predicated region
      $region113: #{neuralnet_forward.1} parent=11 // pred_check
        %p795 = pneg %p637
      $region114: #{neuralnet_forward.1} parent=11 // pred_check_branch
        %797 = sbr.rel (%p795) target = $region116
      $region115: #{neuralnet_forward.1} parent=11 // pred_region
        _
      $region116: #{neuralnet_forward.1} parent=11 // pred_fallthru
        _
      // Predicated region
      $region117: #{neuralnet_forward.1} parent=11 // pred_check
        %p798 = pneg %p658
      $region118: #{neuralnet_forward.1} parent=11 // pred_check_branch
        %800 = sbr.rel (%p798) target = $region120
      $region119: #{neuralnet_forward.1} parent=11 // pred_region
        _
      $region120: #{neuralnet_forward.1} parent=11 // pred_fallthru
        _
      // Predicated region
      $region121: #{neuralnet_forward.1} parent=11 // pred_check
        %p801 = pneg %p679
      $region122: #{neuralnet_forward.1} parent=11 // pred_check_branch
        %803 = sbr.rel (%p801) target = $region124
      $region123: #{neuralnet_forward.1} parent=11 // pred_region
        _
      $region124: #{neuralnet_forward.1} parent=11 // pred_fallthru
        _
    $region12: #{neuralnet_forward.1} parent=5 // pred_fallthru
      _
    %p804 = scmp.lt.s32.totalorder %s65, 2
    // Predicated region
    $region125: #{neuralnet_forward.1} parent=5 // pred_check
      %p805 = pneg %p804
    $region126: #{neuralnet_forward.1} parent=5 // pred_check_branch
      %807 = sbr.rel (%p805) target = $region128
    $region127: #{neuralnet_forward.1} parent=5 // pred_region
      // Predicated region
      $region129: #{neuralnet_forward.1} parent=127 // pred_check
        %p808 = pneg %p85
      $region130: #{neuralnet_forward.1} parent=127 // pred_check_branch
        %810 = sbr.rel (%p808) target = $region132
      $region131: #{neuralnet_forward.1} parent=127 // pred_region
        %p811 = scmp.lt.s32.totalorder %s65, 1
        %s812 = scalar_select %p811, %s65, 1
        %s813 = smul.addr %s812, 4
        %s814 = smul.addr %s813, 8
        %s815 = scalar_lea.vmem %s1, %s814
      $region132: #{neuralnet_forward.1} parent=127 // pred_fallthru
        _
    $region128: #{neuralnet_forward.1} parent=5 // pred_fallthru
      _
    %p816 = scmp.le.s32.totalorder 1, %s65
    %p817 = scmp.lt.s32.totalorder %s65, 3
    %p818 = pnand %p816, %p817
    %p819 = pneg %p818
    // Predicated region
    $region133: #{neuralnet_forward.1} parent=5 // pred_check
      _
    $region134: #{neuralnet_forward.1} parent=5 // pred_check_branch
      %821 = sbr.rel (%p818) target = $region136
    $region135: #{neuralnet_forward.1} parent=5 // pred_region
      %s822 = ssub.s32 %s65, 1
      %p823 = scmp.lt.s32.totalorder %s70, 1
      %s824 = scalar_select %p823, %s70, 1
      %s825 = smul.addr %s824, 4
      %s826 = smul.addr %s825, 8
      %s827 = scalar_lea.vmem %s1, %s826
      %p828 = pneg %p91
      %p829 = pneg %p88
      %p830 = pneg %p112
      %p831 = pneg %p109
      %p832 = pneg %p133
      %p833 = pneg %p130
      %p834 = pneg %p154
      %p835 = pneg %p151
      %p836 = pneg %p175
      %p837 = pneg %p172
      %p838 = pneg %p196
      %p839 = pneg %p193
      %p840 = pneg %p217
      %p841 = pneg %p214
      %p842 = pneg %p238
      %p843 = pneg %p235
      %p844 = pneg %p259
      %p845 = pneg %p256
      %p846 = pneg %p280
      %p847 = pneg %p277
      %p848 = pneg %p301
      %p849 = pneg %p298
      %p850 = pneg %p322
      %p851 = pneg %p319
      %p852 = pneg %p343
      %p853 = pneg %p340
      %p854 = pneg %p364
      %p855 = pneg %p361
      %p856 = pneg %p385
      %p857 = pneg %p382
      %p858 = pneg %p406
      %p859 = pneg %p403
      %p860 = pneg %p427
      %p861 = pneg %p424
      %p862 = pneg %p448
      %p863 = pneg %p445
      %p864 = pneg %p469
      %p865 = pneg %p466
      %p866 = pneg %p490
      %p867 = pneg %p487
      %p868 = pneg %p511
      %p869 = pneg %p508
      %p870 = pneg %p532
      %p871 = pneg %p529
      %p872 = pneg %p553
      %p873 = pneg %p550
      %p874 = pneg %p574
      %p875 = pneg %p571
      %p876 = pneg %p595
      %p877 = pneg %p592
      %p878 = pneg %p616
      %p879 = pneg %p613
      %p880 = pneg %p637
      %p881 = pneg %p634
      %p882 = pneg %p658
      %p883 = pneg %p655
      %p884 = pneg %p679
      %p885 = pneg %p676
      %p886 = pneg %p705
      %p887 = pneg %p702
      %p888 = scmp.lt.s32.totalorder %s70, 1
      %s889 = scalar_select %p888, %s70, 1
      %s890 = smul.addr %s889, 4
      %s891 = smul.addr %s890, 8
      %s892 = scalar_lea.vmem %s59, %s891
      %p893 = scmp.lt.s32.totalorder %s70, 1
      %s894 = scalar_select %p893, %s70, 1
      %s895 = smul.addr %s894, 4
      %s896 = smul.addr %s895, 8
      %s897 = scalar_lea.vmem %s1, %s896
      %p898 = scmp.lt.s32.totalorder %s70, 1
      %s899 = scalar_select %p898, %s70, 1
      %s900 = smul.addr %s899, 4
      %s901 = smul.addr %s900, 8
      %s902 = scalar_lea.vmem %s59, %s901
      %v904 = vld [vmem:[%s897] sm:$0xff]
      %v905 = vld [vmem:[%s897 + $0x8] sm:$0xff]
      %v906 = vld [vmem:[%s897 + $0x10] sm:$0xff]
      %v907 = vld [vmem:[%s897 + $0x18] sm:$0xf]
      %v908 = vpack.c.bf16 %v905, %v904
      %v909 = vpack.c.bf16 %v907, %v906
      %v910 = vld [vmem:[%s3] sm:$0xff]
      %v911 = vld [vmem:[%s3 + $0x8] sm:$0xff]
      %v912 = vld [vmem:[%s3 + $0x10] sm:$0xff]
      %v913 = vld [vmem:[%s3 + $0x18] sm:$0xff]
      %v914 = vld [vmem:[%s3 + $0x20] sm:$0xff]
      %v915 = vld [vmem:[%s3 + $0x28] sm:$0xff]
      %v916 = vld [vmem:[%s3 + $0x30] sm:$0xff]
      %v917 = vld [vmem:[%s3 + $0x38] sm:$0xff]
      %v918 = vld [vmem:[%s3 + $0x40] sm:$0xff]
      %v919 = vld [vmem:[%s3 + $0x48] sm:$0xff]
      %v920 = vld [vmem:[%s3 + $0x50] sm:$0x33]
      %s921 = scalar_lea.vmem %s3, 88
      %v922 = vld [vmem:[%s921] sm:$0xff]
      %v923 = vld [vmem:[%s921 + $0x8] sm:$0xff]
      %v924 = vld [vmem:[%s921 + $0x10] sm:$0xff]
      %v925 = vld [vmem:[%s921 + $0x18] sm:$0xff]
      %v926 = vld [vmem:[%s921 + $0x20] sm:$0xff]
      %v927 = vld [vmem:[%s921 + $0x28] sm:$0xff]
      %v928 = vld [vmem:[%s921 + $0x30] sm:$0xff]
      %v929 = vld [vmem:[%s921 + $0x38] sm:$0xff]
      %v930 = vld [vmem:[%s921 + $0x40] sm:$0xff]
      %v931 = vld [vmem:[%s921 + $0x48] sm:$0xff]
      %v932 = vld [vmem:[%s921 + $0x50] sm:$0x33]
      %vm933 = vsmask.f32 7424
      %v935 = vshrl.u32 %v908, 16
      %v937 = vshll.u32 %v908, 16
      %v939 = vrot.slane %v937, 1
      %v940 = vor.u32 %v935, %v939
      %v942 = vshll.u32 %v909, 16
      %v944 = vrot.slane %v942, 1
      %v945 = vsel %vm933, %v940, %v944
      %v946 = vshrl.u32 %v909, 16
      %v948 = vor.u32 %v946, %v944
      %v960 = vunpack.c.l.b16 %v922
      %v961 = vunpack.c.h.b16 %v922
      %v962 = vunpack.c.l.b16 %v923
      %v963 = vunpack.c.h.b16 %v923
      %v964 = vunpack.c.l.b16 %v924
      %v965 = vunpack.c.h.b16 %v924
      %v966 = vunpack.c.l.b16 %v925
      %v967 = vunpack.c.h.b16 %v925
      %v968 = vunpack.c.l.b16 %v926
      %v969 = vunpack.c.h.b16 %v926
      %v970 = vunpack.c.l.b16 %v927
      %v971 = vunpack.c.h.b16 %v927
      %v972 = vunpack.c.l.b16 %v928
      %v973 = vunpack.c.h.b16 %v928
      %v974 = vunpack.c.l.b16 %v929
      %v975 = vunpack.c.h.b16 %v929
      %v976 = vunpack.c.l.b16 %v930
      %v977 = vunpack.c.h.b16 %v930
      %v978 = vunpack.c.l.b16 %v931
      %v979 = vunpack.c.h.b16 %v931
      %v980 = vunpack.c.l.b16 %v932
      %v981 = vunpack.c.h.b16 %v932
      %v982 = vpack.c.b16 %v962, %v960
      %v983 = vpack.c.b16 %v963, %v961
      %v984 = vpack.c.b16 %v966, %v964
      %v985 = vpack.c.b16 %v967, %v965
      %v986 = vpack.c.b16 %v970, %v968
      %v987 = vpack.c.b16 %v971, %v969
      %v988 = vpack.c.b16 %v974, %v972
      %v989 = vpack.c.b16 %v975, %v973
      %v990 = vpack.c.b16 %v978, %v976
      %v991 = vpack.c.b16 %v979, %v977
      %v992 = vpack.c.b16 %v980, %v980
      %v993 = vpack.c.b16 %v981, %v981
      %vm1004 = vcmask 687104
      %v1006 = vsel %vm1004, %v945, 0
      %v1009 = vsel %vm1004, %v948, 0
      %vm1011 = vcmask 1041408
      %v1013 = vsel %vm1011, %v992, 0
      %v1016 = vsel %vm1011, %v993, 0
      %1018 = vmatprep.subr.bf16.mxu0 %v983
      %1019 = vmatpush1.bf16.msra.mxu0 %v982
      %1020 = vmatprep.subr.bf16.mxu0 %v985
      %1021 = vmatpush1.bf16.msra.mxu0 %v984
      %1022 = vmatprep.subr.bf16.mxu0 %v987
      %1023 = vmatpush1.bf16.msra.mxu0 %v986
      %1024 = vmatprep.subr.bf16.mxu0 %v989
      %1025 = vmatpush1.bf16.msra.mxu0 %v988
      %1026 = vmatprep.subr.bf16.mxu0 %v991
      %1027 = vmatpush1.bf16.msra.mxu0 %v990
      %1028 = vmatprep.subr.bf16.mxu0 %v1016
      %1029 = vmatpush1.bf16.msra.mxu0 %v1013
      %1030 = vmatprep.subr.bf16.mxu0 0
      %1031 = vmatpush1.bf16.msra.mxu0 0
      %1032 = vmatprep.subr.bf16.mxu0 0
      %1033 = vmatpush1.bf16.msra.mxu0 0
      %1034 = vmatprep.subr.bf16.mxu0 0
      %1035 = vmatpush1.bf16.msra.mxu0 0
      %1036 = vmatprep.subr.bf16.mxu0 0
      %1037 = vmatpush1.bf16.msra.mxu0 0
      %1038 = vmatprep.subr.bf16.mxu0 0
      %1039 = vmatpush1.bf16.msra.mxu0 0
      %1040 = vmatprep.subr.bf16.mxu0 0
      %1041 = vmatpush1.bf16.msra.mxu0 0
      %1042 = vmatprep.subr.bf16.mxu0 0
      %1043 = vmatpush1.bf16.msra.mxu0 0
      %1044 = vmatprep.subr.bf16.mxu0 0
      %1045 = vmatpush1.bf16.msra.mxu0 0
      %1046 = vmatprep.subr.bf16.mxu0 0
      %1047 = vmatpush1.bf16.msra.mxu0 0
      %1048 = vmatprep.subr.bf16.mxu0 0
      %1049 = vmatpush1.bf16.msra.mxu0 0
      %1050 = vmatprep.mubr.bf16.mxu0 0
      %1051 = vmatmul.mubr.bf16.gmra.mrb[0].mxu0 %v1006
      %v1052 = vpop.f32.mrb[0].mxu0
      %v1053 = vadd.f32 0.0, %v1052
      %v1054 = vpop.f32.mrb[0].mxu0
      %v1055 = vadd.f32 0.0, %v1054
      %v1056 = vpop.f32.mrb[0].mxu0
      %v1057 = vadd.f32 0.0, %v1056
      %v1058 = vpop.f32.mrb[0].mxu0
      %v1059 = vadd.f32 0.0, %v1058
      %1060 = vmatprep.mubr.bf16.mxu0 0
      %1061 = vmatmul.mubr.bf16.gmra.mrb[0].mxu0 %v1009
      %v1062 = vpop.f32.mrb[0].mxu0
      %v1063 = vadd.f32 0.0, %v1062
      %v1064 = vpop.f32.mrb[0].mxu0
      %v1065 = vadd.f32 0.0, %v1064
      %v1066 = vpop.f32.mrb[0].mxu0
      %v1067 = vadd.f32 0.0, %v1066
      %v1068 = vpop.f32.mrb[0].mxu0
      %v1069 = vadd.f32 0.0, %v1068
      %1070 = vdwg.mxu0
      %v1082 = vunpack.c.l.b16 %v910
      %v1083 = vunpack.c.h.b16 %v910
      %v1084 = vunpack.c.l.b16 %v911
      %v1085 = vunpack.c.h.b16 %v911
      %v1086 = vunpack.c.l.b16 %v912
      %v1087 = vunpack.c.h.b16 %v912
      %v1088 = vunpack.c.l.b16 %v913
      %v1089 = vunpack.c.h.b16 %v913
      %v1090 = vunpack.c.l.b16 %v914
      %v1091 = vunpack.c.h.b16 %v914
      %v1092 = vunpack.c.l.b16 %v915
      %v1093 = vunpack.c.h.b16 %v915
      %v1094 = vunpack.c.l.b16 %v916
      %v1095 = vunpack.c.h.b16 %v916
      %v1096 = vunpack.c.l.b16 %v917
      %v1097 = vunpack.c.h.b16 %v917
      %v1098 = vunpack.c.l.b16 %v918
      %v1099 = vunpack.c.h.b16 %v918
      %v1100 = vunpack.c.l.b16 %v919
      %v1101 = vunpack.c.h.b16 %v919
      %v1102 = vunpack.c.l.b16 %v920
      %v1103 = vunpack.c.h.b16 %v920
      %v1104 = vpack.c.b16 %v1084, %v1082
      %v1105 = vpack.c.b16 %v1085, %v1083
      %v1106 = vpack.c.b16 %v1088, %v1086
      %v1107 = vpack.c.b16 %v1089, %v1087
      %v1108 = vpack.c.b16 %v1092, %v1090
      %v1109 = vpack.c.b16 %v1093, %v1091
      %v1110 = vpack.c.b16 %v1096, %v1094
      %v1111 = vpack.c.b16 %v1097, %v1095
      %v1112 = vpack.c.b16 %v1100, %v1098
      %v1113 = vpack.c.b16 %v1101, %v1099
      %v1114 = vpack.c.b16 %v1102, %v1102
      %v1115 = vpack.c.b16 %v1103, %v1103
      %v1126 = vsel %vm1004, %v908, 0
      %v1128 = vsel %vm1004, %v909, 0
      %v1131 = vsel %vm1011, %v1114, 0
      %v1134 = vsel %vm1011, %v1115, 0
      %1136 = vmatprep.subr.bf16.mxu0 %v1105
      %1137 = vmatpush1.bf16.msra.mxu0 %v1104
      %1138 = vmatprep.subr.bf16.mxu0 %v1107
      %1139 = vmatpush1.bf16.msra.mxu0 %v1106
      %1140 = vmatprep.subr.bf16.mxu0 %v1109
      %1141 = vmatpush1.bf16.msra.mxu0 %v1108
      %1142 = vmatprep.subr.bf16.mxu0 %v1111
      %1143 = vmatpush1.bf16.msra.mxu0 %v1110
      %1144 = vmatprep.subr.bf16.mxu0 %v1113
      %1145 = vmatpush1.bf16.msra.mxu0 %v1112
      %1146 = vmatprep.subr.bf16.mxu0 %v1134
      %1147 = vmatpush1.bf16.msra.mxu0 %v1131
      %1148 = vmatprep.subr.bf16.mxu0 0
      %1149 = vmatpush1.bf16.msra.mxu0 0
      %1150 = vmatprep.subr.bf16.mxu0 0
      %1151 = vmatpush1.bf16.msra.mxu0 0
      %1152 = vmatprep.subr.bf16.mxu0 0
      %1153 = vmatpush1.bf16.msra.mxu0 0
      %1154 = vmatprep.subr.bf16.mxu0 0
      %1155 = vmatpush1.bf16.msra.mxu0 0
      %1156 = vmatprep.subr.bf16.mxu0 0
      %1157 = vmatpush1.bf16.msra.mxu0 0
      %1158 = vmatprep.subr.bf16.mxu0 0
      %1159 = vmatpush1.bf16.msra.mxu0 0
      %1160 = vmatprep.subr.bf16.mxu0 0
      %1161 = vmatpush1.bf16.msra.mxu0 0
      %1162 = vmatprep.subr.bf16.mxu0 0
      %1163 = vmatpush1.bf16.msra.mxu0 0
      %1164 = vmatprep.subr.bf16.mxu0 0
      %1165 = vmatpush1.bf16.msra.mxu0 0
      %1166 = vmatprep.subr.bf16.mxu0 0
      %1167 = vmatpush1.bf16.msra.mxu0 0
      %1168 = vmatprep.mubr.bf16.mxu0 0
      %1169 = vmatmul.mubr.bf16.gmra.mrb[0].mxu0 %v1126
      %v1170 = vpop.f32.mrb[0].mxu0
      %v1171 = vadd.f32 %v1053, %v1170
      %v1172 = vpop.f32.mrb[0].mxu0
      %v1173 = vadd.f32 %v1055, %v1172
      %v1174 = vpop.f32.mrb[0].mxu0
      %v1175 = vadd.f32 %v1057, %v1174
      %v1176 = vpop.f32.mrb[0].mxu0
      %v1177 = vadd.f32 %v1059, %v1176
      %1178 = vmatprep.mubr.bf16.mxu0 0
      %1179 = vmatmul.mubr.bf16.gmra.mrb[0].mxu0 %v1128
      %v1180 = vpop.f32.mrb[0].mxu0
      %v1181 = vadd.f32 %v1063, %v1180
      %v1182 = vpop.f32.mrb[0].mxu0
      %v1183 = vadd.f32 %v1065, %v1182
      %v1184 = vpop.f32.mrb[0].mxu0
      %v1185 = vadd.f32 %v1067, %v1184
      %v1186 = vpop.f32.mrb[0].mxu0
      %v1187 = vadd.f32 %v1069, %v1186
      %1188 = vdwg.mxu0
      %s1189 = scalar_lea.vmem %s3, 176
      %v1190 = vld [vmem:[%s1189] sm:$0xff]
      %v1191 = vld [vmem:[%s1189 + $0x8] sm:$0xff]
      %v1192 = vld [vmem:[%s1189 + $0x10] sm:$0xff]
      %v1193 = vld [vmem:[%s1189 + $0x18] sm:$0xff]
      %v1194 = vld [vmem:[%s1189 + $0x20] sm:$0xff]
      %v1195 = vld [vmem:[%s1189 + $0x28] sm:$0xff]
      %v1196 = vld [vmem:[%s1189 + $0x30] sm:$0xff]
      %v1197 = vld [vmem:[%s1189 + $0x38] sm:$0xff]
      %v1198 = vld [vmem:[%s1189 + $0x40] sm:$0xff]
      %v1199 = vld [vmem:[%s1189 + $0x48] sm:$0xff]
      %v1200 = vld [vmem:[%s1189 + $0x50] sm:$0x33]
      %vm1203 = vcmask 1046528
      %v1204 = vrot.slane %v908, 1
      %v1205 = vrot.slane %v909, 1
      %v1206 = vsel %vm1203, %v1204, %v1205
      %v1218 = vunpack.c.l.b16 %v1190
      %v1219 = vunpack.c.h.b16 %v1190
      %v1220 = vunpack.c.l.b16 %v1191
      %v1221 = vunpack.c.h.b16 %v1191
      %v1222 = vunpack.c.l.b16 %v1192
      %v1223 = vunpack.c.h.b16 %v1192
      %v1224 = vunpack.c.l.b16 %v1193
      %v1225 = vunpack.c.h.b16 %v1193
      %v1226 = vunpack.c.l.b16 %v1194
      %v1227 = vunpack.c.h.b16 %v1194
      %v1228 = vunpack.c.l.b16 %v1195
      %v1229 = vunpack.c.h.b16 %v1195
      %v1230 = vunpack.c.l.b16 %v1196
      %v1231 = vunpack.c.h.b16 %v1196
      %v1232 = vunpack.c.l.b16 %v1197
      %v1233 = vunpack.c.h.b16 %v1197
      %v1234 = vunpack.c.l.b16 %v1198
      %v1235 = vunpack.c.h.b16 %v1198
      %v1236 = vunpack.c.l.b16 %v1199
      %v1237 = vunpack.c.h.b16 %v1199
      %v1238 = vunpack.c.l.b16 %v1200
      %v1239 = vunpack.c.h.b16 %v1200
      %v1240 = vpack.c.b16 %v1220, %v1218
      %v1241 = vpack.c.b16 %v1221, %v1219
      %v1242 = vpack.c.b16 %v1224, %v1222
      %v1243 = vpack.c.b16 %v1225, %v1223
      %v1244 = vpack.c.b16 %v1228, %v1226
      %v1245 = vpack.c.b16 %v1229, %v1227
      %v1246 = vpack.c.b16 %v1232, %v1230
      %v1247 = vpack.c.b16 %v1233, %v1231
      %v1248 = vpack.c.b16 %v1236, %v1234
      %v1249 = vpack.c.b16 %v1237, %v1235
      %v1250 = vpack.c.b16 %v1238, %v1238
      %v1251 = vpack.c.b16 %v1239, %v1239
      %v1263 = vsel %vm1004, %v1206, 0
      %v1266 = vsel %vm1004, %v1205, 0
      %v1269 = vsel %vm1011, %v1250, 0
      %v1272 = vsel %vm1011, %v1251, 0
      %1274 = vmatprep.subr.bf16.mxu0 %v1241
      %1275 = vmatpush1.bf16.msra.mxu0 %v1240
      %1276 = vmatprep.subr.bf16.mxu0 %v1243
      %1277 = vmatpush1.bf16.msra.mxu0 %v1242
      %1278 = vmatprep.subr.bf16.mxu0 %v1245
      %1279 = vmatpush1.bf16.msra.mxu0 %v1244
      %1280 = vmatprep.subr.bf16.mxu0 %v1247
      %1281 = vmatpush1.bf16.msra.mxu0 %v1246
      %1282 = vmatprep.subr.bf16.mxu0 %v1249
      %1283 = vmatpush1.bf16.msra.mxu0 %v1248
      %1284 = vmatprep.subr.bf16.mxu0 %v1272
      %1285 = vmatpush1.bf16.msra.mxu0 %v1269
      %1286 = vmatprep.subr.bf16.mxu0 0
      %1287 = vmatpush1.bf16.msra.mxu0 0
      %1288 = vmatprep.subr.bf16.mxu0 0
      %1289 = vmatpush1.bf16.msra.mxu0 0
      %1290 = vmatprep.subr.bf16.mxu0 0
      %1291 = vmatpush1.bf16.msra.mxu0 0
      %1292 = vmatprep.subr.bf16.mxu0 0
      %1293 = vmatpush1.bf16.msra.mxu0 0
      %1294 = vmatprep.subr.bf16.mxu0 0
      %1295 = vmatpush1.bf16.msra.mxu0 0
      %1296 = vmatprep.subr.bf16.mxu0 0
      %1297 = vmatpush1.bf16.msra.mxu0 0
      %1298 = vmatprep.subr.bf16.mxu0 0
      %1299 = vmatpush1.bf16.msra.mxu0 0
      %1300 = vmatprep.subr.bf16.mxu0 0
      %1301 = vmatpush1.bf16.msra.mxu0 0
      %1302 = vmatprep.subr.bf16.mxu0 0
      %1303 = vmatpush1.bf16.msra.mxu0 0
      %1304 = vmatprep.subr.bf16.mxu0 0
      %1305 = vmatpush1.bf16.msra.mxu0 0
      %1306 = vmatprep.mubr.bf16.mxu0 0
      %1307 = vmatmul.mubr.bf16.gmra.mrb[0].mxu0 %v1263
      %v1308 = vpop.f32.mrb[0].mxu0
      %v1309 = vadd.f32 0.0, %v1308
      %v1310 = vpop.f32.mrb[0].mxu0
      %v1311 = vadd.f32 0.0, %v1310
      %v1312 = vpop.f32.mrb[0].mxu0
      %v1313 = vadd.f32 0.0, %v1312
      %v1314 = vpop.f32.mrb[0].mxu0
      %v1315 = vadd.f32 0.0, %v1314
      %1316 = vmatprep.mubr.bf16.mxu0 0
      %1317 = vmatmul.mubr.bf16.gmra.mrb[0].mxu0 %v1266
      %v1318 = vpop.f32.mrb[0].mxu0
      %v1319 = vadd.f32 0.0, %v1318
      %v1320 = vpop.f32.mrb[0].mxu0
      %v1321 = vadd.f32 0.0, %v1320
      %v1322 = vpop.f32.mrb[0].mxu0
      %v1323 = vadd.f32 0.0, %v1322
      %v1324 = vpop.f32.mrb[0].mxu0
      %v1325 = vadd.f32 0.0, %v1324
      %1326 = vdwg.mxu0
      %v1327 = vadd.f32 %v1171, %v1309
      %v1328 = vadd.f32 %v1173, %v1311
      %v1329 = vadd.f32 %v1175, %v1313
      %v1330 = vadd.f32 %v1177, %v1315
      %v1331 = vadd.f32 %v1181, %v1319
      %v1332 = vadd.f32 %v1183, %v1321
      %v1333 = vadd.f32 %v1185, %v1323
      %v1334 = vadd.f32 %v1187, %v1325
      %v1335 = vld [vmem:[%s5] sm:$0x3]
      %v1337 = vlaneseq
      %v1338 = vshrl.u32 %v1337, 7
      %v1339 = vsub.s32 0, %v1338
      %v1340 = vrot.slane %v1335, %v1339
      %v1341 = vlaneseq
      %v1342 = vshrl.u32 %v1341, 7
      %v1343 = vsub.s32 1, %v1342
      %v1344 = vrot.slane %v1335, %v1343
      %v1347 = vadd.f32 %v1327, %v1340
      %v1348 = vadd.f32 %v1328, %v1344
      %v1349 = vadd.f32 %v1329, %v1340
      %v1350 = vadd.f32 %v1330, %v1344
      %v1351 = vadd.f32 %v1331, %v1340
      %v1352 = vadd.f32 %v1332, %v1344
      %v1353 = vadd.f32 %v1333, %v1340
      %v1354 = vadd.f32 %v1334, %v1344
      %v1355 = vmax.f32 %v1347, 0.0
      %v1356 = vmax.f32 %v1348, 0.0
      %v1357 = vmax.f32 %v1349, 0.0
      %v1358 = vmax.f32 %v1350, 0.0
      %v1359 = vmax.f32 %v1351, 0.0
      %v1360 = vmax.f32 %v1352, 0.0
      %v1361 = vmax.f32 %v1353, 0.0
      %v1362 = vmax.f32 %v1354, 0.0
      %v1363 = vpack.c.bf16 %v1357, %v1355
      %v1364 = vpack.c.bf16 %v1358, %v1356
      %v1365 = vpack.c.bf16 %v1361, %v1359
      %v1366 = vpack.c.bf16 %v1362, %v1360
      %v1367 = vld [vmem:[%s7] sm:$0xff]
      %v1368 = vld [vmem:[%s7 + $0x8] sm:$0xf]
      %v1369 = vld [vmem:[%s7 + $0xc] sm:$0xff]
      %v1370 = vld [vmem:[%s7 + $0x14] sm:$0xf]
      %v1371 = vld [vmem:[%s7 + $0x18] sm:$0xff]
      %v1372 = vld [vmem:[%s7 + $0x20] sm:$0xf]
      %v1373 = vld [vmem:[%s7 + $0x24] sm:$0xff]
      %v1374 = vld [vmem:[%s7 + $0x2c] sm:$0xf]
      %v1375 = vld [vmem:[%s7 + $0x30] sm:$0xff]
      %v1376 = vld [vmem:[%s7 + $0x38] sm:$0xf]
      %v1377 = vld [vmem:[%s7 + $0x3c] sm:$0xff]
      %v1378 = vld [vmem:[%s7 + $0x44] sm:$0xf]
      %v1379 = vld [vmem:[%s7 + $0x48] sm:$0xff]
      %v1380 = vld [vmem:[%s7 + $0x50] sm:$0xf]
      %v1381 = vld [vmem:[%s7 + $0x54] sm:$0xff]
      %v1382 = vld [vmem:[%s7 + $0x5c] sm:$0xf]
      %v1383 = vld [vmem:[%s7 + $0x60] sm:$0xff]
      %v1384 = vld [vmem:[%s7 + $0x68] sm:$0xf]
      %v1385 = vld [vmem:[%s7 + $0x6c] sm:$0xff]
      %v1386 = vld [vmem:[%s7 + $0x74] sm:$0xf]
      %v1387 = vld [vmem:[%s7 + $0x78] sm:$0xff]
      %v1388 = vld [vmem:[%s7 + $0x80] sm:$0xf]
      %v1389 = vld [vmem:[%s7 + $0x84] sm:$0xff]
      %v1390 = vld [vmem:[%s7 + $0x8c] sm:$0xf]
      %v1391 = vld [vmem:[%s7 + $0x90] sm:$0xff]
      %v1392 = vld [vmem:[%s7 + $0x98] sm:$0xf]
      %v1393 = vld [vmem:[%s7 + $0x9c] sm:$0xff]
      %v1394 = vld [vmem:[%s7 + $0xa4] sm:$0xf]
      %v1395 = vld [vmem:[%s7 + $0xa8] sm:$0xff]
      %v1396 = vld [vmem:[%s7 + $0xb0] sm:$0xf]
      %v1397 = vld [vmem:[%s7 + $0xb4] sm:$0xff]
      %v1398 = vld [vmem:[%s7 + $0xbc] sm:$0xf]
      %v1399 = vld [vmem:[%s7 + $0xc0] sm:$0xff]
      %v1400 = vld [vmem:[%s7 + $0xc8] sm:$0xf]
      %v1401 = vld [vmem:[%s7 + $0xcc] sm:$0xff]
      %v1402 = vld [vmem:[%s7 + $0xd4] sm:$0xf]
      %v1403 = vld [vmem:[%s7 + $0xd8] sm:$0xff]
      %v1404 = vld [vmem:[%s7 + $0xe0] sm:$0xf]
      %v1405 = vld [vmem:[%s7 + $0xe4] sm:$0xff]
      %v1406 = vld [vmem:[%s7 + $0xec] sm:$0xf]
      %v1407 = vld [vmem:[%s7 + $0xf0] sm:$0xff]
      %v1408 = vld [vmem:[%s7 + $0xf8] sm:$0xf]
      %v1409 = vld [vmem:[%s7 + $0xfc] sm:$0xff]
      %v1410 = vld [vmem:[%s7 + $0x104] sm:$0xf]
      %v1411 = vld [vmem:[%s7 + $0x108] sm:$0xff]
      %v1412 = vld [vmem:[%s7 + $0x110] sm:$0xf]
      %v1413 = vld [vmem:[%s7 + $0x114] sm:$0xff]
      %v1414 = vld [vmem:[%s7 + $0x11c] sm:$0xf]
      %v1415 = vld [vmem:[%s7 + $0x120] sm:$0xff]
      %v1416 = vld [vmem:[%s7 + $0x128] sm:$0xf]
      %v1417 = vld [vmem:[%s7 + $0x12c] sm:$0xff]
      %v1418 = vld [vmem:[%s7 + $0x134] sm:$0xf]
      %s1419 = scalar_lea.vmem %s7, 312
      %v1420 = vld [vmem:[%s1419] sm:$0xff]
      %v1421 = vld [vmem:[%s1419 + $0x8] sm:$0xf]
      %v1422 = vld [vmem:[%s1419 + $0xc] sm:$0xff]
      %v1423 = vld [vmem:[%s1419 + $0x14] sm:$0xf]
      %v1424 = vld [vmem:[%s1419 + $0x18] sm:$0xff]
      %v1425 = vld [vmem:[%s1419 + $0x20] sm:$0xf]
      %v1426 = vld [vmem:[%s1419 + $0x24] sm:$0xff]
      %v1427 = vld [vmem:[%s1419 + $0x2c] sm:$0xf]
      %v1428 = vld [vmem:[%s1419 + $0x30] sm:$0xff]
      %v1429 = vld [vmem:[%s1419 + $0x38] sm:$0xf]
      %v1430 = vld [vmem:[%s1419 + $0x3c] sm:$0xff]
      %v1431 = vld [vmem:[%s1419 + $0x44] sm:$0xf]
      %v1432 = vld [vmem:[%s1419 + $0x48] sm:$0xff]
      %v1433 = vld [vmem:[%s1419 + $0x50] sm:$0xf]
      %v1434 = vld [vmem:[%s1419 + $0x54] sm:$0xff]
      %v1435 = vld [vmem:[%s1419 + $0x5c] sm:$0xf]
      %v1436 = vld [vmem:[%s1419 + $0x60] sm:$0xff]
      %v1437 = vld [vmem:[%s1419 + $0x68] sm:$0xf]
      %v1438 = vld [vmem:[%s1419 + $0x6c] sm:$0xff]
      %v1439 = vld [vmem:[%s1419 + $0x74] sm:$0xf]
      %v1440 = vld [vmem:[%s1419 + $0x78] sm:$0xff]
      %v1441 = vld [vmem:[%s1419 + $0x80] sm:$0xf]
      %v1442 = vld [vmem:[%s1419 + $0x84] sm:$0xff]
      %v1443 = vld [vmem:[%s1419 + $0x8c] sm:$0xf]
      %v1444 = vld [vmem:[%s1419 + $0x90] sm:$0xff]
      %v1445 = vld [vmem:[%s1419 + $0x98] sm:$0xf]
      %v1446 = vld [vmem:[%s1419 + $0x9c] sm:$0xff]
      %v1447 = vld [vmem:[%s1419 + $0xa4] sm:$0xf]
      %v1448 = vld [vmem:[%s1419 + $0xa8] sm:$0xff]
      %v1449 = vld [vmem:[%s1419 + $0xb0] sm:$0xf]
      %v1450 = vld [vmem:[%s1419 + $0xb4] sm:$0xff]
      %v1451 = vld [vmem:[%s1419 + $0xbc] sm:$0xf]
      %v1452 = vld [vmem:[%s1419 + $0xc0] sm:$0xff]
      %v1453 = vld [vmem:[%s1419 + $0xc8] sm:$0xf]
      %v1454 = vld [vmem:[%s1419 + $0xcc] sm:$0xff]
      %v1455 = vld [vmem:[%s1419 + $0xd4] sm:$0xf]
      %v1456 = vld [vmem:[%s1419 + $0xd8] sm:$0xff]
      %v1457 = vld [vmem:[%s1419 + $0xe0] sm:$0xf]
      %v1458 = vld [vmem:[%s1419 + $0xe4] sm:$0xff]
      %v1459 = vld [vmem:[%s1419 + $0xec] sm:$0xf]
      %v1460 = vld [vmem:[%s1419 + $0xf0] sm:$0xff]
      %v1461 = vld [vmem:[%s1419 + $0xf8] sm:$0xf]
      %v1462 = vld [vmem:[%s1419 + $0xfc] sm:$0xff]
      %v1463 = vld [vmem:[%s1419 + $0x104] sm:$0xf]
      %v1464 = vld [vmem:[%s1419 + $0x108] sm:$0xff]
      %v1465 = vld [vmem:[%s1419 + $0x110] sm:$0xf]
      %v1466 = vld [vmem:[%s1419 + $0x114] sm:$0xff]
      %v1467 = vld [vmem:[%s1419 + $0x11c] sm:$0xf]
      %v1468 = vld [vmem:[%s1419 + $0x120] sm:$0xff]
      %v1469 = vld [vmem:[%s1419 + $0x128] sm:$0xf]
      %v1470 = vld [vmem:[%s1419 + $0x12c] sm:$0xff]
      %v1471 = vld [vmem:[%s1419 + $0x134] sm:$0xf]
      %v1473 = vshrl.u32 %v1363, 16
      %v1475 = vshll.u32 %v1363, 16
      %v1477 = vrot.slane %v1475, 1
      %v1478 = vor.u32 %v1473, %v1477
      %v1480 = vshll.u32 %v1365, 16
      %v1482 = vrot.slane %v1480, 1
      %v1483 = vsel %vm933, %v1478, %v1482
      %v1485 = vshrl.u32 %v1364, 16
      %v1487 = vshll.u32 %v1364, 16
      %v1489 = vrot.slane %v1487, 1
      %v1490 = vor.u32 %v1485, %v1489
      %v1492 = vshll.u32 %v1366, 16
      %v1494 = vrot.slane %v1492, 1
      %v1495 = vsel %vm933, %v1490, %v1494
      %v1496 = vshrl.u32 %v1365, 16
      %v1498 = vor.u32 %v1496, %v1482
      %v1499 = vshrl.u32 %v1366, 16
      %v1501 = vor.u32 %v1499, %v1494
      %v1556 = vunpack.c.l.b16 %v1420
      %v1557 = vunpack.c.h.b16 %v1420
      %v1558 = vunpack.c.l.b16 %v1421
      %v1559 = vunpack.c.l.b16 %v1422
      %v1560 = vunpack.c.h.b16 %v1422
      %v1561 = vunpack.c.l.b16 %v1423
      %v1562 = vunpack.c.l.b16 %v1424
      %v1563 = vunpack.c.h.b16 %v1424
      %v1564 = vunpack.c.l.b16 %v1425
      %v1565 = vunpack.c.l.b16 %v1426
      %v1566 = vunpack.c.h.b16 %v1426
      %v1567 = vunpack.c.l.b16 %v1427
      %v1568 = vunpack.c.l.b16 %v1428
      %v1569 = vunpack.c.h.b16 %v1428
      %v1570 = vunpack.c.l.b16 %v1429
      %v1571 = vunpack.c.l.b16 %v1430
      %v1572 = vunpack.c.h.b16 %v1430
      %v1573 = vunpack.c.l.b16 %v1431
      %v1574 = vunpack.c.l.b16 %v1432
      %v1575 = vunpack.c.h.b16 %v1432
      %v1576 = vunpack.c.l.b16 %v1433
      %v1577 = vunpack.c.l.b16 %v1434
      %v1578 = vunpack.c.h.b16 %v1434
      %v1579 = vunpack.c.l.b16 %v1435
      %v1580 = vunpack.c.l.b16 %v1436
      %v1581 = vunpack.c.h.b16 %v1436
      %v1582 = vunpack.c.l.b16 %v1437
      %v1583 = vunpack.c.l.b16 %v1438
      %v1584 = vunpack.c.h.b16 %v1438
      %v1585 = vunpack.c.l.b16 %v1439
      %v1586 = vunpack.c.l.b16 %v1440
      %v1587 = vunpack.c.h.b16 %v1440
      %v1588 = vunpack.c.l.b16 %v1441
      %v1589 = vunpack.c.l.b16 %v1442
      %v1590 = vunpack.c.h.b16 %v1442
      %v1591 = vunpack.c.l.b16 %v1443
      %v1592 = vunpack.c.l.b16 %v1444
      %v1593 = vunpack.c.h.b16 %v1444
      %v1594 = vunpack.c.l.b16 %v1445
      %v1595 = vunpack.c.l.b16 %v1446
      %v1596 = vunpack.c.h.b16 %v1446
      %v1597 = vunpack.c.l.b16 %v1447
      %v1598 = vunpack.c.l.b16 %v1448
      %v1599 = vunpack.c.h.b16 %v1448
      %v1600 = vunpack.c.l.b16 %v1449
      %v1601 = vunpack.c.l.b16 %v1450
      %v1602 = vunpack.c.h.b16 %v1450
      %v1603 = vunpack.c.l.b16 %v1451
      %v1604 = vunpack.c.l.b16 %v1452
      %v1605 = vunpack.c.h.b16 %v1452
      %v1606 = vunpack.c.l.b16 %v1453
      %v1607 = vunpack.c.l.b16 %v1454
      %v1608 = vunpack.c.h.b16 %v1454
      %v1609 = vunpack.c.l.b16 %v1455
      %v1610 = vunpack.c.l.b16 %v1456
      %v1611 = vunpack.c.h.b16 %v1456
      %v1612 = vunpack.c.l.b16 %v1457
      %v1613 = vunpack.c.l.b16 %v1458
      %v1614 = vunpack.c.h.b16 %v1458
      %v1615 = vunpack.c.l.b16 %v1459
      %v1616 = vunpack.c.l.b16 %v1460
      %v1617 = vunpack.c.h.b16 %v1460
      %v1618 = vunpack.c.l.b16 %v1461
      %v1619 = vunpack.c.l.b16 %v1462
      %v1620 = vunpack.c.h.b16 %v1462
      %v1621 = vunpack.c.l.b16 %v1463
      %v1622 = vunpack.c.l.b16 %v1464
      %v1623 = vunpack.c.h.b16 %v1464
      %v1624 = vunpack.c.l.b16 %v1465
      %v1625 = vunpack.c.l.b16 %v1466
      %v1626 = vunpack.c.h.b16 %v1466
      %v1627 = vunpack.c.l.b16 %v1467
      %v1628 = vunpack.c.l.b16 %v1468
      %v1629 = vunpack.c.h.b16 %v1468
      %v1630 = vunpack.c.l.b16 %v1469
      %v1631 = vunpack.c.l.b16 %v1470
      %v1632 = vunpack.c.h.b16 %v1470
      %v1633 = vunpack.c.l.b16 %v1471
      %v1634 = vpack.c.b16 %v1559, %v1556
      %v1635 = vpack.c.b16 %v1560, %v1557
      %v1636 = vpack.c.b16 %v1561, %v1558
      %v1637 = vpack.c.b16 %v1565, %v1562
      %v1638 = vpack.c.b16 %v1566, %v1563
      %v1639 = vpack.c.b16 %v1567, %v1564
      %v1640 = vpack.c.b16 %v1571, %v1568
      %v1641 = vpack.c.b16 %v1572, %v1569
      %v1642 = vpack.c.b16 %v1573, %v1570
      %v1643 = vpack.c.b16 %v1577, %v1574
      %v1644 = vpack.c.b16 %v1578, %v1575
      %v1645 = vpack.c.b16 %v1579, %v1576
      %v1646 = vpack.c.b16 %v1583, %v1580
      %v1647 = vpack.c.b16 %v1584, %v1581
      %v1648 = vpack.c.b16 %v1585, %v1582
      %v1649 = vpack.c.b16 %v1589, %v1586
      %v1650 = vpack.c.b16 %v1590, %v1587
      %v1651 = vpack.c.b16 %v1591, %v1588
      %v1652 = vpack.c.b16 %v1595, %v1592
      %v1653 = vpack.c.b16 %v1596, %v1593
      %v1654 = vpack.c.b16 %v1597, %v1594
      %v1655 = vpack.c.b16 %v1601, %v1598
      %v1656 = vpack.c.b16 %v1602, %v1599
      %v1657 = vpack.c.b16 %v1603, %v1600
      %v1658 = vpack.c.b16 %v1607, %v1604
      %v1659 = vpack.c.b16 %v1608, %v1605
      %v1660 = vpack.c.b16 %v1609, %v1606
      %v1661 = vpack.c.b16 %v1613, %v1610
      %v1662 = vpack.c.b16 %v1614, %v1611
      %v1663 = vpack.c.b16 %v1615, %v1612
      %v1664 = vpack.c.b16 %v1619, %v1616
      %v1665 = vpack.c.b16 %v1620, %v1617
      %v1666 = vpack.c.b16 %v1621, %v1618
      %v1667 = vpack.c.b16 %v1625, %v1622
      %v1668 = vpack.c.b16 %v1626, %v1623
      %v1669 = vpack.c.b16 %v1627, %v1624
      %v1670 = vpack.c.b16 %v1631, %v1628
      %v1671 = vpack.c.b16 %v1632, %v1629
      %v1672 = vpack.c.b16 %v1633, %v1630
      %vm1712 = vcmask 654336
      %v1714 = vsel %vm1712, %v1495, 0
      %v1717 = vsel %vm1712, %v1501, 0
      %1719 = vmatprep.subr.bf16.mxu0 %v1635
      %1720 = vmatpush1.bf16.msra.mxu0 %v1634
      %1721 = vmatprep.subr.bf16.mxu0 %v1638
      %1722 = vmatpush1.bf16.msra.mxu0 %v1637
      %1723 = vmatprep.subr.bf16.mxu0 %v1641
      %1724 = vmatpush1.bf16.msra.mxu0 %v1640
      %1725 = vmatprep.subr.bf16.mxu0 %v1644
      %1726 = vmatpush1.bf16.msra.mxu0 %v1643
      %1727 = vmatprep.subr.bf16.mxu0 %v1647
      %1728 = vmatpush1.bf16.msra.mxu0 %v1646
      %1729 = vmatprep.subr.bf16.mxu0 %v1650
      %1730 = vmatpush1.bf16.msra.mxu0 %v1649
      %1731 = vmatprep.subr.bf16.mxu0 %v1653
      %1732 = vmatpush1.bf16.msra.mxu0 %v1652
      %1733 = vmatprep.subr.bf16.mxu0 %v1656
      %1734 = vmatpush1.bf16.msra.mxu0 %v1655
      %1735 = vmatprep.subr.bf16.mxu0 %v1659
      %1736 = vmatpush1.bf16.msra.mxu0 %v1658
      %1737 = vmatprep.subr.bf16.mxu0 %v1662
      %1738 = vmatpush1.bf16.msra.mxu0 %v1661
      %1739 = vmatprep.subr.bf16.mxu0 %v1665
      %1740 = vmatpush1.bf16.msra.mxu0 %v1664
      %1741 = vmatprep.subr.bf16.mxu0 %v1668
      %1742 = vmatpush1.bf16.msra.mxu0 %v1667
      %1743 = vmatprep.subr.bf16.mxu0 %v1671
      %1744 = vmatpush1.bf16.msra.mxu0 %v1670
      %1745 = vmatprep.subr.bf16.mxu0 0
      %1746 = vmatpush1.bf16.msra.mxu0 0
      %1747 = vmatprep.subr.bf16.mxu0 0
      %1748 = vmatpush1.bf16.msra.mxu0 0
      %1749 = vmatprep.subr.bf16.mxu0 0
      %1750 = vmatpush1.bf16.msra.mxu0 0
      %1751 = vmatprep.mubr.bf16.mxu0 %v1714
      %1752 = vmatmul.mubr.bf16.gmra.mrb[0].mxu0 %v1483
      %v1753 = vpop.f32.mrb[0].mxu0
      %v1754 = vadd.f32 0.0, %v1753
      %v1755 = vpop.f32.mrb[0].mxu0
      %v1756 = vadd.f32 0.0, %v1755
      %v1757 = vpop.f32.mrb[0].mxu0
      %v1758 = vadd.f32 0.0, %v1757
      %v1759 = vpop.f32.mrb[0].mxu0
      %v1760 = vadd.f32 0.0, %v1759
      %1761 = vmatprep.mubr.bf16.mxu0 %v1717
      %1762 = vmatmul.mubr.bf16.gmra.mrb[0].mxu0 %v1498
      %v1763 = vpop.f32.mrb[0].mxu0
      %v1764 = vadd.f32 0.0, %v1763
      %v1765 = vpop.f32.mrb[0].mxu0
      %v1766 = vadd.f32 0.0, %v1765
      %v1767 = vpop.f32.mrb[0].mxu0
      %v1768 = vpop.f32.mrb[0].mxu0
      %1769 = vdwg.mxu0
      %1770 = vmatprep.subr.bf16.mxu0 0
      %1771 = vmatpush1.bf16.msra.mxu0 %v1636
      %1772 = vmatprep.subr.bf16.mxu0 0
      %1773 = vmatpush1.bf16.msra.mxu0 %v1639
      %1774 = vmatprep.subr.bf16.mxu0 0
      %1775 = vmatpush1.bf16.msra.mxu0 %v1642
      %1776 = vmatprep.subr.bf16.mxu0 0
      %1777 = vmatpush1.bf16.msra.mxu0 %v1645
      %1778 = vmatprep.subr.bf16.mxu0 0
      %1779 = vmatpush1.bf16.msra.mxu0 %v1648
      %1780 = vmatprep.subr.bf16.mxu0 0
      %1781 = vmatpush1.bf16.msra.mxu0 %v1651
      %1782 = vmatprep.subr.bf16.mxu0 0
      %1783 = vmatpush1.bf16.msra.mxu0 %v1654
      %1784 = vmatprep.subr.bf16.mxu0 0
      %1785 = vmatpush1.bf16.msra.mxu0 %v1657
      %1786 = vmatprep.subr.bf16.mxu0 0
      %1787 = vmatpush1.bf16.msra.mxu0 %v1660
      %1788 = vmatprep.subr.bf16.mxu0 0
      %1789 = vmatpush1.bf16.msra.mxu0 %v1663
      %1790 = vmatprep.subr.bf16.mxu0 0
      %1791 = vmatpush1.bf16.msra.mxu0 %v1666
      %1792 = vmatprep.subr.bf16.mxu0 0
      %1793 = vmatpush1.bf16.msra.mxu0 %v1669
      %1794 = vmatprep.subr.bf16.mxu0 0
      %1795 = vmatpush1.bf16.msra.mxu0 %v1672
      %1796 = vmatprep.subr.bf16.mxu0 0
      %1797 = vmatpush1.bf16.msra.mxu0 0
      %1798 = vmatprep.subr.bf16.mxu0 0
      %1799 = vmatpush1.bf16.msra.mxu0 0
      %1800 = vmatprep.subr.bf16.mxu0 0
      %1801 = vmatpush1.bf16.msra.mxu0 0
      %1802 = vmatprep.mubr.bf16.mxu0 %v1714
      %1803 = vmatmul.mubr.bf16.gmra.mrb[0].mxu0 %v1483
      %v1804 = vpop.f32.mrb[0].mxu0
      %v1805 = vadd.f32 0.0, %v1804
      %v1806 = vpop.f32.mrb[0].mxu0
      %v1807 = vpop.f32.mrb[0].mxu0
      %v1808 = vadd.f32 0.0, %v1807
      %v1809 = vpop.f32.mrb[0].mxu0
      %1810 = vmatprep.mubr.bf16.mxu0 %v1717
      %1811 = vmatmul.mubr.bf16.gmra.mrb[0].mxu0 %v1498
      %v1812 = vpop.f32.mrb[0].mxu0
      %v1813 = vadd.f32 0.0, %v1812
      %v1814 = vpop.f32.mrb[0].mxu0
      %v1815 = vpop.f32.mrb[0].mxu0
      %v1816 = vpop.f32.mrb[0].mxu0
      %1817 = vdwg.mxu0
      %v1870 = vunpack.c.l.b16 %v1367
      %v1871 = vunpack.c.h.b16 %v1367
      %v1872 = vunpack.c.l.b16 %v1368
      %v1873 = vunpack.c.l.b16 %v1369
      %v1874 = vunpack.c.h.b16 %v1369
      %v1875 = vunpack.c.l.b16 %v1370
      %v1876 = vunpack.c.l.b16 %v1371
      %v1877 = vunpack.c.h.b16 %v1371
      %v1878 = vunpack.c.l.b16 %v1372
      %v1879 = vunpack.c.l.b16 %v1373
      %v1880 = vunpack.c.h.b16 %v1373
      %v1881 = vunpack.c.l.b16 %v1374
      %v1882 = vunpack.c.l.b16 %v1375
      %v1883 = vunpack.c.h.b16 %v1375
      %v1884 = vunpack.c.l.b16 %v1376
      %v1885 = vunpack.c.l.b16 %v1377
      %v1886 = vunpack.c.h.b16 %v1377
      %v1887 = vunpack.c.l.b16 %v1378
      %v1888 = vunpack.c.l.b16 %v1379
      %v1889 = vunpack.c.h.b16 %v1379
      %v1890 = vunpack.c.l.b16 %v1380
      %v1891 = vunpack.c.l.b16 %v1381
      %v1892 = vunpack.c.h.b16 %v1381
      %v1893 = vunpack.c.l.b16 %v1382
      %v1894 = vunpack.c.l.b16 %v1383
      %v1895 = vunpack.c.h.b16 %v1383
      %v1896 = vunpack.c.l.b16 %v1384
      %v1897 = vunpack.c.l.b16 %v1385
      %v1898 = vunpack.c.h.b16 %v1385
      %v1899 = vunpack.c.l.b16 %v1386
      %v1900 = vunpack.c.l.b16 %v1387
      %v1901 = vunpack.c.h.b16 %v1387
      %v1902 = vunpack.c.l.b16 %v1388
      %v1903 = vunpack.c.l.b16 %v1389
      %v1904 = vunpack.c.h.b16 %v1389
      %v1905 = vunpack.c.l.b16 %v1390
      %v1906 = vunpack.c.l.b16 %v1391
      %v1907 = vunpack.c.h.b16 %v1391
      %v1908 = vunpack.c.l.b16 %v1392
      %v1909 = vunpack.c.l.b16 %v1393
      %v1910 = vunpack.c.h.b16 %v1393
      %v1911 = vunpack.c.l.b16 %v1394
      %v1912 = vunpack.c.l.b16 %v1395
      %v1913 = vunpack.c.h.b16 %v1395
      %v1914 = vunpack.c.l.b16 %v1396
      %v1915 = vunpack.c.l.b16 %v1397
      %v1916 = vunpack.c.h.b16 %v1397
      %v1917 = vunpack.c.l.b16 %v1398
      %v1918 = vunpack.c.l.b16 %v1399
      %v1919 = vunpack.c.h.b16 %v1399
      %v1920 = vunpack.c.l.b16 %v1400
      %v1921 = vunpack.c.l.b16 %v1401
      %v1922 = vunpack.c.h.b16 %v1401
      %v1923 = vunpack.c.l.b16 %v1402
      %v1924 = vunpack.c.l.b16 %v1403
      %v1925 = vunpack.c.h.b16 %v1403
      %v1926 = vunpack.c.l.b16 %v1404
      %v1927 = vunpack.c.l.b16 %v1405
      %v1928 = vunpack.c.h.b16 %v1405
      %v1929 = vunpack.c.l.b16 %v1406
      %v1930 = vunpack.c.l.b16 %v1407
      %v1931 = vunpack.c.h.b16 %v1407
      %v1932 = vunpack.c.l.b16 %v1408
      %v1933 = vunpack.c.l.b16 %v1409
      %v1934 = vunpack.c.h.b16 %v1409
      %v1935 = vunpack.c.l.b16 %v1410
      %v1936 = vunpack.c.l.b16 %v1411
      %v1937 = vunpack.c.h.b16 %v1411
      %v1938 = vunpack.c.l.b16 %v1412
      %v1939 = vunpack.c.l.b16 %v1413
      %v1940 = vunpack.c.h.b16 %v1413
      %v1941 = vunpack.c.l.b16 %v1414
      %v1942 = vunpack.c.l.b16 %v1415
      %v1943 = vunpack.c.h.b16 %v1415
      %v1944 = vunpack.c.l.b16 %v1416
      %v1945 = vunpack.c.l.b16 %v1417
      %v1946 = vunpack.c.h.b16 %v1417
      %v1947 = vunpack.c.l.b16 %v1418
      %v1948 = vpack.c.b16 %v1873, %v1870
      %v1949 = vpack.c.b16 %v1874, %v1871
      %v1950 = vpack.c.b16 %v1875, %v1872
      %v1951 = vpack.c.b16 %v1879, %v1876
      %v1952 = vpack.c.b16 %v1880, %v1877
      %v1953 = vpack.c.b16 %v1881, %v1878
      %v1954 = vpack.c.b16 %v1885, %v1882
      %v1955 = vpack.c.b16 %v1886, %v1883
      %v1956 = vpack.c.b16 %v1887, %v1884
      %v1957 = vpack.c.b16 %v1891, %v1888
      %v1958 = vpack.c.b16 %v1892, %v1889
      %v1959 = vpack.c.b16 %v1893, %v1890
      %v1960 = vpack.c.b16 %v1897, %v1894
      %v1961 = vpack.c.b16 %v1898, %v1895
      %v1962 = vpack.c.b16 %v1899, %v1896
      %v1963 = vpack.c.b16 %v1903, %v1900
      %v1964 = vpack.c.b16 %v1904, %v1901
      %v1965 = vpack.c.b16 %v1905, %v1902
      %v1966 = vpack.c.b16 %v1909, %v1906
      %v1967 = vpack.c.b16 %v1910, %v1907
      %v1968 = vpack.c.b16 %v1911, %v1908
      %v1969 = vpack.c.b16 %v1915, %v1912
      %v1970 = vpack.c.b16 %v1916, %v1913
      %v1971 = vpack.c.b16 %v1917, %v1914
      %v1972 = vpack.c.b16 %v1921, %v1918
      %v1973 = vpack.c.b16 %v1922, %v1919
      %v1974 = vpack.c.b16 %v1923, %v1920
      %v1975 = vpack.c.b16 %v1927, %v1924
      %v1976 = vpack.c.b16 %v1928, %v1925
      %v1977 = vpack.c.b16 %v1929, %v1926
      %v1978 = vpack.c.b16 %v1933, %v1930
      %v1979 = vpack.c.b16 %v1934, %v1931
      %v1980 = vpack.c.b16 %v1935, %v1932
      %v1981 = vpack.c.b16 %v1939, %v1936
      %v1982 = vpack.c.b16 %v1940, %v1937
      %v1983 = vpack.c.b16 %v1941, %v1938
      %v1984 = vpack.c.b16 %v1945, %v1942
      %v1985 = vpack.c.b16 %v1946, %v1943
      %v1986 = vpack.c.b16 %v1947, %v1944
      %v2026 = vsel %vm1712, %v1364, 0
      %v2028 = vsel %vm1712, %v1366, 0
      %2030 = vmatprep.subr.bf16.mxu0 %v1949
      %2031 = vmatpush1.bf16.msra.mxu0 %v1948
      %2032 = vmatprep.subr.bf16.mxu0 %v1952
      %2033 = vmatpush1.bf16.msra.mxu0 %v1951
      %2034 = vmatprep.subr.bf16.mxu0 %v1955
      %2035 = vmatpush1.bf16.msra.mxu0 %v1954
      %2036 = vmatprep.subr.bf16.mxu0 %v1958
      %2037 = vmatpush1.bf16.msra.mxu0 %v1957
      %2038 = vmatprep.subr.bf16.mxu0 %v1961
      %2039 = vmatpush1.bf16.msra.mxu0 %v1960
      %2040 = vmatprep.subr.bf16.mxu0 %v1964
      %2041 = vmatpush1.bf16.msra.mxu0 %v1963
      %2042 = vmatprep.subr.bf16.mxu0 %v1967
      %2043 = vmatpush1.bf16.msra.mxu0 %v1966
      %2044 = vmatprep.subr.bf16.mxu0 %v1970
      %2045 = vmatpush1.bf16.msra.mxu0 %v1969
      %2046 = vmatprep.subr.bf16.mxu0 %v1973
      %2047 = vmatpush1.bf16.msra.mxu0 %v1972
      %2048 = vmatprep.subr.bf16.mxu0 %v1976
      %2049 = vmatpush1.bf16.msra.mxu0 %v1975
      %2050 = vmatprep.subr.bf16.mxu0 %v1979
      %2051 = vmatpush1.bf16.msra.mxu0 %v1978
      %2052 = vmatprep.subr.bf16.mxu0 %v1982
      %2053 = vmatpush1.bf16.msra.mxu0 %v1981
      %2054 = vmatprep.subr.bf16.mxu0 %v1985
      %2055 = vmatpush1.bf16.msra.mxu0 %v1984
      %2056 = vmatprep.subr.bf16.mxu0 0
      %2057 = vmatpush1.bf16.msra.mxu0 0
      %2058 = vmatprep.subr.bf16.mxu0 0
      %2059 = vmatpush1.bf16.msra.mxu0 0
      %2060 = vmatprep.subr.bf16.mxu0 0
      %2061 = vmatpush1.bf16.msra.mxu0 0
      %2062 = vmatprep.mubr.bf16.mxu0 %v2026
      %2063 = vmatmul.mubr.bf16.gmra.mrb[0].mxu0 %v1363
      %v2064 = vpop.f32.mrb[0].mxu0
      %v2065 = vadd.f32 %v1754, %v2064
      %v2066 = vpop.f32.mrb[0].mxu0
      %v2067 = vadd.f32 %v1756, %v2066
      %v2068 = vpop.f32.mrb[0].mxu0
      %v2069 = vadd.f32 %v1758, %v2068
      %v2070 = vpop.f32.mrb[0].mxu0
      %v2071 = vadd.f32 %v1760, %v2070
      %2072 = vmatprep.mubr.bf16.mxu0 %v2028
      %2073 = vmatmul.mubr.bf16.gmra.mrb[0].mxu0 %v1365
      %v2074 = vpop.f32.mrb[0].mxu0
      %v2075 = vadd.f32 %v1764, %v2074
      %v2076 = vpop.f32.mrb[0].mxu0
      %v2077 = vadd.f32 %v1766, %v2076
      %v2078 = vpop.f32.mrb[0].mxu0
      %v2079 = vpop.f32.mrb[0].mxu0
      %2080 = vdwg.mxu0
      %2081 = vmatprep.subr.bf16.mxu0 0
      %2082 = vmatpush1.bf16.msra.mxu0 %v1950
      %2083 = vmatprep.subr.bf16.mxu0 0
      %2084 = vmatpush1.bf16.msra.mxu0 %v1953
      %2085 = vmatprep.subr.bf16.mxu0 0
      %2086 = vmatpush1.bf16.msra.mxu0 %v1956
      %2087 = vmatprep.subr.bf16.mxu0 0
      %2088 = vmatpush1.bf16.msra.mxu0 %v1959
      %2089 = vmatprep.subr.bf16.mxu0 0
      %2090 = vmatpush1.bf16.msra.mxu0 %v1962
      %2091 = vmatprep.subr.bf16.mxu0 0
      %2092 = vmatpush1.bf16.msra.mxu0 %v1965
      %2093 = vmatprep.subr.bf16.mxu0 0
      %2094 = vmatpush1.bf16.msra.mxu0 %v1968
      %2095 = vmatprep.subr.bf16.mxu0 0
      %2096 = vmatpush1.bf16.msra.mxu0 %v1971
      %2097 = vmatprep.subr.bf16.mxu0 0
      %2098 = vmatpush1.bf16.msra.mxu0 %v1974
      %2099 = vmatprep.subr.bf16.mxu0 0
      %2100 = vmatpush1.bf16.msra.mxu0 %v1977
      %2101 = vmatprep.subr.bf16.mxu0 0
      %2102 = vmatpush1.bf16.msra.mxu0 %v1980
      %2103 = vmatprep.subr.bf16.mxu0 0
      %2104 = vmatpush1.bf16.msra.mxu0 %v1983
      %2105 = vmatprep.subr.bf16.mxu0 0
      %2106 = vmatpush1.bf16.msra.mxu0 %v1986
      %2107 = vmatprep.subr.bf16.mxu0 0
      %2108 = vmatpush1.bf16.msra.mxu0 0
      %2109 = vmatprep.subr.bf16.mxu0 0
      %2110 = vmatpush1.bf16.msra.mxu0 0
      %2111 = vmatprep.subr.bf16.mxu0 0
      %2112 = vmatpush1.bf16.msra.mxu0 0
      %2113 = vmatprep.mubr.bf16.mxu0 %v2026
      %2114 = vmatmul.mubr.bf16.gmra.mrb[0].mxu0 %v1363
      %v2115 = vpop.f32.mrb[0].mxu0
      %v2116 = vadd.f32 %v1805, %v2115
      %v2117 = vpop.f32.mrb[0].mxu0
      %v2118 = vpop.f32.mrb[0].mxu0
      %v2119 = vadd.f32 %v1808, %v2118
      %v2120 = vpop.f32.mrb[0].mxu0
      %2121 = vmatprep.mubr.bf16.mxu0 %v2028
      %2122 = vmatmul.mubr.bf16.gmra.mrb[0].mxu0 %v1365
      %v2123 = vpop.f32.mrb[0].mxu0
      %v2124 = vadd.f32 %v1813, %v2123
      %v2125 = vpop.f32.mrb[0].mxu0
      %v2126 = vpop.f32.mrb[0].mxu0
      %v2127 = vpop.f32.mrb[0].mxu0
      %2128 = vdwg.mxu0
      %s2129 = scalar_lea.vmem %s7, 624
      %v2130 = vld [vmem:[%s2129] sm:$0xff]
      %v2131 = vld [vmem:[%s2129 + $0x8] sm:$0xf]
      %v2132 = vld [vmem:[%s2129 + $0xc] sm:$0xff]
      %v2133 = vld [vmem:[%s2129 + $0x14] sm:$0xf]
      %v2134 = vld [vmem:[%s2129 + $0x18] sm:$0xff]
      %v2135 = vld [vmem:[%s2129 + $0x20] sm:$0xf]
      %v2136 = vld [vmem:[%s2129 + $0x24] sm:$0xff]
      %v2137 = vld [vmem:[%s2129 + $0x2c] sm:$0xf]
      %v2138 = vld [vmem:[%s2129 + $0x30] sm:$0xff]
      %v2139 = vld [vmem:[%s2129 + $0x38] sm:$0xf]
      %v2140 = vld [vmem:[%s2129 + $0x3c] sm:$0xff]
      %v2141 = vld [vmem:[%s2129 + $0x44] sm:$0xf]
      %v2142 = vld [vmem:[%s2129 + $0x48] sm:$0xff]
      %v2143 = vld [vmem:[%s2129 + $0x50] sm:$0xf]
      %v2144 = vld [vmem:[%s2129 + $0x54] sm:$0xff]
      %v2145 = vld [vmem:[%s2129 + $0x5c] sm:$0xf]
      %v2146 = vld [vmem:[%s2129 + $0x60] sm:$0xff]
      %v2147 = vld [vmem:[%s2129 + $0x68] sm:$0xf]
      %v2148 = vld [vmem:[%s2129 + $0x6c] sm:$0xff]
      %v2149 = vld [vmem:[%s2129 + $0x74] sm:$0xf]
      %v2150 = vld [vmem:[%s2129 + $0x78] sm:$0xff]
      %v2151 = vld [vmem:[%s2129 + $0x80] sm:$0xf]
      %v2152 = vld [vmem:[%s2129 + $0x84] sm:$0xff]
      %v2153 = vld [vmem:[%s2129 + $0x8c] sm:$0xf]
      %v2154 = vld [vmem:[%s2129 + $0x90] sm:$0xff]
      %v2155 = vld [vmem:[%s2129 + $0x98] sm:$0xf]
      %v2156 = vld [vmem:[%s2129 + $0x9c] sm:$0xff]
      %v2157 = vld [vmem:[%s2129 + $0xa4] sm:$0xf]
      %v2158 = vld [vmem:[%s2129 + $0xa8] sm:$0xff]
      %v2159 = vld [vmem:[%s2129 + $0xb0] sm:$0xf]
      %v2160 = vld [vmem:[%s2129 + $0xb4] sm:$0xff]
      %v2161 = vld [vmem:[%s2129 + $0xbc] sm:$0xf]
      %v2162 = vld [vmem:[%s2129 + $0xc0] sm:$0xff]
      %v2163 = vld [vmem:[%s2129 + $0xc8] sm:$0xf]
      %v2164 = vld [vmem:[%s2129 + $0xcc] sm:$0xff]
      %v2165 = vld [vmem:[%s2129 + $0xd4] sm:$0xf]
      %v2166 = vld [vmem:[%s2129 + $0xd8] sm:$0xff]
      %v2167 = vld [vmem:[%s2129 + $0xe0] sm:$0xf]
      %v2168 = vld [vmem:[%s2129 + $0xe4] sm:$0xff]
      %v2169 = vld [vmem:[%s2129 + $0xec] sm:$0xf]
      %v2170 = vld [vmem:[%s2129 + $0xf0] sm:$0xff]
      %v2171 = vld [vmem:[%s2129 + $0xf8] sm:$0xf]
      %v2172 = vld [vmem:[%s2129 + $0xfc] sm:$0xff]
      %v2173 = vld [vmem:[%s2129 + $0x104] sm:$0xf]
      %v2174 = vld [vmem:[%s2129 + $0x108] sm:$0xff]
      %v2175 = vld [vmem:[%s2129 + $0x110] sm:$0xf]
      %v2176 = vld [vmem:[%s2129 + $0x114] sm:$0xff]
      %v2177 = vld [vmem:[%s2129 + $0x11c] sm:$0xf]
      %v2178 = vld [vmem:[%s2129 + $0x120] sm:$0xff]
      %v2179 = vld [vmem:[%s2129 + $0x128] sm:$0xf]
      %v2180 = vld [vmem:[%s2129 + $0x12c] sm:$0xff]
      %v2181 = vld [vmem:[%s2129 + $0x134] sm:$0xf]
      %v2186 = vrot.slane %v1363, 1
      %v2187 = vrot.slane %v1365, 1
      %v2188 = vsel %vm1203, %v2186, %v2187
      %v2189 = vrot.slane %v1364, 1
      %v2190 = vrot.slane %v1366, 1
      %v2191 = vsel %vm1203, %v2189, %v2190
      %v2246 = vunpack.c.l.b16 %v2130
      %v2247 = vunpack.c.h.b16 %v2130
      %v2248 = vunpack.c.l.b16 %v2131
      %v2249 = vunpack.c.l.b16 %v2132
      %v2250 = vunpack.c.h.b16 %v2132
      %v2251 = vunpack.c.l.b16 %v2133
      %v2252 = vunpack.c.l.b16 %v2134
      %v2253 = vunpack.c.h.b16 %v2134
      %v2254 = vunpack.c.l.b16 %v2135
      %v2255 = vunpack.c.l.b16 %v2136
      %v2256 = vunpack.c.h.b16 %v2136
      %v2257 = vunpack.c.l.b16 %v2137
      %v2258 = vunpack.c.l.b16 %v2138
      %v2259 = vunpack.c.h.b16 %v2138
      %v2260 = vunpack.c.l.b16 %v2139
      %v2261 = vunpack.c.l.b16 %v2140
      %v2262 = vunpack.c.h.b16 %v2140
      %v2263 = vunpack.c.l.b16 %v2141
      %v2264 = vunpack.c.l.b16 %v2142
      %v2265 = vunpack.c.h.b16 %v2142
      %v2266 = vunpack.c.l.b16 %v2143
      %v2267 = vunpack.c.l.b16 %v2144
      %v2268 = vunpack.c.h.b16 %v2144
      %v2269 = vunpack.c.l.b16 %v2145
      %v2270 = vunpack.c.l.b16 %v2146
      %v2271 = vunpack.c.h.b16 %v2146
      %v2272 = vunpack.c.l.b16 %v2147
      %v2273 = vunpack.c.l.b16 %v2148
      %v2274 = vunpack.c.h.b16 %v2148
      %v2275 = vunpack.c.l.b16 %v2149
      %v2276 = vunpack.c.l.b16 %v2150
      %v2277 = vunpack.c.h.b16 %v2150
      %v2278 = vunpack.c.l.b16 %v2151
      %v2279 = vunpack.c.l.b16 %v2152
      %v2280 = vunpack.c.h.b16 %v2152
      %v2281 = vunpack.c.l.b16 %v2153
      %v2282 = vunpack.c.l.b16 %v2154
      %v2283 = vunpack.c.h.b16 %v2154
      %v2284 = vunpack.c.l.b16 %v2155
      %v2285 = vunpack.c.l.b16 %v2156
      %v2286 = vunpack.c.h.b16 %v2156
      %v2287 = vunpack.c.l.b16 %v2157
      %v2288 = vunpack.c.l.b16 %v2158
      %v2289 = vunpack.c.h.b16 %v2158
      %v2290 = vunpack.c.l.b16 %v2159
      %v2291 = vunpack.c.l.b16 %v2160
      %v2292 = vunpack.c.h.b16 %v2160
      %v2293 = vunpack.c.l.b16 %v2161
      %v2294 = vunpack.c.l.b16 %v2162
      %v2295 = vunpack.c.h.b16 %v2162
      %v2296 = vunpack.c.l.b16 %v2163
      %v2297 = vunpack.c.l.b16 %v2164
      %v2298 = vunpack.c.h.b16 %v2164
      %v2299 = vunpack.c.l.b16 %v2165
      %v2300 = vunpack.c.l.b16 %v2166
      %v2301 = vunpack.c.h.b16 %v2166
      %v2302 = vunpack.c.l.b16 %v2167
      %v2303 = vunpack.c.l.b16 %v2168
      %v2304 = vunpack.c.h.b16 %v2168
      %v2305 = vunpack.c.l.b16 %v2169
      %v2306 = vunpack.c.l.b16 %v2170
      %v2307 = vunpack.c.h.b16 %v2170
      %v2308 = vunpack.c.l.b16 %v2171
      %v2309 = vunpack.c.l.b16 %v2172
      %v2310 = vunpack.c.h.b16 %v2172
      %v2311 = vunpack.c.l.b16 %v2173
      %v2312 = vunpack.c.l.b16 %v2174
      %v2313 = vunpack.c.h.b16 %v2174
      %v2314 = vunpack.c.l.b16 %v2175
      %v2315 = vunpack.c.l.b16 %v2176
      %v2316 = vunpack.c.h.b16 %v2176
      %v2317 = vunpack.c.l.b16 %v2177
      %v2318 = vunpack.c.l.b16 %v2178
      %v2319 = vunpack.c.h.b16 %v2178
      %v2320 = vunpack.c.l.b16 %v2179
      %v2321 = vunpack.c.l.b16 %v2180
      %v2322 = vunpack.c.h.b16 %v2180
      %v2323 = vunpack.c.l.b16 %v2181
      %v2324 = vpack.c.b16 %v2249, %v2246
      %v2325 = vpack.c.b16 %v2250, %v2247
      %v2326 = vpack.c.b16 %v2251, %v2248
      %v2327 = vpack.c.b16 %v2255, %v2252
      %v2328 = vpack.c.b16 %v2256, %v2253
      %v2329 = vpack.c.b16 %v2257, %v2254
      %v2330 = vpack.c.b16 %v2261, %v2258
      %v2331 = vpack.c.b16 %v2262, %v2259
      %v2332 = vpack.c.b16 %v2263, %v2260
      %v2333 = vpack.c.b16 %v2267, %v2264
      %v2334 = vpack.c.b16 %v2268, %v2265
      %v2335 = vpack.c.b16 %v2269, %v2266
      %v2336 = vpack.c.b16 %v2273, %v2270
      %v2337 = vpack.c.b16 %v2274, %v2271
      %v2338 = vpack.c.b16 %v2275, %v2272
      %v2339 = vpack.c.b16 %v2279, %v2276
      %v2340 = vpack.c.b16 %v2280, %v2277
      %v2341 = vpack.c.b16 %v2281, %v2278
      %v2342 = vpack.c.b16 %v2285, %v2282
      %v2343 = vpack.c.b16 %v2286, %v2283
      %v2344 = vpack.c.b16 %v2287, %v2284
      %v2345 = vpack.c.b16 %v2291, %v2288
      %v2346 = vpack.c.b16 %v2292, %v2289
      %v2347 = vpack.c.b16 %v2293, %v2290
      %v2348 = vpack.c.b16 %v2297, %v2294
      %v2349 = vpack.c.b16 %v2298, %v2295
      %v2350 = vpack.c.b16 %v2299, %v2296
      %v2351 = vpack.c.b16 %v2303, %v2300
      %v2352 = vpack.c.b16 %v2304, %v2301
      %v2353 = vpack.c.b16 %v2305, %v2302
      %v2354 = vpack.c.b16 %v2309, %v2306
      %v2355 = vpack.c.b16 %v2310, %v2307
      %v2356 = vpack.c.b16 %v2311, %v2308
      %v2357 = vpack.c.b16 %v2315, %v2312
      %v2358 = vpack.c.b16 %v2316, %v2313
      %v2359 = vpack.c.b16 %v2317, %v2314
      %v2360 = vpack.c.b16 %v2321, %v2318
      %v2361 = vpack.c.b16 %v2322, %v2319
      %v2362 = vpack.c.b16 %v2323, %v2320
      %v2403 = vsel %vm1712, %v2191, 0
      %v2406 = vsel %vm1712, %v2190, 0
      %2408 = vmatprep.subr.bf16.mxu0 %v2325
      %2409 = vmatpush1.bf16.msra.mxu0 %v2324
      %2410 = vmatprep.subr.bf16.mxu0 %v2328
      %2411 = vmatpush1.bf16.msra.mxu0 %v2327
      %2412 = vmatprep.subr.bf16.mxu0 %v2331
      %2413 = vmatpush1.bf16.msra.mxu0 %v2330
      %2414 = vmatprep.subr.bf16.mxu0 %v2334
      %2415 = vmatpush1.bf16.msra.mxu0 %v2333
      %2416 = vmatprep.subr.bf16.mxu0 %v2337
      %2417 = vmatpush1.bf16.msra.mxu0 %v2336
      %2418 = vmatprep.subr.bf16.mxu0 %v2340
      %2419 = vmatpush1.bf16.msra.mxu0 %v2339
      %2420 = vmatprep.subr.bf16.mxu0 %v2343
      %2421 = vmatpush1.bf16.msra.mxu0 %v2342
      %2422 = vmatprep.subr.bf16.mxu0 %v2346
      %2423 = vmatpush1.bf16.msra.mxu0 %v2345
      %2424 = vmatprep.subr.bf16.mxu0 %v2349
      %2425 = vmatpush1.bf16.msra.mxu0 %v2348
      %2426 = vmatprep.subr.bf16.mxu0 %v2352
      %2427 = vmatpush1.bf16.msra.mxu0 %v2351
      %2428 = vmatprep.subr.bf16.mxu0 %v2355
      %2429 = vmatpush1.bf16.msra.mxu0 %v2354
      %2430 = vmatprep.subr.bf16.mxu0 %v2358
      %2431 = vmatpush1.bf16.msra.mxu0 %v2357
      %2432 = vmatprep.subr.bf16.mxu0 %v2361
      %2433 = vmatpush1.bf16.msra.mxu0 %v2360
      %2434 = vmatprep.subr.bf16.mxu0 0
      %2435 = vmatpush1.bf16.msra.mxu0 0
      %2436 = vmatprep.subr.bf16.mxu0 0
      %2437 = vmatpush1.bf16.msra.mxu0 0
      %2438 = vmatprep.subr.bf16.mxu0 0
      %2439 = vmatpush1.bf16.msra.mxu0 0
      %2440 = vmatprep.mubr.bf16.mxu0 %v2403
      %2441 = vmatmul.mubr.bf16.gmra.mrb[0].mxu0 %v2188
      %v2442 = vpop.f32.mrb[0].mxu0
      %v2443 = vadd.f32 0.0, %v2442
      %v2444 = vpop.f32.mrb[0].mxu0
      %v2445 = vadd.f32 0.0, %v2444
      %v2446 = vpop.f32.mrb[0].mxu0
      %v2447 = vadd.f32 0.0, %v2446
      %v2448 = vpop.f32.mrb[0].mxu0
      %v2449 = vadd.f32 0.0, %v2448
      %2450 = vmatprep.mubr.bf16.mxu0 %v2406
      %2451 = vmatmul.mubr.bf16.gmra.mrb[0].mxu0 %v2187
      %v2452 = vpop.f32.mrb[0].mxu0
      %v2453 = vadd.f32 0.0, %v2452
      %v2454 = vpop.f32.mrb[0].mxu0
      %v2455 = vadd.f32 0.0, %v2454
      %v2456 = vpop.f32.mrb[0].mxu0
      %v2457 = vpop.f32.mrb[0].mxu0
      %2458 = vdwg.mxu0
      %2459 = vmatprep.subr.bf16.mxu0 0
      %2460 = vmatpush1.bf16.msra.mxu0 %v2326
      %2461 = vmatprep.subr.bf16.mxu0 0
      %2462 = vmatpush1.bf16.msra.mxu0 %v2329
      %2463 = vmatprep.subr.bf16.mxu0 0
      %2464 = vmatpush1.bf16.msra.mxu0 %v2332
      %2465 = vmatprep.subr.bf16.mxu0 0
      %2466 = vmatpush1.bf16.msra.mxu0 %v2335
      %2467 = vmatprep.subr.bf16.mxu0 0
      %2468 = vmatpush1.bf16.msra.mxu0 %v2338
      %2469 = vmatprep.subr.bf16.mxu0 0
      %2470 = vmatpush1.bf16.msra.mxu0 %v2341
      %2471 = vmatprep.subr.bf16.mxu0 0
      %2472 = vmatpush1.bf16.msra.mxu0 %v2344
      %2473 = vmatprep.subr.bf16.mxu0 0
      %2474 = vmatpush1.bf16.msra.mxu0 %v2347
      %2475 = vmatprep.subr.bf16.mxu0 0
      %2476 = vmatpush1.bf16.msra.mxu0 %v2350
      %2477 = vmatprep.subr.bf16.mxu0 0
      %2478 = vmatpush1.bf16.msra.mxu0 %v2353
      %2479 = vmatprep.subr.bf16.mxu0 0
      %2480 = vmatpush1.bf16.msra.mxu0 %v2356
      %2481 = vmatprep.subr.bf16.mxu0 0
      %2482 = vmatpush1.bf16.msra.mxu0 %v2359
      %2483 = vmatprep.subr.bf16.mxu0 0
      %2484 = vmatpush1.bf16.msra.mxu0 %v2362
      %2485 = vmatprep.subr.bf16.mxu0 0
      %2486 = vmatpush1.bf16.msra.mxu0 0
      %2487 = vmatprep.subr.bf16.mxu0 0
      %2488 = vmatpush1.bf16.msra.mxu0 0
      %2489 = vmatprep.subr.bf16.mxu0 0
      %2490 = vmatpush1.bf16.msra.mxu0 0
      %2491 = vmatprep.mubr.bf16.mxu0 %v2403
      %2492 = vmatmul.mubr.bf16.gmra.mrb[0].mxu0 %v2188
      %v2493 = vpop.f32.mrb[0].mxu0
      %v2494 = vadd.f32 0.0, %v2493
      %v2495 = vpop.f32.mrb[0].mxu0
      %v2496 = vpop.f32.mrb[0].mxu0
      %v2497 = vadd.f32 0.0, %v2496
      %v2498 = vpop.f32.mrb[0].mxu0
      %2499 = vmatprep.mubr.bf16.mxu0 %v2406
      %2500 = vmatmul.mubr.bf16.gmra.mrb[0].mxu0 %v2187
      %v2501 = vpop.f32.mrb[0].mxu0
      %v2502 = vadd.f32 0.0, %v2501
      %v2503 = vpop.f32.mrb[0].mxu0
      %v2504 = vpop.f32.mrb[0].mxu0
      %v2505 = vpop.f32.mrb[0].mxu0
      %2506 = vdwg.mxu0
      %v2507 = vadd.f32 %v2065, %v2443
      %v2508 = vadd.f32 %v2067, %v2445
      %v2509 = vadd.f32 %v2116, %v2494
      %v2510 = vadd.f32 %v2069, %v2447
      %v2511 = vadd.f32 %v2071, %v2449
      %v2512 = vadd.f32 %v2119, %v2497
      %v2513 = vadd.f32 %v2075, %v2453
      %v2514 = vadd.f32 %v2077, %v2455
      %v2515 = vadd.f32 %v2124, %v2502
      %v2516 = vld [vmem:[%s9] sm:$0x7]
      %v2518 = vlaneseq
      %v2519 = vshrl.u32 %v2518, 7
      %v2520 = vsub.s32 0, %v2519
      %v2521 = vrot.slane %v2516, %v2520
      %v2522 = vlaneseq
      %v2523 = vshrl.u32 %v2522, 7
      %v2524 = vsub.s32 1, %v2523
      %v2525 = vrot.slane %v2516, %v2524
      %v2526 = vlaneseq
      %v2527 = vshrl.u32 %v2526, 7
      %v2528 = vsub.s32 2, %v2527
      %v2529 = vrot.slane %v2516, %v2528
      %v2533 = vadd.f32 %v2507, %v2521
      %v2534 = vadd.f32 %v2508, %v2525
      %v2535 = vadd.f32 %v2509, %v2529
      %v2536 = vadd.f32 %v2510, %v2521
      %v2537 = vadd.f32 %v2511, %v2525
      %v2538 = vadd.f32 %v2512, %v2529
      %v2539 = vadd.f32 %v2513, %v2521
      %v2540 = vadd.f32 %v2514, %v2525
      %v2541 = vadd.f32 %v2515, %v2529
      %v2542 = vmax.f32 %v2533, 0.0
      %v2543 = vmax.f32 %v2534, 0.0
      %v2544 = vmax.f32 %v2535, 0.0
      %v2545 = vmax.f32 %v2536, 0.0
      %v2546 = vmax.f32 %v2537, 0.0
      %v2547 = vmax.f32 %v2538, 0.0
      %v2548 = vmax.f32 %v2539, 0.0
      %v2549 = vmax.f32 %v2540, 0.0
      %v2550 = vmax.f32 %v2541, 0.0
      %vm2560 = vcmask 1046528
      %v2561 = vrot.slane %v2542, 1
      %v2562 = vrot.slane %v2545, 1
      %v2563 = vsel %vm2560, %v2561, %v2562
      %v2564 = vrot.slane %v2543, 1
      %v2565 = vrot.slane %v2546, 1
      %v2566 = vsel %vm2560, %v2564, %v2565
      %v2567 = vrot.slane %v2544, 1
      %v2568 = vrot.slane %v2547, 1
      %v2569 = vsel %vm2560, %v2567, %v2568
      %v2570 = vrot.slane %v2548, 1
      %v2571 = vsel %vm2560, %v2562, %v2570
      %v2572 = vrot.slane %v2549, 1
      %v2573 = vsel %vm2560, %v2565, %v2572
      %v2574 = vrot.slane %v2550, 1
      %v2575 = vsel %vm2560, %v2568, %v2574
      %v2585 = vmax.f32 %v2542, %v2563
      %v2586 = vmax.f32 %v2543, %v2566
      %v2587 = vmax.f32 %v2544, %v2569
      %v2588 = vmax.f32 %v2545, %v2571
      %v2589 = vmax.f32 %v2546, %v2573
      %v2590 = vmax.f32 %v2547, %v2575
      %v2591 = vmax.f32 %v2548, %v2570
      %v2592 = vmax.f32 %v2549, %v2572
      %v2593 = vmax.f32 %v2550, %v2574
      %v2594 = vpack.c.bf16 %v2588, %v2585
      %v2595 = vpack.c.bf16 %v2589, %v2586
      %v2596 = vpack.c.bf16 %v2590, %v2587
      %v2597 = vpack.c.bf16 %v2591, %v2591
      %v2598 = vpack.c.bf16 %v2592, %v2592
      %v2599 = vpack.c.bf16 %v2593, %v2593
      %v2600 = vld [vmem:[%s13] sm:$0xff]
      %v2601 = vld [vmem:[%s13 + $0x8] sm:$0xff]
      %v2602 = vld [vmem:[%s13 + $0x10] sm:$0xff]
      %v2603 = vld [vmem:[%s13 + $0x18] sm:$0xff]
      %v2604 = vld [vmem:[%s13 + $0x20] sm:$0xff]
      %v2605 = vld [vmem:[%s13 + $0x28] sm:$0xff]
      %v2606 = vld [vmem:[%s13 + $0x30] sm:$0xff]
      %v2607 = vld [vmem:[%s13 + $0x38] sm:$0xff]
      %v2608 = vld [vmem:[%s13 + $0x40] sm:$0xff]
      %v2609 = vld [vmem:[%s13 + $0x48] sm:$0xff]
      %v2610 = vld [vmem:[%s13 + $0x50] sm:$0xff]
      %v2611 = vld [vmem:[%s13 + $0x58] sm:$0xff]
      %v2612 = vld [vmem:[%s13 + $0x60] sm:$0xff]
      %v2613 = vld [vmem:[%s13 + $0x68] sm:$0xff]
      %v2614 = vld [vmem:[%s13 + $0x70] sm:$0xff]
      %v2615 = vld [vmem:[%s13 + $0x78] sm:$0xff]
      %v2616 = vld [vmem:[%s13 + $0x80] sm:$0xff]
      %v2617 = vld [vmem:[%s13 + $0x88] sm:$0xff]
      %v2618 = vld [vmem:[%s13 + $0x90] sm:$0xff]
      %v2619 = vld [vmem:[%s13 + $0x98] sm:$0xff]
      %v2620 = vld [vmem:[%s13 + $0xa0] sm:$0xff]
      %v2621 = vld [vmem:[%s13 + $0xa8] sm:$0xff]
      %v2622 = vld [vmem:[%s13 + $0xb0] sm:$0xff]
      %v2623 = vld [vmem:[%s13 + $0xb8] sm:$0xff]
      %v2624 = vld [vmem:[%s13 + $0xc0] sm:$0xff]
      %v2625 = vld [vmem:[%s13 + $0xc8] sm:$0xff]
      %v2626 = vld [vmem:[%s13 + $0xd0] sm:$0xff]
      %v2627 = vld [vmem:[%s13 + $0xd8] sm:$0xff]
      %v2628 = vld [vmem:[%s13 + $0xe0] sm:$0xff]
      %v2629 = vld [vmem:[%s13 + $0xe8] sm:$0xff]
      %v2630 = vld [vmem:[%s13 + $0xf0] sm:$0xff]
      %v2631 = vld [vmem:[%s13 + $0xf8] sm:$0xff]
      %v2632 = vld [vmem:[%s13 + $0x100] sm:$0xff]
      %v2633 = vld [vmem:[%s13 + $0x108] sm:$0xff]
      %v2634 = vld [vmem:[%s13 + $0x110] sm:$0xff]
      %v2635 = vld [vmem:[%s13 + $0x118] sm:$0xff]
      %v2636 = vld [vmem:[%s13 + $0x120] sm:$0xff]
      %v2637 = vld [vmem:[%s13 + $0x128] sm:$0xff]
      %v2638 = vld [vmem:[%s13 + $0x130] sm:$0xff]
      %v2639 = vld [vmem:[%s13 + $0x138] sm:$0xff]
      %v2640 = vld [vmem:[%s13 + $0x140] sm:$0xff]
      %v2641 = vld [vmem:[%s13 + $0x148] sm:$0xff]
      %v2642 = vld [vmem:[%s13 + $0x150] sm:$0xff]
      %v2643 = vld [vmem:[%s13 + $0x158] sm:$0xff]
      %v2644 = vld [vmem:[%s13 + $0x160] sm:$0xff]
      %v2645 = vld [vmem:[%s13 + $0x168] sm:$0xff]
      %v2646 = vld [vmem:[%s13 + $0x170] sm:$0xff]
      %v2647 = vld [vmem:[%s13 + $0x178] sm:$0xff]
      %v2696 = vunpack.c.l.b16 %v2600
      %v2697 = vunpack.c.h.b16 %v2600
      %v2698 = vunpack.c.l.b16 %v2601
      %v2699 = vunpack.c.h.b16 %v2601
      %v2700 = vunpack.c.l.b16 %v2602
      %v2701 = vunpack.c.h.b16 %v2602
      %v2702 = vunpack.c.l.b16 %v2603
      %v2703 = vunpack.c.h.b16 %v2603
      %v2704 = vunpack.c.l.b16 %v2604
      %v2705 = vunpack.c.h.b16 %v2604
      %v2706 = vunpack.c.l.b16 %v2605
      %v2707 = vunpack.c.h.b16 %v2605
      %v2708 = vunpack.c.l.b16 %v2606
      %v2709 = vunpack.c.h.b16 %v2606
      %v2710 = vunpack.c.l.b16 %v2607
      %v2711 = vunpack.c.h.b16 %v2607
      %v2712 = vunpack.c.l.b16 %v2608
      %v2713 = vunpack.c.h.b16 %v2608
      %v2714 = vunpack.c.l.b16 %v2609
      %v2715 = vunpack.c.h.b16 %v2609
      %v2716 = vunpack.c.l.b16 %v2610
      %v2717 = vunpack.c.h.b16 %v2610
      %v2718 = vunpack.c.l.b16 %v2611
      %v2719 = vunpack.c.h.b16 %v2611
      %v2720 = vunpack.c.l.b16 %v2612
      %v2721 = vunpack.c.h.b16 %v2612
      %v2722 = vunpack.c.l.b16 %v2613
      %v2723 = vunpack.c.h.b16 %v2613
      %v2724 = vunpack.c.l.b16 %v2614
      %v2725 = vunpack.c.h.b16 %v2614
      %v2726 = vunpack.c.l.b16 %v2615
      %v2727 = vunpack.c.h.b16 %v2615
      %v2728 = vunpack.c.l.b16 %v2616
      %v2729 = vunpack.c.h.b16 %v2616
      %v2730 = vunpack.c.l.b16 %v2617
      %v2731 = vunpack.c.h.b16 %v2617
      %v2732 = vunpack.c.l.b16 %v2618
      %v2733 = vunpack.c.h.b16 %v2618
      %v2734 = vunpack.c.l.b16 %v2619
      %v2735 = vunpack.c.h.b16 %v2619
      %v2736 = vunpack.c.l.b16 %v2620
      %v2737 = vunpack.c.h.b16 %v2620
      %v2738 = vunpack.c.l.b16 %v2621
      %v2739 = vunpack.c.h.b16 %v2621
      %v2740 = vunpack.c.l.b16 %v2622
      %v2741 = vunpack.c.h.b16 %v2622
      %v2742 = vunpack.c.l.b16 %v2623
      %v2743 = vunpack.c.h.b16 %v2623
      %v2744 = vunpack.c.l.b16 %v2624
      %v2745 = vunpack.c.h.b16 %v2624
      %v2746 = vunpack.c.l.b16 %v2625
      %v2747 = vunpack.c.h.b16 %v2625
      %v2748 = vunpack.c.l.b16 %v2626
      %v2749 = vunpack.c.h.b16 %v2626
      %v2750 = vunpack.c.l.b16 %v2627
      %v2751 = vunpack.c.h.b16 %v2627
      %v2752 = vunpack.c.l.b16 %v2628
      %v2753 = vunpack.c.h.b16 %v2628
      %v2754 = vunpack.c.l.b16 %v2629
      %v2755 = vunpack.c.h.b16 %v2629
      %v2756 = vunpack.c.l.b16 %v2630
      %v2757 = vunpack.c.h.b16 %v2630
      %v2758 = vunpack.c.l.b16 %v2631
      %v2759 = vunpack.c.h.b16 %v2631
      %v2760 = vunpack.c.l.b16 %v2632
      %v2761 = vunpack.c.h.b16 %v2632
      %v2762 = vunpack.c.l.b16 %v2633
      %v2763 = vunpack.c.h.b16 %v2633
      %v2764 = vunpack.c.l.b16 %v2634
      %v2765 = vunpack.c.h.b16 %v2634
      %v2766 = vunpack.c.l.b16 %v2635
      %v2767 = vunpack.c.h.b16 %v2635
      %v2768 = vunpack.c.l.b16 %v2636
      %v2769 = vunpack.c.h.b16 %v2636
      %v2770 = vunpack.c.l.b16 %v2637
      %v2771 = vunpack.c.h.b16 %v2637
      %v2772 = vunpack.c.l.b16 %v2638
      %v2773 = vunpack.c.h.b16 %v2638
      %v2774 = vunpack.c.l.b16 %v2639
      %v2775 = vunpack.c.h.b16 %v2639
      %v2776 = vunpack.c.l.b16 %v2640
      %v2777 = vunpack.c.h.b16 %v2640
      %v2778 = vunpack.c.l.b16 %v2641
      %v2779 = vunpack.c.h.b16 %v2641
      %v2780 = vunpack.c.l.b16 %v2642
      %v2781 = vunpack.c.h.b16 %v2642
      %v2782 = vunpack.c.l.b16 %v2643
      %v2783 = vunpack.c.h.b16 %v2643
      %v2784 = vunpack.c.l.b16 %v2644
      %v2785 = vunpack.c.h.b16 %v2644
      %v2786 = vunpack.c.l.b16 %v2645
      %v2787 = vunpack.c.h.b16 %v2645
      %v2788 = vunpack.c.l.b16 %v2646
      %v2789 = vunpack.c.h.b16 %v2646
      %v2790 = vunpack.c.l.b16 %v2647
      %v2791 = vunpack.c.h.b16 %v2647
      %v2792 = vpack.c.b16 %v2698, %v2696
      %v2793 = vpack.c.b16 %v2699, %v2697
      %v2794 = vpack.c.b16 %v2702, %v2700
      %v2795 = vpack.c.b16 %v2703, %v2701
      %v2796 = vpack.c.b16 %v2706, %v2704
      %v2797 = vpack.c.b16 %v2707, %v2705
      %v2798 = vpack.c.b16 %v2710, %v2708
      %v2799 = vpack.c.b16 %v2711, %v2709
      %v2800 = vpack.c.b16 %v2714, %v2712
      %v2801 = vpack.c.b16 %v2715, %v2713
      %v2802 = vpack.c.b16 %v2718, %v2716
      %v2803 = vpack.c.b16 %v2719, %v2717
      %v2804 = vpack.c.b16 %v2722, %v2720
      %v2805 = vpack.c.b16 %v2723, %v2721
      %v2806 = vpack.c.b16 %v2726, %v2724
      %v2807 = vpack.c.b16 %v2727, %v2725
      %v2808 = vpack.c.b16 %v2730, %v2728
      %v2809 = vpack.c.b16 %v2731, %v2729
      %v2810 = vpack.c.b16 %v2734, %v2732
      %v2811 = vpack.c.b16 %v2735, %v2733
      %v2812 = vpack.c.b16 %v2738, %v2736
      %v2813 = vpack.c.b16 %v2739, %v2737
      %v2814 = vpack.c.b16 %v2742, %v2740
      %v2815 = vpack.c.b16 %v2743, %v2741
      %v2816 = vpack.c.b16 %v2746, %v2744
      %v2817 = vpack.c.b16 %v2747, %v2745
      %v2818 = vpack.c.b16 %v2750, %v2748
      %v2819 = vpack.c.b16 %v2751, %v2749
      %v2820 = vpack.c.b16 %v2754, %v2752
      %v2821 = vpack.c.b16 %v2755, %v2753
      %v2822 = vpack.c.b16 %v2758, %v2756
      %v2823 = vpack.c.b16 %v2759, %v2757
      %v2824 = vpack.c.b16 %v2762, %v2760
      %v2825 = vpack.c.b16 %v2763, %v2761
      %v2826 = vpack.c.b16 %v2766, %v2764
      %v2827 = vpack.c.b16 %v2767, %v2765
      %v2828 = vpack.c.b16 %v2770, %v2768
      %v2829 = vpack.c.b16 %v2771, %v2769
      %v2830 = vpack.c.b16 %v2774, %v2772
      %v2831 = vpack.c.b16 %v2775, %v2773
      %v2832 = vpack.c.b16 %v2778, %v2776
      %v2833 = vpack.c.b16 %v2779, %v2777
      %v2834 = vpack.c.b16 %v2782, %v2780
      %v2835 = vpack.c.b16 %v2783, %v2781
      %v2836 = vpack.c.b16 %v2786, %v2784
      %v2837 = vpack.c.b16 %v2787, %v2785
      %v2838 = vpack.c.b16 %v2790, %v2788
      %v2839 = vpack.c.b16 %v2791, %v2789
      %2888 = vmatprep.subr.bf16.mxu0 %v2793
      %2889 = vmatpush1.bf16.msra.mxu0 %v2792
      %2890 = vmatprep.subr.bf16.mxu0 %v2795
      %2891 = vmatpush1.bf16.msra.mxu0 %v2794
      %2892 = vmatprep.subr.bf16.mxu0 %v2797
      %2893 = vmatpush1.bf16.msra.mxu0 %v2796
      %2894 = vmatprep.subr.bf16.mxu0 %v2799
      %2895 = vmatpush1.bf16.msra.mxu0 %v2798
      %2896 = vmatprep.subr.bf16.mxu0 %v2801
      %2897 = vmatpush1.bf16.msra.mxu0 %v2800
      %2898 = vmatprep.subr.bf16.mxu0 %v2803
      %2899 = vmatpush1.bf16.msra.mxu0 %v2802
      %2900 = vmatprep.subr.bf16.mxu0 %v2805
      %2901 = vmatpush1.bf16.msra.mxu0 %v2804
      %2902 = vmatprep.subr.bf16.mxu0 %v2807
      %2903 = vmatpush1.bf16.msra.mxu0 %v2806
      %2904 = vmatprep.subr.bf16.mxu0 %v2809
      %2905 = vmatpush1.bf16.msra.mxu0 %v2808
      %2906 = vmatprep.subr.bf16.mxu0 %v2811
      %2907 = vmatpush1.bf16.msra.mxu0 %v2810
      %2908 = vmatprep.subr.bf16.mxu0 %v2813
      %2909 = vmatpush1.bf16.msra.mxu0 %v2812
      %2910 = vmatprep.subr.bf16.mxu0 %v2815
      %2911 = vmatpush1.bf16.msra.mxu0 %v2814
      %2912 = vmatprep.subr.bf16.mxu0 %v2817
      %2913 = vmatpush1.bf16.msra.mxu0 %v2816
      %2914 = vmatprep.subr.bf16.mxu0 %v2819
      %2915 = vmatpush1.bf16.msra.mxu0 %v2818
      %2916 = vmatprep.subr.bf16.mxu0 %v2821
      %2917 = vmatpush1.bf16.msra.mxu0 %v2820
      %2918 = vmatprep.subr.bf16.mxu0 %v2823
      %2919 = vmatpush1.bf16.msra.mxu0 %v2822
      %2920 = vmatprep.mubr.bf16.mxu0 %v2595
      %2921 = vmatmul.mubr.bf16.gmra.mrb[0].mxu0 %v2594
      %v2922 = vpop.f32.mrb[0].mxu0
      %v2923 = vadd.f32 0.0, %v2922
      %v2924 = vpop.f32.mrb[0].mxu0
      %v2925 = vadd.f32 0.0, %v2924
      %v2926 = vpop.f32.mrb[0].mxu0
      %v2927 = vadd.f32 0.0, %v2926
      %v2928 = vpop.f32.mrb[0].mxu0
      %v2929 = vadd.f32 0.0, %v2928
      %2930 = vmatprep.mubr.bf16.mxu0 %v2598
      %2931 = vmatmul.mubr.bf16.gmra.mrb[0].mxu0 %v2597
      %v2932 = vpop.f32.mrb[0].mxu0
      %v2933 = vadd.f32 0.0, %v2932
      %v2934 = vpop.f32.mrb[0].mxu0
      %v2935 = vadd.f32 0.0, %v2934
      %v2936 = vpop.f32.mrb[0].mxu0
      %v2937 = vpop.f32.mrb[0].mxu0
      %2938 = vdwg.mxu0
      %2939 = vmatprep.subr.bf16.mxu0 %v2825
      %2940 = vmatpush1.bf16.msra.mxu0 %v2824
      %2941 = vmatprep.subr.bf16.mxu0 %v2827
      %2942 = vmatpush1.bf16.msra.mxu0 %v2826
      %2943 = vmatprep.subr.bf16.mxu0 %v2829
      %2944 = vmatpush1.bf16.msra.mxu0 %v2828
      %2945 = vmatprep.subr.bf16.mxu0 %v2831
      %2946 = vmatpush1.bf16.msra.mxu0 %v2830
      %2947 = vmatprep.subr.bf16.mxu0 %v2833
      %2948 = vmatpush1.bf16.msra.mxu0 %v2832
      %2949 = vmatprep.subr.bf16.mxu0 %v2835
      %2950 = vmatpush1.bf16.msra.mxu0 %v2834
      %2951 = vmatprep.subr.bf16.mxu0 %v2837
      %2952 = vmatpush1.bf16.msra.mxu0 %v2836
      %2953 = vmatprep.subr.bf16.mxu0 %v2839
      %2954 = vmatpush1.bf16.msra.mxu0 %v2838
      %2955 = vmatprep.subr.bf16.mxu0 0
      %2956 = vmatpush1.bf16.msra.mxu0 0
      %2957 = vmatprep.subr.bf16.mxu0 0
      %2958 = vmatpush1.bf16.msra.mxu0 0
      %2959 = vmatprep.subr.bf16.mxu0 0
      %2960 = vmatpush1.bf16.msra.mxu0 0
      %2961 = vmatprep.subr.bf16.mxu0 0
      %2962 = vmatpush1.bf16.msra.mxu0 0
      %2963 = vmatprep.subr.bf16.mxu0 0
      %2964 = vmatpush1.bf16.msra.mxu0 0
      %2965 = vmatprep.subr.bf16.mxu0 0
      %2966 = vmatpush1.bf16.msra.mxu0 0
      %2967 = vmatprep.subr.bf16.mxu0 0
      %2968 = vmatpush1.bf16.msra.mxu0 0
      %2969 = vmatprep.subr.bf16.mxu0 0
      %2970 = vmatpush1.bf16.msra.mxu0 0
      %2971 = vmatprep.mubr.bf16.mxu0 0
      %2972 = vmatmul.mubr.bf16.gmra.mrb[0].mxu0 %v2596
      %v2973 = vpop.f32.mrb[0].mxu0
      %v2974 = vadd.f32 %v2923, %v2973
      %v2975 = vpop.f32.mrb[0].mxu0
      %v2976 = vadd.f32 %v2925, %v2975
      %v2977 = vpop.f32.mrb[0].mxu0
      %v2978 = vadd.f32 %v2927, %v2977
      %v2979 = vpop.f32.mrb[0].mxu0
      %v2980 = vadd.f32 %v2929, %v2979
      %2981 = vmatprep.mubr.bf16.mxu0 0
      %2982 = vmatmul.mubr.bf16.gmra.mrb[0].mxu0 %v2599
      %v2983 = vpop.f32.mrb[0].mxu0
      %v2984 = vadd.f32 %v2933, %v2983
      %v2985 = vpop.f32.mrb[0].mxu0
      %v2986 = vadd.f32 %v2935, %v2985
      %v2987 = vpop.f32.mrb[0].mxu0
      %v2988 = vpop.f32.mrb[0].mxu0
      %2989 = vdwg.mxu0
      %v2990 = vld [vmem:[%s15] sm:$0xff]
      %v2991 = vld [vmem:[%s15 + $0x8] sm:$0xff]
      %v2992 = vld [vmem:[%s15 + $0x10] sm:$0xff]
      %v2993 = vld [vmem:[%s15 + $0x18] sm:$0xff]
      %v2994 = vld [vmem:[%s15 + $0x20] sm:$0xff]
      %v2995 = vld [vmem:[%s15 + $0x28] sm:$0xff]
      %v2996 = vld [vmem:[%s15 + $0x30] sm:$0xff]
      %v2997 = vld [vmem:[%s15 + $0x38] sm:$0xff]
      %v2998 = vld [vmem:[%s15 + $0x40] sm:$0xff]
      %v2999 = vld [vmem:[%s15 + $0x48] sm:$0xff]
      %v3000 = vld [vmem:[%s15 + $0x50] sm:$0xff]
      %v3001 = vld [vmem:[%s15 + $0x58] sm:$0xff]
      %v3002 = vld [vmem:[%s15 + $0x60] sm:$0xff]
      %v3003 = vld [vmem:[%s15 + $0x68] sm:$0xff]
      %v3004 = vld [vmem:[%s15 + $0x70] sm:$0xff]
      %v3005 = vld [vmem:[%s15 + $0x78] sm:$0xff]
      %v3006 = vld [vmem:[%s15 + $0x80] sm:$0xff]
      %v3007 = vld [vmem:[%s15 + $0x88] sm:$0xff]
      %v3008 = vld [vmem:[%s15 + $0x90] sm:$0xff]
      %v3009 = vld [vmem:[%s15 + $0x98] sm:$0xff]
      %v3010 = vld [vmem:[%s15 + $0xa0] sm:$0xff]
      %v3011 = vld [vmem:[%s15 + $0xa8] sm:$0xff]
      %v3012 = vld [vmem:[%s15 + $0xb0] sm:$0xff]
      %v3013 = vld [vmem:[%s15 + $0xb8] sm:$0xff]
      %v3014 = vld [vmem:[%s15 + $0xc0] sm:$0xff]
      %v3015 = vld [vmem:[%s15 + $0xc8] sm:$0xff]
      %v3016 = vld [vmem:[%s15 + $0xd0] sm:$0xff]
      %v3017 = vld [vmem:[%s15 + $0xd8] sm:$0xff]
      %v3018 = vld [vmem:[%s15 + $0xe0] sm:$0xff]
      %v3019 = vld [vmem:[%s15 + $0xe8] sm:$0xff]
      %v3020 = vld [vmem:[%s15 + $0xf0] sm:$0xff]
      %v3021 = vld [vmem:[%s15 + $0xf8] sm:$0xff]
      %v3022 = vld [vmem:[%s15 + $0x100] sm:$0xff]
      %v3023 = vld [vmem:[%s15 + $0x108] sm:$0xff]
      %v3024 = vld [vmem:[%s15 + $0x110] sm:$0xff]
      %v3025 = vld [vmem:[%s15 + $0x118] sm:$0xff]
      %v3026 = vld [vmem:[%s15 + $0x120] sm:$0xff]
      %v3027 = vld [vmem:[%s15 + $0x128] sm:$0xff]
      %v3028 = vld [vmem:[%s15 + $0x130] sm:$0xff]
      %v3029 = vld [vmem:[%s15 + $0x138] sm:$0xff]
      %v3030 = vld [vmem:[%s15 + $0x140] sm:$0xff]
      %v3031 = vld [vmem:[%s15 + $0x148] sm:$0xff]
      %v3032 = vld [vmem:[%s15 + $0x150] sm:$0xff]
      %v3033 = vld [vmem:[%s15 + $0x158] sm:$0xff]
      %v3034 = vld [vmem:[%s15 + $0x160] sm:$0xff]
      %v3035 = vld [vmem:[%s15 + $0x168] sm:$0xff]
      %v3036 = vld [vmem:[%s15 + $0x170] sm:$0xff]
      %v3037 = vld [vmem:[%s15 + $0x178] sm:$0xff]
      %v3086 = vunpack.c.l.b16 %v2990
      %v3087 = vunpack.c.h.b16 %v2990
      %v3088 = vunpack.c.l.b16 %v2991
      %v3089 = vunpack.c.h.b16 %v2991
      %v3090 = vunpack.c.l.b16 %v2992
      %v3091 = vunpack.c.h.b16 %v2992
      %v3092 = vunpack.c.l.b16 %v2993
      %v3093 = vunpack.c.h.b16 %v2993
      %v3094 = vunpack.c.l.b16 %v2994
      %v3095 = vunpack.c.h.b16 %v2994
      %v3096 = vunpack.c.l.b16 %v2995
      %v3097 = vunpack.c.h.b16 %v2995
      %v3098 = vunpack.c.l.b16 %v2996
      %v3099 = vunpack.c.h.b16 %v2996
      %v3100 = vunpack.c.l.b16 %v2997
      %v3101 = vunpack.c.h.b16 %v2997
      %v3102 = vunpack.c.l.b16 %v2998
      %v3103 = vunpack.c.h.b16 %v2998
      %v3104 = vunpack.c.l.b16 %v2999
      %v3105 = vunpack.c.h.b16 %v2999
      %v3106 = vunpack.c.l.b16 %v3000
      %v3107 = vunpack.c.h.b16 %v3000
      %v3108 = vunpack.c.l.b16 %v3001
      %v3109 = vunpack.c.h.b16 %v3001
      %v3110 = vunpack.c.l.b16 %v3002
      %v3111 = vunpack.c.h.b16 %v3002
      %v3112 = vunpack.c.l.b16 %v3003
      %v3113 = vunpack.c.h.b16 %v3003
      %v3114 = vunpack.c.l.b16 %v3004
      %v3115 = vunpack.c.h.b16 %v3004
      %v3116 = vunpack.c.l.b16 %v3005
      %v3117 = vunpack.c.h.b16 %v3005
      %v3118 = vunpack.c.l.b16 %v3006
      %v3119 = vunpack.c.h.b16 %v3006
      %v3120 = vunpack.c.l.b16 %v3007
      %v3121 = vunpack.c.h.b16 %v3007
      %v3122 = vunpack.c.l.b16 %v3008
      %v3123 = vunpack.c.h.b16 %v3008
      %v3124 = vunpack.c.l.b16 %v3009
      %v3125 = vunpack.c.h.b16 %v3009
      %v3126 = vunpack.c.l.b16 %v3010
      %v3127 = vunpack.c.h.b16 %v3010
      %v3128 = vunpack.c.l.b16 %v3011
      %v3129 = vunpack.c.h.b16 %v3011
      %v3130 = vunpack.c.l.b16 %v3012
      %v3131 = vunpack.c.h.b16 %v3012
      %v3132 = vunpack.c.l.b16 %v3013
      %v3133 = vunpack.c.h.b16 %v3013
      %v3134 = vunpack.c.l.b16 %v3014
      %v3135 = vunpack.c.h.b16 %v3014
      %v3136 = vunpack.c.l.b16 %v3015
      %v3137 = vunpack.c.h.b16 %v3015
      %v3138 = vunpack.c.l.b16 %v3016
      %v3139 = vunpack.c.h.b16 %v3016
      %v3140 = vunpack.c.l.b16 %v3017
      %v3141 = vunpack.c.h.b16 %v3017
      %v3142 = vunpack.c.l.b16 %v3018
      %v3143 = vunpack.c.h.b16 %v3018
      %v3144 = vunpack.c.l.b16 %v3019
      %v3145 = vunpack.c.h.b16 %v3019
      %v3146 = vunpack.c.l.b16 %v3020
      %v3147 = vunpack.c.h.b16 %v3020
      %v3148 = vunpack.c.l.b16 %v3021
      %v3149 = vunpack.c.h.b16 %v3021
      %v3150 = vunpack.c.l.b16 %v3022
      %v3151 = vunpack.c.h.b16 %v3022
      %v3152 = vunpack.c.l.b16 %v3023
      %v3153 = vunpack.c.h.b16 %v3023
      %v3154 = vunpack.c.l.b16 %v3024
      %v3155 = vunpack.c.h.b16 %v3024
      %v3156 = vunpack.c.l.b16 %v3025
      %v3157 = vunpack.c.h.b16 %v3025
      %v3158 = vunpack.c.l.b16 %v3026
      %v3159 = vunpack.c.h.b16 %v3026
      %v3160 = vunpack.c.l.b16 %v3027
      %v3161 = vunpack.c.h.b16 %v3027
      %v3162 = vunpack.c.l.b16 %v3028
      %v3163 = vunpack.c.h.b16 %v3028
      %v3164 = vunpack.c.l.b16 %v3029
      %v3165 = vunpack.c.h.b16 %v3029
      %v3166 = vunpack.c.l.b16 %v3030
      %v3167 = vunpack.c.h.b16 %v3030
      %v3168 = vunpack.c.l.b16 %v3031
      %v3169 = vunpack.c.h.b16 %v3031
      %v3170 = vunpack.c.l.b16 %v3032
      %v3171 = vunpack.c.h.b16 %v3032
      %v3172 = vunpack.c.l.b16 %v3033
      %v3173 = vunpack.c.h.b16 %v3033
      %v3174 = vunpack.c.l.b16 %v3034
      %v3175 = vunpack.c.h.b16 %v3034
      %v3176 = vunpack.c.l.b16 %v3035
      %v3177 = vunpack.c.h.b16 %v3035
      %v3178 = vunpack.c.l.b16 %v3036
      %v3179 = vunpack.c.h.b16 %v3036
      %v3180 = vunpack.c.l.b16 %v3037
      %v3181 = vunpack.c.h.b16 %v3037
      %v3182 = vpack.c.b16 %v3088, %v3086
      %v3183 = vpack.c.b16 %v3089, %v3087
      %v3184 = vpack.c.b16 %v3092, %v3090
      %v3185 = vpack.c.b16 %v3093, %v3091
      %v3186 = vpack.c.b16 %v3096, %v3094
      %v3187 = vpack.c.b16 %v3097, %v3095
      %v3188 = vpack.c.b16 %v3100, %v3098
      %v3189 = vpack.c.b16 %v3101, %v3099
      %v3190 = vpack.c.b16 %v3104, %v3102
      %v3191 = vpack.c.b16 %v3105, %v3103
      %v3192 = vpack.c.b16 %v3108, %v3106
      %v3193 = vpack.c.b16 %v3109, %v3107
      %v3194 = vpack.c.b16 %v3112, %v3110
      %v3195 = vpack.c.b16 %v3113, %v3111
      %v3196 = vpack.c.b16 %v3116, %v3114
      %v3197 = vpack.c.b16 %v3117, %v3115
      %v3198 = vpack.c.b16 %v3120, %v3118
      %v3199 = vpack.c.b16 %v3121, %v3119
      %v3200 = vpack.c.b16 %v3124, %v3122
      %v3201 = vpack.c.b16 %v3125, %v3123
      %v3202 = vpack.c.b16 %v3128, %v3126
      %v3203 = vpack.c.b16 %v3129, %v3127
      %v3204 = vpack.c.b16 %v3132, %v3130
      %v3205 = vpack.c.b16 %v3133, %v3131
      %v3206 = vpack.c.b16 %v3136, %v3134
      %v3207 = vpack.c.b16 %v3137, %v3135
      %v3208 = vpack.c.b16 %v3140, %v3138
      %v3209 = vpack.c.b16 %v3141, %v3139
      %v3210 = vpack.c.b16 %v3144, %v3142
      %v3211 = vpack.c.b16 %v3145, %v3143
      %v3212 = vpack.c.b16 %v3148, %v3146
      %v3213 = vpack.c.b16 %v3149, %v3147
      %v3214 = vpack.c.b16 %v3152, %v3150
      %v3215 = vpack.c.b16 %v3153, %v3151
      %v3216 = vpack.c.b16 %v3156, %v3154
      %v3217 = vpack.c.b16 %v3157, %v3155
      %v3218 = vpack.c.b16 %v3160, %v3158
      %v3219 = vpack.c.b16 %v3161, %v3159
      %v3220 = vpack.c.b16 %v3164, %v3162
      %v3221 = vpack.c.b16 %v3165, %v3163
      %v3222 = vpack.c.b16 %v3168, %v3166
      %v3223 = vpack.c.b16 %v3169, %v3167
      %v3224 = vpack.c.b16 %v3172, %v3170
      %v3225 = vpack.c.b16 %v3173, %v3171
      %v3226 = vpack.c.b16 %v3176, %v3174
      %v3227 = vpack.c.b16 %v3177, %v3175
      %v3228 = vpack.c.b16 %v3180, %v3178
      %v3229 = vpack.c.b16 %v3181, %v3179
      %3278 = vmatprep.subr.bf16.mxu0 %v3183
      %3279 = vmatpush1.bf16.msra.mxu0 %v3182
      %3280 = vmatprep.subr.bf16.mxu0 %v3185
      %3281 = vmatpush1.bf16.msra.mxu0 %v3184
      %3282 = vmatprep.subr.bf16.mxu0 %v3187
      %3283 = vmatpush1.bf16.msra.mxu0 %v3186
      %3284 = vmatprep.subr.bf16.mxu0 %v3189
      %3285 = vmatpush1.bf16.msra.mxu0 %v3188
      %3286 = vmatprep.subr.bf16.mxu0 %v3191
      %3287 = vmatpush1.bf16.msra.mxu0 %v3190
      %3288 = vmatprep.subr.bf16.mxu0 %v3193
      %3289 = vmatpush1.bf16.msra.mxu0 %v3192
      %3290 = vmatprep.subr.bf16.mxu0 %v3195
      %3291 = vmatpush1.bf16.msra.mxu0 %v3194
      %3292 = vmatprep.subr.bf16.mxu0 %v3197
      %3293 = vmatpush1.bf16.msra.mxu0 %v3196
      %3294 = vmatprep.subr.bf16.mxu0 %v3199
      %3295 = vmatpush1.bf16.msra.mxu0 %v3198
      %3296 = vmatprep.subr.bf16.mxu0 %v3201
      %3297 = vmatpush1.bf16.msra.mxu0 %v3200
      %3298 = vmatprep.subr.bf16.mxu0 %v3203
      %3299 = vmatpush1.bf16.msra.mxu0 %v3202
      %3300 = vmatprep.subr.bf16.mxu0 %v3205
      %3301 = vmatpush1.bf16.msra.mxu0 %v3204
      %3302 = vmatprep.subr.bf16.mxu0 %v3207
      %3303 = vmatpush1.bf16.msra.mxu0 %v3206
      %3304 = vmatprep.subr.bf16.mxu0 %v3209
      %3305 = vmatpush1.bf16.msra.mxu0 %v3208
      %3306 = vmatprep.subr.bf16.mxu0 %v3211
      %3307 = vmatpush1.bf16.msra.mxu0 %v3210
      %3308 = vmatprep.subr.bf16.mxu0 %v3213
      %3309 = vmatpush1.bf16.msra.mxu0 %v3212
      %3310 = vmatprep.mubr.bf16.mxu0 %v2595
      %3311 = vmatmul.mubr.bf16.gmra.mrb[0].mxu0 %v2594
      %v3312 = vpop.f32.mrb[0].mxu0
      %v3313 = vadd.f32 0.0, %v3312
      %v3314 = vpop.f32.mrb[0].mxu0
      %v3315 = vadd.f32 0.0, %v3314
      %v3316 = vpop.f32.mrb[0].mxu0
      %v3317 = vadd.f32 0.0, %v3316
      %v3318 = vpop.f32.mrb[0].mxu0
      %v3319 = vadd.f32 0.0, %v3318
      %3320 = vmatprep.mubr.bf16.mxu0 %v2598
      %3321 = vmatmul.mubr.bf16.gmra.mrb[0].mxu0 %v2597
      %v3322 = vpop.f32.mrb[0].mxu0
      %v3323 = vadd.f32 0.0, %v3322
      %v3324 = vpop.f32.mrb[0].mxu0
      %v3325 = vadd.f32 0.0, %v3324
      %v3326 = vpop.f32.mrb[0].mxu0
      %v3327 = vpop.f32.mrb[0].mxu0
      %3328 = vdwg.mxu0
      %3329 = vmatprep.subr.bf16.mxu0 %v3215
      %3330 = vmatpush1.bf16.msra.mxu0 %v3214
      %3331 = vmatprep.subr.bf16.mxu0 %v3217
      %3332 = vmatpush1.bf16.msra.mxu0 %v3216
      %3333 = vmatprep.subr.bf16.mxu0 %v3219
      %3334 = vmatpush1.bf16.msra.mxu0 %v3218
      %3335 = vmatprep.subr.bf16.mxu0 %v3221
      %3336 = vmatpush1.bf16.msra.mxu0 %v3220
      %3337 = vmatprep.subr.bf16.mxu0 %v3223
      %3338 = vmatpush1.bf16.msra.mxu0 %v3222
      %3339 = vmatprep.subr.bf16.mxu0 %v3225
      %3340 = vmatpush1.bf16.msra.mxu0 %v3224
      %3341 = vmatprep.subr.bf16.mxu0 %v3227
      %3342 = vmatpush1.bf16.msra.mxu0 %v3226
      %3343 = vmatprep.subr.bf16.mxu0 %v3229
      %3344 = vmatpush1.bf16.msra.mxu0 %v3228
      %3345 = vmatprep.subr.bf16.mxu0 0
      %3346 = vmatpush1.bf16.msra.mxu0 0
      %3347 = vmatprep.subr.bf16.mxu0 0
      %3348 = vmatpush1.bf16.msra.mxu0 0
      %3349 = vmatprep.subr.bf16.mxu0 0
      %3350 = vmatpush1.bf16.msra.mxu0 0
      %3351 = vmatprep.subr.bf16.mxu0 0
      %3352 = vmatpush1.bf16.msra.mxu0 0
      %3353 = vmatprep.subr.bf16.mxu0 0
      %3354 = vmatpush1.bf16.msra.mxu0 0
      %3355 = vmatprep.subr.bf16.mxu0 0
      %3356 = vmatpush1.bf16.msra.mxu0 0
      %3357 = vmatprep.subr.bf16.mxu0 0
      %3358 = vmatpush1.bf16.msra.mxu0 0
      %3359 = vmatprep.subr.bf16.mxu0 0
      %3360 = vmatpush1.bf16.msra.mxu0 0
      %3361 = vmatprep.mubr.bf16.mxu0 0
      %3362 = vmatmul.mubr.bf16.gmra.mrb[0].mxu0 %v2596
      %v3363 = vpop.f32.mrb[0].mxu0
      %v3364 = vadd.f32 %v3313, %v3363
      %v3365 = vpop.f32.mrb[0].mxu0
      %v3366 = vadd.f32 %v3315, %v3365
      %v3367 = vpop.f32.mrb[0].mxu0
      %v3368 = vadd.f32 %v3317, %v3367
      %v3369 = vpop.f32.mrb[0].mxu0
      %v3370 = vadd.f32 %v3319, %v3369
      %3371 = vmatprep.mubr.bf16.mxu0 0
      %3372 = vmatmul.mubr.bf16.gmra.mrb[0].mxu0 %v2599
      %v3373 = vpop.f32.mrb[0].mxu0
      %v3374 = vadd.f32 %v3323, %v3373
      %v3375 = vpop.f32.mrb[0].mxu0
      %v3376 = vadd.f32 %v3325, %v3375
      %v3377 = vpop.f32.mrb[0].mxu0
      %v3378 = vpop.f32.mrb[0].mxu0
      %3379 = vdwg.mxu0
      %v3380 = vmax.f32 %v2974, %v3364
      %v3381 = vmax.f32 %v2976, %v3366
      %v3382 = vmax.f32 %v2978, %v3368
      %v3383 = vmax.f32 %v2980, %v3370
      %v3384 = vmax.f32 %v2984, %v3374
      %v3385 = vmax.f32 %v2986, %v3376
      %v3386 = vld [vmem:[%s11] sm:$0xf]
      %v3387 = vld [vmem:[%s11 + $0x4] sm:$0x3]
      %v3388 = vpack.c.bf16 %v3382, %v3380
      %v3389 = vpack.c.bf16 %v3383, %v3381
      %v3390 = vpack.c.bf16 %v3384, %v3384
      %v3391 = vpack.c.bf16 %v3385, %v3385
      %v3394 = vunpack.c.l.b16 %v3386
      %v3395 = vunpack.c.l.b16 %v3387
      %v3396 = vpack.c.b16 %v3395, %v3394
      %vm3397 = vcmask 187392
      %v3399 = vsel %vm3397, %v3396, 0
      %vm3401 = vcmask 1042432
      %vm3402 = vcmask 1043456
      %v3403 = vsel %vm3401, 4294967295, 65535
      %v3404 = vsel %vm3402, %v3403, 0
      %v3406 = vand.u32 %v3390, %v3404
      %v3409 = vand.u32 %v3391, %v3404
      %3411 = vmatprep.subr.bf16.mxu0 %v3389
      %3412 = vmatpush1.bf16.msra.mxu0 %v3388
      %3413 = vmatprep.subr.bf16.mxu0 %v3409
      %3414 = vmatpush1.bf16.msra.mxu0 %v3406
      %3415 = vmatprep.subr.bf16.mxu0 0
      %3416 = vmatpush1.bf16.msra.mxu0 0
      %3417 = vmatprep.subr.bf16.mxu0 0
      %3418 = vmatpush1.bf16.msra.mxu0 0
      %3419 = vmatprep.subr.bf16.mxu0 0
      %3420 = vmatpush1.bf16.msra.mxu0 0
      %3421 = vmatprep.subr.bf16.mxu0 0
      %3422 = vmatpush1.bf16.msra.mxu0 0
      %3423 = vmatprep.subr.bf16.mxu0 0
      %3424 = vmatpush1.bf16.msra.mxu0 0
      %3425 = vmatprep.subr.bf16.mxu0 0
      %3426 = vmatpush1.bf16.msra.mxu0 0
      %3427 = vmatprep.subr.bf16.mxu0 0
      %3428 = vmatpush1.bf16.msra.mxu0 0
      %3429 = vmatprep.subr.bf16.mxu0 0
      %3430 = vmatpush1.bf16.msra.mxu0 0
      %3431 = vmatprep.subr.bf16.mxu0 0
      %3432 = vmatpush1.bf16.msra.mxu0 0
      %3433 = vmatprep.subr.bf16.mxu0 0
      %3434 = vmatpush1.bf16.msra.mxu0 0
      %3435 = vmatprep.subr.bf16.mxu0 0
      %3436 = vmatpush1.bf16.msra.mxu0 0
      %3437 = vmatprep.subr.bf16.mxu0 0
      %3438 = vmatpush1.bf16.msra.mxu0 0
      %3439 = vmatprep.subr.bf16.mxu0 0
      %3440 = vmatpush1.bf16.msra.mxu0 0
      %3441 = vmatprep.subr.bf16.mxu0 0
      %3442 = vmatpush1.bf16.msra.mxu0 0
      %3443 = vmatprep.mubr.bf16.mxu0 0
      %3444 = vmatmul.mubr.bf16.gmra.mrb[0].mxu0 %v3399
      %v3445 = vpop.f32.mrb[0].mxu0
      %v3446 = vadd.f32 0.0, %v3445
      %v3447 = vpop.f32.mrb[0].mxu0
      %v3448 = vadd.f32 0.0, %v3447
      %v3449 = vpop.f32.mrb[0].mxu0
      %v3450 = vadd.f32 0.0, %v3449
      %v3451 = vpop.f32.mrb[0].mxu0
      %v3452 = vadd.f32 0.0, %v3451
      %3453 = vdwg.mxu0
      %v3454 = vpack.c.bf16 %v3450, %v3446
      %v3455 = vpack.c.bf16 %v3452, %v3448
      %v3456 = vld [vmem:[%s17] sm:$0xff]
      %v3457 = vld [vmem:[%s17 + $0x8] sm:$0xff]
      %v3458 = vld [vmem:[%s17 + $0x10] sm:$0xff]
      %v3459 = vld [vmem:[%s17 + $0x18] sm:$0xff]
      %v3460 = vld [vmem:[%s17 + $0x20] sm:$0xff]
      %v3461 = vld [vmem:[%s17 + $0x28] sm:$0xff]
      %v3462 = vld [vmem:[%s17 + $0x30] sm:$0xff]
      %v3463 = vld [vmem:[%s17 + $0x38] sm:$0xff]
      %v3464 = vld [vmem:[%s17 + $0x40] sm:$0xff]
      %v3465 = vld [vmem:[%s17 + $0x48] sm:$0xff]
      %v3466 = vld [vmem:[%s17 + $0x50] sm:$0xff]
      %v3467 = vld [vmem:[%s17 + $0x58] sm:$0xff]
      %v3468 = vld [vmem:[%s17 + $0x60] sm:$0xff]
      %v3469 = vld [vmem:[%s17 + $0x68] sm:$0xff]
      %v3470 = vld [vmem:[%s17 + $0x70] sm:$0xff]
      %v3471 = vld [vmem:[%s17 + $0x78] sm:$0xff]
      %v3472 = vld [vmem:[%s17 + $0x80] sm:$0xff]
      %v3473 = vld [vmem:[%s17 + $0x88] sm:$0xff]
      %v3474 = vld [vmem:[%s17 + $0x90] sm:$0xff]
      %v3475 = vld [vmem:[%s17 + $0x98] sm:$0xff]
      %v3476 = vld [vmem:[%s17 + $0xa0] sm:$0xff]
      %v3477 = vld [vmem:[%s17 + $0xa8] sm:$0xff]
      %v3478 = vld [vmem:[%s17 + $0xb0] sm:$0xff]
      %v3479 = vld [vmem:[%s17 + $0xb8] sm:$0xff]
      %s3480 = scalar_lea.vmem %s17, 192
      %v3481 = vld [vmem:[%s3480] sm:$0xff]
      %v3482 = vld [vmem:[%s3480 + $0x8] sm:$0xff]
      %v3483 = vld [vmem:[%s3480 + $0x10] sm:$0xff]
      %v3484 = vld [vmem:[%s3480 + $0x18] sm:$0xff]
      %v3485 = vld [vmem:[%s3480 + $0x20] sm:$0xff]
      %v3486 = vld [vmem:[%s3480 + $0x28] sm:$0xff]
      %v3487 = vld [vmem:[%s3480 + $0x30] sm:$0xff]
      %v3488 = vld [vmem:[%s3480 + $0x38] sm:$0xff]
      %v3489 = vld [vmem:[%s3480 + $0x40] sm:$0xff]
      %v3490 = vld [vmem:[%s3480 + $0x48] sm:$0xff]
      %v3491 = vld [vmem:[%s3480 + $0x50] sm:$0xff]
      %v3492 = vld [vmem:[%s3480 + $0x58] sm:$0xff]
      %v3493 = vld [vmem:[%s3480 + $0x60] sm:$0xff]
      %v3494 = vld [vmem:[%s3480 + $0x68] sm:$0xff]
      %v3495 = vld [vmem:[%s3480 + $0x70] sm:$0xff]
      %v3496 = vld [vmem:[%s3480 + $0x78] sm:$0xff]
      %v3497 = vld [vmem:[%s3480 + $0x80] sm:$0xff]
      %v3498 = vld [vmem:[%s3480 + $0x88] sm:$0xff]
      %v3499 = vld [vmem:[%s3480 + $0x90] sm:$0xff]
      %v3500 = vld [vmem:[%s3480 + $0x98] sm:$0xff]
      %v3501 = vld [vmem:[%s3480 + $0xa0] sm:$0xff]
      %v3502 = vld [vmem:[%s3480 + $0xa8] sm:$0xff]
      %v3503 = vld [vmem:[%s3480 + $0xb0] sm:$0xff]
      %v3504 = vld [vmem:[%s3480 + $0xb8] sm:$0xff]
      %v3506 = vshrl.u32 %v3454, 16
      %v3508 = vshll.u32 %v3454, 16
      %v3510 = vrot.slane %v3508, 1
      %v3511 = vor.u32 %v3506, %v3510
      %v3513 = vshrl.u32 %v3455, 16
      %v3515 = vshll.u32 %v3455, 16
      %v3517 = vrot.slane %v3515, 1
      %v3518 = vor.u32 %v3513, %v3517
      %v3544 = vunpack.c.l.b16 %v3481
      %v3545 = vunpack.c.h.b16 %v3481
      %v3546 = vunpack.c.l.b16 %v3482
      %v3547 = vunpack.c.h.b16 %v3482
      %v3548 = vunpack.c.l.b16 %v3483
      %v3549 = vunpack.c.h.b16 %v3483
      %v3550 = vunpack.c.l.b16 %v3484
      %v3551 = vunpack.c.h.b16 %v3484
      %v3552 = vunpack.c.l.b16 %v3485
      %v3553 = vunpack.c.h.b16 %v3485
      %v3554 = vunpack.c.l.b16 %v3486
      %v3555 = vunpack.c.h.b16 %v3486
      %v3556 = vunpack.c.l.b16 %v3487
      %v3557 = vunpack.c.h.b16 %v3487
      %v3558 = vunpack.c.l.b16 %v3488
      %v3559 = vunpack.c.h.b16 %v3488
      %v3560 = vunpack.c.l.b16 %v3489
      %v3561 = vunpack.c.h.b16 %v3489
      %v3562 = vunpack.c.l.b16 %v3490
      %v3563 = vunpack.c.h.b16 %v3490
      %v3564 = vunpack.c.l.b16 %v3491
      %v3565 = vunpack.c.h.b16 %v3491
      %v3566 = vunpack.c.l.b16 %v3492
      %v3567 = vunpack.c.h.b16 %v3492
      %v3568 = vunpack.c.l.b16 %v3493
      %v3569 = vunpack.c.h.b16 %v3493
      %v3570 = vunpack.c.l.b16 %v3494
      %v3571 = vunpack.c.h.b16 %v3494
      %v3572 = vunpack.c.l.b16 %v3495
      %v3573 = vunpack.c.h.b16 %v3495
      %v3574 = vunpack.c.l.b16 %v3496
      %v3575 = vunpack.c.h.b16 %v3496
      %v3576 = vunpack.c.l.b16 %v3497
      %v3577 = vunpack.c.h.b16 %v3497
      %v3578 = vunpack.c.l.b16 %v3498
      %v3579 = vunpack.c.h.b16 %v3498
      %v3580 = vunpack.c.l.b16 %v3499
      %v3581 = vunpack.c.h.b16 %v3499
      %v3582 = vunpack.c.l.b16 %v3500
      %v3583 = vunpack.c.h.b16 %v3500
      %v3584 = vunpack.c.l.b16 %v3501
      %v3585 = vunpack.c.h.b16 %v3501
      %v3586 = vunpack.c.l.b16 %v3502
      %v3587 = vunpack.c.h.b16 %v3502
      %v3588 = vunpack.c.l.b16 %v3503
      %v3589 = vunpack.c.h.b16 %v3503
      %v3590 = vunpack.c.l.b16 %v3504
      %v3591 = vunpack.c.h.b16 %v3504
      %v3592 = vpack.c.b16 %v3546, %v3544
      %v3593 = vpack.c.b16 %v3547, %v3545
      %v3594 = vpack.c.b16 %v3550, %v3548
      %v3595 = vpack.c.b16 %v3551, %v3549
      %v3596 = vpack.c.b16 %v3554, %v3552
      %v3597 = vpack.c.b16 %v3555, %v3553
      %v3598 = vpack.c.b16 %v3558, %v3556
      %v3599 = vpack.c.b16 %v3559, %v3557
      %v3600 = vpack.c.b16 %v3562, %v3560
      %v3601 = vpack.c.b16 %v3563, %v3561
      %v3602 = vpack.c.b16 %v3566, %v3564
      %v3603 = vpack.c.b16 %v3567, %v3565
      %v3604 = vpack.c.b16 %v3570, %v3568
      %v3605 = vpack.c.b16 %v3571, %v3569
      %v3606 = vpack.c.b16 %v3574, %v3572
      %v3607 = vpack.c.b16 %v3575, %v3573
      %v3608 = vpack.c.b16 %v3578, %v3576
      %v3609 = vpack.c.b16 %v3579, %v3577
      %v3610 = vpack.c.b16 %v3582, %v3580
      %v3611 = vpack.c.b16 %v3583, %v3581
      %v3612 = vpack.c.b16 %v3586, %v3584
      %v3613 = vpack.c.b16 %v3587, %v3585
      %v3614 = vpack.c.b16 %v3590, %v3588
      %v3615 = vpack.c.b16 %v3591, %v3589
      %vm3640 = vcmask 523264
      %v3642 = vsel %vm3640, %v3518, 0
      %3644 = vmatprep.subr.bf16.mxu0 %v3593
      %3645 = vmatpush1.bf16.msra.mxu0 %v3592
      %3646 = vmatprep.subr.bf16.mxu0 %v3595
      %3647 = vmatpush1.bf16.msra.mxu0 %v3594
      %3648 = vmatprep.subr.bf16.mxu0 %v3597
      %3649 = vmatpush1.bf16.msra.mxu0 %v3596
      %3650 = vmatprep.subr.bf16.mxu0 %v3599
      %3651 = vmatpush1.bf16.msra.mxu0 %v3598
      %3652 = vmatprep.subr.bf16.mxu0 %v3601
      %3653 = vmatpush1.bf16.msra.mxu0 %v3600
      %3654 = vmatprep.subr.bf16.mxu0 %v3603
      %3655 = vmatpush1.bf16.msra.mxu0 %v3602
      %3656 = vmatprep.subr.bf16.mxu0 %v3605
      %3657 = vmatpush1.bf16.msra.mxu0 %v3604
      %3658 = vmatprep.subr.bf16.mxu0 %v3607
      %3659 = vmatpush1.bf16.msra.mxu0 %v3606
      %3660 = vmatprep.subr.bf16.mxu0 %v3609
      %3661 = vmatpush1.bf16.msra.mxu0 %v3608
      %3662 = vmatprep.subr.bf16.mxu0 %v3611
      %3663 = vmatpush1.bf16.msra.mxu0 %v3610
      %3664 = vmatprep.subr.bf16.mxu0 %v3613
      %3665 = vmatpush1.bf16.msra.mxu0 %v3612
      %3666 = vmatprep.subr.bf16.mxu0 %v3615
      %3667 = vmatpush1.bf16.msra.mxu0 %v3614
      %3668 = vmatprep.subr.bf16.mxu0 0
      %3669 = vmatpush1.bf16.msra.mxu0 0
      %3670 = vmatprep.subr.bf16.mxu0 0
      %3671 = vmatpush1.bf16.msra.mxu0 0
      %3672 = vmatprep.subr.bf16.mxu0 0
      %3673 = vmatpush1.bf16.msra.mxu0 0
      %3674 = vmatprep.subr.bf16.mxu0 0
      %3675 = vmatpush1.bf16.msra.mxu0 0
      %3676 = vmatprep.mubr.bf16.mxu0 %v3642
      %3677 = vmatmul.mubr.bf16.gmra.mrb[0].mxu0 %v3511
      %v3678 = vpop.f32.mrb[0].mxu0
      %v3679 = vadd.f32 0.0, %v3678
      %v3680 = vpop.f32.mrb[0].mxu0
      %v3681 = vadd.f32 0.0, %v3680
      %v3682 = vpop.f32.mrb[0].mxu0
      %v3683 = vadd.f32 0.0, %v3682
      %v3684 = vpop.f32.mrb[0].mxu0
      %v3685 = vadd.f32 0.0, %v3684
      %3686 = vdwg.mxu0
      %v3711 = vunpack.c.l.b16 %v3456
      %v3712 = vunpack.c.h.b16 %v3456
      %v3713 = vunpack.c.l.b16 %v3457
      %v3714 = vunpack.c.h.b16 %v3457
      %v3715 = vunpack.c.l.b16 %v3458
      %v3716 = vunpack.c.h.b16 %v3458
      %v3717 = vunpack.c.l.b16 %v3459
      %v3718 = vunpack.c.h.b16 %v3459
      %v3719 = vunpack.c.l.b16 %v3460
      %v3720 = vunpack.c.h.b16 %v3460
      %v3721 = vunpack.c.l.b16 %v3461
      %v3722 = vunpack.c.h.b16 %v3461
      %v3723 = vunpack.c.l.b16 %v3462
      %v3724 = vunpack.c.h.b16 %v3462
      %v3725 = vunpack.c.l.b16 %v3463
      %v3726 = vunpack.c.h.b16 %v3463
      %v3727 = vunpack.c.l.b16 %v3464
      %v3728 = vunpack.c.h.b16 %v3464
      %v3729 = vunpack.c.l.b16 %v3465
      %v3730 = vunpack.c.h.b16 %v3465
      %v3731 = vunpack.c.l.b16 %v3466
      %v3732 = vunpack.c.h.b16 %v3466
      %v3733 = vunpack.c.l.b16 %v3467
      %v3734 = vunpack.c.h.b16 %v3467
      %v3735 = vunpack.c.l.b16 %v3468
      %v3736 = vunpack.c.h.b16 %v3468
      %v3737 = vunpack.c.l.b16 %v3469
      %v3738 = vunpack.c.h.b16 %v3469
      %v3739 = vunpack.c.l.b16 %v3470
      %v3740 = vunpack.c.h.b16 %v3470
      %v3741 = vunpack.c.l.b16 %v3471
      %v3742 = vunpack.c.h.b16 %v3471
      %v3743 = vunpack.c.l.b16 %v3472
      %v3744 = vunpack.c.h.b16 %v3472
      %v3745 = vunpack.c.l.b16 %v3473
      %v3746 = vunpack.c.h.b16 %v3473
      %v3747 = vunpack.c.l.b16 %v3474
      %v3748 = vunpack.c.h.b16 %v3474
      %v3749 = vunpack.c.l.b16 %v3475
      %v3750 = vunpack.c.h.b16 %v3475
      %v3751 = vunpack.c.l.b16 %v3476
      %v3752 = vunpack.c.h.b16 %v3476
      %v3753 = vunpack.c.l.b16 %v3477
      %v3754 = vunpack.c.h.b16 %v3477
      %v3755 = vunpack.c.l.b16 %v3478
      %v3756 = vunpack.c.h.b16 %v3478
      %v3757 = vunpack.c.l.b16 %v3479
      %v3758 = vunpack.c.h.b16 %v3479
      %v3759 = vpack.c.b16 %v3713, %v3711
      %v3760 = vpack.c.b16 %v3714, %v3712
      %v3761 = vpack.c.b16 %v3717, %v3715
      %v3762 = vpack.c.b16 %v3718, %v3716
      %v3763 = vpack.c.b16 %v3721, %v3719
      %v3764 = vpack.c.b16 %v3722, %v3720
      %v3765 = vpack.c.b16 %v3725, %v3723
      %v3766 = vpack.c.b16 %v3726, %v3724
      %v3767 = vpack.c.b16 %v3729, %v3727
      %v3768 = vpack.c.b16 %v3730, %v3728
      %v3769 = vpack.c.b16 %v3733, %v3731
      %v3770 = vpack.c.b16 %v3734, %v3732
      %v3771 = vpack.c.b16 %v3737, %v3735
      %v3772 = vpack.c.b16 %v3738, %v3736
      %v3773 = vpack.c.b16 %v3741, %v3739
      %v3774 = vpack.c.b16 %v3742, %v3740
      %v3775 = vpack.c.b16 %v3745, %v3743
      %v3776 = vpack.c.b16 %v3746, %v3744
      %v3777 = vpack.c.b16 %v3749, %v3747
      %v3778 = vpack.c.b16 %v3750, %v3748
      %v3779 = vpack.c.b16 %v3753, %v3751
      %v3780 = vpack.c.b16 %v3754, %v3752
      %v3781 = vpack.c.b16 %v3757, %v3755
      %v3782 = vpack.c.b16 %v3758, %v3756
      %v3807 = vsel %vm3640, %v3455, 0
      %3809 = vmatprep.subr.bf16.mxu0 %v3760
      %3810 = vmatpush1.bf16.msra.mxu0 %v3759
      %3811 = vmatprep.subr.bf16.mxu0 %v3762
      %3812 = vmatpush1.bf16.msra.mxu0 %v3761
      %3813 = vmatprep.subr.bf16.mxu0 %v3764
      %3814 = vmatpush1.bf16.msra.mxu0 %v3763
      %3815 = vmatprep.subr.bf16.mxu0 %v3766
      %3816 = vmatpush1.bf16.msra.mxu0 %v3765
      %3817 = vmatprep.subr.bf16.mxu0 %v3768
      %3818 = vmatpush1.bf16.msra.mxu0 %v3767
      %3819 = vmatprep.subr.bf16.mxu0 %v3770
      %3820 = vmatpush1.bf16.msra.mxu0 %v3769
      %3821 = vmatprep.subr.bf16.mxu0 %v3772
      %3822 = vmatpush1.bf16.msra.mxu0 %v3771
      %3823 = vmatprep.subr.bf16.mxu0 %v3774
      %3824 = vmatpush1.bf16.msra.mxu0 %v3773
      %3825 = vmatprep.subr.bf16.mxu0 %v3776
      %3826 = vmatpush1.bf16.msra.mxu0 %v3775
      %3827 = vmatprep.subr.bf16.mxu0 %v3778
      %3828 = vmatpush1.bf16.msra.mxu0 %v3777
      %3829 = vmatprep.subr.bf16.mxu0 %v3780
      %3830 = vmatpush1.bf16.msra.mxu0 %v3779
      %3831 = vmatprep.subr.bf16.mxu0 %v3782
      %3832 = vmatpush1.bf16.msra.mxu0 %v3781
      %3833 = vmatprep.subr.bf16.mxu0 0
      %3834 = vmatpush1.bf16.msra.mxu0 0
      %3835 = vmatprep.subr.bf16.mxu0 0
      %3836 = vmatpush1.bf16.msra.mxu0 0
      %3837 = vmatprep.subr.bf16.mxu0 0
      %3838 = vmatpush1.bf16.msra.mxu0 0
      %3839 = vmatprep.subr.bf16.mxu0 0
      %3840 = vmatpush1.bf16.msra.mxu0 0
      %3841 = vmatprep.mubr.bf16.mxu0 %v3807
      %3842 = vmatmul.mubr.bf16.gmra.mrb[0].mxu0 %v3454
      %v3843 = vpop.f32.mrb[0].mxu0
      %v3844 = vadd.f32 %v3679, %v3843
      %v3845 = vpop.f32.mrb[0].mxu0
      %v3846 = vadd.f32 %v3681, %v3845
      %v3847 = vpop.f32.mrb[0].mxu0
      %v3848 = vadd.f32 %v3683, %v3847
      %v3849 = vpop.f32.mrb[0].mxu0
      %v3850 = vadd.f32 %v3685, %v3849
      %3851 = vdwg.mxu0
      %s3852 = scalar_lea.vmem %s17, 384
      %v3853 = vld [vmem:[%s3852] sm:$0xff]
      %v3854 = vld [vmem:[%s3852 + $0x8] sm:$0xff]
      %v3855 = vld [vmem:[%s3852 + $0x10] sm:$0xff]
      %v3856 = vld [vmem:[%s3852 + $0x18] sm:$0xff]
      %v3857 = vld [vmem:[%s3852 + $0x20] sm:$0xff]
      %v3858 = vld [vmem:[%s3852 + $0x28] sm:$0xff]
      %v3859 = vld [vmem:[%s3852 + $0x30] sm:$0xff]
      %v3860 = vld [vmem:[%s3852 + $0x38] sm:$0xff]
      %v3861 = vld [vmem:[%s3852 + $0x40] sm:$0xff]
      %v3862 = vld [vmem:[%s3852 + $0x48] sm:$0xff]
      %v3863 = vld [vmem:[%s3852 + $0x50] sm:$0xff]
      %v3864 = vld [vmem:[%s3852 + $0x58] sm:$0xff]
      %v3865 = vld [vmem:[%s3852 + $0x60] sm:$0xff]
      %v3866 = vld [vmem:[%s3852 + $0x68] sm:$0xff]
      %v3867 = vld [vmem:[%s3852 + $0x70] sm:$0xff]
      %v3868 = vld [vmem:[%s3852 + $0x78] sm:$0xff]
      %v3869 = vld [vmem:[%s3852 + $0x80] sm:$0xff]
      %v3870 = vld [vmem:[%s3852 + $0x88] sm:$0xff]
      %v3871 = vld [vmem:[%s3852 + $0x90] sm:$0xff]
      %v3872 = vld [vmem:[%s3852 + $0x98] sm:$0xff]
      %v3873 = vld [vmem:[%s3852 + $0xa0] sm:$0xff]
      %v3874 = vld [vmem:[%s3852 + $0xa8] sm:$0xff]
      %v3875 = vld [vmem:[%s3852 + $0xb0] sm:$0xff]
      %v3876 = vld [vmem:[%s3852 + $0xb8] sm:$0xff]
      %v3879 = vrot.slane %v3454, 1
      %v3880 = vrot.slane %v3455, 1
      %v3906 = vunpack.c.l.b16 %v3853
      %v3907 = vunpack.c.h.b16 %v3853
      %v3908 = vunpack.c.l.b16 %v3854
      %v3909 = vunpack.c.h.b16 %v3854
      %v3910 = vunpack.c.l.b16 %v3855
      %v3911 = vunpack.c.h.b16 %v3855
      %v3912 = vunpack.c.l.b16 %v3856
      %v3913 = vunpack.c.h.b16 %v3856
      %v3914 = vunpack.c.l.b16 %v3857
      %v3915 = vunpack.c.h.b16 %v3857
      %v3916 = vunpack.c.l.b16 %v3858
      %v3917 = vunpack.c.h.b16 %v3858
      %v3918 = vunpack.c.l.b16 %v3859
      %v3919 = vunpack.c.h.b16 %v3859
      %v3920 = vunpack.c.l.b16 %v3860
      %v3921 = vunpack.c.h.b16 %v3860
      %v3922 = vunpack.c.l.b16 %v3861
      %v3923 = vunpack.c.h.b16 %v3861
      %v3924 = vunpack.c.l.b16 %v3862
      %v3925 = vunpack.c.h.b16 %v3862
      %v3926 = vunpack.c.l.b16 %v3863
      %v3927 = vunpack.c.h.b16 %v3863
      %v3928 = vunpack.c.l.b16 %v3864
      %v3929 = vunpack.c.h.b16 %v3864
      %v3930 = vunpack.c.l.b16 %v3865
      %v3931 = vunpack.c.h.b16 %v3865
      %v3932 = vunpack.c.l.b16 %v3866
      %v3933 = vunpack.c.h.b16 %v3866
      %v3934 = vunpack.c.l.b16 %v3867
      %v3935 = vunpack.c.h.b16 %v3867
      %v3936 = vunpack.c.l.b16 %v3868
      %v3937 = vunpack.c.h.b16 %v3868
      %v3938 = vunpack.c.l.b16 %v3869
      %v3939 = vunpack.c.h.b16 %v3869
      %v3940 = vunpack.c.l.b16 %v3870
      %v3941 = vunpack.c.h.b16 %v3870
      %v3942 = vunpack.c.l.b16 %v3871
      %v3943 = vunpack.c.h.b16 %v3871
      %v3944 = vunpack.c.l.b16 %v3872
      %v3945 = vunpack.c.h.b16 %v3872
      %v3946 = vunpack.c.l.b16 %v3873
      %v3947 = vunpack.c.h.b16 %v3873
      %v3948 = vunpack.c.l.b16 %v3874
      %v3949 = vunpack.c.h.b16 %v3874
      %v3950 = vunpack.c.l.b16 %v3875
      %v3951 = vunpack.c.h.b16 %v3875
      %v3952 = vunpack.c.l.b16 %v3876
      %v3953 = vunpack.c.h.b16 %v3876
      %v3954 = vpack.c.b16 %v3908, %v3906
      %v3955 = vpack.c.b16 %v3909, %v3907
      %v3956 = vpack.c.b16 %v3912, %v3910
      %v3957 = vpack.c.b16 %v3913, %v3911
      %v3958 = vpack.c.b16 %v3916, %v3914
      %v3959 = vpack.c.b16 %v3917, %v3915
      %v3960 = vpack.c.b16 %v3920, %v3918
      %v3961 = vpack.c.b16 %v3921, %v3919
      %v3962 = vpack.c.b16 %v3924, %v3922
      %v3963 = vpack.c.b16 %v3925, %v3923
      %v3964 = vpack.c.b16 %v3928, %v3926
      %v3965 = vpack.c.b16 %v3929, %v3927
      %v3966 = vpack.c.b16 %v3932, %v3930
      %v3967 = vpack.c.b16 %v3933, %v3931
      %v3968 = vpack.c.b16 %v3936, %v3934
      %v3969 = vpack.c.b16 %v3937, %v3935
      %v3970 = vpack.c.b16 %v3940, %v3938
      %v3971 = vpack.c.b16 %v3941, %v3939
      %v3972 = vpack.c.b16 %v3944, %v3942
      %v3973 = vpack.c.b16 %v3945, %v3943
      %v3974 = vpack.c.b16 %v3948, %v3946
      %v3975 = vpack.c.b16 %v3949, %v3947
      %v3976 = vpack.c.b16 %v3952, %v3950
      %v3977 = vpack.c.b16 %v3953, %v3951
      %v4003 = vsel %vm3640, %v3880, 0
      %4005 = vmatprep.subr.bf16.mxu0 %v3955
      %4006 = vmatpush1.bf16.msra.mxu0 %v3954
      %4007 = vmatprep.subr.bf16.mxu0 %v3957
      %4008 = vmatpush1.bf16.msra.mxu0 %v3956
      %4009 = vmatprep.subr.bf16.mxu0 %v3959
      %4010 = vmatpush1.bf16.msra.mxu0 %v3958
      %4011 = vmatprep.subr.bf16.mxu0 %v3961
      %4012 = vmatpush1.bf16.msra.mxu0 %v3960
      %4013 = vmatprep.subr.bf16.mxu0 %v3963
      %4014 = vmatpush1.bf16.msra.mxu0 %v3962
      %4015 = vmatprep.subr.bf16.mxu0 %v3965
      %4016 = vmatpush1.bf16.msra.mxu0 %v3964
      %4017 = vmatprep.subr.bf16.mxu0 %v3967
      %4018 = vmatpush1.bf16.msra.mxu0 %v3966
      %4019 = vmatprep.subr.bf16.mxu0 %v3969
      %4020 = vmatpush1.bf16.msra.mxu0 %v3968
      %4021 = vmatprep.subr.bf16.mxu0 %v3971
      %4022 = vmatpush1.bf16.msra.mxu0 %v3970
      %4023 = vmatprep.subr.bf16.mxu0 %v3973
      %4024 = vmatpush1.bf16.msra.mxu0 %v3972
      %4025 = vmatprep.subr.bf16.mxu0 %v3975
      %4026 = vmatpush1.bf16.msra.mxu0 %v3974
      %4027 = vmatprep.subr.bf16.mxu0 %v3977
      %4028 = vmatpush1.bf16.msra.mxu0 %v3976
      %4029 = vmatprep.subr.bf16.mxu0 0
      %4030 = vmatpush1.bf16.msra.mxu0 0
      %4031 = vmatprep.subr.bf16.mxu0 0
      %4032 = vmatpush1.bf16.msra.mxu0 0
      %4033 = vmatprep.subr.bf16.mxu0 0
      %4034 = vmatpush1.bf16.msra.mxu0 0
      %4035 = vmatprep.subr.bf16.mxu0 0
      %4036 = vmatpush1.bf16.msra.mxu0 0
      %4037 = vmatprep.mubr.bf16.mxu0 %v4003
      %4038 = vmatmul.mubr.bf16.gmra.mrb[0].mxu0 %v3879
      %v4039 = vpop.f32.mrb[0].mxu0
      %v4040 = vadd.f32 0.0, %v4039
      %v4041 = vpop.f32.mrb[0].mxu0
      %v4042 = vadd.f32 0.0, %v4041
      %v4043 = vpop.f32.mrb[0].mxu0
      %v4044 = vadd.f32 0.0, %v4043
      %v4045 = vpop.f32.mrb[0].mxu0
      %v4046 = vadd.f32 0.0, %v4045
      %4047 = vdwg.mxu0
      %v4048 = vadd.f32 %v3844, %v4040
      %v4049 = vadd.f32 %v3846, %v4042
      %v4050 = vadd.f32 %v3848, %v4044
      %v4051 = vadd.f32 %v3850, %v4046
      %v4052 = vld [vmem:[%s19] sm:$0x3]
      %v4054 = vlaneseq
      %v4055 = vshrl.u32 %v4054, 7
      %v4056 = vsub.s32 0, %v4055
      %v4057 = vrot.slane %v4052, %v4056
      %v4058 = vlaneseq
      %v4059 = vshrl.u32 %v4058, 7
      %v4060 = vsub.s32 1, %v4059
      %v4061 = vrot.slane %v4052, %v4060
      %v4064 = vadd.f32 %v4048, %v4057
      %v4065 = vadd.f32 %v4049, %v4061
      %v4066 = vadd.f32 %v4050, %v4057
      %v4067 = vadd.f32 %v4051, %v4061
      %v4068 = vmax.f32 %v4064, 0.0
      %v4069 = vmax.f32 %v4065, 0.0
      %v4070 = vmax.f32 %v4066, 0.0
      %v4071 = vmax.f32 %v4067, 0.0
      %v4072 = vpack.c.bf16 %v4070, %v4068
      %v4073 = vpack.c.bf16 %v4071, %v4069
      %v4074 = vld [vmem:[%s21] sm:$0xff]
      %v4075 = vld [vmem:[%s21 + $0x8] sm:$0xff]
      %v4076 = vld [vmem:[%s21 + $0x10] sm:$0xff]
      %v4077 = vld [vmem:[%s21 + $0x18] sm:$0xff]
      %v4078 = vld [vmem:[%s21 + $0x20] sm:$0xff]
      %v4079 = vld [vmem:[%s21 + $0x28] sm:$0xff]
      %v4080 = vld [vmem:[%s21 + $0x30] sm:$0xff]
      %v4081 = vld [vmem:[%s21 + $0x38] sm:$0xff]
      %v4082 = vld [vmem:[%s21 + $0x40] sm:$0xff]
      %v4083 = vld [vmem:[%s21 + $0x48] sm:$0xff]
      %v4084 = vld [vmem:[%s21 + $0x50] sm:$0xff]
      %v4085 = vld [vmem:[%s21 + $0x58] sm:$0xff]
      %v4086 = vld [vmem:[%s21 + $0x60] sm:$0xff]
      %v4087 = vld [vmem:[%s21 + $0x68] sm:$0xff]
      %v4088 = vld [vmem:[%s21 + $0x70] sm:$0xff]
      %v4089 = vld [vmem:[%s21 + $0x78] sm:$0xff]
      %v4090 = vld [vmem:[%s21 + $0x80] sm:$0xff]
      %v4091 = vld [vmem:[%s21 + $0x88] sm:$0xff]
      %v4092 = vld [vmem:[%s21 + $0x90] sm:$0xff]
      %v4093 = vld [vmem:[%s21 + $0x98] sm:$0xff]
      %s4094 = scalar_lea.vmem %s21, 160
      %v4095 = vld [vmem:[%s4094] sm:$0xff]
      %v4096 = vld [vmem:[%s4094 + $0x8] sm:$0xff]
      %v4097 = vld [vmem:[%s4094 + $0x10] sm:$0xff]
      %v4098 = vld [vmem:[%s4094 + $0x18] sm:$0xff]
      %v4099 = vld [vmem:[%s4094 + $0x20] sm:$0xff]
      %v4100 = vld [vmem:[%s4094 + $0x28] sm:$0xff]
      %v4101 = vld [vmem:[%s4094 + $0x30] sm:$0xff]
      %v4102 = vld [vmem:[%s4094 + $0x38] sm:$0xff]
      %v4103 = vld [vmem:[%s4094 + $0x40] sm:$0xff]
      %v4104 = vld [vmem:[%s4094 + $0x48] sm:$0xff]
      %v4105 = vld [vmem:[%s4094 + $0x50] sm:$0xff]
      %v4106 = vld [vmem:[%s4094 + $0x58] sm:$0xff]
      %v4107 = vld [vmem:[%s4094 + $0x60] sm:$0xff]
      %v4108 = vld [vmem:[%s4094 + $0x68] sm:$0xff]
      %v4109 = vld [vmem:[%s4094 + $0x70] sm:$0xff]
      %v4110 = vld [vmem:[%s4094 + $0x78] sm:$0xff]
      %v4111 = vld [vmem:[%s4094 + $0x80] sm:$0xff]
      %v4112 = vld [vmem:[%s4094 + $0x88] sm:$0xff]
      %v4113 = vld [vmem:[%s4094 + $0x90] sm:$0xff]
      %v4114 = vld [vmem:[%s4094 + $0x98] sm:$0xff]
      %v4116 = vshrl.u32 %v4072, 16
      %v4118 = vshll.u32 %v4072, 16
      %v4120 = vrot.slane %v4118, 1
      %v4121 = vor.u32 %v4116, %v4120
      %v4123 = vshrl.u32 %v4073, 16
      %v4125 = vshll.u32 %v4073, 16
      %v4127 = vrot.slane %v4125, 1
      %v4128 = vor.u32 %v4123, %v4127
      %v4150 = vunpack.c.l.b16 %v4095
      %v4151 = vunpack.c.h.b16 %v4095
      %v4152 = vunpack.c.l.b16 %v4096
      %v4153 = vunpack.c.h.b16 %v4096
      %v4154 = vunpack.c.l.b16 %v4097
      %v4155 = vunpack.c.h.b16 %v4097
      %v4156 = vunpack.c.l.b16 %v4098
      %v4157 = vunpack.c.h.b16 %v4098
      %v4158 = vunpack.c.l.b16 %v4099
      %v4159 = vunpack.c.h.b16 %v4099
      %v4160 = vunpack.c.l.b16 %v4100
      %v4161 = vunpack.c.h.b16 %v4100
      %v4162 = vunpack.c.l.b16 %v4101
      %v4163 = vunpack.c.h.b16 %v4101
      %v4164 = vunpack.c.l.b16 %v4102
      %v4165 = vunpack.c.h.b16 %v4102
      %v4166 = vunpack.c.l.b16 %v4103
      %v4167 = vunpack.c.h.b16 %v4103
      %v4168 = vunpack.c.l.b16 %v4104
      %v4169 = vunpack.c.h.b16 %v4104
      %v4170 = vunpack.c.l.b16 %v4105
      %v4171 = vunpack.c.h.b16 %v4105
      %v4172 = vunpack.c.l.b16 %v4106
      %v4173 = vunpack.c.h.b16 %v4106
      %v4174 = vunpack.c.l.b16 %v4107
      %v4175 = vunpack.c.h.b16 %v4107
      %v4176 = vunpack.c.l.b16 %v4108
      %v4177 = vunpack.c.h.b16 %v4108
      %v4178 = vunpack.c.l.b16 %v4109
      %v4179 = vunpack.c.h.b16 %v4109
      %v4180 = vunpack.c.l.b16 %v4110
      %v4181 = vunpack.c.h.b16 %v4110
      %v4182 = vunpack.c.l.b16 %v4111
      %v4183 = vunpack.c.h.b16 %v4111
      %v4184 = vunpack.c.l.b16 %v4112
      %v4185 = vunpack.c.h.b16 %v4112
      %v4186 = vunpack.c.l.b16 %v4113
      %v4187 = vunpack.c.h.b16 %v4113
      %v4188 = vunpack.c.l.b16 %v4114
      %v4189 = vunpack.c.h.b16 %v4114
      %v4190 = vpack.c.b16 %v4152, %v4150
      %v4191 = vpack.c.b16 %v4153, %v4151
      %v4192 = vpack.c.b16 %v4156, %v4154
      %v4193 = vpack.c.b16 %v4157, %v4155
      %v4194 = vpack.c.b16 %v4160, %v4158
      %v4195 = vpack.c.b16 %v4161, %v4159
      %v4196 = vpack.c.b16 %v4164, %v4162
      %v4197 = vpack.c.b16 %v4165, %v4163
      %v4198 = vpack.c.b16 %v4168, %v4166
      %v4199 = vpack.c.b16 %v4169, %v4167
      %v4200 = vpack.c.b16 %v4172, %v4170
      %v4201 = vpack.c.b16 %v4173, %v4171
      %v4202 = vpack.c.b16 %v4176, %v4174
      %v4203 = vpack.c.b16 %v4177, %v4175
      %v4204 = vpack.c.b16 %v4180, %v4178
      %v4205 = vpack.c.b16 %v4181, %v4179
      %v4206 = vpack.c.b16 %v4184, %v4182
      %v4207 = vpack.c.b16 %v4185, %v4183
      %v4208 = vpack.c.b16 %v4188, %v4186
      %v4209 = vpack.c.b16 %v4189, %v4187
      %vm4230 = vcmask 261120
      %v4232 = vsel %vm4230, %v4128, 0
      %4234 = vmatprep.subr.bf16.mxu0 %v4191
      %4235 = vmatpush1.bf16.msra.mxu0 %v4190
      %4236 = vmatprep.subr.bf16.mxu0 %v4193
      %4237 = vmatpush1.bf16.msra.mxu0 %v4192
      %4238 = vmatprep.subr.bf16.mxu0 %v4195
      %4239 = vmatpush1.bf16.msra.mxu0 %v4194
      %4240 = vmatprep.subr.bf16.mxu0 %v4197
      %4241 = vmatpush1.bf16.msra.mxu0 %v4196
      %4242 = vmatprep.subr.bf16.mxu0 %v4199
      %4243 = vmatpush1.bf16.msra.mxu0 %v4198
      %4244 = vmatprep.subr.bf16.mxu0 %v4201
      %4245 = vmatpush1.bf16.msra.mxu0 %v4200
      %4246 = vmatprep.subr.bf16.mxu0 %v4203
      %4247 = vmatpush1.bf16.msra.mxu0 %v4202
      %4248 = vmatprep.subr.bf16.mxu0 %v4205
      %4249 = vmatpush1.bf16.msra.mxu0 %v4204
      %4250 = vmatprep.subr.bf16.mxu0 %v4207
      %4251 = vmatpush1.bf16.msra.mxu0 %v4206
      %4252 = vmatprep.subr.bf16.mxu0 %v4209
      %4253 = vmatpush1.bf16.msra.mxu0 %v4208
      %4254 = vmatprep.subr.bf16.mxu0 0
      %4255 = vmatpush1.bf16.msra.mxu0 0
      %4256 = vmatprep.subr.bf16.mxu0 0
      %4257 = vmatpush1.bf16.msra.mxu0 0
      %4258 = vmatprep.subr.bf16.mxu0 0
      %4259 = vmatpush1.bf16.msra.mxu0 0
      %4260 = vmatprep.subr.bf16.mxu0 0
      %4261 = vmatpush1.bf16.msra.mxu0 0
      %4262 = vmatprep.subr.bf16.mxu0 0
      %4263 = vmatpush1.bf16.msra.mxu0 0
      %4264 = vmatprep.subr.bf16.mxu0 0
      %4265 = vmatpush1.bf16.msra.mxu0 0
      %4266 = vmatprep.mubr.bf16.mxu0 %v4232
      %4267 = vmatmul.mubr.bf16.gmra.mrb[0].mxu0 %v4121
      %v4268 = vpop.f32.mrb[0].mxu0
      %v4269 = vadd.f32 0.0, %v4268
      %v4270 = vpop.f32.mrb[0].mxu0
      %v4271 = vadd.f32 0.0, %v4270
      %v4272 = vpop.f32.mrb[0].mxu0
      %v4273 = vpop.f32.mrb[0].mxu0
      %4274 = vdwg.mxu0
      %v4295 = vunpack.c.l.b16 %v4074
      %v4296 = vunpack.c.h.b16 %v4074
      %v4297 = vunpack.c.l.b16 %v4075
      %v4298 = vunpack.c.h.b16 %v4075
      %v4299 = vunpack.c.l.b16 %v4076
      %v4300 = vunpack.c.h.b16 %v4076
      %v4301 = vunpack.c.l.b16 %v4077
      %v4302 = vunpack.c.h.b16 %v4077
      %v4303 = vunpack.c.l.b16 %v4078
      %v4304 = vunpack.c.h.b16 %v4078
      %v4305 = vunpack.c.l.b16 %v4079
      %v4306 = vunpack.c.h.b16 %v4079
      %v4307 = vunpack.c.l.b16 %v4080
      %v4308 = vunpack.c.h.b16 %v4080
      %v4309 = vunpack.c.l.b16 %v4081
      %v4310 = vunpack.c.h.b16 %v4081
      %v4311 = vunpack.c.l.b16 %v4082
      %v4312 = vunpack.c.h.b16 %v4082
      %v4313 = vunpack.c.l.b16 %v4083
      %v4314 = vunpack.c.h.b16 %v4083
      %v4315 = vunpack.c.l.b16 %v4084
      %v4316 = vunpack.c.h.b16 %v4084
      %v4317 = vunpack.c.l.b16 %v4085
      %v4318 = vunpack.c.h.b16 %v4085
      %v4319 = vunpack.c.l.b16 %v4086
      %v4320 = vunpack.c.h.b16 %v4086
      %v4321 = vunpack.c.l.b16 %v4087
      %v4322 = vunpack.c.h.b16 %v4087
      %v4323 = vunpack.c.l.b16 %v4088
      %v4324 = vunpack.c.h.b16 %v4088
      %v4325 = vunpack.c.l.b16 %v4089
      %v4326 = vunpack.c.h.b16 %v4089
      %v4327 = vunpack.c.l.b16 %v4090
      %v4328 = vunpack.c.h.b16 %v4090
      %v4329 = vunpack.c.l.b16 %v4091
      %v4330 = vunpack.c.h.b16 %v4091
      %v4331 = vunpack.c.l.b16 %v4092
      %v4332 = vunpack.c.h.b16 %v4092
      %v4333 = vunpack.c.l.b16 %v4093
      %v4334 = vunpack.c.h.b16 %v4093
      %v4335 = vpack.c.b16 %v4297, %v4295
      %v4336 = vpack.c.b16 %v4298, %v4296
      %v4337 = vpack.c.b16 %v4301, %v4299
      %v4338 = vpack.c.b16 %v4302, %v4300
      %v4339 = vpack.c.b16 %v4305, %v4303
      %v4340 = vpack.c.b16 %v4306, %v4304
      %v4341 = vpack.c.b16 %v4309, %v4307
      %v4342 = vpack.c.b16 %v4310, %v4308
      %v4343 = vpack.c.b16 %v4313, %v4311
      %v4344 = vpack.c.b16 %v4314, %v4312
      %v4345 = vpack.c.b16 %v4317, %v4315
      %v4346 = vpack.c.b16 %v4318, %v4316
      %v4347 = vpack.c.b16 %v4321, %v4319
      %v4348 = vpack.c.b16 %v4322, %v4320
      %v4349 = vpack.c.b16 %v4325, %v4323
      %v4350 = vpack.c.b16 %v4326, %v4324
      %v4351 = vpack.c.b16 %v4329, %v4327
      %v4352 = vpack.c.b16 %v4330, %v4328
      %v4353 = vpack.c.b16 %v4333, %v4331
      %v4354 = vpack.c.b16 %v4334, %v4332
      %v4375 = vsel %vm4230, %v4073, 0
      %4377 = vmatprep.subr.bf16.mxu0 %v4336
      %4378 = vmatpush1.bf16.msra.mxu0 %v4335
      %4379 = vmatprep.subr.bf16.mxu0 %v4338
      %4380 = vmatpush1.bf16.msra.mxu0 %v4337
      %4381 = vmatprep.subr.bf16.mxu0 %v4340
      %4382 = vmatpush1.bf16.msra.mxu0 %v4339
      %4383 = vmatprep.subr.bf16.mxu0 %v4342
      %4384 = vmatpush1.bf16.msra.mxu0 %v4341
      %4385 = vmatprep.subr.bf16.mxu0 %v4344
      %4386 = vmatpush1.bf16.msra.mxu0 %v4343
      %4387 = vmatprep.subr.bf16.mxu0 %v4346
      %4388 = vmatpush1.bf16.msra.mxu0 %v4345
      %4389 = vmatprep.subr.bf16.mxu0 %v4348
      %4390 = vmatpush1.bf16.msra.mxu0 %v4347
      %4391 = vmatprep.subr.bf16.mxu0 %v4350
      %4392 = vmatpush1.bf16.msra.mxu0 %v4349
      %4393 = vmatprep.subr.bf16.mxu0 %v4352
      %4394 = vmatpush1.bf16.msra.mxu0 %v4351
      %4395 = vmatprep.subr.bf16.mxu0 %v4354
      %4396 = vmatpush1.bf16.msra.mxu0 %v4353
      %4397 = vmatprep.subr.bf16.mxu0 0
      %4398 = vmatpush1.bf16.msra.mxu0 0
      %4399 = vmatprep.subr.bf16.mxu0 0
      %4400 = vmatpush1.bf16.msra.mxu0 0
      %4401 = vmatprep.subr.bf16.mxu0 0
      %4402 = vmatpush1.bf16.msra.mxu0 0
      %4403 = vmatprep.subr.bf16.mxu0 0
      %4404 = vmatpush1.bf16.msra.mxu0 0
      %4405 = vmatprep.subr.bf16.mxu0 0
      %4406 = vmatpush1.bf16.msra.mxu0 0
      %4407 = vmatprep.subr.bf16.mxu0 0
      %4408 = vmatpush1.bf16.msra.mxu0 0
      %4409 = vmatprep.mubr.bf16.mxu0 %v4375
      %4410 = vmatmul.mubr.bf16.gmra.mrb[0].mxu0 %v4072
      %v4411 = vpop.f32.mrb[0].mxu0
      %v4412 = vadd.f32 %v4269, %v4411
      %v4413 = vpop.f32.mrb[0].mxu0
      %v4414 = vadd.f32 %v4271, %v4413
      %v4415 = vpop.f32.mrb[0].mxu0
      %v4416 = vpop.f32.mrb[0].mxu0
      %4417 = vdwg.mxu0
      %s4418 = scalar_lea.vmem %s21, 320
      %v4419 = vld [vmem:[%s4418] sm:$0xff]
      %v4420 = vld [vmem:[%s4418 + $0x8] sm:$0xff]
      %v4421 = vld [vmem:[%s4418 + $0x10] sm:$0xff]
      %v4422 = vld [vmem:[%s4418 + $0x18] sm:$0xff]
      %v4423 = vld [vmem:[%s4418 + $0x20] sm:$0xff]
      %v4424 = vld [vmem:[%s4418 + $0x28] sm:$0xff]
      %v4425 = vld [vmem:[%s4418 + $0x30] sm:$0xff]
      %v4426 = vld [vmem:[%s4418 + $0x38] sm:$0xff]
      %v4427 = vld [vmem:[%s4418 + $0x40] sm:$0xff]
      %v4428 = vld [vmem:[%s4418 + $0x48] sm:$0xff]
      %v4429 = vld [vmem:[%s4418 + $0x50] sm:$0xff]
      %v4430 = vld [vmem:[%s4418 + $0x58] sm:$0xff]
      %v4431 = vld [vmem:[%s4418 + $0x60] sm:$0xff]
      %v4432 = vld [vmem:[%s4418 + $0x68] sm:$0xff]
      %v4433 = vld [vmem:[%s4418 + $0x70] sm:$0xff]
      %v4434 = vld [vmem:[%s4418 + $0x78] sm:$0xff]
      %v4435 = vld [vmem:[%s4418 + $0x80] sm:$0xff]
      %v4436 = vld [vmem:[%s4418 + $0x88] sm:$0xff]
      %v4437 = vld [vmem:[%s4418 + $0x90] sm:$0xff]
      %v4438 = vld [vmem:[%s4418 + $0x98] sm:$0xff]
      %v4441 = vrot.slane %v4072, 1
      %v4442 = vrot.slane %v4073, 1
      %v4464 = vunpack.c.l.b16 %v4419
      %v4465 = vunpack.c.h.b16 %v4419
      %v4466 = vunpack.c.l.b16 %v4420
      %v4467 = vunpack.c.h.b16 %v4420
      %v4468 = vunpack.c.l.b16 %v4421
      %v4469 = vunpack.c.h.b16 %v4421
      %v4470 = vunpack.c.l.b16 %v4422
      %v4471 = vunpack.c.h.b16 %v4422
      %v4472 = vunpack.c.l.b16 %v4423
      %v4473 = vunpack.c.h.b16 %v4423
      %v4474 = vunpack.c.l.b16 %v4424
      %v4475 = vunpack.c.h.b16 %v4424
      %v4476 = vunpack.c.l.b16 %v4425
      %v4477 = vunpack.c.h.b16 %v4425
      %v4478 = vunpack.c.l.b16 %v4426
      %v4479 = vunpack.c.h.b16 %v4426
      %v4480 = vunpack.c.l.b16 %v4427
      %v4481 = vunpack.c.h.b16 %v4427
      %v4482 = vunpack.c.l.b16 %v4428
      %v4483 = vunpack.c.h.b16 %v4428
      %v4484 = vunpack.c.l.b16 %v4429
      %v4485 = vunpack.c.h.b16 %v4429
      %v4486 = vunpack.c.l.b16 %v4430
      %v4487 = vunpack.c.h.b16 %v4430
      %v4488 = vunpack.c.l.b16 %v4431
      %v4489 = vunpack.c.h.b16 %v4431
      %v4490 = vunpack.c.l.b16 %v4432
      %v4491 = vunpack.c.h.b16 %v4432
      %v4492 = vunpack.c.l.b16 %v4433
      %v4493 = vunpack.c.h.b16 %v4433
      %v4494 = vunpack.c.l.b16 %v4434
      %v4495 = vunpack.c.h.b16 %v4434
      %v4496 = vunpack.c.l.b16 %v4435
      %v4497 = vunpack.c.h.b16 %v4435
      %v4498 = vunpack.c.l.b16 %v4436
      %v4499 = vunpack.c.h.b16 %v4436
      %v4500 = vunpack.c.l.b16 %v4437
      %v4501 = vunpack.c.h.b16 %v4437
      %v4502 = vunpack.c.l.b16 %v4438
      %v4503 = vunpack.c.h.b16 %v4438
      %v4504 = vpack.c.b16 %v4466, %v4464
      %v4505 = vpack.c.b16 %v4467, %v4465
      %v4506 = vpack.c.b16 %v4470, %v4468
      %v4507 = vpack.c.b16 %v4471, %v4469
      %v4508 = vpack.c.b16 %v4474, %v4472
      %v4509 = vpack.c.b16 %v4475, %v4473
      %v4510 = vpack.c.b16 %v4478, %v4476
      %v4511 = vpack.c.b16 %v4479, %v4477
      %v4512 = vpack.c.b16 %v4482, %v4480
      %v4513 = vpack.c.b16 %v4483, %v4481
      %v4514 = vpack.c.b16 %v4486, %v4484
      %v4515 = vpack.c.b16 %v4487, %v4485
      %v4516 = vpack.c.b16 %v4490, %v4488
      %v4517 = vpack.c.b16 %v4491, %v4489
      %v4518 = vpack.c.b16 %v4494, %v4492
      %v4519 = vpack.c.b16 %v4495, %v4493
      %v4520 = vpack.c.b16 %v4498, %v4496
      %v4521 = vpack.c.b16 %v4499, %v4497
      %v4522 = vpack.c.b16 %v4502, %v4500
      %v4523 = vpack.c.b16 %v4503, %v4501
      %v4545 = vsel %vm4230, %v4442, 0
      %4547 = vmatprep.subr.bf16.mxu0 %v4505
      %4548 = vmatpush1.bf16.msra.mxu0 %v4504
      %4549 = vmatprep.subr.bf16.mxu0 %v4507
      %4550 = vmatpush1.bf16.msra.mxu0 %v4506
      %4551 = vmatprep.subr.bf16.mxu0 %v4509
      %4552 = vmatpush1.bf16.msra.mxu0 %v4508
      %4553 = vmatprep.subr.bf16.mxu0 %v4511
      %4554 = vmatpush1.bf16.msra.mxu0 %v4510
      %4555 = vmatprep.subr.bf16.mxu0 %v4513
      %4556 = vmatpush1.bf16.msra.mxu0 %v4512
      %4557 = vmatprep.subr.bf16.mxu0 %v4515
      %4558 = vmatpush1.bf16.msra.mxu0 %v4514
      %4559 = vmatprep.subr.bf16.mxu0 %v4517
      %4560 = vmatpush1.bf16.msra.mxu0 %v4516
      %4561 = vmatprep.subr.bf16.mxu0 %v4519
      %4562 = vmatpush1.bf16.msra.mxu0 %v4518
      %4563 = vmatprep.subr.bf16.mxu0 %v4521
      %4564 = vmatpush1.bf16.msra.mxu0 %v4520
      %4565 = vmatprep.subr.bf16.mxu0 %v4523
      %4566 = vmatpush1.bf16.msra.mxu0 %v4522
      %4567 = vmatprep.subr.bf16.mxu0 0
      %4568 = vmatpush1.bf16.msra.mxu0 0
      %4569 = vmatprep.subr.bf16.mxu0 0
      %4570 = vmatpush1.bf16.msra.mxu0 0
      %4571 = vmatprep.subr.bf16.mxu0 0
      %4572 = vmatpush1.bf16.msra.mxu0 0
      %4573 = vmatprep.subr.bf16.mxu0 0
      %4574 = vmatpush1.bf16.msra.mxu0 0
      %4575 = vmatprep.subr.bf16.mxu0 0
      %4576 = vmatpush1.bf16.msra.mxu0 0
      %4577 = vmatprep.subr.bf16.mxu0 0
      %4578 = vmatpush1.bf16.msra.mxu0 0
      %4579 = vmatprep.mubr.bf16.mxu0 %v4545
      %4580 = vmatmul.mubr.bf16.gmra.mrb[0].mxu0 %v4441
      %v4581 = vpop.f32.mrb[0].mxu0
      %v4582 = vadd.f32 0.0, %v4581
      %v4583 = vpop.f32.mrb[0].mxu0
      %v4584 = vadd.f32 0.0, %v4583
      %v4585 = vpop.f32.mrb[0].mxu0
      %v4586 = vpop.f32.mrb[0].mxu0
      %4587 = vdwg.mxu0
      %v4588 = vadd.f32 %v4412, %v4582
      %v4589 = vadd.f32 %v4414, %v4584
      %v4590 = vld [vmem:[%s23] sm:$0x3]
      %v4592 = vlaneseq
      %v4593 = vshrl.u32 %v4592, 7
      %v4594 = vsub.s32 0, %v4593
      %v4595 = vrot.slane %v4590, %v4594
      %v4596 = vlaneseq
      %v4597 = vshrl.u32 %v4596, 7
      %v4598 = vsub.s32 1, %v4597
      %v4599 = vrot.slane %v4590, %v4598
      %v4602 = vadd.f32 %v4588, %v4595
      %v4603 = vadd.f32 %v4589, %v4599
      %v4604 = vmax.f32 %v4602, 0.0
      %v4605 = vmax.f32 %v4603, 0.0
      %v4606 = vpack.c.bf16 %v4604, %v4604
      %v4607 = vpack.c.bf16 %v4605, %v4605
      %v4608 = vld [vmem:[%s25] sm:$0xff]
      %v4609 = vld [vmem:[%s25 + $0x8] sm:$0xff]
      %v4610 = vld [vmem:[%s25 + $0x10] sm:$0xff]
      %v4611 = vld [vmem:[%s25 + $0x18] sm:$0xff]
      %v4612 = vld [vmem:[%s25 + $0x20] sm:$0xff]
      %v4613 = vld [vmem:[%s25 + $0x28] sm:$0xff]
      %v4614 = vld [vmem:[%s25 + $0x30] sm:$0xff]
      %v4615 = vld [vmem:[%s25 + $0x38] sm:$0xff]
      %v4616 = vld [vmem:[%s25 + $0x40] sm:$0xff]
      %v4617 = vld [vmem:[%s25 + $0x48] sm:$0xff]
      %v4618 = vld [vmem:[%s25 + $0x50] sm:$0xff]
      %v4619 = vld [vmem:[%s25 + $0x58] sm:$0xff]
      %v4620 = vld [vmem:[%s25 + $0x60] sm:$0xff]
      %v4621 = vld [vmem:[%s25 + $0x68] sm:$0xff]
      %v4622 = vld [vmem:[%s25 + $0x70] sm:$0xff]
      %v4623 = vld [vmem:[%s25 + $0x78] sm:$0xff]
      %v4624 = vld [vmem:[%s25 + $0x80] sm:$0xff]
      %v4625 = vld [vmem:[%s25 + $0x88] sm:$0xff]
      %v4626 = vld [vmem:[%s25 + $0x90] sm:$0xff]
      %v4627 = vld [vmem:[%s25 + $0x98] sm:$0xff]
      %v4628 = vld [vmem:[%s25 + $0xa0] sm:$0xff]
      %v4629 = vld [vmem:[%s25 + $0xa8] sm:$0xff]
      %v4630 = vld [vmem:[%s25 + $0xb0] sm:$0xff]
      %v4631 = vld [vmem:[%s25 + $0xb8] sm:$0xff]
      %v4632 = vld [vmem:[%s25 + $0xc0] sm:$0xff]
      %v4633 = vld [vmem:[%s25 + $0xc8] sm:$0xff]
      %v4634 = vld [vmem:[%s25 + $0xd0] sm:$0xff]
      %v4635 = vld [vmem:[%s25 + $0xd8] sm:$0xff]
      %v4636 = vld [vmem:[%s25 + $0xe0] sm:$0xff]
      %v4637 = vld [vmem:[%s25 + $0xe8] sm:$0xff]
      %v4638 = vld [vmem:[%s25 + $0xf0] sm:$0xff]
      %v4639 = vld [vmem:[%s25 + $0xf8] sm:$0xff]
      %s4640 = scalar_lea.vmem %s25, 256
      %v4641 = vld [vmem:[%s4640] sm:$0xff]
      %v4642 = vld [vmem:[%s4640 + $0x8] sm:$0xff]
      %v4643 = vld [vmem:[%s4640 + $0x10] sm:$0xff]
      %v4644 = vld [vmem:[%s4640 + $0x18] sm:$0xff]
      %v4645 = vld [vmem:[%s4640 + $0x20] sm:$0xff]
      %v4646 = vld [vmem:[%s4640 + $0x28] sm:$0xff]
      %v4647 = vld [vmem:[%s4640 + $0x30] sm:$0xff]
      %v4648 = vld [vmem:[%s4640 + $0x38] sm:$0xff]
      %v4649 = vld [vmem:[%s4640 + $0x40] sm:$0xff]
      %v4650 = vld [vmem:[%s4640 + $0x48] sm:$0xff]
      %v4651 = vld [vmem:[%s4640 + $0x50] sm:$0xff]
      %v4652 = vld [vmem:[%s4640 + $0x58] sm:$0xff]
      %v4653 = vld [vmem:[%s4640 + $0x60] sm:$0xff]
      %v4654 = vld [vmem:[%s4640 + $0x68] sm:$0xff]
      %v4655 = vld [vmem:[%s4640 + $0x70] sm:$0xff]
      %v4656 = vld [vmem:[%s4640 + $0x78] sm:$0xff]
      %v4657 = vld [vmem:[%s4640 + $0x80] sm:$0xff]
      %v4658 = vld [vmem:[%s4640 + $0x88] sm:$0xff]
      %v4659 = vld [vmem:[%s4640 + $0x90] sm:$0xff]
      %v4660 = vld [vmem:[%s4640 + $0x98] sm:$0xff]
      %v4661 = vld [vmem:[%s4640 + $0xa0] sm:$0xff]
      %v4662 = vld [vmem:[%s4640 + $0xa8] sm:$0xff]
      %v4663 = vld [vmem:[%s4640 + $0xb0] sm:$0xff]
      %v4664 = vld [vmem:[%s4640 + $0xb8] sm:$0xff]
      %v4665 = vld [vmem:[%s4640 + $0xc0] sm:$0xff]
      %v4666 = vld [vmem:[%s4640 + $0xc8] sm:$0xff]
      %v4667 = vld [vmem:[%s4640 + $0xd0] sm:$0xff]
      %v4668 = vld [vmem:[%s4640 + $0xd8] sm:$0xff]
      %v4669 = vld [vmem:[%s4640 + $0xe0] sm:$0xff]
      %v4670 = vld [vmem:[%s4640 + $0xe8] sm:$0xff]
      %v4671 = vld [vmem:[%s4640 + $0xf0] sm:$0xff]
      %v4672 = vld [vmem:[%s4640 + $0xf8] sm:$0xff]
      %v4674 = vshrl.u32 %v4606, 16
      %v4676 = vshll.u32 %v4606, 16
      %v4678 = vrot.slane %v4676, 1
      %v4679 = vor.u32 %v4674, %v4678
      %v4681 = vshrl.u32 %v4607, 16
      %v4683 = vshll.u32 %v4607, 16
      %v4685 = vrot.slane %v4683, 1
      %v4686 = vor.u32 %v4681, %v4685
      %v4721 = vunpack.c.l.b16 %v4641
      %v4722 = vunpack.c.h.b16 %v4641
      %v4723 = vunpack.c.l.b16 %v4642
      %v4724 = vunpack.c.h.b16 %v4642
      %v4725 = vunpack.c.l.b16 %v4643
      %v4726 = vunpack.c.h.b16 %v4643
      %v4727 = vunpack.c.l.b16 %v4644
      %v4728 = vunpack.c.h.b16 %v4644
      %v4729 = vunpack.c.l.b16 %v4645
      %v4730 = vunpack.c.h.b16 %v4645
      %v4731 = vunpack.c.l.b16 %v4646
      %v4732 = vunpack.c.h.b16 %v4646
      %v4733 = vunpack.c.l.b16 %v4647
      %v4734 = vunpack.c.h.b16 %v4647
      %v4735 = vunpack.c.l.b16 %v4648
      %v4736 = vunpack.c.h.b16 %v4648
      %v4737 = vunpack.c.l.b16 %v4649
      %v4738 = vunpack.c.h.b16 %v4649
      %v4739 = vunpack.c.l.b16 %v4650
      %v4740 = vunpack.c.h.b16 %v4650
      %v4741 = vunpack.c.l.b16 %v4651
      %v4742 = vunpack.c.h.b16 %v4651
      %v4743 = vunpack.c.l.b16 %v4652
      %v4744 = vunpack.c.h.b16 %v4652
      %v4745 = vunpack.c.l.b16 %v4653
      %v4746 = vunpack.c.h.b16 %v4653
      %v4747 = vunpack.c.l.b16 %v4654
      %v4748 = vunpack.c.h.b16 %v4654
      %v4749 = vunpack.c.l.b16 %v4655
      %v4750 = vunpack.c.h.b16 %v4655
      %v4751 = vunpack.c.l.b16 %v4656
      %v4752 = vunpack.c.h.b16 %v4656
      %v4753 = vunpack.c.l.b16 %v4657
      %v4754 = vunpack.c.h.b16 %v4657
      %v4755 = vunpack.c.l.b16 %v4658
      %v4756 = vunpack.c.h.b16 %v4658
      %v4757 = vunpack.c.l.b16 %v4659
      %v4758 = vunpack.c.h.b16 %v4659
      %v4759 = vunpack.c.l.b16 %v4660
      %v4760 = vunpack.c.h.b16 %v4660
      %v4761 = vunpack.c.l.b16 %v4661
      %v4762 = vunpack.c.h.b16 %v4661
      %v4763 = vunpack.c.l.b16 %v4662
      %v4764 = vunpack.c.h.b16 %v4662
      %v4765 = vunpack.c.l.b16 %v4663
      %v4766 = vunpack.c.h.b16 %v4663
      %v4767 = vunpack.c.l.b16 %v4664
      %v4768 = vunpack.c.h.b16 %v4664
      %v4769 = vunpack.c.l.b16 %v4665
      %v4770 = vunpack.c.h.b16 %v4665
      %v4771 = vunpack.c.l.b16 %v4666
      %v4772 = vunpack.c.h.b16 %v4666
      %v4773 = vunpack.c.l.b16 %v4667
      %v4774 = vunpack.c.h.b16 %v4667
      %v4775 = vunpack.c.l.b16 %v4668
      %v4776 = vunpack.c.h.b16 %v4668
      %v4777 = vunpack.c.l.b16 %v4669
      %v4778 = vunpack.c.h.b16 %v4669
      %v4779 = vunpack.c.l.b16 %v4670
      %v4780 = vunpack.c.h.b16 %v4670
      %v4781 = vunpack.c.l.b16 %v4671
      %v4782 = vunpack.c.h.b16 %v4671
      %v4783 = vunpack.c.l.b16 %v4672
      %v4784 = vunpack.c.h.b16 %v4672
      %v4785 = vpack.c.b16 %v4723, %v4721
      %v4786 = vpack.c.b16 %v4724, %v4722
      %v4787 = vpack.c.b16 %v4727, %v4725
      %v4788 = vpack.c.b16 %v4728, %v4726
      %v4789 = vpack.c.b16 %v4731, %v4729
      %v4790 = vpack.c.b16 %v4732, %v4730
      %v4791 = vpack.c.b16 %v4735, %v4733
      %v4792 = vpack.c.b16 %v4736, %v4734
      %v4793 = vpack.c.b16 %v4739, %v4737
      %v4794 = vpack.c.b16 %v4740, %v4738
      %v4795 = vpack.c.b16 %v4743, %v4741
      %v4796 = vpack.c.b16 %v4744, %v4742
      %v4797 = vpack.c.b16 %v4747, %v4745
      %v4798 = vpack.c.b16 %v4748, %v4746
      %v4799 = vpack.c.b16 %v4751, %v4749
      %v4800 = vpack.c.b16 %v4752, %v4750
      %v4801 = vpack.c.b16 %v4755, %v4753
      %v4802 = vpack.c.b16 %v4756, %v4754
      %v4803 = vpack.c.b16 %v4759, %v4757
      %v4804 = vpack.c.b16 %v4760, %v4758
      %v4805 = vpack.c.b16 %v4763, %v4761
      %v4806 = vpack.c.b16 %v4764, %v4762
      %v4807 = vpack.c.b16 %v4767, %v4765
      %v4808 = vpack.c.b16 %v4768, %v4766
      %v4809 = vpack.c.b16 %v4771, %v4769
      %v4810 = vpack.c.b16 %v4772, %v4770
      %v4811 = vpack.c.b16 %v4775, %v4773
      %v4812 = vpack.c.b16 %v4776, %v4774
      %v4813 = vpack.c.b16 %v4779, %v4777
      %v4814 = vpack.c.b16 %v4780, %v4778
      %v4815 = vpack.c.b16 %v4783, %v4781
      %v4816 = vpack.c.b16 %v4784, %v4782
      %4849 = vmatprep.subr.bf16.mxu0 %v4786
      %4850 = vmatpush1.bf16.msra.mxu0 %v4785
      %4851 = vmatprep.subr.bf16.mxu0 %v4788
      %4852 = vmatpush1.bf16.msra.mxu0 %v4787
      %4853 = vmatprep.subr.bf16.mxu0 %v4790
      %4854 = vmatpush1.bf16.msra.mxu0 %v4789
      %4855 = vmatprep.subr.bf16.mxu0 %v4792
      %4856 = vmatpush1.bf16.msra.mxu0 %v4791
      %4857 = vmatprep.subr.bf16.mxu0 %v4794
      %4858 = vmatpush1.bf16.msra.mxu0 %v4793
      %4859 = vmatprep.subr.bf16.mxu0 %v4796
      %4860 = vmatpush1.bf16.msra.mxu0 %v4795
      %4861 = vmatprep.subr.bf16.mxu0 %v4798
      %4862 = vmatpush1.bf16.msra.mxu0 %v4797
      %4863 = vmatprep.subr.bf16.mxu0 %v4800
      %4864 = vmatpush1.bf16.msra.mxu0 %v4799
      %4865 = vmatprep.subr.bf16.mxu0 %v4802
      %4866 = vmatpush1.bf16.msra.mxu0 %v4801
      %4867 = vmatprep.subr.bf16.mxu0 %v4804
      %4868 = vmatpush1.bf16.msra.mxu0 %v4803
      %4869 = vmatprep.subr.bf16.mxu0 %v4806
      %4870 = vmatpush1.bf16.msra.mxu0 %v4805
      %4871 = vmatprep.subr.bf16.mxu0 %v4808
      %4872 = vmatpush1.bf16.msra.mxu0 %v4807
      %4873 = vmatprep.subr.bf16.mxu0 %v4810
      %4874 = vmatpush1.bf16.msra.mxu0 %v4809
      %4875 = vmatprep.subr.bf16.mxu0 %v4812
      %4876 = vmatpush1.bf16.msra.mxu0 %v4811
      %4877 = vmatprep.subr.bf16.mxu0 %v4814
      %4878 = vmatpush1.bf16.msra.mxu0 %v4813
      %4879 = vmatprep.subr.bf16.mxu0 %v4816
      %4880 = vmatpush1.bf16.msra.mxu0 %v4815
      %4881 = vmatprep.mubr.bf16.mxu0 %v4686
      %4882 = vmatmul.mubr.bf16.gmra.mrb[0].mxu0 %v4679
      %v4883 = vpop.f32.mrb[0].mxu0
      %v4884 = vadd.f32 0.0, %v4883
      %v4885 = vpop.f32.mrb[0].mxu0
      %v4886 = vadd.f32 0.0, %v4885
      %v4887 = vpop.f32.mrb[0].mxu0
      %v4888 = vpop.f32.mrb[0].mxu0
      %4889 = vdwg.mxu0
      %v4922 = vunpack.c.l.b16 %v4608
      %v4923 = vunpack.c.h.b16 %v4608
      %v4924 = vunpack.c.l.b16 %v4609
      %v4925 = vunpack.c.h.b16 %v4609
      %v4926 = vunpack.c.l.b16 %v4610
      %v4927 = vunpack.c.h.b16 %v4610
      %v4928 = vunpack.c.l.b16 %v4611
      %v4929 = vunpack.c.h.b16 %v4611
      %v4930 = vunpack.c.l.b16 %v4612
      %v4931 = vunpack.c.h.b16 %v4612
      %v4932 = vunpack.c.l.b16 %v4613
      %v4933 = vunpack.c.h.b16 %v4613
      %v4934 = vunpack.c.l.b16 %v4614
      %v4935 = vunpack.c.h.b16 %v4614
      %v4936 = vunpack.c.l.b16 %v4615
      %v4937 = vunpack.c.h.b16 %v4615
      %v4938 = vunpack.c.l.b16 %v4616
      %v4939 = vunpack.c.h.b16 %v4616
      %v4940 = vunpack.c.l.b16 %v4617
      %v4941 = vunpack.c.h.b16 %v4617
      %v4942 = vunpack.c.l.b16 %v4618
      %v4943 = vunpack.c.h.b16 %v4618
      %v4944 = vunpack.c.l.b16 %v4619
      %v4945 = vunpack.c.h.b16 %v4619
      %v4946 = vunpack.c.l.b16 %v4620
      %v4947 = vunpack.c.h.b16 %v4620
      %v4948 = vunpack.c.l.b16 %v4621
      %v4949 = vunpack.c.h.b16 %v4621
      %v4950 = vunpack.c.l.b16 %v4622
      %v4951 = vunpack.c.h.b16 %v4622
      %v4952 = vunpack.c.l.b16 %v4623
      %v4953 = vunpack.c.h.b16 %v4623
      %v4954 = vunpack.c.l.b16 %v4624
      %v4955 = vunpack.c.h.b16 %v4624
      %v4956 = vunpack.c.l.b16 %v4625
      %v4957 = vunpack.c.h.b16 %v4625
      %v4958 = vunpack.c.l.b16 %v4626
      %v4959 = vunpack.c.h.b16 %v4626
      %v4960 = vunpack.c.l.b16 %v4627
      %v4961 = vunpack.c.h.b16 %v4627
      %v4962 = vunpack.c.l.b16 %v4628
      %v4963 = vunpack.c.h.b16 %v4628
      %v4964 = vunpack.c.l.b16 %v4629
      %v4965 = vunpack.c.h.b16 %v4629
      %v4966 = vunpack.c.l.b16 %v4630
      %v4967 = vunpack.c.h.b16 %v4630
      %v4968 = vunpack.c.l.b16 %v4631
      %v4969 = vunpack.c.h.b16 %v4631
      %v4970 = vunpack.c.l.b16 %v4632
      %v4971 = vunpack.c.h.b16 %v4632
      %v4972 = vunpack.c.l.b16 %v4633
      %v4973 = vunpack.c.h.b16 %v4633
      %v4974 = vunpack.c.l.b16 %v4634
      %v4975 = vunpack.c.h.b16 %v4634
      %v4976 = vunpack.c.l.b16 %v4635
      %v4977 = vunpack.c.h.b16 %v4635
      %v4978 = vunpack.c.l.b16 %v4636
      %v4979 = vunpack.c.h.b16 %v4636
      %v4980 = vunpack.c.l.b16 %v4637
      %v4981 = vunpack.c.h.b16 %v4637
      %v4982 = vunpack.c.l.b16 %v4638
      %v4983 = vunpack.c.h.b16 %v4638
      %v4984 = vunpack.c.l.b16 %v4639
      %v4985 = vunpack.c.h.b16 %v4639
      %v4986 = vpack.c.b16 %v4924, %v4922
      %v4987 = vpack.c.b16 %v4925, %v4923
      %v4988 = vpack.c.b16 %v4928, %v4926
      %v4989 = vpack.c.b16 %v4929, %v4927
      %v4990 = vpack.c.b16 %v4932, %v4930
      %v4991 = vpack.c.b16 %v4933, %v4931
      %v4992 = vpack.c.b16 %v4936, %v4934
      %v4993 = vpack.c.b16 %v4937, %v4935
      %v4994 = vpack.c.b16 %v4940, %v4938
      %v4995 = vpack.c.b16 %v4941, %v4939
      %v4996 = vpack.c.b16 %v4944, %v4942
      %v4997 = vpack.c.b16 %v4945, %v4943
      %v4998 = vpack.c.b16 %v4948, %v4946
      %v4999 = vpack.c.b16 %v4949, %v4947
      %v5000 = vpack.c.b16 %v4952, %v4950
      %v5001 = vpack.c.b16 %v4953, %v4951
      %v5002 = vpack.c.b16 %v4956, %v4954
      %v5003 = vpack.c.b16 %v4957, %v4955
      %v5004 = vpack.c.b16 %v4960, %v4958
      %v5005 = vpack.c.b16 %v4961, %v4959
      %v5006 = vpack.c.b16 %v4964, %v4962
      %v5007 = vpack.c.b16 %v4965, %v4963
      %v5008 = vpack.c.b16 %v4968, %v4966
      %v5009 = vpack.c.b16 %v4969, %v4967
      %v5010 = vpack.c.b16 %v4972, %v4970
      %v5011 = vpack.c.b16 %v4973, %v4971
      %v5012 = vpack.c.b16 %v4976, %v4974
      %v5013 = vpack.c.b16 %v4977, %v4975
      %v5014 = vpack.c.b16 %v4980, %v4978
      %v5015 = vpack.c.b16 %v4981, %v4979
      %v5016 = vpack.c.b16 %v4984, %v4982
      %v5017 = vpack.c.b16 %v4985, %v4983
      %5050 = vmatprep.subr.bf16.mxu0 %v4987
      %5051 = vmatpush1.bf16.msra.mxu0 %v4986
      %5052 = vmatprep.subr.bf16.mxu0 %v4989
      %5053 = vmatpush1.bf16.msra.mxu0 %v4988
      %5054 = vmatprep.subr.bf16.mxu0 %v4991
      %5055 = vmatpush1.bf16.msra.mxu0 %v4990
      %5056 = vmatprep.subr.bf16.mxu0 %v4993
      %5057 = vmatpush1.bf16.msra.mxu0 %v4992
      %5058 = vmatprep.subr.bf16.mxu0 %v4995
      %5059 = vmatpush1.bf16.msra.mxu0 %v4994
      %5060 = vmatprep.subr.bf16.mxu0 %v4997
      %5061 = vmatpush1.bf16.msra.mxu0 %v4996
      %5062 = vmatprep.subr.bf16.mxu0 %v4999
      %5063 = vmatpush1.bf16.msra.mxu0 %v4998
      %5064 = vmatprep.subr.bf16.mxu0 %v5001
      %5065 = vmatpush1.bf16.msra.mxu0 %v5000
      %5066 = vmatprep.subr.bf16.mxu0 %v5003
      %5067 = vmatpush1.bf16.msra.mxu0 %v5002
      %5068 = vmatprep.subr.bf16.mxu0 %v5005
      %5069 = vmatpush1.bf16.msra.mxu0 %v5004
      %5070 = vmatprep.subr.bf16.mxu0 %v5007
      %5071 = vmatpush1.bf16.msra.mxu0 %v5006
      %5072 = vmatprep.subr.bf16.mxu0 %v5009
      %5073 = vmatpush1.bf16.msra.mxu0 %v5008
      %5074 = vmatprep.subr.bf16.mxu0 %v5011
      %5075 = vmatpush1.bf16.msra.mxu0 %v5010
      %5076 = vmatprep.subr.bf16.mxu0 %v5013
      %5077 = vmatpush1.bf16.msra.mxu0 %v5012
      %5078 = vmatprep.subr.bf16.mxu0 %v5015
      %5079 = vmatpush1.bf16.msra.mxu0 %v5014
      %5080 = vmatprep.subr.bf16.mxu0 %v5017
      %5081 = vmatpush1.bf16.msra.mxu0 %v5016
      %5082 = vmatprep.mubr.bf16.mxu0 %v4607
      %5083 = vmatmul.mubr.bf16.gmra.mrb[0].mxu0 %v4606
      %v5084 = vpop.f32.mrb[0].mxu0
      %v5085 = vadd.f32 %v4884, %v5084
      %v5086 = vpop.f32.mrb[0].mxu0
      %v5087 = vadd.f32 %v4886, %v5086
      %v5088 = vpop.f32.mrb[0].mxu0
      %v5089 = vpop.f32.mrb[0].mxu0
      %5090 = vdwg.mxu0
      %s5091 = scalar_lea.vmem %s25, 512
      %v5092 = vld [vmem:[%s5091] sm:$0xff]
      %v5093 = vld [vmem:[%s5091 + $0x8] sm:$0xff]
      %v5094 = vld [vmem:[%s5091 + $0x10] sm:$0xff]
      %v5095 = vld [vmem:[%s5091 + $0x18] sm:$0xff]
      %v5096 = vld [vmem:[%s5091 + $0x20] sm:$0xff]
      %v5097 = vld [vmem:[%s5091 + $0x28] sm:$0xff]
      %v5098 = vld [vmem:[%s5091 + $0x30] sm:$0xff]
      %v5099 = vld [vmem:[%s5091 + $0x38] sm:$0xff]
      %v5100 = vld [vmem:[%s5091 + $0x40] sm:$0xff]
      %v5101 = vld [vmem:[%s5091 + $0x48] sm:$0xff]
      %v5102 = vld [vmem:[%s5091 + $0x50] sm:$0xff]
      %v5103 = vld [vmem:[%s5091 + $0x58] sm:$0xff]
      %v5104 = vld [vmem:[%s5091 + $0x60] sm:$0xff]
      %v5105 = vld [vmem:[%s5091 + $0x68] sm:$0xff]
      %v5106 = vld [vmem:[%s5091 + $0x70] sm:$0xff]
      %v5107 = vld [vmem:[%s5091 + $0x78] sm:$0xff]
      %v5108 = vld [vmem:[%s5091 + $0x80] sm:$0xff]
      %v5109 = vld [vmem:[%s5091 + $0x88] sm:$0xff]
      %v5110 = vld [vmem:[%s5091 + $0x90] sm:$0xff]
      %v5111 = vld [vmem:[%s5091 + $0x98] sm:$0xff]
      %v5112 = vld [vmem:[%s5091 + $0xa0] sm:$0xff]
      %v5113 = vld [vmem:[%s5091 + $0xa8] sm:$0xff]
      %v5114 = vld [vmem:[%s5091 + $0xb0] sm:$0xff]
      %v5115 = vld [vmem:[%s5091 + $0xb8] sm:$0xff]
      %v5116 = vld [vmem:[%s5091 + $0xc0] sm:$0xff]
      %v5117 = vld [vmem:[%s5091 + $0xc8] sm:$0xff]
      %v5118 = vld [vmem:[%s5091 + $0xd0] sm:$0xff]
      %v5119 = vld [vmem:[%s5091 + $0xd8] sm:$0xff]
      %v5120 = vld [vmem:[%s5091 + $0xe0] sm:$0xff]
      %v5121 = vld [vmem:[%s5091 + $0xe8] sm:$0xff]
      %v5122 = vld [vmem:[%s5091 + $0xf0] sm:$0xff]
      %v5123 = vld [vmem:[%s5091 + $0xf8] sm:$0xff]
      %v5126 = vrot.slane %v4606, 1
      %v5127 = vrot.slane %v4607, 1
      %v5162 = vunpack.c.l.b16 %v5092
      %v5163 = vunpack.c.h.b16 %v5092
      %v5164 = vunpack.c.l.b16 %v5093
      %v5165 = vunpack.c.h.b16 %v5093
      %v5166 = vunpack.c.l.b16 %v5094
      %v5167 = vunpack.c.h.b16 %v5094
      %v5168 = vunpack.c.l.b16 %v5095
      %v5169 = vunpack.c.h.b16 %v5095
      %v5170 = vunpack.c.l.b16 %v5096
      %v5171 = vunpack.c.h.b16 %v5096
      %v5172 = vunpack.c.l.b16 %v5097
      %v5173 = vunpack.c.h.b16 %v5097
      %v5174 = vunpack.c.l.b16 %v5098
      %v5175 = vunpack.c.h.b16 %v5098
      %v5176 = vunpack.c.l.b16 %v5099
      %v5177 = vunpack.c.h.b16 %v5099
      %v5178 = vunpack.c.l.b16 %v5100
      %v5179 = vunpack.c.h.b16 %v5100
      %v5180 = vunpack.c.l.b16 %v5101
      %v5181 = vunpack.c.h.b16 %v5101
      %v5182 = vunpack.c.l.b16 %v5102
      %v5183 = vunpack.c.h.b16 %v5102
      %v5184 = vunpack.c.l.b16 %v5103
      %v5185 = vunpack.c.h.b16 %v5103
      %v5186 = vunpack.c.l.b16 %v5104
      %v5187 = vunpack.c.h.b16 %v5104
      %v5188 = vunpack.c.l.b16 %v5105
      %v5189 = vunpack.c.h.b16 %v5105
      %v5190 = vunpack.c.l.b16 %v5106
      %v5191 = vunpack.c.h.b16 %v5106
      %v5192 = vunpack.c.l.b16 %v5107
      %v5193 = vunpack.c.h.b16 %v5107
      %v5194 = vunpack.c.l.b16 %v5108
      %v5195 = vunpack.c.h.b16 %v5108
      %v5196 = vunpack.c.l.b16 %v5109
      %v5197 = vunpack.c.h.b16 %v5109
      %v5198 = vunpack.c.l.b16 %v5110
      %v5199 = vunpack.c.h.b16 %v5110
      %v5200 = vunpack.c.l.b16 %v5111
      %v5201 = vunpack.c.h.b16 %v5111
      %v5202 = vunpack.c.l.b16 %v5112
      %v5203 = vunpack.c.h.b16 %v5112
      %v5204 = vunpack.c.l.b16 %v5113
      %v5205 = vunpack.c.h.b16 %v5113
      %v5206 = vunpack.c.l.b16 %v5114
      %v5207 = vunpack.c.h.b16 %v5114
      %v5208 = vunpack.c.l.b16 %v5115
      %v5209 = vunpack.c.h.b16 %v5115
      %v5210 = vunpack.c.l.b16 %v5116
      %v5211 = vunpack.c.h.b16 %v5116
      %v5212 = vunpack.c.l.b16 %v5117
      %v5213 = vunpack.c.h.b16 %v5117
      %v5214 = vunpack.c.l.b16 %v5118
      %v5215 = vunpack.c.h.b16 %v5118
      %v5216 = vunpack.c.l.b16 %v5119
      %v5217 = vunpack.c.h.b16 %v5119
      %v5218 = vunpack.c.l.b16 %v5120
      %v5219 = vunpack.c.h.b16 %v5120
      %v5220 = vunpack.c.l.b16 %v5121
      %v5221 = vunpack.c.h.b16 %v5121
      %v5222 = vunpack.c.l.b16 %v5122
      %v5223 = vunpack.c.h.b16 %v5122
      %v5224 = vunpack.c.l.b16 %v5123
      %v5225 = vunpack.c.h.b16 %v5123
      %v5226 = vpack.c.b16 %v5164, %v5162
      %v5227 = vpack.c.b16 %v5165, %v5163
      %v5228 = vpack.c.b16 %v5168, %v5166
      %v5229 = vpack.c.b16 %v5169, %v5167
      %v5230 = vpack.c.b16 %v5172, %v5170
      %v5231 = vpack.c.b16 %v5173, %v5171
      %v5232 = vpack.c.b16 %v5176, %v5174
      %v5233 = vpack.c.b16 %v5177, %v5175
      %v5234 = vpack.c.b16 %v5180, %v5178
      %v5235 = vpack.c.b16 %v5181, %v5179
      %v5236 = vpack.c.b16 %v5184, %v5182
      %v5237 = vpack.c.b16 %v5185, %v5183
      %v5238 = vpack.c.b16 %v5188, %v5186
      %v5239 = vpack.c.b16 %v5189, %v5187
      %v5240 = vpack.c.b16 %v5192, %v5190
      %v5241 = vpack.c.b16 %v5193, %v5191
      %v5242 = vpack.c.b16 %v5196, %v5194
      %v5243 = vpack.c.b16 %v5197, %v5195
      %v5244 = vpack.c.b16 %v5200, %v5198
      %v5245 = vpack.c.b16 %v5201, %v5199
      %v5246 = vpack.c.b16 %v5204, %v5202
      %v5247 = vpack.c.b16 %v5205, %v5203
      %v5248 = vpack.c.b16 %v5208, %v5206
      %v5249 = vpack.c.b16 %v5209, %v5207
      %v5250 = vpack.c.b16 %v5212, %v5210
      %v5251 = vpack.c.b16 %v5213, %v5211
      %v5252 = vpack.c.b16 %v5216, %v5214
      %v5253 = vpack.c.b16 %v5217, %v5215
      %v5254 = vpack.c.b16 %v5220, %v5218
      %v5255 = vpack.c.b16 %v5221, %v5219
      %v5256 = vpack.c.b16 %v5224, %v5222
      %v5257 = vpack.c.b16 %v5225, %v5223
      %5290 = vmatprep.subr.bf16.mxu0 %v5227
      %5291 = vmatpush1.bf16.msra.mxu0 %v5226
      %5292 = vmatprep.subr.bf16.mxu0 %v5229
      %5293 = vmatpush1.bf16.msra.mxu0 %v5228
      %5294 = vmatprep.subr.bf16.mxu0 %v5231
      %5295 = vmatpush1.bf16.msra.mxu0 %v5230
      %5296 = vmatprep.subr.bf16.mxu0 %v5233
      %5297 = vmatpush1.bf16.msra.mxu0 %v5232
      %5298 = vmatprep.subr.bf16.mxu0 %v5235
      %5299 = vmatpush1.bf16.msra.mxu0 %v5234
      %5300 = vmatprep.subr.bf16.mxu0 %v5237
      %5301 = vmatpush1.bf16.msra.mxu0 %v5236
      %5302 = vmatprep.subr.bf16.mxu0 %v5239
      %5303 = vmatpush1.bf16.msra.mxu0 %v5238
      %5304 = vmatprep.subr.bf16.mxu0 %v5241
      %5305 = vmatpush1.bf16.msra.mxu0 %v5240
      %5306 = vmatprep.subr.bf16.mxu0 %v5243
      %5307 = vmatpush1.bf16.msra.mxu0 %v5242
      %5308 = vmatprep.subr.bf16.mxu0 %v5245
      %5309 = vmatpush1.bf16.msra.mxu0 %v5244
      %5310 = vmatprep.subr.bf16.mxu0 %v5247
      %5311 = vmatpush1.bf16.msra.mxu0 %v5246
      %5312 = vmatprep.subr.bf16.mxu0 %v5249
      %5313 = vmatpush1.bf16.msra.mxu0 %v5248
      %5314 = vmatprep.subr.bf16.mxu0 %v5251
      %5315 = vmatpush1.bf16.msra.mxu0 %v5250
      %5316 = vmatprep.subr.bf16.mxu0 %v5253
      %5317 = vmatpush1.bf16.msra.mxu0 %v5252
      %5318 = vmatprep.subr.bf16.mxu0 %v5255
      %5319 = vmatpush1.bf16.msra.mxu0 %v5254
      %5320 = vmatprep.subr.bf16.mxu0 %v5257
      %5321 = vmatpush1.bf16.msra.mxu0 %v5256
      %5322 = vmatprep.mubr.bf16.mxu0 %v5127
      %5323 = vmatmul.mubr.bf16.gmra.mrb[0].mxu0 %v5126
      %v5324 = vpop.f32.mrb[0].mxu0
      %v5325 = vadd.f32 0.0, %v5324
      %v5326 = vpop.f32.mrb[0].mxu0
      %v5327 = vadd.f32 0.0, %v5326
      %v5328 = vpop.f32.mrb[0].mxu0
      %v5329 = vpop.f32.mrb[0].mxu0
      %5330 = vdwg.mxu0
      %v5331 = vadd.f32 %v5085, %v5325
      %v5332 = vadd.f32 %v5087, %v5327
      %v5333 = vld [vmem:[%s27] sm:$0x3]
      %v5335 = vlaneseq
      %v5336 = vshrl.u32 %v5335, 7
      %v5337 = vsub.s32 0, %v5336
      %v5338 = vrot.slane %v5333, %v5337
      %v5339 = vlaneseq
      %v5340 = vshrl.u32 %v5339, 7
      %v5341 = vsub.s32 1, %v5340
      %v5342 = vrot.slane %v5333, %v5341
      %v5345 = vadd.f32 %v5331, %v5338
      %v5346 = vadd.f32 %v5332, %v5342
      %v5347 = vmax.f32 %v5345, 0.0
      %v5348 = vmax.f32 %v5346, 0.0
      %v5351 = vrot.slane %v5347, 1
      %v5352 = vrot.slane %v5348, 1
      %v5355 = vmax.f32 %v5347, %v5351
      %v5356 = vmax.f32 %v5348, %v5352
      %v5357 = vpack.c.bf16 %v5355, %v5355
      %v5358 = vpack.c.bf16 %v5356, %v5356
      %v5359 = vld [vmem:[%s31] sm:$0xf]
      %v5360 = vld [vmem:[%s31 + $0x4] sm:$0xf]
      %v5361 = vld [vmem:[%s31 + $0x8] sm:$0xf]
      %v5362 = vld [vmem:[%s31 + $0xc] sm:$0xf]
      %v5363 = vld [vmem:[%s31 + $0x10] sm:$0xf]
      %v5364 = vld [vmem:[%s31 + $0x14] sm:$0xf]
      %v5365 = vld [vmem:[%s31 + $0x18] sm:$0xf]
      %v5366 = vld [vmem:[%s31 + $0x1c] sm:$0xf]
      %v5367 = vld [vmem:[%s31 + $0x20] sm:$0xf]
      %v5368 = vld [vmem:[%s31 + $0x24] sm:$0xf]
      %v5369 = vld [vmem:[%s31 + $0x28] sm:$0xf]
      %v5370 = vld [vmem:[%s31 + $0x2c] sm:$0xf]
      %v5371 = vld [vmem:[%s31 + $0x30] sm:$0xf]
      %v5372 = vld [vmem:[%s31 + $0x34] sm:$0xf]
      %v5373 = vld [vmem:[%s31 + $0x38] sm:$0xf]
      %v5374 = vld [vmem:[%s31 + $0x3c] sm:$0xf]
      %v5375 = vld [vmem:[%s31 + $0x40] sm:$0xf]
      %v5376 = vld [vmem:[%s31 + $0x44] sm:$0xf]
      %v5377 = vld [vmem:[%s31 + $0x48] sm:$0xf]
      %v5378 = vld [vmem:[%s31 + $0x4c] sm:$0xf]
      %v5379 = vld [vmem:[%s31 + $0x50] sm:$0xf]
      %v5380 = vld [vmem:[%s31 + $0x54] sm:$0xf]
      %v5381 = vld [vmem:[%s31 + $0x58] sm:$0xf]
      %v5382 = vld [vmem:[%s31 + $0x5c] sm:$0xf]
      %v5407 = vunpack.c.l.b16 %v5359
      %v5408 = vunpack.c.l.b16 %v5360
      %v5409 = vunpack.c.l.b16 %v5361
      %v5410 = vunpack.c.l.b16 %v5362
      %v5411 = vunpack.c.l.b16 %v5363
      %v5412 = vunpack.c.l.b16 %v5364
      %v5413 = vunpack.c.l.b16 %v5365
      %v5414 = vunpack.c.l.b16 %v5366
      %v5415 = vunpack.c.l.b16 %v5367
      %v5416 = vunpack.c.l.b16 %v5368
      %v5417 = vunpack.c.l.b16 %v5369
      %v5418 = vunpack.c.l.b16 %v5370
      %v5419 = vunpack.c.l.b16 %v5371
      %v5420 = vunpack.c.l.b16 %v5372
      %v5421 = vunpack.c.l.b16 %v5373
      %v5422 = vunpack.c.l.b16 %v5374
      %v5423 = vunpack.c.l.b16 %v5375
      %v5424 = vunpack.c.l.b16 %v5376
      %v5425 = vunpack.c.l.b16 %v5377
      %v5426 = vunpack.c.l.b16 %v5378
      %v5427 = vunpack.c.l.b16 %v5379
      %v5428 = vunpack.c.l.b16 %v5380
      %v5429 = vunpack.c.l.b16 %v5381
      %v5430 = vunpack.c.l.b16 %v5382
      %v5431 = vpack.c.b16 %v5408, %v5407
      %v5432 = vpack.c.b16 %v5410, %v5409
      %v5433 = vpack.c.b16 %v5412, %v5411
      %v5434 = vpack.c.b16 %v5414, %v5413
      %v5435 = vpack.c.b16 %v5416, %v5415
      %v5436 = vpack.c.b16 %v5418, %v5417
      %v5437 = vpack.c.b16 %v5420, %v5419
      %v5438 = vpack.c.b16 %v5422, %v5421
      %v5439 = vpack.c.b16 %v5424, %v5423
      %v5440 = vpack.c.b16 %v5426, %v5425
      %v5441 = vpack.c.b16 %v5428, %v5427
      %v5442 = vpack.c.b16 %v5430, %v5429
      %v5456 = vsel %vm3640, %v5358, 0
      %5458 = vmatprep.subr.bf16.mxu0 0
      %5459 = vmatpush1.bf16.msra.mxu0 %v5431
      %5460 = vmatprep.subr.bf16.mxu0 0
      %5461 = vmatpush1.bf16.msra.mxu0 %v5432
      %5462 = vmatprep.subr.bf16.mxu0 0
      %5463 = vmatpush1.bf16.msra.mxu0 %v5433
      %5464 = vmatprep.subr.bf16.mxu0 0
      %5465 = vmatpush1.bf16.msra.mxu0 %v5434
      %5466 = vmatprep.subr.bf16.mxu0 0
      %5467 = vmatpush1.bf16.msra.mxu0 %v5435
      %5468 = vmatprep.subr.bf16.mxu0 0
      %5469 = vmatpush1.bf16.msra.mxu0 %v5436
      %5470 = vmatprep.subr.bf16.mxu0 0
      %5471 = vmatpush1.bf16.msra.mxu0 %v5437
      %5472 = vmatprep.subr.bf16.mxu0 0
      %5473 = vmatpush1.bf16.msra.mxu0 %v5438
      %5474 = vmatprep.subr.bf16.mxu0 0
      %5475 = vmatpush1.bf16.msra.mxu0 %v5439
      %5476 = vmatprep.subr.bf16.mxu0 0
      %5477 = vmatpush1.bf16.msra.mxu0 %v5440
      %5478 = vmatprep.subr.bf16.mxu0 0
      %5479 = vmatpush1.bf16.msra.mxu0 %v5441
      %5480 = vmatprep.subr.bf16.mxu0 0
      %5481 = vmatpush1.bf16.msra.mxu0 %v5442
      %5482 = vmatprep.subr.bf16.mxu0 0
      %5483 = vmatpush1.bf16.msra.mxu0 0
      %5484 = vmatprep.subr.bf16.mxu0 0
      %5485 = vmatpush1.bf16.msra.mxu0 0
      %5486 = vmatprep.subr.bf16.mxu0 0
      %5487 = vmatpush1.bf16.msra.mxu0 0
      %5488 = vmatprep.subr.bf16.mxu0 0
      %5489 = vmatpush1.bf16.msra.mxu0 0
      %5490 = vmatprep.mubr.bf16.mxu0 %v5456
      %5491 = vmatmul.mubr.bf16.gmra.mrb[0].mxu0 %v5357
      %v5492 = vpop.f32.mrb[0].mxu0
      %v5493 = vadd.f32 0.0, %v5492
      %v5494 = vpop.f32.mrb[0].mxu0
      %v5495 = vpop.f32.mrb[0].mxu0
      %v5496 = vpop.f32.mrb[0].mxu0
      %5497 = vdwg.mxu0
      %v5498 = vld [vmem:[%s33] sm:$0xf]
      %v5499 = vld [vmem:[%s33 + $0x4] sm:$0xf]
      %v5500 = vld [vmem:[%s33 + $0x8] sm:$0xf]
      %v5501 = vld [vmem:[%s33 + $0xc] sm:$0xf]
      %v5502 = vld [vmem:[%s33 + $0x10] sm:$0xf]
      %v5503 = vld [vmem:[%s33 + $0x14] sm:$0xf]
      %v5504 = vld [vmem:[%s33 + $0x18] sm:$0xf]
      %v5505 = vld [vmem:[%s33 + $0x1c] sm:$0xf]
      %v5506 = vld [vmem:[%s33 + $0x20] sm:$0xf]
      %v5507 = vld [vmem:[%s33 + $0x24] sm:$0xf]
      %v5508 = vld [vmem:[%s33 + $0x28] sm:$0xf]
      %v5509 = vld [vmem:[%s33 + $0x2c] sm:$0xf]
      %v5510 = vld [vmem:[%s33 + $0x30] sm:$0xf]
      %v5511 = vld [vmem:[%s33 + $0x34] sm:$0xf]
      %v5512 = vld [vmem:[%s33 + $0x38] sm:$0xf]
      %v5513 = vld [vmem:[%s33 + $0x3c] sm:$0xf]
      %v5514 = vld [vmem:[%s33 + $0x40] sm:$0xf]
      %v5515 = vld [vmem:[%s33 + $0x44] sm:$0xf]
      %v5516 = vld [vmem:[%s33 + $0x48] sm:$0xf]
      %v5517 = vld [vmem:[%s33 + $0x4c] sm:$0xf]
      %v5518 = vld [vmem:[%s33 + $0x50] sm:$0xf]
      %v5519 = vld [vmem:[%s33 + $0x54] sm:$0xf]
      %v5520 = vld [vmem:[%s33 + $0x58] sm:$0xf]
      %v5521 = vld [vmem:[%s33 + $0x5c] sm:$0xf]
      %v5546 = vunpack.c.l.b16 %v5498
      %v5547 = vunpack.c.l.b16 %v5499
      %v5548 = vunpack.c.l.b16 %v5500
      %v5549 = vunpack.c.l.b16 %v5501
      %v5550 = vunpack.c.l.b16 %v5502
      %v5551 = vunpack.c.l.b16 %v5503
      %v5552 = vunpack.c.l.b16 %v5504
      %v5553 = vunpack.c.l.b16 %v5505
      %v5554 = vunpack.c.l.b16 %v5506
      %v5555 = vunpack.c.l.b16 %v5507
      %v5556 = vunpack.c.l.b16 %v5508
      %v5557 = vunpack.c.l.b16 %v5509
      %v5558 = vunpack.c.l.b16 %v5510
      %v5559 = vunpack.c.l.b16 %v5511
      %v5560 = vunpack.c.l.b16 %v5512
      %v5561 = vunpack.c.l.b16 %v5513
      %v5562 = vunpack.c.l.b16 %v5514
      %v5563 = vunpack.c.l.b16 %v5515
      %v5564 = vunpack.c.l.b16 %v5516
      %v5565 = vunpack.c.l.b16 %v5517
      %v5566 = vunpack.c.l.b16 %v5518
      %v5567 = vunpack.c.l.b16 %v5519
      %v5568 = vunpack.c.l.b16 %v5520
      %v5569 = vunpack.c.l.b16 %v5521
      %v5570 = vpack.c.b16 %v5547, %v5546
      %v5571 = vpack.c.b16 %v5549, %v5548
      %v5572 = vpack.c.b16 %v5551, %v5550
      %v5573 = vpack.c.b16 %v5553, %v5552
      %v5574 = vpack.c.b16 %v5555, %v5554
      %v5575 = vpack.c.b16 %v5557, %v5556
      %v5576 = vpack.c.b16 %v5559, %v5558
      %v5577 = vpack.c.b16 %v5561, %v5560
      %v5578 = vpack.c.b16 %v5563, %v5562
      %v5579 = vpack.c.b16 %v5565, %v5564
      %v5580 = vpack.c.b16 %v5567, %v5566
      %v5581 = vpack.c.b16 %v5569, %v5568
      %5594 = vmatprep.subr.bf16.mxu0 0
      %5595 = vmatpush1.bf16.msra.mxu0 %v5570
      %5596 = vmatprep.subr.bf16.mxu0 0
      %5597 = vmatpush1.bf16.msra.mxu0 %v5571
      %5598 = vmatprep.subr.bf16.mxu0 0
      %5599 = vmatpush1.bf16.msra.mxu0 %v5572
      %5600 = vmatprep.subr.bf16.mxu0 0
      %5601 = vmatpush1.bf16.msra.mxu0 %v5573
      %5602 = vmatprep.subr.bf16.mxu0 0
      %5603 = vmatpush1.bf16.msra.mxu0 %v5574
      %5604 = vmatprep.subr.bf16.mxu0 0
      %5605 = vmatpush1.bf16.msra.mxu0 %v5575
      %5606 = vmatprep.subr.bf16.mxu0 0
      %5607 = vmatpush1.bf16.msra.mxu0 %v5576
      %5608 = vmatprep.subr.bf16.mxu0 0
      %5609 = vmatpush1.bf16.msra.mxu0 %v5577
      %5610 = vmatprep.subr.bf16.mxu0 0
      %5611 = vmatpush1.bf16.msra.mxu0 %v5578
      %5612 = vmatprep.subr.bf16.mxu0 0
      %5613 = vmatpush1.bf16.msra.mxu0 %v5579
      %5614 = vmatprep.subr.bf16.mxu0 0
      %5615 = vmatpush1.bf16.msra.mxu0 %v5580
      %5616 = vmatprep.subr.bf16.mxu0 0
      %5617 = vmatpush1.bf16.msra.mxu0 %v5581
      %5618 = vmatprep.subr.bf16.mxu0 0
      %5619 = vmatpush1.bf16.msra.mxu0 0
      %5620 = vmatprep.subr.bf16.mxu0 0
      %5621 = vmatpush1.bf16.msra.mxu0 0
      %5622 = vmatprep.subr.bf16.mxu0 0
      %5623 = vmatpush1.bf16.msra.mxu0 0
      %5624 = vmatprep.subr.bf16.mxu0 0
      %5625 = vmatpush1.bf16.msra.mxu0 0
      %5626 = vmatprep.mubr.bf16.mxu0 %v5456
      %5627 = vmatmul.mubr.bf16.gmra.mrb[0].mxu0 %v5357
      %v5628 = vpop.f32.mrb[0].mxu0
      %v5629 = vadd.f32 0.0, %v5628
      %v5630 = vpop.f32.mrb[0].mxu0
      %v5631 = vpop.f32.mrb[0].mxu0
      %v5632 = vpop.f32.mrb[0].mxu0
      %5633 = vdwg.mxu0
      %v5634 = vmax.f32 %v5493, %v5629
      %v5635 = vld [vmem:[%s29] sm:$0x3]
      %v5636 = vpack.c.bf16 %v5634, %v5634
      %vm5637 = vcmask 39936
      %v5639 = vsel %vm5637, %v5635, 0
      %v5641 = vsel %vm1011, 4294967295, 65535
      %v5642 = vsel %vm3401, %v5641, 0
      %v5644 = vand.u32 %v5636, %v5642
      %5646 = vmatprep.subr.bf16.mxu0 0
      %5647 = vmatpush1.bf16.msra.mxu0 %v5644
      %5648 = vmatprep.subr.bf16.mxu0 0
      %5649 = vmatpush1.bf16.msra.mxu0 0
      %5650 = vmatprep.subr.bf16.mxu0 0
      %5651 = vmatpush1.bf16.msra.mxu0 0
      %5652 = vmatprep.subr.bf16.mxu0 0
      %5653 = vmatpush1.bf16.msra.mxu0 0
      %5654 = vmatprep.subr.bf16.mxu0 0
      %5655 = vmatpush1.bf16.msra.mxu0 0
      %5656 = vmatprep.subr.bf16.mxu0 0
      %5657 = vmatpush1.bf16.msra.mxu0 0
      %5658 = vmatprep.subr.bf16.mxu0 0
      %5659 = vmatpush1.bf16.msra.mxu0 0
      %5660 = vmatprep.subr.bf16.mxu0 0
      %5661 = vmatpush1.bf16.msra.mxu0 0
      %5662 = vmatprep.subr.bf16.mxu0 0
      %5663 = vmatpush1.bf16.msra.mxu0 0
      %5664 = vmatprep.subr.bf16.mxu0 0
      %5665 = vmatpush1.bf16.msra.mxu0 0
      %5666 = vmatprep.subr.bf16.mxu0 0
      %5667 = vmatpush1.bf16.msra.mxu0 0
      %5668 = vmatprep.subr.bf16.mxu0 0
      %5669 = vmatpush1.bf16.msra.mxu0 0
      %5670 = vmatprep.subr.bf16.mxu0 0
      %5671 = vmatpush1.bf16.msra.mxu0 0
      %5672 = vmatprep.subr.bf16.mxu0 0
      %5673 = vmatpush1.bf16.msra.mxu0 0
      %5674 = vmatprep.subr.bf16.mxu0 0
      %5675 = vmatpush1.bf16.msra.mxu0 0
      %5676 = vmatprep.subr.bf16.mxu0 0
      %5677 = vmatpush1.bf16.msra.mxu0 0
      %5678 = vmatprep.mubr.bf16.mxu0 0
      %5679 = vmatmul.mubr.bf16.gmra.mrb[0].mxu0 %v5639
      %v5680 = vpop.f32.mrb[0].mxu0
      %v5681 = vadd.f32 0.0, %v5680
      %v5682 = vpop.f32.mrb[0].mxu0
      %v5683 = vpop.f32.mrb[0].mxu0
      %v5684 = vpop.f32.mrb[0].mxu0
      %5685 = vdwg.mxu0
      %v5686 = vld [vmem:[%s35] sm:$0xf]
      %v5687 = vld [vmem:[%s35 + $0x4] sm:$0x1]
      %v5688 = vpack.c.bf16 %v5681, %v5681
      %v5691 = vunpack.c.l.b16 %v5686
      %v5692 = vunpack.c.l.b16 %v5687
      %v5693 = vpack.c.b16 %v5692, %v5691
      %vm5694 = vcmask 23552
      %v5696 = vsel %vm5694, %v5693, 0
      %vm5698 = vcmask 1040384
      %v5699 = vsel %vm5698, 4294967295, 65535
      %v5700 = vsel %vm1011, %v5699, 0
      %v5702 = vand.u32 %v5688, %v5700
      %5704 = vmatprep.subr.bf16.mxu0 0
      %5705 = vmatpush1.bf16.msra.mxu0 %v5702
      %5706 = vmatprep.subr.bf16.mxu0 0
      %5707 = vmatpush1.bf16.msra.mxu0 0
      %5708 = vmatprep.subr.bf16.mxu0 0
      %5709 = vmatpush1.bf16.msra.mxu0 0
      %5710 = vmatprep.subr.bf16.mxu0 0
      %5711 = vmatpush1.bf16.msra.mxu0 0
      %5712 = vmatprep.subr.bf16.mxu0 0
      %5713 = vmatpush1.bf16.msra.mxu0 0
      %5714 = vmatprep.subr.bf16.mxu0 0
      %5715 = vmatpush1.bf16.msra.mxu0 0
      %5716 = vmatprep.subr.bf16.mxu0 0
      %5717 = vmatpush1.bf16.msra.mxu0 0
      %5718 = vmatprep.subr.bf16.mxu0 0
      %5719 = vmatpush1.bf16.msra.mxu0 0
      %5720 = vmatprep.subr.bf16.mxu0 0
      %5721 = vmatpush1.bf16.msra.mxu0 0
      %5722 = vmatprep.subr.bf16.mxu0 0
      %5723 = vmatpush1.bf16.msra.mxu0 0
      %5724 = vmatprep.subr.bf16.mxu0 0
      %5725 = vmatpush1.bf16.msra.mxu0 0
      %5726 = vmatprep.subr.bf16.mxu0 0
      %5727 = vmatpush1.bf16.msra.mxu0 0
      %5728 = vmatprep.subr.bf16.mxu0 0
      %5729 = vmatpush1.bf16.msra.mxu0 0
      %5730 = vmatprep.subr.bf16.mxu0 0
      %5731 = vmatpush1.bf16.msra.mxu0 0
      %5732 = vmatprep.subr.bf16.mxu0 0
      %5733 = vmatpush1.bf16.msra.mxu0 0
      %5734 = vmatprep.subr.bf16.mxu0 0
      %5735 = vmatpush1.bf16.msra.mxu0 0
      %5736 = vmatprep.mubr.bf16.mxu0 0
      %5737 = vmatmul.mubr.bf16.gmra.mrb[0].mxu0 %v5696
      %v5738 = vpop.f32.mrb[0].mxu0
      %v5739 = vadd.f32 0.0, %v5738
      %v5740 = vpop.f32.mrb[0].mxu0
      %v5741 = vpop.f32.mrb[0].mxu0
      %v5742 = vadd.f32 0.0, %v5741
      %v5743 = vpop.f32.mrb[0].mxu0
      %5744 = vdwg.mxu0
      %v5745 = vpack.c.bf16 %v5742, %v5739
      %v5746 = vld [vmem:[%s37] sm:$0xff]
      %v5747 = vld [vmem:[%s37 + $0x8] sm:$0xff]
      %v5748 = vld [vmem:[%s37 + $0x10] sm:$0xff]
      %v5749 = vld [vmem:[%s37 + $0x18] sm:$0xff]
      %v5750 = vld [vmem:[%s37 + $0x20] sm:$0xff]
      %v5751 = vld [vmem:[%s37 + $0x28] sm:$0xff]
      %v5752 = vld [vmem:[%s37 + $0x30] sm:$0xff]
      %v5753 = vld [vmem:[%s37 + $0x38] sm:$0xff]
      %v5754 = vld [vmem:[%s37 + $0x40] sm:$0xff]
      %v5755 = vld [vmem:[%s37 + $0x48] sm:$0xff]
      %v5756 = vld [vmem:[%s37 + $0x50] sm:$0xff]
      %v5757 = vld [vmem:[%s37 + $0x58] sm:$0xff]
      %s5758 = scalar_lea.vmem %s37, 96
      %v5759 = vld [vmem:[%s5758] sm:$0xff]
      %v5760 = vld [vmem:[%s5758 + $0x8] sm:$0xff]
      %v5761 = vld [vmem:[%s5758 + $0x10] sm:$0xff]
      %v5762 = vld [vmem:[%s5758 + $0x18] sm:$0xff]
      %v5763 = vld [vmem:[%s5758 + $0x20] sm:$0xff]
      %v5764 = vld [vmem:[%s5758 + $0x28] sm:$0xff]
      %v5765 = vld [vmem:[%s5758 + $0x30] sm:$0xff]
      %v5766 = vld [vmem:[%s5758 + $0x38] sm:$0xff]
      %v5767 = vld [vmem:[%s5758 + $0x40] sm:$0xff]
      %v5768 = vld [vmem:[%s5758 + $0x48] sm:$0xff]
      %v5769 = vld [vmem:[%s5758 + $0x50] sm:$0xff]
      %v5770 = vld [vmem:[%s5758 + $0x58] sm:$0xff]
      %v5772 = vshrl.u32 %v5745, 16
      %v5774 = vshll.u32 %v5745, 16
      %v5776 = vrot.slane %v5774, 1
      %v5777 = vor.u32 %v5772, %v5776
      %v5790 = vunpack.c.l.b16 %v5759
      %v5791 = vunpack.c.h.b16 %v5759
      %v5792 = vunpack.c.l.b16 %v5760
      %v5793 = vunpack.c.h.b16 %v5760
      %v5794 = vunpack.c.l.b16 %v5761
      %v5795 = vunpack.c.h.b16 %v5761
      %v5796 = vunpack.c.l.b16 %v5762
      %v5797 = vunpack.c.h.b16 %v5762
      %v5798 = vunpack.c.l.b16 %v5763
      %v5799 = vunpack.c.h.b16 %v5763
      %v5800 = vunpack.c.l.b16 %v5764
      %v5801 = vunpack.c.h.b16 %v5764
      %v5802 = vunpack.c.l.b16 %v5765
      %v5803 = vunpack.c.h.b16 %v5765
      %v5804 = vunpack.c.l.b16 %v5766
      %v5805 = vunpack.c.h.b16 %v5766
      %v5806 = vunpack.c.l.b16 %v5767
      %v5807 = vunpack.c.h.b16 %v5767
      %v5808 = vunpack.c.l.b16 %v5768
      %v5809 = vunpack.c.h.b16 %v5768
      %v5810 = vunpack.c.l.b16 %v5769
      %v5811 = vunpack.c.h.b16 %v5769
      %v5812 = vunpack.c.l.b16 %v5770
      %v5813 = vunpack.c.h.b16 %v5770
      %v5814 = vpack.c.b16 %v5792, %v5790
      %v5815 = vpack.c.b16 %v5793, %v5791
      %v5816 = vpack.c.b16 %v5796, %v5794
      %v5817 = vpack.c.b16 %v5797, %v5795
      %v5818 = vpack.c.b16 %v5800, %v5798
      %v5819 = vpack.c.b16 %v5801, %v5799
      %v5820 = vpack.c.b16 %v5804, %v5802
      %v5821 = vpack.c.b16 %v5805, %v5803
      %v5822 = vpack.c.b16 %v5808, %v5806
      %v5823 = vpack.c.b16 %v5809, %v5807
      %v5824 = vpack.c.b16 %v5812, %v5810
      %v5825 = vpack.c.b16 %v5813, %v5811
      %vm5838 = vcmask 785408
      %v5840 = vsel %vm5838, %v5777, 0
      %5842 = vmatprep.subr.bf16.mxu0 %v5815
      %5843 = vmatpush1.bf16.msra.mxu0 %v5814
      %5844 = vmatprep.subr.bf16.mxu0 %v5817
      %5845 = vmatpush1.bf16.msra.mxu0 %v5816
      %5846 = vmatprep.subr.bf16.mxu0 %v5819
      %5847 = vmatpush1.bf16.msra.mxu0 %v5818
      %5848 = vmatprep.subr.bf16.mxu0 %v5821
      %5849 = vmatpush1.bf16.msra.mxu0 %v5820
      %5850 = vmatprep.subr.bf16.mxu0 %v5823
      %5851 = vmatpush1.bf16.msra.mxu0 %v5822
      %5852 = vmatprep.subr.bf16.mxu0 %v5825
      %5853 = vmatpush1.bf16.msra.mxu0 %v5824
      %5854 = vmatprep.subr.bf16.mxu0 0
      %5855 = vmatpush1.bf16.msra.mxu0 0
      %5856 = vmatprep.subr.bf16.mxu0 0
      %5857 = vmatpush1.bf16.msra.mxu0 0
      %5858 = vmatprep.subr.bf16.mxu0 0
      %5859 = vmatpush1.bf16.msra.mxu0 0
      %5860 = vmatprep.subr.bf16.mxu0 0
      %5861 = vmatpush1.bf16.msra.mxu0 0
      %5862 = vmatprep.subr.bf16.mxu0 0
      %5863 = vmatpush1.bf16.msra.mxu0 0
      %5864 = vmatprep.subr.bf16.mxu0 0
      %5865 = vmatpush1.bf16.msra.mxu0 0
      %5866 = vmatprep.subr.bf16.mxu0 0
      %5867 = vmatpush1.bf16.msra.mxu0 0
      %5868 = vmatprep.subr.bf16.mxu0 0
      %5869 = vmatpush1.bf16.msra.mxu0 0
      %5870 = vmatprep.subr.bf16.mxu0 0
      %5871 = vmatpush1.bf16.msra.mxu0 0
      %5872 = vmatprep.subr.bf16.mxu0 0
      %5873 = vmatpush1.bf16.msra.mxu0 0
      %5874 = vmatprep.mubr.bf16.mxu0 0
      %5875 = vmatmul.mubr.bf16.gmra.mrb[0].mxu0 %v5840
      %v5876 = vpop.f32.mrb[0].mxu0
      %v5877 = vadd.f32 0.0, %v5876
      %v5878 = vpop.f32.mrb[0].mxu0
      %v5879 = vadd.f32 0.0, %v5878
      %v5880 = vpop.f32.mrb[0].mxu0
      %v5881 = vpop.f32.mrb[0].mxu0
      %5882 = vdwg.mxu0
      %v5895 = vunpack.c.l.b16 %v5746
      %v5896 = vunpack.c.h.b16 %v5746
      %v5897 = vunpack.c.l.b16 %v5747
      %v5898 = vunpack.c.h.b16 %v5747
      %v5899 = vunpack.c.l.b16 %v5748
      %v5900 = vunpack.c.h.b16 %v5748
      %v5901 = vunpack.c.l.b16 %v5749
      %v5902 = vunpack.c.h.b16 %v5749
      %v5903 = vunpack.c.l.b16 %v5750
      %v5904 = vunpack.c.h.b16 %v5750
      %v5905 = vunpack.c.l.b16 %v5751
      %v5906 = vunpack.c.h.b16 %v5751
      %v5907 = vunpack.c.l.b16 %v5752
      %v5908 = vunpack.c.h.b16 %v5752
      %v5909 = vunpack.c.l.b16 %v5753
      %v5910 = vunpack.c.h.b16 %v5753
      %v5911 = vunpack.c.l.b16 %v5754
      %v5912 = vunpack.c.h.b16 %v5754
      %v5913 = vunpack.c.l.b16 %v5755
      %v5914 = vunpack.c.h.b16 %v5755
      %v5915 = vunpack.c.l.b16 %v5756
      %v5916 = vunpack.c.h.b16 %v5756
      %v5917 = vunpack.c.l.b16 %v5757
      %v5918 = vunpack.c.h.b16 %v5757
      %v5919 = vpack.c.b16 %v5897, %v5895
      %v5920 = vpack.c.b16 %v5898, %v5896
      %v5921 = vpack.c.b16 %v5901, %v5899
      %v5922 = vpack.c.b16 %v5902, %v5900
      %v5923 = vpack.c.b16 %v5905, %v5903
      %v5924 = vpack.c.b16 %v5906, %v5904
      %v5925 = vpack.c.b16 %v5909, %v5907
      %v5926 = vpack.c.b16 %v5910, %v5908
      %v5927 = vpack.c.b16 %v5913, %v5911
      %v5928 = vpack.c.b16 %v5914, %v5912
      %v5929 = vpack.c.b16 %v5917, %v5915
      %v5930 = vpack.c.b16 %v5918, %v5916
      %v5943 = vsel %vm5838, %v5745, 0
      %5945 = vmatprep.subr.bf16.mxu0 %v5920
      %5946 = vmatpush1.bf16.msra.mxu0 %v5919
      %5947 = vmatprep.subr.bf16.mxu0 %v5922
      %5948 = vmatpush1.bf16.msra.mxu0 %v5921
      %5949 = vmatprep.subr.bf16.mxu0 %v5924
      %5950 = vmatpush1.bf16.msra.mxu0 %v5923
      %5951 = vmatprep.subr.bf16.mxu0 %v5926
      %5952 = vmatpush1.bf16.msra.mxu0 %v5925
      %5953 = vmatprep.subr.bf16.mxu0 %v5928
      %5954 = vmatpush1.bf16.msra.mxu0 %v5927
      %5955 = vmatprep.subr.bf16.mxu0 %v5930
      %5956 = vmatpush1.bf16.msra.mxu0 %v5929
      %5957 = vmatprep.subr.bf16.mxu0 0
      %5958 = vmatpush1.bf16.msra.mxu0 0
      %5959 = vmatprep.subr.bf16.mxu0 0
      %5960 = vmatpush1.bf16.msra.mxu0 0
      %5961 = vmatprep.subr.bf16.mxu0 0
      %5962 = vmatpush1.bf16.msra.mxu0 0
      %5963 = vmatprep.subr.bf16.mxu0 0
      %5964 = vmatpush1.bf16.msra.mxu0 0
      %5965 = vmatprep.subr.bf16.mxu0 0
      %5966 = vmatpush1.bf16.msra.mxu0 0
      %5967 = vmatprep.subr.bf16.mxu0 0
      %5968 = vmatpush1.bf16.msra.mxu0 0
      %5969 = vmatprep.subr.bf16.mxu0 0
      %5970 = vmatpush1.bf16.msra.mxu0 0
      %5971 = vmatprep.subr.bf16.mxu0 0
      %5972 = vmatpush1.bf16.msra.mxu0 0
      %5973 = vmatprep.subr.bf16.mxu0 0
      %5974 = vmatpush1.bf16.msra.mxu0 0
      %5975 = vmatprep.subr.bf16.mxu0 0
      %5976 = vmatpush1.bf16.msra.mxu0 0
      %5977 = vmatprep.mubr.bf16.mxu0 0
      %5978 = vmatmul.mubr.bf16.gmra.mrb[0].mxu0 %v5943
      %v5979 = vpop.f32.mrb[0].mxu0
      %v5980 = vadd.f32 %v5877, %v5979
      %v5981 = vpop.f32.mrb[0].mxu0
      %v5982 = vadd.f32 %v5879, %v5981
      %v5983 = vpop.f32.mrb[0].mxu0
      %v5984 = vpop.f32.mrb[0].mxu0
      %5985 = vdwg.mxu0
      %s5986 = scalar_lea.vmem %s37, 192
      %v5987 = vld [vmem:[%s5986] sm:$0xff]
      %v5988 = vld [vmem:[%s5986 + $0x8] sm:$0xff]
      %v5989 = vld [vmem:[%s5986 + $0x10] sm:$0xff]
      %v5990 = vld [vmem:[%s5986 + $0x18] sm:$0xff]
      %v5991 = vld [vmem:[%s5986 + $0x20] sm:$0xff]
      %v5992 = vld [vmem:[%s5986 + $0x28] sm:$0xff]
      %v5993 = vld [vmem:[%s5986 + $0x30] sm:$0xff]
      %v5994 = vld [vmem:[%s5986 + $0x38] sm:$0xff]
      %v5995 = vld [vmem:[%s5986 + $0x40] sm:$0xff]
      %v5996 = vld [vmem:[%s5986 + $0x48] sm:$0xff]
      %v5997 = vld [vmem:[%s5986 + $0x50] sm:$0xff]
      %v5998 = vld [vmem:[%s5986 + $0x58] sm:$0xff]
      %v6000 = vrot.slane %v5745, 1
      %v6013 = vunpack.c.l.b16 %v5987
      %v6014 = vunpack.c.h.b16 %v5987
      %v6015 = vunpack.c.l.b16 %v5988
      %v6016 = vunpack.c.h.b16 %v5988
      %v6017 = vunpack.c.l.b16 %v5989
      %v6018 = vunpack.c.h.b16 %v5989
      %v6019 = vunpack.c.l.b16 %v5990
      %v6020 = vunpack.c.h.b16 %v5990
      %v6021 = vunpack.c.l.b16 %v5991
      %v6022 = vunpack.c.h.b16 %v5991
      %v6023 = vunpack.c.l.b16 %v5992
      %v6024 = vunpack.c.h.b16 %v5992
      %v6025 = vunpack.c.l.b16 %v5993
      %v6026 = vunpack.c.h.b16 %v5993
      %v6027 = vunpack.c.l.b16 %v5994
      %v6028 = vunpack.c.h.b16 %v5994
      %v6029 = vunpack.c.l.b16 %v5995
      %v6030 = vunpack.c.h.b16 %v5995
      %v6031 = vunpack.c.l.b16 %v5996
      %v6032 = vunpack.c.h.b16 %v5996
      %v6033 = vunpack.c.l.b16 %v5997
      %v6034 = vunpack.c.h.b16 %v5997
      %v6035 = vunpack.c.l.b16 %v5998
      %v6036 = vunpack.c.h.b16 %v5998
      %v6037 = vpack.c.b16 %v6015, %v6013
      %v6038 = vpack.c.b16 %v6016, %v6014
      %v6039 = vpack.c.b16 %v6019, %v6017
      %v6040 = vpack.c.b16 %v6020, %v6018
      %v6041 = vpack.c.b16 %v6023, %v6021
      %v6042 = vpack.c.b16 %v6024, %v6022
      %v6043 = vpack.c.b16 %v6027, %v6025
      %v6044 = vpack.c.b16 %v6028, %v6026
      %v6045 = vpack.c.b16 %v6031, %v6029
      %v6046 = vpack.c.b16 %v6032, %v6030
      %v6047 = vpack.c.b16 %v6035, %v6033
      %v6048 = vpack.c.b16 %v6036, %v6034
      %v6062 = vsel %vm5838, %v6000, 0
      %6064 = vmatprep.subr.bf16.mxu0 %v6038
      %6065 = vmatpush1.bf16.msra.mxu0 %v6037
      %6066 = vmatprep.subr.bf16.mxu0 %v6040
      %6067 = vmatpush1.bf16.msra.mxu0 %v6039
      %6068 = vmatprep.subr.bf16.mxu0 %v6042
      %6069 = vmatpush1.bf16.msra.mxu0 %v6041
      %6070 = vmatprep.subr.bf16.mxu0 %v6044
      %6071 = vmatpush1.bf16.msra.mxu0 %v6043
      %6072 = vmatprep.subr.bf16.mxu0 %v6046
      %6073 = vmatpush1.bf16.msra.mxu0 %v6045
      %6074 = vmatprep.subr.bf16.mxu0 %v6048
      %6075 = vmatpush1.bf16.msra.mxu0 %v6047
      %6076 = vmatprep.subr.bf16.mxu0 0
      %6077 = vmatpush1.bf16.msra.mxu0 0
      %6078 = vmatprep.subr.bf16.mxu0 0
      %6079 = vmatpush1.bf16.msra.mxu0 0
      %6080 = vmatprep.subr.bf16.mxu0 0
      %6081 = vmatpush1.bf16.msra.mxu0 0
      %6082 = vmatprep.subr.bf16.mxu0 0
      %6083 = vmatpush1.bf16.msra.mxu0 0
      %6084 = vmatprep.subr.bf16.mxu0 0
      %6085 = vmatpush1.bf16.msra.mxu0 0
      %6086 = vmatprep.subr.bf16.mxu0 0
      %6087 = vmatpush1.bf16.msra.mxu0 0
      %6088 = vmatprep.subr.bf16.mxu0 0
      %6089 = vmatpush1.bf16.msra.mxu0 0
      %6090 = vmatprep.subr.bf16.mxu0 0
      %6091 = vmatpush1.bf16.msra.mxu0 0
      %6092 = vmatprep.subr.bf16.mxu0 0
      %6093 = vmatpush1.bf16.msra.mxu0 0
      %6094 = vmatprep.subr.bf16.mxu0 0
      %6095 = vmatpush1.bf16.msra.mxu0 0
      %6096 = vmatprep.mubr.bf16.mxu0 0
      %6097 = vmatmul.mubr.bf16.gmra.mrb[0].mxu0 %v6062
      %v6098 = vpop.f32.mrb[0].mxu0
      %v6099 = vadd.f32 0.0, %v6098
      %v6100 = vpop.f32.mrb[0].mxu0
      %v6101 = vadd.f32 0.0, %v6100
      %v6102 = vpop.f32.mrb[0].mxu0
      %v6103 = vpop.f32.mrb[0].mxu0
      %6104 = vdwg.mxu0
      %v6105 = vadd.f32 %v5980, %v6099
      %v6106 = vadd.f32 %v5982, %v6101
      %v6107 = vld [vmem:[%s39] sm:$0x3]
      %v6109 = vlaneseq
      %v6110 = vshrl.u32 %v6109, 7
      %v6111 = vsub.s32 0, %v6110
      %v6112 = vrot.slane %v6107, %v6111
      %v6113 = vlaneseq
      %v6114 = vshrl.u32 %v6113, 7
      %v6115 = vsub.s32 1, %v6114
      %v6116 = vrot.slane %v6107, %v6115
      %v6119 = vadd.f32 %v6105, %v6112
      %v6120 = vadd.f32 %v6106, %v6116
      %v6121 = vmax.f32 %v6119, 0.0
      %v6122 = vmax.f32 %v6120, 0.0
      %6123 = vst [vmem:[#allocation2] sm:$0x3] 0.0
      %6124 = vst [vmem:[#allocation2 + $0x8] sm:$0x3] 0.0
      %v6127 = vrot.slane %v6121, 6
      %v6128 = vrot.slane %v6122, 6
      %6131 = vst [vmem:[#allocation2] sm:$0xfc] %v6127
      %6132 = vst [vmem:[#allocation2 + $0x8] sm:$0xfc] %v6128
      %6133 = vst [vmem:[#allocation2 + $0x10] sm:$0x3] %v6127
      %6134 = vst [vmem:[#allocation2 + $0x18] sm:$0x3] %v6128
      %6135 = vst [vmem:[#allocation2 + $0x10] sm:$0xc] 0.0
      %6136 = vst [vmem:[#allocation2 + $0x18] sm:$0xc] 0.0
      %v6137 = vld [vmem:[#allocation2] sm:$0xff]
      %v6138 = vld [vmem:[#allocation2 + $0x8] sm:$0xff]
      %v6139 = vld [vmem:[#allocation2 + $0x10] sm:$0xf]
      %v6140 = vld [vmem:[#allocation2 + $0x18] sm:$0xf]
      %v6141 = vpack.c.bf16 %v6139, %v6137
      %v6142 = vpack.c.bf16 %v6140, %v6138
      %v6143 = vld [vmem:[%s41] sm:$0xff]
      %v6144 = vld [vmem:[%s41 + $0x8] sm:$0xff]
      %v6145 = vld [vmem:[%s41 + $0x10] sm:$0xff]
      %v6146 = vld [vmem:[%s41 + $0x18] sm:$0xff]
      %v6147 = vld [vmem:[%s41 + $0x20] sm:$0xff]
      %v6148 = vld [vmem:[%s41 + $0x28] sm:$0xff]
      %v6149 = vld [vmem:[%s41 + $0x30] sm:$0xff]
      %v6150 = vld [vmem:[%s41 + $0x38] sm:$0xff]
      %v6151 = vld [vmem:[%s41 + $0x40] sm:$0xff]
      %v6152 = vld [vmem:[%s41 + $0x48] sm:$0xff]
      %v6153 = vld [vmem:[%s41 + $0x50] sm:$0xff]
      %v6154 = vld [vmem:[%s41 + $0x58] sm:$0xff]
      %v6155 = vld [vmem:[%s41 + $0x60] sm:$0xff]
      %v6156 = vld [vmem:[%s41 + $0x68] sm:$0xff]
      %v6157 = vld [vmem:[%s41 + $0x70] sm:$0xff]
      %v6158 = vld [vmem:[%s41 + $0x78] sm:$0xff]
      %v6159 = vld [vmem:[%s41 + $0x80] sm:$0xff]
      %v6160 = vld [vmem:[%s41 + $0x88] sm:$0xff]
      %v6161 = vld [vmem:[%s41 + $0x90] sm:$0xff]
      %v6162 = vld [vmem:[%s41 + $0x98] sm:$0xff]
      %v6163 = vld [vmem:[%s41 + $0xa0] sm:$0xff]
      %v6164 = vld [vmem:[%s41 + $0xa8] sm:$0xff]
      %v6165 = vld [vmem:[%s41 + $0xb0] sm:$0xff]
      %v6166 = vld [vmem:[%s41 + $0xb8] sm:$0xff]
      %v6167 = vld [vmem:[%s41 + $0xc0] sm:$0xff]
      %v6168 = vld [vmem:[%s41 + $0xc8] sm:$0xff]
      %v6169 = vld [vmem:[%s41 + $0xd0] sm:$0xff]
      %v6170 = vld [vmem:[%s41 + $0xd8] sm:$0xff]
      %v6171 = vld [vmem:[%s41 + $0xe0] sm:$0xff]
      %v6172 = vld [vmem:[%s41 + $0xe8] sm:$0xff]
      %v6173 = vld [vmem:[%s41 + $0xf0] sm:$0xff]
      %v6174 = vld [vmem:[%s41 + $0xf8] sm:$0xff]
      %s6175 = scalar_lea.vmem %s41, 256
      %v6176 = vld [vmem:[%s6175] sm:$0xff]
      %v6177 = vld [vmem:[%s6175 + $0x8] sm:$0xff]
      %v6178 = vld [vmem:[%s6175 + $0x10] sm:$0xff]
      %v6179 = vld [vmem:[%s6175 + $0x18] sm:$0xff]
      %v6180 = vld [vmem:[%s6175 + $0x20] sm:$0xff]
      %v6181 = vld [vmem:[%s6175 + $0x28] sm:$0xff]
      %v6182 = vld [vmem:[%s6175 + $0x30] sm:$0xff]
      %v6183 = vld [vmem:[%s6175 + $0x38] sm:$0xff]
      %v6184 = vld [vmem:[%s6175 + $0x40] sm:$0xff]
      %v6185 = vld [vmem:[%s6175 + $0x48] sm:$0xff]
      %v6186 = vld [vmem:[%s6175 + $0x50] sm:$0xff]
      %v6187 = vld [vmem:[%s6175 + $0x58] sm:$0xff]
      %v6188 = vld [vmem:[%s6175 + $0x60] sm:$0xff]
      %v6189 = vld [vmem:[%s6175 + $0x68] sm:$0xff]
      %v6190 = vld [vmem:[%s6175 + $0x70] sm:$0xff]
      %v6191 = vld [vmem:[%s6175 + $0x78] sm:$0xff]
      %v6192 = vld [vmem:[%s6175 + $0x80] sm:$0xff]
      %v6193 = vld [vmem:[%s6175 + $0x88] sm:$0xff]
      %v6194 = vld [vmem:[%s6175 + $0x90] sm:$0xff]
      %v6195 = vld [vmem:[%s6175 + $0x98] sm:$0xff]
      %v6196 = vld [vmem:[%s6175 + $0xa0] sm:$0xff]
      %v6197 = vld [vmem:[%s6175 + $0xa8] sm:$0xff]
      %v6198 = vld [vmem:[%s6175 + $0xb0] sm:$0xff]
      %v6199 = vld [vmem:[%s6175 + $0xb8] sm:$0xff]
      %v6200 = vld [vmem:[%s6175 + $0xc0] sm:$0xff]
      %v6201 = vld [vmem:[%s6175 + $0xc8] sm:$0xff]
      %v6202 = vld [vmem:[%s6175 + $0xd0] sm:$0xff]
      %v6203 = vld [vmem:[%s6175 + $0xd8] sm:$0xff]
      %v6204 = vld [vmem:[%s6175 + $0xe0] sm:$0xff]
      %v6205 = vld [vmem:[%s6175 + $0xe8] sm:$0xff]
      %v6206 = vld [vmem:[%s6175 + $0xf0] sm:$0xff]
      %v6207 = vld [vmem:[%s6175 + $0xf8] sm:$0xff]
      %v6209 = vshrl.u32 %v6141, 16
      %v6211 = vshll.u32 %v6141, 16
      %v6213 = vrot.slane %v6211, 1
      %v6214 = vor.u32 %v6209, %v6213
      %v6216 = vshrl.u32 %v6142, 16
      %v6218 = vshll.u32 %v6142, 16
      %v6220 = vrot.slane %v6218, 1
      %v6221 = vor.u32 %v6216, %v6220
      %v6256 = vunpack.c.l.b16 %v6176
      %v6257 = vunpack.c.h.b16 %v6176
      %v6258 = vunpack.c.l.b16 %v6177
      %v6259 = vunpack.c.h.b16 %v6177
      %v6260 = vunpack.c.l.b16 %v6178
      %v6261 = vunpack.c.h.b16 %v6178
      %v6262 = vunpack.c.l.b16 %v6179
      %v6263 = vunpack.c.h.b16 %v6179
      %v6264 = vunpack.c.l.b16 %v6180
      %v6265 = vunpack.c.h.b16 %v6180
      %v6266 = vunpack.c.l.b16 %v6181
      %v6267 = vunpack.c.h.b16 %v6181
      %v6268 = vunpack.c.l.b16 %v6182
      %v6269 = vunpack.c.h.b16 %v6182
      %v6270 = vunpack.c.l.b16 %v6183
      %v6271 = vunpack.c.h.b16 %v6183
      %v6272 = vunpack.c.l.b16 %v6184
      %v6273 = vunpack.c.h.b16 %v6184
      %v6274 = vunpack.c.l.b16 %v6185
      %v6275 = vunpack.c.h.b16 %v6185
      %v6276 = vunpack.c.l.b16 %v6186
      %v6277 = vunpack.c.h.b16 %v6186
      %v6278 = vunpack.c.l.b16 %v6187
      %v6279 = vunpack.c.h.b16 %v6187
      %v6280 = vunpack.c.l.b16 %v6188
      %v6281 = vunpack.c.h.b16 %v6188
      %v6282 = vunpack.c.l.b16 %v6189
      %v6283 = vunpack.c.h.b16 %v6189
      %v6284 = vunpack.c.l.b16 %v6190
      %v6285 = vunpack.c.h.b16 %v6190
      %v6286 = vunpack.c.l.b16 %v6191
      %v6287 = vunpack.c.h.b16 %v6191
      %v6288 = vunpack.c.l.b16 %v6192
      %v6289 = vunpack.c.h.b16 %v6192
      %v6290 = vunpack.c.l.b16 %v6193
      %v6291 = vunpack.c.h.b16 %v6193
      %v6292 = vunpack.c.l.b16 %v6194
      %v6293 = vunpack.c.h.b16 %v6194
      %v6294 = vunpack.c.l.b16 %v6195
      %v6295 = vunpack.c.h.b16 %v6195
      %v6296 = vunpack.c.l.b16 %v6196
      %v6297 = vunpack.c.h.b16 %v6196
      %v6298 = vunpack.c.l.b16 %v6197
      %v6299 = vunpack.c.h.b16 %v6197
      %v6300 = vunpack.c.l.b16 %v6198
      %v6301 = vunpack.c.h.b16 %v6198
      %v6302 = vunpack.c.l.b16 %v6199
      %v6303 = vunpack.c.h.b16 %v6199
      %v6304 = vunpack.c.l.b16 %v6200
      %v6305 = vunpack.c.h.b16 %v6200
      %v6306 = vunpack.c.l.b16 %v6201
      %v6307 = vunpack.c.h.b16 %v6201
      %v6308 = vunpack.c.l.b16 %v6202
      %v6309 = vunpack.c.h.b16 %v6202
      %v6310 = vunpack.c.l.b16 %v6203
      %v6311 = vunpack.c.h.b16 %v6203
      %v6312 = vunpack.c.l.b16 %v6204
      %v6313 = vunpack.c.h.b16 %v6204
      %v6314 = vunpack.c.l.b16 %v6205
      %v6315 = vunpack.c.h.b16 %v6205
      %v6316 = vunpack.c.l.b16 %v6206
      %v6317 = vunpack.c.h.b16 %v6206
      %v6318 = vunpack.c.l.b16 %v6207
      %v6319 = vunpack.c.h.b16 %v6207
      %v6320 = vpack.c.b16 %v6258, %v6256
      %v6321 = vpack.c.b16 %v6259, %v6257
      %v6322 = vpack.c.b16 %v6262, %v6260
      %v6323 = vpack.c.b16 %v6263, %v6261
      %v6324 = vpack.c.b16 %v6266, %v6264
      %v6325 = vpack.c.b16 %v6267, %v6265
      %v6326 = vpack.c.b16 %v6270, %v6268
      %v6327 = vpack.c.b16 %v6271, %v6269
      %v6328 = vpack.c.b16 %v6274, %v6272
      %v6329 = vpack.c.b16 %v6275, %v6273
      %v6330 = vpack.c.b16 %v6278, %v6276
      %v6331 = vpack.c.b16 %v6279, %v6277
      %v6332 = vpack.c.b16 %v6282, %v6280
      %v6333 = vpack.c.b16 %v6283, %v6281
      %v6334 = vpack.c.b16 %v6286, %v6284
      %v6335 = vpack.c.b16 %v6287, %v6285
      %v6336 = vpack.c.b16 %v6290, %v6288
      %v6337 = vpack.c.b16 %v6291, %v6289
      %v6338 = vpack.c.b16 %v6294, %v6292
      %v6339 = vpack.c.b16 %v6295, %v6293
      %v6340 = vpack.c.b16 %v6298, %v6296
      %v6341 = vpack.c.b16 %v6299, %v6297
      %v6342 = vpack.c.b16 %v6302, %v6300
      %v6343 = vpack.c.b16 %v6303, %v6301
      %v6344 = vpack.c.b16 %v6306, %v6304
      %v6345 = vpack.c.b16 %v6307, %v6305
      %v6346 = vpack.c.b16 %v6310, %v6308
      %v6347 = vpack.c.b16 %v6311, %v6309
      %v6348 = vpack.c.b16 %v6314, %v6312
      %v6349 = vpack.c.b16 %v6315, %v6313
      %v6350 = vpack.c.b16 %v6318, %v6316
      %v6351 = vpack.c.b16 %v6319, %v6317
      %6384 = vmatprep.subr.bf16.mxu0 %v6321
      %6385 = vmatpush1.bf16.msra.mxu0 %v6320
      %6386 = vmatprep.subr.bf16.mxu0 %v6323
      %6387 = vmatpush1.bf16.msra.mxu0 %v6322
      %6388 = vmatprep.subr.bf16.mxu0 %v6325
      %6389 = vmatpush1.bf16.msra.mxu0 %v6324
      %6390 = vmatprep.subr.bf16.mxu0 %v6327
      %6391 = vmatpush1.bf16.msra.mxu0 %v6326
      %6392 = vmatprep.subr.bf16.mxu0 %v6329
      %6393 = vmatpush1.bf16.msra.mxu0 %v6328
      %6394 = vmatprep.subr.bf16.mxu0 %v6331
      %6395 = vmatpush1.bf16.msra.mxu0 %v6330
      %6396 = vmatprep.subr.bf16.mxu0 %v6333
      %6397 = vmatpush1.bf16.msra.mxu0 %v6332
      %6398 = vmatprep.subr.bf16.mxu0 %v6335
      %6399 = vmatpush1.bf16.msra.mxu0 %v6334
      %6400 = vmatprep.subr.bf16.mxu0 %v6337
      %6401 = vmatpush1.bf16.msra.mxu0 %v6336
      %6402 = vmatprep.subr.bf16.mxu0 %v6339
      %6403 = vmatpush1.bf16.msra.mxu0 %v6338
      %6404 = vmatprep.subr.bf16.mxu0 %v6341
      %6405 = vmatpush1.bf16.msra.mxu0 %v6340
      %6406 = vmatprep.subr.bf16.mxu0 %v6343
      %6407 = vmatpush1.bf16.msra.mxu0 %v6342
      %6408 = vmatprep.subr.bf16.mxu0 %v6345
      %6409 = vmatpush1.bf16.msra.mxu0 %v6344
      %6410 = vmatprep.subr.bf16.mxu0 %v6347
      %6411 = vmatpush1.bf16.msra.mxu0 %v6346
      %6412 = vmatprep.subr.bf16.mxu0 %v6349
      %6413 = vmatpush1.bf16.msra.mxu0 %v6348
      %6414 = vmatprep.subr.bf16.mxu0 %v6351
      %6415 = vmatpush1.bf16.msra.mxu0 %v6350
      %6416 = vmatprep.mubr.bf16.mxu0 %v6221
      %6417 = vmatmul.mubr.bf16.gmra.mrb[0].mxu0 %v6214
      %v6418 = vpop.f32.mrb[0].mxu0
      %v6419 = vadd.f32 0.0, %v6418
      %v6420 = vpop.f32.mrb[0].mxu0
      %v6421 = vadd.f32 0.0, %v6420
      %v6422 = vpop.f32.mrb[0].mxu0
      %v6423 = vadd.f32 0.0, %v6422
      %v6424 = vpop.f32.mrb[0].mxu0
      %v6425 = vadd.f32 0.0, %v6424
      %6426 = vdwg.mxu0
      %v6459 = vunpack.c.l.b16 %v6143
      %v6460 = vunpack.c.h.b16 %v6143
      %v6461 = vunpack.c.l.b16 %v6144
      %v6462 = vunpack.c.h.b16 %v6144
      %v6463 = vunpack.c.l.b16 %v6145
      %v6464 = vunpack.c.h.b16 %v6145
      %v6465 = vunpack.c.l.b16 %v6146
      %v6466 = vunpack.c.h.b16 %v6146
      %v6467 = vunpack.c.l.b16 %v6147
      %v6468 = vunpack.c.h.b16 %v6147
      %v6469 = vunpack.c.l.b16 %v6148
      %v6470 = vunpack.c.h.b16 %v6148
      %v6471 = vunpack.c.l.b16 %v6149
      %v6472 = vunpack.c.h.b16 %v6149
      %v6473 = vunpack.c.l.b16 %v6150
      %v6474 = vunpack.c.h.b16 %v6150
      %v6475 = vunpack.c.l.b16 %v6151
      %v6476 = vunpack.c.h.b16 %v6151
      %v6477 = vunpack.c.l.b16 %v6152
      %v6478 = vunpack.c.h.b16 %v6152
      %v6479 = vunpack.c.l.b16 %v6153
      %v6480 = vunpack.c.h.b16 %v6153
      %v6481 = vunpack.c.l.b16 %v6154
      %v6482 = vunpack.c.h.b16 %v6154
      %v6483 = vunpack.c.l.b16 %v6155
      %v6484 = vunpack.c.h.b16 %v6155
      %v6485 = vunpack.c.l.b16 %v6156
      %v6486 = vunpack.c.h.b16 %v6156
      %v6487 = vunpack.c.l.b16 %v6157
      %v6488 = vunpack.c.h.b16 %v6157
      %v6489 = vunpack.c.l.b16 %v6158
      %v6490 = vunpack.c.h.b16 %v6158
      %v6491 = vunpack.c.l.b16 %v6159
      %v6492 = vunpack.c.h.b16 %v6159
      %v6493 = vunpack.c.l.b16 %v6160
      %v6494 = vunpack.c.h.b16 %v6160
      %v6495 = vunpack.c.l.b16 %v6161
      %v6496 = vunpack.c.h.b16 %v6161
      %v6497 = vunpack.c.l.b16 %v6162
      %v6498 = vunpack.c.h.b16 %v6162
      %v6499 = vunpack.c.l.b16 %v6163
      %v6500 = vunpack.c.h.b16 %v6163
      %v6501 = vunpack.c.l.b16 %v6164
      %v6502 = vunpack.c.h.b16 %v6164
      %v6503 = vunpack.c.l.b16 %v6165
      %v6504 = vunpack.c.h.b16 %v6165
      %v6505 = vunpack.c.l.b16 %v6166
      %v6506 = vunpack.c.h.b16 %v6166
      %v6507 = vunpack.c.l.b16 %v6167
      %v6508 = vunpack.c.h.b16 %v6167
      %v6509 = vunpack.c.l.b16 %v6168
      %v6510 = vunpack.c.h.b16 %v6168
      %v6511 = vunpack.c.l.b16 %v6169
      %v6512 = vunpack.c.h.b16 %v6169
      %v6513 = vunpack.c.l.b16 %v6170
      %v6514 = vunpack.c.h.b16 %v6170
      %v6515 = vunpack.c.l.b16 %v6171
      %v6516 = vunpack.c.h.b16 %v6171
      %v6517 = vunpack.c.l.b16 %v6172
      %v6518 = vunpack.c.h.b16 %v6172
      %v6519 = vunpack.c.l.b16 %v6173
      %v6520 = vunpack.c.h.b16 %v6173
      %v6521 = vunpack.c.l.b16 %v6174
      %v6522 = vunpack.c.h.b16 %v6174
      %v6523 = vpack.c.b16 %v6461, %v6459
      %v6524 = vpack.c.b16 %v6462, %v6460
      %v6525 = vpack.c.b16 %v6465, %v6463
      %v6526 = vpack.c.b16 %v6466, %v6464
      %v6527 = vpack.c.b16 %v6469, %v6467
      %v6528 = vpack.c.b16 %v6470, %v6468
      %v6529 = vpack.c.b16 %v6473, %v6471
      %v6530 = vpack.c.b16 %v6474, %v6472
      %v6531 = vpack.c.b16 %v6477, %v6475
      %v6532 = vpack.c.b16 %v6478, %v6476
      %v6533 = vpack.c.b16 %v6481, %v6479
      %v6534 = vpack.c.b16 %v6482, %v6480
      %v6535 = vpack.c.b16 %v6485, %v6483
      %v6536 = vpack.c.b16 %v6486, %v6484
      %v6537 = vpack.c.b16 %v6489, %v6487
      %v6538 = vpack.c.b16 %v6490, %v6488
      %v6539 = vpack.c.b16 %v6493, %v6491
      %v6540 = vpack.c.b16 %v6494, %v6492
      %v6541 = vpack.c.b16 %v6497, %v6495
      %v6542 = vpack.c.b16 %v6498, %v6496
      %v6543 = vpack.c.b16 %v6501, %v6499
      %v6544 = vpack.c.b16 %v6502, %v6500
      %v6545 = vpack.c.b16 %v6505, %v6503
      %v6546 = vpack.c.b16 %v6506, %v6504
      %v6547 = vpack.c.b16 %v6509, %v6507
      %v6548 = vpack.c.b16 %v6510, %v6508
      %v6549 = vpack.c.b16 %v6513, %v6511
      %v6550 = vpack.c.b16 %v6514, %v6512
      %v6551 = vpack.c.b16 %v6517, %v6515
      %v6552 = vpack.c.b16 %v6518, %v6516
      %v6553 = vpack.c.b16 %v6521, %v6519
      %v6554 = vpack.c.b16 %v6522, %v6520
      %6587 = vmatprep.subr.bf16.mxu0 %v6524
      %6588 = vmatpush1.bf16.msra.mxu0 %v6523
      %6589 = vmatprep.subr.bf16.mxu0 %v6526
      %6590 = vmatpush1.bf16.msra.mxu0 %v6525
      %6591 = vmatprep.subr.bf16.mxu0 %v6528
      %6592 = vmatpush1.bf16.msra.mxu0 %v6527
      %6593 = vmatprep.subr.bf16.mxu0 %v6530
      %6594 = vmatpush1.bf16.msra.mxu0 %v6529
      %6595 = vmatprep.subr.bf16.mxu0 %v6532
      %6596 = vmatpush1.bf16.msra.mxu0 %v6531
      %6597 = vmatprep.subr.bf16.mxu0 %v6534
      %6598 = vmatpush1.bf16.msra.mxu0 %v6533
      %6599 = vmatprep.subr.bf16.mxu0 %v6536
      %6600 = vmatpush1.bf16.msra.mxu0 %v6535
      %6601 = vmatprep.subr.bf16.mxu0 %v6538
      %6602 = vmatpush1.bf16.msra.mxu0 %v6537
      %6603 = vmatprep.subr.bf16.mxu0 %v6540
      %6604 = vmatpush1.bf16.msra.mxu0 %v6539
      %6605 = vmatprep.subr.bf16.mxu0 %v6542
      %6606 = vmatpush1.bf16.msra.mxu0 %v6541
      %6607 = vmatprep.subr.bf16.mxu0 %v6544
      %6608 = vmatpush1.bf16.msra.mxu0 %v6543
      %6609 = vmatprep.subr.bf16.mxu0 %v6546
      %6610 = vmatpush1.bf16.msra.mxu0 %v6545
      %6611 = vmatprep.subr.bf16.mxu0 %v6548
      %6612 = vmatpush1.bf16.msra.mxu0 %v6547
      %6613 = vmatprep.subr.bf16.mxu0 %v6550
      %6614 = vmatpush1.bf16.msra.mxu0 %v6549
      %6615 = vmatprep.subr.bf16.mxu0 %v6552
      %6616 = vmatpush1.bf16.msra.mxu0 %v6551
      %6617 = vmatprep.subr.bf16.mxu0 %v6554
      %6618 = vmatpush1.bf16.msra.mxu0 %v6553
      %6619 = vmatprep.mubr.bf16.mxu0 %v6142
      %6620 = vmatmul.mubr.bf16.gmra.mrb[0].mxu0 %v6141
      %v6621 = vpop.f32.mrb[0].mxu0
      %v6622 = vadd.f32 %v6419, %v6621
      %v6623 = vpop.f32.mrb[0].mxu0
      %v6624 = vadd.f32 %v6421, %v6623
      %v6625 = vpop.f32.mrb[0].mxu0
      %v6626 = vadd.f32 %v6423, %v6625
      %v6627 = vpop.f32.mrb[0].mxu0
      %v6628 = vadd.f32 %v6425, %v6627
      %6629 = vdwg.mxu0
      %s6630 = scalar_lea.vmem %s41, 512
      %v6631 = vld [vmem:[%s6630] sm:$0xff]
      %v6632 = vld [vmem:[%s6630 + $0x8] sm:$0xff]
      %v6633 = vld [vmem:[%s6630 + $0x10] sm:$0xff]
      %v6634 = vld [vmem:[%s6630 + $0x18] sm:$0xff]
      %v6635 = vld [vmem:[%s6630 + $0x20] sm:$0xff]
      %v6636 = vld [vmem:[%s6630 + $0x28] sm:$0xff]
      %v6637 = vld [vmem:[%s6630 + $0x30] sm:$0xff]
      %v6638 = vld [vmem:[%s6630 + $0x38] sm:$0xff]
      %v6639 = vld [vmem:[%s6630 + $0x40] sm:$0xff]
      %v6640 = vld [vmem:[%s6630 + $0x48] sm:$0xff]
      %v6641 = vld [vmem:[%s6630 + $0x50] sm:$0xff]
      %v6642 = vld [vmem:[%s6630 + $0x58] sm:$0xff]
      %v6643 = vld [vmem:[%s6630 + $0x60] sm:$0xff]
      %v6644 = vld [vmem:[%s6630 + $0x68] sm:$0xff]
      %v6645 = vld [vmem:[%s6630 + $0x70] sm:$0xff]
      %v6646 = vld [vmem:[%s6630 + $0x78] sm:$0xff]
      %v6647 = vld [vmem:[%s6630 + $0x80] sm:$0xff]
      %v6648 = vld [vmem:[%s6630 + $0x88] sm:$0xff]
      %v6649 = vld [vmem:[%s6630 + $0x90] sm:$0xff]
      %v6650 = vld [vmem:[%s6630 + $0x98] sm:$0xff]
      %v6651 = vld [vmem:[%s6630 + $0xa0] sm:$0xff]
      %v6652 = vld [vmem:[%s6630 + $0xa8] sm:$0xff]
      %v6653 = vld [vmem:[%s6630 + $0xb0] sm:$0xff]
      %v6654 = vld [vmem:[%s6630 + $0xb8] sm:$0xff]
      %v6655 = vld [vmem:[%s6630 + $0xc0] sm:$0xff]
      %v6656 = vld [vmem:[%s6630 + $0xc8] sm:$0xff]
      %v6657 = vld [vmem:[%s6630 + $0xd0] sm:$0xff]
      %v6658 = vld [vmem:[%s6630 + $0xd8] sm:$0xff]
      %v6659 = vld [vmem:[%s6630 + $0xe0] sm:$0xff]
      %v6660 = vld [vmem:[%s6630 + $0xe8] sm:$0xff]
      %v6661 = vld [vmem:[%s6630 + $0xf0] sm:$0xff]
      %v6662 = vld [vmem:[%s6630 + $0xf8] sm:$0xff]
      %v6665 = vrot.slane %v6141, 1
      %v6666 = vrot.slane %v6142, 1
      %v6701 = vunpack.c.l.b16 %v6631
      %v6702 = vunpack.c.h.b16 %v6631
      %v6703 = vunpack.c.l.b16 %v6632
      %v6704 = vunpack.c.h.b16 %v6632
      %v6705 = vunpack.c.l.b16 %v6633
      %v6706 = vunpack.c.h.b16 %v6633
      %v6707 = vunpack.c.l.b16 %v6634
      %v6708 = vunpack.c.h.b16 %v6634
      %v6709 = vunpack.c.l.b16 %v6635
      %v6710 = vunpack.c.h.b16 %v6635
      %v6711 = vunpack.c.l.b16 %v6636
      %v6712 = vunpack.c.h.b16 %v6636
      %v6713 = vunpack.c.l.b16 %v6637
      %v6714 = vunpack.c.h.b16 %v6637
      %v6715 = vunpack.c.l.b16 %v6638
      %v6716 = vunpack.c.h.b16 %v6638
      %v6717 = vunpack.c.l.b16 %v6639
      %v6718 = vunpack.c.h.b16 %v6639
      %v6719 = vunpack.c.l.b16 %v6640
      %v6720 = vunpack.c.h.b16 %v6640
      %v6721 = vunpack.c.l.b16 %v6641
      %v6722 = vunpack.c.h.b16 %v6641
      %v6723 = vunpack.c.l.b16 %v6642
      %v6724 = vunpack.c.h.b16 %v6642
      %v6725 = vunpack.c.l.b16 %v6643
      %v6726 = vunpack.c.h.b16 %v6643
      %v6727 = vunpack.c.l.b16 %v6644
      %v6728 = vunpack.c.h.b16 %v6644
      %v6729 = vunpack.c.l.b16 %v6645
      %v6730 = vunpack.c.h.b16 %v6645
      %v6731 = vunpack.c.l.b16 %v6646
      %v6732 = vunpack.c.h.b16 %v6646
      %v6733 = vunpack.c.l.b16 %v6647
      %v6734 = vunpack.c.h.b16 %v6647
      %v6735 = vunpack.c.l.b16 %v6648
      %v6736 = vunpack.c.h.b16 %v6648
      %v6737 = vunpack.c.l.b16 %v6649
      %v6738 = vunpack.c.h.b16 %v6649
      %v6739 = vunpack.c.l.b16 %v6650
      %v6740 = vunpack.c.h.b16 %v6650
      %v6741 = vunpack.c.l.b16 %v6651
      %v6742 = vunpack.c.h.b16 %v6651
      %v6743 = vunpack.c.l.b16 %v6652
      %v6744 = vunpack.c.h.b16 %v6652
      %v6745 = vunpack.c.l.b16 %v6653
      %v6746 = vunpack.c.h.b16 %v6653
      %v6747 = vunpack.c.l.b16 %v6654
      %v6748 = vunpack.c.h.b16 %v6654
      %v6749 = vunpack.c.l.b16 %v6655
      %v6750 = vunpack.c.h.b16 %v6655
      %v6751 = vunpack.c.l.b16 %v6656
      %v6752 = vunpack.c.h.b16 %v6656
      %v6753 = vunpack.c.l.b16 %v6657
      %v6754 = vunpack.c.h.b16 %v6657
      %v6755 = vunpack.c.l.b16 %v6658
      %v6756 = vunpack.c.h.b16 %v6658
      %v6757 = vunpack.c.l.b16 %v6659
      %v6758 = vunpack.c.h.b16 %v6659
      %v6759 = vunpack.c.l.b16 %v6660
      %v6760 = vunpack.c.h.b16 %v6660
      %v6761 = vunpack.c.l.b16 %v6661
      %v6762 = vunpack.c.h.b16 %v6661
      %v6763 = vunpack.c.l.b16 %v6662
      %v6764 = vunpack.c.h.b16 %v6662
      %v6765 = vpack.c.b16 %v6703, %v6701
      %v6766 = vpack.c.b16 %v6704, %v6702
      %v6767 = vpack.c.b16 %v6707, %v6705
      %v6768 = vpack.c.b16 %v6708, %v6706
      %v6769 = vpack.c.b16 %v6711, %v6709
      %v6770 = vpack.c.b16 %v6712, %v6710
      %v6771 = vpack.c.b16 %v6715, %v6713
      %v6772 = vpack.c.b16 %v6716, %v6714
      %v6773 = vpack.c.b16 %v6719, %v6717
      %v6774 = vpack.c.b16 %v6720, %v6718
      %v6775 = vpack.c.b16 %v6723, %v6721
      %v6776 = vpack.c.b16 %v6724, %v6722
      %v6777 = vpack.c.b16 %v6727, %v6725
      %v6778 = vpack.c.b16 %v6728, %v6726
      %v6779 = vpack.c.b16 %v6731, %v6729
      %v6780 = vpack.c.b16 %v6732, %v6730
      %v6781 = vpack.c.b16 %v6735, %v6733
      %v6782 = vpack.c.b16 %v6736, %v6734
      %v6783 = vpack.c.b16 %v6739, %v6737
      %v6784 = vpack.c.b16 %v6740, %v6738
      %v6785 = vpack.c.b16 %v6743, %v6741
      %v6786 = vpack.c.b16 %v6744, %v6742
      %v6787 = vpack.c.b16 %v6747, %v6745
      %v6788 = vpack.c.b16 %v6748, %v6746
      %v6789 = vpack.c.b16 %v6751, %v6749
      %v6790 = vpack.c.b16 %v6752, %v6750
      %v6791 = vpack.c.b16 %v6755, %v6753
      %v6792 = vpack.c.b16 %v6756, %v6754
      %v6793 = vpack.c.b16 %v6759, %v6757
      %v6794 = vpack.c.b16 %v6760, %v6758
      %v6795 = vpack.c.b16 %v6763, %v6761
      %v6796 = vpack.c.b16 %v6764, %v6762
      %6829 = vmatprep.subr.bf16.mxu0 %v6766
      %6830 = vmatpush1.bf16.msra.mxu0 %v6765
      %6831 = vmatprep.subr.bf16.mxu0 %v6768
      %6832 = vmatpush1.bf16.msra.mxu0 %v6767
      %6833 = vmatprep.subr.bf16.mxu0 %v6770
      %6834 = vmatpush1.bf16.msra.mxu0 %v6769
      %6835 = vmatprep.subr.bf16.mxu0 %v6772
      %6836 = vmatpush1.bf16.msra.mxu0 %v6771
      %6837 = vmatprep.subr.bf16.mxu0 %v6774
      %6838 = vmatpush1.bf16.msra.mxu0 %v6773
      %6839 = vmatprep.subr.bf16.mxu0 %v6776
      %6840 = vmatpush1.bf16.msra.mxu0 %v6775
      %6841 = vmatprep.subr.bf16.mxu0 %v6778
      %6842 = vmatpush1.bf16.msra.mxu0 %v6777
      %6843 = vmatprep.subr.bf16.mxu0 %v6780
      %6844 = vmatpush1.bf16.msra.mxu0 %v6779
      %6845 = vmatprep.subr.bf16.mxu0 %v6782
      %6846 = vmatpush1.bf16.msra.mxu0 %v6781
      %6847 = vmatprep.subr.bf16.mxu0 %v6784
      %6848 = vmatpush1.bf16.msra.mxu0 %v6783
      %6849 = vmatprep.subr.bf16.mxu0 %v6786
      %6850 = vmatpush1.bf16.msra.mxu0 %v6785
      %6851 = vmatprep.subr.bf16.mxu0 %v6788
      %6852 = vmatpush1.bf16.msra.mxu0 %v6787
      %6853 = vmatprep.subr.bf16.mxu0 %v6790
      %6854 = vmatpush1.bf16.msra.mxu0 %v6789
      %6855 = vmatprep.subr.bf16.mxu0 %v6792
      %6856 = vmatpush1.bf16.msra.mxu0 %v6791
      %6857 = vmatprep.subr.bf16.mxu0 %v6794
      %6858 = vmatpush1.bf16.msra.mxu0 %v6793
      %6859 = vmatprep.subr.bf16.mxu0 %v6796
      %6860 = vmatpush1.bf16.msra.mxu0 %v6795
      %6861 = vmatprep.mubr.bf16.mxu0 %v6666
      %6862 = vmatmul.mubr.bf16.gmra.mrb[0].mxu0 %v6665
      %v6863 = vpop.f32.mrb[0].mxu0
      %v6864 = vadd.f32 0.0, %v6863
      %v6865 = vpop.f32.mrb[0].mxu0
      %v6866 = vadd.f32 0.0, %v6865
      %v6867 = vpop.f32.mrb[0].mxu0
      %v6868 = vadd.f32 0.0, %v6867
      %v6869 = vpop.f32.mrb[0].mxu0
      %v6870 = vadd.f32 0.0, %v6869
      %6871 = vdwg.mxu0
      %v6872 = vadd.f32 %v6622, %v6864
      %v6873 = vadd.f32 %v6624, %v6866
      %v6874 = vadd.f32 %v6626, %v6868
      %v6875 = vadd.f32 %v6628, %v6870
      %v6876 = vld [vmem:[%s43] sm:$0x3]
      %v6878 = vlaneseq
      %v6879 = vshrl.u32 %v6878, 7
      %v6880 = vsub.s32 0, %v6879
      %v6881 = vrot.slane %v6876, %v6880
      %v6882 = vlaneseq
      %v6883 = vshrl.u32 %v6882, 7
      %v6884 = vsub.s32 1, %v6883
      %v6885 = vrot.slane %v6876, %v6884
      %v6888 = vadd.f32 %v6872, %v6881
      %v6889 = vadd.f32 %v6873, %v6885
      %v6890 = vadd.f32 %v6874, %v6881
      %v6891 = vadd.f32 %v6875, %v6885
      %v6892 = vmax.f32 %v6888, 0.0
      %v6893 = vmax.f32 %v6889, 0.0
      %v6894 = vmax.f32 %v6890, 0.0
      %v6895 = vmax.f32 %v6891, 0.0
      %6896 = vst [vmem:[#allocation2] sm:$0x3] 0.0
      %vm6897 = vcmask 254976
      %6898 = vst.msk [vmem:[#allocation2 + $0x8] sm:$0x3] %vm6897, 0.0
      %v6903 = vrot.slane %v6892, 6
      %v6904 = vrot.slane %v6893, 6
      %v6905 = vrot.slane %v6894, 6
      %v6906 = vsel %vm1011, %v6903, %v6905
      %v6907 = vrot.slane %v6895, 6
      %v6908 = vsel %vm1011, %v6904, %v6907
      %6913 = vst [vmem:[#allocation2] sm:$0xfc] %v6903
      %vm6914 = vcmask 261122
      %6915 = vst.msk [vmem:[#allocation2 + $0x8] sm:$0xfc] %vm6914, %v6904
      %6916 = vst [vmem:[#allocation2 + $0x10] sm:$0xf] %v6906
      %vm6917 = vcmask 257024
      %6918 = vst.msk [vmem:[#allocation2 + $0x18] sm:$0xf] %vm6917, %v6908
      %6919 = vst [vmem:[#allocation2 + $0x10] sm:$0x30] 0.0
      %vm6920 = vcmask 259076
      %6921 = vst.msk [vmem:[#allocation2 + $0x18] sm:$0x30] %vm6920, 0.0
      %v6922 = vld [vmem:[#allocation2] sm:$0xff]
      %v6923 = vld [vmem:[#allocation2 + $0x8] sm:$0xff]
      %v6924 = vld [vmem:[#allocation2 + $0x10] sm:$0x3f]
      %v6925 = vld [vmem:[#allocation2 + $0x18] sm:$0x3f]
      %v6926 = vpack.c.bf16 %v6924, %v6922
      %v6927 = vpack.c.bf16 %v6925, %v6923
      %v6928 = vld [vmem:[%s45] sm:$0xff]
      %v6929 = vld [vmem:[%s45 + $0x8] sm:$0xff]
      %v6930 = vld [vmem:[%s45 + $0x10] sm:$0xff]
      %v6931 = vld [vmem:[%s45 + $0x18] sm:$0xff]
      %v6932 = vld [vmem:[%s45 + $0x20] sm:$0xff]
      %v6933 = vld [vmem:[%s45 + $0x28] sm:$0xff]
      %v6934 = vld [vmem:[%s45 + $0x30] sm:$0xff]
      %v6935 = vld [vmem:[%s45 + $0x38] sm:$0xff]
      %v6936 = vld [vmem:[%s45 + $0x40] sm:$0xff]
      %v6937 = vld [vmem:[%s45 + $0x48] sm:$0xff]
      %v6938 = vld [vmem:[%s45 + $0x50] sm:$0xff]
      %v6939 = vld [vmem:[%s45 + $0x58] sm:$0xff]
      %v6940 = vld [vmem:[%s45 + $0x60] sm:$0xff]
      %v6941 = vld [vmem:[%s45 + $0x68] sm:$0xff]
      %v6942 = vld [vmem:[%s45 + $0x70] sm:$0xff]
      %v6943 = vld [vmem:[%s45 + $0x78] sm:$0xff]
      %v6944 = vld [vmem:[%s45 + $0x80] sm:$0xff]
      %v6945 = vld [vmem:[%s45 + $0x88] sm:$0xff]
      %v6946 = vld [vmem:[%s45 + $0x90] sm:$0xff]
      %v6947 = vld [vmem:[%s45 + $0x98] sm:$0xff]
      %s6948 = scalar_lea.vmem %s45, 160
      %v6949 = vld [vmem:[%s6948] sm:$0xff]
      %v6950 = vld [vmem:[%s6948 + $0x8] sm:$0xff]
      %v6951 = vld [vmem:[%s6948 + $0x10] sm:$0xff]
      %v6952 = vld [vmem:[%s6948 + $0x18] sm:$0xff]
      %v6953 = vld [vmem:[%s6948 + $0x20] sm:$0xff]
      %v6954 = vld [vmem:[%s6948 + $0x28] sm:$0xff]
      %v6955 = vld [vmem:[%s6948 + $0x30] sm:$0xff]
      %v6956 = vld [vmem:[%s6948 + $0x38] sm:$0xff]
      %v6957 = vld [vmem:[%s6948 + $0x40] sm:$0xff]
      %v6958 = vld [vmem:[%s6948 + $0x48] sm:$0xff]
      %v6959 = vld [vmem:[%s6948 + $0x50] sm:$0xff]
      %v6960 = vld [vmem:[%s6948 + $0x58] sm:$0xff]
      %v6961 = vld [vmem:[%s6948 + $0x60] sm:$0xff]
      %v6962 = vld [vmem:[%s6948 + $0x68] sm:$0xff]
      %v6963 = vld [vmem:[%s6948 + $0x70] sm:$0xff]
      %v6964 = vld [vmem:[%s6948 + $0x78] sm:$0xff]
      %v6965 = vld [vmem:[%s6948 + $0x80] sm:$0xff]
      %v6966 = vld [vmem:[%s6948 + $0x88] sm:$0xff]
      %v6967 = vld [vmem:[%s6948 + $0x90] sm:$0xff]
      %v6968 = vld [vmem:[%s6948 + $0x98] sm:$0xff]
      %v6970 = vshrl.u32 %v6926, 16
      %v6972 = vshll.u32 %v6926, 16
      %v6974 = vrot.slane %v6972, 1
      %v6975 = vor.u32 %v6970, %v6974
      %v6977 = vshrl.u32 %v6927, 16
      %v6979 = vshll.u32 %v6927, 16
      %v6981 = vrot.slane %v6979, 1
      %v6982 = vor.u32 %v6977, %v6981
      %v7004 = vunpack.c.l.b16 %v6949
      %v7005 = vunpack.c.h.b16 %v6949
      %v7006 = vunpack.c.l.b16 %v6950
      %v7007 = vunpack.c.h.b16 %v6950
      %v7008 = vunpack.c.l.b16 %v6951
      %v7009 = vunpack.c.h.b16 %v6951
      %v7010 = vunpack.c.l.b16 %v6952
      %v7011 = vunpack.c.h.b16 %v6952
      %v7012 = vunpack.c.l.b16 %v6953
      %v7013 = vunpack.c.h.b16 %v6953
      %v7014 = vunpack.c.l.b16 %v6954
      %v7015 = vunpack.c.h.b16 %v6954
      %v7016 = vunpack.c.l.b16 %v6955
      %v7017 = vunpack.c.h.b16 %v6955
      %v7018 = vunpack.c.l.b16 %v6956
      %v7019 = vunpack.c.h.b16 %v6956
      %v7020 = vunpack.c.l.b16 %v6957
      %v7021 = vunpack.c.h.b16 %v6957
      %v7022 = vunpack.c.l.b16 %v6958
      %v7023 = vunpack.c.h.b16 %v6958
      %v7024 = vunpack.c.l.b16 %v6959
      %v7025 = vunpack.c.h.b16 %v6959
      %v7026 = vunpack.c.l.b16 %v6960
      %v7027 = vunpack.c.h.b16 %v6960
      %v7028 = vunpack.c.l.b16 %v6961
      %v7029 = vunpack.c.h.b16 %v6961
      %v7030 = vunpack.c.l.b16 %v6962
      %v7031 = vunpack.c.h.b16 %v6962
      %v7032 = vunpack.c.l.b16 %v6963
      %v7033 = vunpack.c.h.b16 %v6963
      %v7034 = vunpack.c.l.b16 %v6964
      %v7035 = vunpack.c.h.b16 %v6964
      %v7036 = vunpack.c.l.b16 %v6965
      %v7037 = vunpack.c.h.b16 %v6965
      %v7038 = vunpack.c.l.b16 %v6966
      %v7039 = vunpack.c.h.b16 %v6966
      %v7040 = vunpack.c.l.b16 %v6967
      %v7041 = vunpack.c.h.b16 %v6967
      %v7042 = vunpack.c.l.b16 %v6968
      %v7043 = vunpack.c.h.b16 %v6968
      %v7044 = vpack.c.b16 %v7006, %v7004
      %v7045 = vpack.c.b16 %v7007, %v7005
      %v7046 = vpack.c.b16 %v7010, %v7008
      %v7047 = vpack.c.b16 %v7011, %v7009
      %v7048 = vpack.c.b16 %v7014, %v7012
      %v7049 = vpack.c.b16 %v7015, %v7013
      %v7050 = vpack.c.b16 %v7018, %v7016
      %v7051 = vpack.c.b16 %v7019, %v7017
      %v7052 = vpack.c.b16 %v7022, %v7020
      %v7053 = vpack.c.b16 %v7023, %v7021
      %v7054 = vpack.c.b16 %v7026, %v7024
      %v7055 = vpack.c.b16 %v7027, %v7025
      %v7056 = vpack.c.b16 %v7030, %v7028
      %v7057 = vpack.c.b16 %v7031, %v7029
      %v7058 = vpack.c.b16 %v7034, %v7032
      %v7059 = vpack.c.b16 %v7035, %v7033
      %v7060 = vpack.c.b16 %v7038, %v7036
      %v7061 = vpack.c.b16 %v7039, %v7037
      %v7062 = vpack.c.b16 %v7042, %v7040
      %v7063 = vpack.c.b16 %v7043, %v7041
      %v7085 = vsel %vm4230, %v6982, 0
      %7087 = vmatprep.subr.bf16.mxu0 %v7045
      %7088 = vmatpush1.bf16.msra.mxu0 %v7044
      %7089 = vmatprep.subr.bf16.mxu0 %v7047
      %7090 = vmatpush1.bf16.msra.mxu0 %v7046
      %7091 = vmatprep.subr.bf16.mxu0 %v7049
      %7092 = vmatpush1.bf16.msra.mxu0 %v7048
      %7093 = vmatprep.subr.bf16.mxu0 %v7051
      %7094 = vmatpush1.bf16.msra.mxu0 %v7050
      %7095 = vmatprep.subr.bf16.mxu0 %v7053
      %7096 = vmatpush1.bf16.msra.mxu0 %v7052
      %7097 = vmatprep.subr.bf16.mxu0 %v7055
      %7098 = vmatpush1.bf16.msra.mxu0 %v7054
      %7099 = vmatprep.subr.bf16.mxu0 %v7057
      %7100 = vmatpush1.bf16.msra.mxu0 %v7056
      %7101 = vmatprep.subr.bf16.mxu0 %v7059
      %7102 = vmatpush1.bf16.msra.mxu0 %v7058
      %7103 = vmatprep.subr.bf16.mxu0 %v7061
      %7104 = vmatpush1.bf16.msra.mxu0 %v7060
      %7105 = vmatprep.subr.bf16.mxu0 %v7063
      %7106 = vmatpush1.bf16.msra.mxu0 %v7062
      %7107 = vmatprep.subr.bf16.mxu0 0
      %7108 = vmatpush1.bf16.msra.mxu0 0
      %7109 = vmatprep.subr.bf16.mxu0 0
      %7110 = vmatpush1.bf16.msra.mxu0 0
      %7111 = vmatprep.subr.bf16.mxu0 0
      %7112 = vmatpush1.bf16.msra.mxu0 0
      %7113 = vmatprep.subr.bf16.mxu0 0
      %7114 = vmatpush1.bf16.msra.mxu0 0
      %7115 = vmatprep.subr.bf16.mxu0 0
      %7116 = vmatpush1.bf16.msra.mxu0 0
      %7117 = vmatprep.subr.bf16.mxu0 0
      %7118 = vmatpush1.bf16.msra.mxu0 0
      %7119 = vmatprep.mubr.bf16.mxu0 %v7085
      %7120 = vmatmul.mubr.bf16.gmra.mrb[0].mxu0 %v6975
      %v7121 = vpop.f32.mrb[0].mxu0
      %v7122 = vadd.f32 0.0, %v7121
      %v7123 = vpop.f32.mrb[0].mxu0
      %v7124 = vadd.f32 0.0, %v7123
      %v7125 = vpop.f32.mrb[0].mxu0
      %v7126 = vadd.f32 0.0, %v7125
      %v7127 = vpop.f32.mrb[0].mxu0
      %v7128 = vadd.f32 0.0, %v7127
      %7129 = vdwg.mxu0
      %v7150 = vunpack.c.l.b16 %v6928
      %v7151 = vunpack.c.h.b16 %v6928
      %v7152 = vunpack.c.l.b16 %v6929
      %v7153 = vunpack.c.h.b16 %v6929
      %v7154 = vunpack.c.l.b16 %v6930
      %v7155 = vunpack.c.h.b16 %v6930
      %v7156 = vunpack.c.l.b16 %v6931
      %v7157 = vunpack.c.h.b16 %v6931
      %v7158 = vunpack.c.l.b16 %v6932
      %v7159 = vunpack.c.h.b16 %v6932
      %v7160 = vunpack.c.l.b16 %v6933
      %v7161 = vunpack.c.h.b16 %v6933
      %v7162 = vunpack.c.l.b16 %v6934
      %v7163 = vunpack.c.h.b16 %v6934
      %v7164 = vunpack.c.l.b16 %v6935
      %v7165 = vunpack.c.h.b16 %v6935
      %v7166 = vunpack.c.l.b16 %v6936
      %v7167 = vunpack.c.h.b16 %v6936
      %v7168 = vunpack.c.l.b16 %v6937
      %v7169 = vunpack.c.h.b16 %v6937
      %v7170 = vunpack.c.l.b16 %v6938
      %v7171 = vunpack.c.h.b16 %v6938
      %v7172 = vunpack.c.l.b16 %v6939
      %v7173 = vunpack.c.h.b16 %v6939
      %v7174 = vunpack.c.l.b16 %v6940
      %v7175 = vunpack.c.h.b16 %v6940
      %v7176 = vunpack.c.l.b16 %v6941
      %v7177 = vunpack.c.h.b16 %v6941
      %v7178 = vunpack.c.l.b16 %v6942
      %v7179 = vunpack.c.h.b16 %v6942
      %v7180 = vunpack.c.l.b16 %v6943
      %v7181 = vunpack.c.h.b16 %v6943
      %v7182 = vunpack.c.l.b16 %v6944
      %v7183 = vunpack.c.h.b16 %v6944
      %v7184 = vunpack.c.l.b16 %v6945
      %v7185 = vunpack.c.h.b16 %v6945
      %v7186 = vunpack.c.l.b16 %v6946
      %v7187 = vunpack.c.h.b16 %v6946
      %v7188 = vunpack.c.l.b16 %v6947
      %v7189 = vunpack.c.h.b16 %v6947
      %v7190 = vpack.c.b16 %v7152, %v7150
      %v7191 = vpack.c.b16 %v7153, %v7151
      %v7192 = vpack.c.b16 %v7156, %v7154
      %v7193 = vpack.c.b16 %v7157, %v7155
      %v7194 = vpack.c.b16 %v7160, %v7158
      %v7195 = vpack.c.b16 %v7161, %v7159
      %v7196 = vpack.c.b16 %v7164, %v7162
      %v7197 = vpack.c.b16 %v7165, %v7163
      %v7198 = vpack.c.b16 %v7168, %v7166
      %v7199 = vpack.c.b16 %v7169, %v7167
      %v7200 = vpack.c.b16 %v7172, %v7170
      %v7201 = vpack.c.b16 %v7173, %v7171
      %v7202 = vpack.c.b16 %v7176, %v7174
      %v7203 = vpack.c.b16 %v7177, %v7175
      %v7204 = vpack.c.b16 %v7180, %v7178
      %v7205 = vpack.c.b16 %v7181, %v7179
      %v7206 = vpack.c.b16 %v7184, %v7182
      %v7207 = vpack.c.b16 %v7185, %v7183
      %v7208 = vpack.c.b16 %v7188, %v7186
      %v7209 = vpack.c.b16 %v7189, %v7187
      %v7230 = vsel %vm4230, %v6927, 0
      %7232 = vmatprep.subr.bf16.mxu0 %v7191
      %7233 = vmatpush1.bf16.msra.mxu0 %v7190
      %7234 = vmatprep.subr.bf16.mxu0 %v7193
      %7235 = vmatpush1.bf16.msra.mxu0 %v7192
      %7236 = vmatprep.subr.bf16.mxu0 %v7195
      %7237 = vmatpush1.bf16.msra.mxu0 %v7194
      %7238 = vmatprep.subr.bf16.mxu0 %v7197
      %7239 = vmatpush1.bf16.msra.mxu0 %v7196
      %7240 = vmatprep.subr.bf16.mxu0 %v7199
      %7241 = vmatpush1.bf16.msra.mxu0 %v7198
      %7242 = vmatprep.subr.bf16.mxu0 %v7201
      %7243 = vmatpush1.bf16.msra.mxu0 %v7200
      %7244 = vmatprep.subr.bf16.mxu0 %v7203
      %7245 = vmatpush1.bf16.msra.mxu0 %v7202
      %7246 = vmatprep.subr.bf16.mxu0 %v7205
      %7247 = vmatpush1.bf16.msra.mxu0 %v7204
      %7248 = vmatprep.subr.bf16.mxu0 %v7207
      %7249 = vmatpush1.bf16.msra.mxu0 %v7206
      %7250 = vmatprep.subr.bf16.mxu0 %v7209
      %7251 = vmatpush1.bf16.msra.mxu0 %v7208
      %7252 = vmatprep.subr.bf16.mxu0 0
      %7253 = vmatpush1.bf16.msra.mxu0 0
      %7254 = vmatprep.subr.bf16.mxu0 0
      %7255 = vmatpush1.bf16.msra.mxu0 0
      %7256 = vmatprep.subr.bf16.mxu0 0
      %7257 = vmatpush1.bf16.msra.mxu0 0
      %7258 = vmatprep.subr.bf16.mxu0 0
      %7259 = vmatpush1.bf16.msra.mxu0 0
      %7260 = vmatprep.subr.bf16.mxu0 0
      %7261 = vmatpush1.bf16.msra.mxu0 0
      %7262 = vmatprep.subr.bf16.mxu0 0
      %7263 = vmatpush1.bf16.msra.mxu0 0
      %7264 = vmatprep.mubr.bf16.mxu0 %v7230
      %7265 = vmatmul.mubr.bf16.gmra.mrb[0].mxu0 %v6926
      %v7266 = vpop.f32.mrb[0].mxu0
      %v7267 = vadd.f32 %v7122, %v7266
      %v7268 = vpop.f32.mrb[0].mxu0
      %v7269 = vadd.f32 %v7124, %v7268
      %v7270 = vpop.f32.mrb[0].mxu0
      %v7271 = vadd.f32 %v7126, %v7270
      %v7272 = vpop.f32.mrb[0].mxu0
      %v7273 = vadd.f32 %v7128, %v7272
      %7274 = vdwg.mxu0
      %s7275 = scalar_lea.vmem %s45, 320
      %v7276 = vld [vmem:[%s7275] sm:$0xff]
      %v7277 = vld [vmem:[%s7275 + $0x8] sm:$0xff]
      %v7278 = vld [vmem:[%s7275 + $0x10] sm:$0xff]
      %v7279 = vld [vmem:[%s7275 + $0x18] sm:$0xff]
      %v7280 = vld [vmem:[%s7275 + $0x20] sm:$0xff]
      %v7281 = vld [vmem:[%s7275 + $0x28] sm:$0xff]
      %v7282 = vld [vmem:[%s7275 + $0x30] sm:$0xff]
      %v7283 = vld [vmem:[%s7275 + $0x38] sm:$0xff]
      %v7284 = vld [vmem:[%s7275 + $0x40] sm:$0xff]
      %v7285 = vld [vmem:[%s7275 + $0x48] sm:$0xff]
      %v7286 = vld [vmem:[%s7275 + $0x50] sm:$0xff]
      %v7287 = vld [vmem:[%s7275 + $0x58] sm:$0xff]
      %v7288 = vld [vmem:[%s7275 + $0x60] sm:$0xff]
      %v7289 = vld [vmem:[%s7275 + $0x68] sm:$0xff]
      %v7290 = vld [vmem:[%s7275 + $0x70] sm:$0xff]
      %v7291 = vld [vmem:[%s7275 + $0x78] sm:$0xff]
      %v7292 = vld [vmem:[%s7275 + $0x80] sm:$0xff]
      %v7293 = vld [vmem:[%s7275 + $0x88] sm:$0xff]
      %v7294 = vld [vmem:[%s7275 + $0x90] sm:$0xff]
      %v7295 = vld [vmem:[%s7275 + $0x98] sm:$0xff]
      %v7298 = vrot.slane %v6926, 1
      %v7299 = vrot.slane %v6927, 1
      %v7321 = vunpack.c.l.b16 %v7276
      %v7322 = vunpack.c.h.b16 %v7276
      %v7323 = vunpack.c.l.b16 %v7277
      %v7324 = vunpack.c.h.b16 %v7277
      %v7325 = vunpack.c.l.b16 %v7278
      %v7326 = vunpack.c.h.b16 %v7278
      %v7327 = vunpack.c.l.b16 %v7279
      %v7328 = vunpack.c.h.b16 %v7279
      %v7329 = vunpack.c.l.b16 %v7280
      %v7330 = vunpack.c.h.b16 %v7280
      %v7331 = vunpack.c.l.b16 %v7281
      %v7332 = vunpack.c.h.b16 %v7281
      %v7333 = vunpack.c.l.b16 %v7282
      %v7334 = vunpack.c.h.b16 %v7282
      %v7335 = vunpack.c.l.b16 %v7283
      %v7336 = vunpack.c.h.b16 %v7283
      %v7337 = vunpack.c.l.b16 %v7284
      %v7338 = vunpack.c.h.b16 %v7284
      %v7339 = vunpack.c.l.b16 %v7285
      %v7340 = vunpack.c.h.b16 %v7285
      %v7341 = vunpack.c.l.b16 %v7286
      %v7342 = vunpack.c.h.b16 %v7286
      %v7343 = vunpack.c.l.b16 %v7287
      %v7344 = vunpack.c.h.b16 %v7287
      %v7345 = vunpack.c.l.b16 %v7288
      %v7346 = vunpack.c.h.b16 %v7288
      %v7347 = vunpack.c.l.b16 %v7289
      %v7348 = vunpack.c.h.b16 %v7289
      %v7349 = vunpack.c.l.b16 %v7290
      %v7350 = vunpack.c.h.b16 %v7290
      %v7351 = vunpack.c.l.b16 %v7291
      %v7352 = vunpack.c.h.b16 %v7291
      %v7353 = vunpack.c.l.b16 %v7292
      %v7354 = vunpack.c.h.b16 %v7292
      %v7355 = vunpack.c.l.b16 %v7293
      %v7356 = vunpack.c.h.b16 %v7293
      %v7357 = vunpack.c.l.b16 %v7294
      %v7358 = vunpack.c.h.b16 %v7294
      %v7359 = vunpack.c.l.b16 %v7295
      %v7360 = vunpack.c.h.b16 %v7295
      %v7361 = vpack.c.b16 %v7323, %v7321
      %v7362 = vpack.c.b16 %v7324, %v7322
      %v7363 = vpack.c.b16 %v7327, %v7325
      %v7364 = vpack.c.b16 %v7328, %v7326
      %v7365 = vpack.c.b16 %v7331, %v7329
      %v7366 = vpack.c.b16 %v7332, %v7330
      %v7367 = vpack.c.b16 %v7335, %v7333
      %v7368 = vpack.c.b16 %v7336, %v7334
      %v7369 = vpack.c.b16 %v7339, %v7337
      %v7370 = vpack.c.b16 %v7340, %v7338
      %v7371 = vpack.c.b16 %v7343, %v7341
      %v7372 = vpack.c.b16 %v7344, %v7342
      %v7373 = vpack.c.b16 %v7347, %v7345
      %v7374 = vpack.c.b16 %v7348, %v7346
      %v7375 = vpack.c.b16 %v7351, %v7349
      %v7376 = vpack.c.b16 %v7352, %v7350
      %v7377 = vpack.c.b16 %v7355, %v7353
      %v7378 = vpack.c.b16 %v7356, %v7354
      %v7379 = vpack.c.b16 %v7359, %v7357
      %v7380 = vpack.c.b16 %v7360, %v7358
      %v7402 = vsel %vm4230, %v7299, 0
      %7404 = vmatprep.subr.bf16.mxu0 %v7362
      %7405 = vmatpush1.bf16.msra.mxu0 %v7361
      %7406 = vmatprep.subr.bf16.mxu0 %v7364
      %7407 = vmatpush1.bf16.msra.mxu0 %v7363
      %7408 = vmatprep.subr.bf16.mxu0 %v7366
      %7409 = vmatpush1.bf16.msra.mxu0 %v7365
      %7410 = vmatprep.subr.bf16.mxu0 %v7368
      %7411 = vmatpush1.bf16.msra.mxu0 %v7367
      %7412 = vmatprep.subr.bf16.mxu0 %v7370
      %7413 = vmatpush1.bf16.msra.mxu0 %v7369
      %7414 = vmatprep.subr.bf16.mxu0 %v7372
      %7415 = vmatpush1.bf16.msra.mxu0 %v7371
      %7416 = vmatprep.subr.bf16.mxu0 %v7374
      %7417 = vmatpush1.bf16.msra.mxu0 %v7373
      %7418 = vmatprep.subr.bf16.mxu0 %v7376
      %7419 = vmatpush1.bf16.msra.mxu0 %v7375
      %7420 = vmatprep.subr.bf16.mxu0 %v7378
      %7421 = vmatpush1.bf16.msra.mxu0 %v7377
      %7422 = vmatprep.subr.bf16.mxu0 %v7380
      %7423 = vmatpush1.bf16.msra.mxu0 %v7379
      %7424 = vmatprep.subr.bf16.mxu0 0
      %7425 = vmatpush1.bf16.msra.mxu0 0
      %7426 = vmatprep.subr.bf16.mxu0 0
      %7427 = vmatpush1.bf16.msra.mxu0 0
      %7428 = vmatprep.subr.bf16.mxu0 0
      %7429 = vmatpush1.bf16.msra.mxu0 0
      %7430 = vmatprep.subr.bf16.mxu0 0
      %7431 = vmatpush1.bf16.msra.mxu0 0
      %7432 = vmatprep.subr.bf16.mxu0 0
      %7433 = vmatpush1.bf16.msra.mxu0 0
      %7434 = vmatprep.subr.bf16.mxu0 0
      %7435 = vmatpush1.bf16.msra.mxu0 0
      %7436 = vmatprep.mubr.bf16.mxu0 %v7402
      %7437 = vmatmul.mubr.bf16.gmra.mrb[0].mxu0 %v7298
      %v7438 = vpop.f32.mrb[0].mxu0
      %v7439 = vadd.f32 0.0, %v7438
      %v7440 = vpop.f32.mrb[0].mxu0
      %v7441 = vadd.f32 0.0, %v7440
      %v7442 = vpop.f32.mrb[0].mxu0
      %v7443 = vadd.f32 0.0, %v7442
      %v7444 = vpop.f32.mrb[0].mxu0
      %v7445 = vadd.f32 0.0, %v7444
      %7446 = vdwg.mxu0
      %v7447 = vadd.f32 %v7267, %v7439
      %v7448 = vadd.f32 %v7269, %v7441
      %v7449 = vadd.f32 %v7271, %v7443
      %v7450 = vadd.f32 %v7273, %v7445
      %v7451 = vld [vmem:[%s47] sm:$0x3]
      %v7453 = vlaneseq
      %v7454 = vshrl.u32 %v7453, 7
      %v7455 = vsub.s32 0, %v7454
      %v7456 = vrot.slane %v7451, %v7455
      %v7457 = vlaneseq
      %v7458 = vshrl.u32 %v7457, 7
      %v7459 = vsub.s32 1, %v7458
      %v7460 = vrot.slane %v7451, %v7459
      %v7463 = vadd.f32 %v7447, %v7456
      %v7464 = vadd.f32 %v7448, %v7460
      %v7465 = vadd.f32 %v7449, %v7456
      %v7466 = vadd.f32 %v7450, %v7460
      %v7467 = vmax.f32 %v7463, 0.0
      %v7468 = vmax.f32 %v7464, 0.0
      %v7469 = vmax.f32 %v7465, 0.0
      %v7470 = vmax.f32 %v7466, 0.0
      %v7471 = vld [vmem:[%s49] sm:$0xf]
      %v7472 = vld [vmem:[%s49 + $0x4] sm:$0xf]
      %v7473 = vld [vmem:[%s49 + $0x8] sm:$0xf]
      %v7474 = vld [vmem:[%s49 + $0xc] sm:$0x3]
      %v7475 = vpack.c.bf16 %v7469, %v7467
      %v7476 = vpack.c.bf16 %v7470, %v7468
      %v7481 = vunpack.c.l.b16 %v7471
      %v7482 = vunpack.c.l.b16 %v7472
      %v7483 = vunpack.c.l.b16 %v7473
      %v7484 = vunpack.c.l.b16 %v7474
      %v7485 = vpack.c.b16 %v7482, %v7481
      %v7486 = vpack.c.b16 %v7484, %v7483
      %vm7487 = vcmask 97280
      %v7489 = vsel %vm7487, %v7485, 0
      %v7492 = vsel %vm7487, %v7486, 0
      %vm7494 = vcmask 1045504
      %v7496 = vsel %vm7494, %v7475, 0
      %v7499 = vsel %vm7494, %v7476, 0
      %7501 = vmatprep.subr.bf16.mxu0 %v7499
      %7502 = vmatpush1.bf16.msra.mxu0 %v7496
      %7503 = vmatprep.subr.bf16.mxu0 0
      %7504 = vmatpush1.bf16.msra.mxu0 0
      %7505 = vmatprep.subr.bf16.mxu0 0
      %7506 = vmatpush1.bf16.msra.mxu0 0
      %7507 = vmatprep.subr.bf16.mxu0 0
      %7508 = vmatpush1.bf16.msra.mxu0 0
      %7509 = vmatprep.subr.bf16.mxu0 0
      %7510 = vmatpush1.bf16.msra.mxu0 0
      %7511 = vmatprep.subr.bf16.mxu0 0
      %7512 = vmatpush1.bf16.msra.mxu0 0
      %7513 = vmatprep.subr.bf16.mxu0 0
      %7514 = vmatpush1.bf16.msra.mxu0 0
      %7515 = vmatprep.subr.bf16.mxu0 0
      %7516 = vmatpush1.bf16.msra.mxu0 0
      %7517 = vmatprep.subr.bf16.mxu0 0
      %7518 = vmatpush1.bf16.msra.mxu0 0
      %7519 = vmatprep.subr.bf16.mxu0 0
      %7520 = vmatpush1.bf16.msra.mxu0 0
      %7521 = vmatprep.subr.bf16.mxu0 0
      %7522 = vmatpush1.bf16.msra.mxu0 0
      %7523 = vmatprep.subr.bf16.mxu0 0
      %7524 = vmatpush1.bf16.msra.mxu0 0
      %7525 = vmatprep.subr.bf16.mxu0 0
      %7526 = vmatpush1.bf16.msra.mxu0 0
      %7527 = vmatprep.subr.bf16.mxu0 0
      %7528 = vmatpush1.bf16.msra.mxu0 0
      %7529 = vmatprep.subr.bf16.mxu0 0
      %7530 = vmatpush1.bf16.msra.mxu0 0
      %7531 = vmatprep.subr.bf16.mxu0 0
      %7532 = vmatpush1.bf16.msra.mxu0 0
      %7533 = vmatprep.mubr.bf16.mxu0 0
      %7534 = vmatmul.mubr.bf16.gmra.mrb[0].mxu0 %v7489
      %v7535 = vpop.f32.mrb[0].mxu0
      %v7536 = vadd.f32 0.0, %v7535
      %v7537 = vpop.f32.mrb[0].mxu0
      %v7538 = vadd.f32 0.0, %v7537
      %v7539 = vpop.f32.mrb[0].mxu0
      %v7540 = vadd.f32 0.0, %v7539
      %v7541 = vpop.f32.mrb[0].mxu0
      %v7542 = vadd.f32 0.0, %v7541
      %7543 = vmatprep.mubr.bf16.mxu0 0
      %7544 = vmatmul.mubr.bf16.gmra.mrb[0].mxu0 %v7492
      %v7545 = vpop.f32.mrb[0].mxu0
      %v7546 = vadd.f32 0.0, %v7545
      %v7547 = vpop.f32.mrb[0].mxu0
      %v7548 = vadd.f32 0.0, %v7547
      %v7549 = vpop.f32.mrb[0].mxu0
      %v7550 = vadd.f32 0.0, %v7549
      %v7551 = vpop.f32.mrb[0].mxu0
      %v7552 = vadd.f32 0.0, %v7551
      %7553 = vdwg.mxu0
      %v7554 = vpack.c.bf16 %v7540, %v7536
      %v7555 = vpack.c.bf16 %v7542, %v7538
      %v7556 = vpack.c.bf16 %v7550, %v7546
      %v7557 = vpack.c.bf16 %v7552, %v7548
      %v7558 = vld [vmem:[%s51] sm:$0xff]
      %v7559 = vld [vmem:[%s51 + $0x8] sm:$0xff]
      %v7560 = vld [vmem:[%s51 + $0x10] sm:$0xff]
      %v7561 = vld [vmem:[%s51 + $0x18] sm:$0xff]
      %v7562 = vld [vmem:[%s51 + $0x20] sm:$0xff]
      %v7563 = vld [vmem:[%s51 + $0x28] sm:$0xff]
      %v7564 = vld [vmem:[%s51 + $0x30] sm:$0xff]
      %v7565 = vld [vmem:[%s51 + $0x38] sm:$0xff]
      %v7566 = vld [vmem:[%s51 + $0x40] sm:$0xff]
      %v7567 = vld [vmem:[%s51 + $0x48] sm:$0xff]
      %v7568 = vld [vmem:[%s51 + $0x50] sm:$0xff]
      %v7569 = vld [vmem:[%s51 + $0x58] sm:$0xff]
      %v7570 = vld [vmem:[%s51 + $0x60] sm:$0xff]
      %v7571 = vld [vmem:[%s51 + $0x68] sm:$0xff]
      %v7572 = vld [vmem:[%s51 + $0x70] sm:$0xff]
      %v7573 = vld [vmem:[%s51 + $0x78] sm:$0xff]
      %v7574 = vld [vmem:[%s51 + $0x80] sm:$0xff]
      %v7575 = vld [vmem:[%s51 + $0x88] sm:$0xff]
      %v7576 = vld [vmem:[%s51 + $0x90] sm:$0xff]
      %v7577 = vld [vmem:[%s51 + $0x98] sm:$0xff]
      %v7578 = vld [vmem:[%s51 + $0xa0] sm:$0xff]
      %v7579 = vld [vmem:[%s51 + $0xa8] sm:$0xff]
      %v7580 = vld [vmem:[%s51 + $0xb0] sm:$0xff]
      %v7581 = vld [vmem:[%s51 + $0xb8] sm:$0xff]
      %s7582 = scalar_lea.vmem %s51, 192
      %v7583 = vld [vmem:[%s7582] sm:$0xff]
      %v7584 = vld [vmem:[%s7582 + $0x8] sm:$0xff]
      %v7585 = vld [vmem:[%s7582 + $0x10] sm:$0xff]
      %v7586 = vld [vmem:[%s7582 + $0x18] sm:$0xff]
      %v7587 = vld [vmem:[%s7582 + $0x20] sm:$0xff]
      %v7588 = vld [vmem:[%s7582 + $0x28] sm:$0xff]
      %v7589 = vld [vmem:[%s7582 + $0x30] sm:$0xff]
      %v7590 = vld [vmem:[%s7582 + $0x38] sm:$0xff]
      %v7591 = vld [vmem:[%s7582 + $0x40] sm:$0xff]
      %v7592 = vld [vmem:[%s7582 + $0x48] sm:$0xff]
      %v7593 = vld [vmem:[%s7582 + $0x50] sm:$0xff]
      %v7594 = vld [vmem:[%s7582 + $0x58] sm:$0xff]
      %v7595 = vld [vmem:[%s7582 + $0x60] sm:$0xff]
      %v7596 = vld [vmem:[%s7582 + $0x68] sm:$0xff]
      %v7597 = vld [vmem:[%s7582 + $0x70] sm:$0xff]
      %v7598 = vld [vmem:[%s7582 + $0x78] sm:$0xff]
      %v7599 = vld [vmem:[%s7582 + $0x80] sm:$0xff]
      %v7600 = vld [vmem:[%s7582 + $0x88] sm:$0xff]
      %v7601 = vld [vmem:[%s7582 + $0x90] sm:$0xff]
      %v7602 = vld [vmem:[%s7582 + $0x98] sm:$0xff]
      %v7603 = vld [vmem:[%s7582 + $0xa0] sm:$0xff]
      %v7604 = vld [vmem:[%s7582 + $0xa8] sm:$0xff]
      %v7605 = vld [vmem:[%s7582 + $0xb0] sm:$0xff]
      %v7606 = vld [vmem:[%s7582 + $0xb8] sm:$0xff]
      %v7608 = vshrl.u32 %v7554, 16
      %v7610 = vshll.u32 %v7554, 16
      %v7612 = vrot.slane %v7610, 1
      %v7613 = vor.u32 %v7608, %v7612
      %v7615 = vshll.u32 %v7556, 16
      %v7617 = vrot.slane %v7615, 1
      %v7618 = vsel %vm933, %v7613, %v7617
      %v7620 = vshrl.u32 %v7555, 16
      %v7622 = vshll.u32 %v7555, 16
      %v7624 = vrot.slane %v7622, 1
      %v7625 = vor.u32 %v7620, %v7624
      %v7627 = vshll.u32 %v7557, 16
      %v7629 = vrot.slane %v7627, 1
      %v7630 = vsel %vm933, %v7625, %v7629
      %v7631 = vshrl.u32 %v7556, 16
      %v7633 = vor.u32 %v7631, %v7617
      %v7634 = vshrl.u32 %v7557, 16
      %v7636 = vor.u32 %v7634, %v7629
      %v7663 = vunpack.c.l.b16 %v7583
      %v7664 = vunpack.c.h.b16 %v7583
      %v7665 = vunpack.c.l.b16 %v7584
      %v7666 = vunpack.c.h.b16 %v7584
      %v7667 = vunpack.c.l.b16 %v7585
      %v7668 = vunpack.c.h.b16 %v7585
      %v7669 = vunpack.c.l.b16 %v7586
      %v7670 = vunpack.c.h.b16 %v7586
      %v7671 = vunpack.c.l.b16 %v7587
      %v7672 = vunpack.c.h.b16 %v7587
      %v7673 = vunpack.c.l.b16 %v7588
      %v7674 = vunpack.c.h.b16 %v7588
      %v7675 = vunpack.c.l.b16 %v7589
      %v7676 = vunpack.c.h.b16 %v7589
      %v7677 = vunpack.c.l.b16 %v7590
      %v7678 = vunpack.c.h.b16 %v7590
      %v7679 = vunpack.c.l.b16 %v7591
      %v7680 = vunpack.c.h.b16 %v7591
      %v7681 = vunpack.c.l.b16 %v7592
      %v7682 = vunpack.c.h.b16 %v7592
      %v7683 = vunpack.c.l.b16 %v7593
      %v7684 = vunpack.c.h.b16 %v7593
      %v7685 = vunpack.c.l.b16 %v7594
      %v7686 = vunpack.c.h.b16 %v7594
      %v7687 = vunpack.c.l.b16 %v7595
      %v7688 = vunpack.c.h.b16 %v7595
      %v7689 = vunpack.c.l.b16 %v7596
      %v7690 = vunpack.c.h.b16 %v7596
      %v7691 = vunpack.c.l.b16 %v7597
      %v7692 = vunpack.c.h.b16 %v7597
      %v7693 = vunpack.c.l.b16 %v7598
      %v7694 = vunpack.c.h.b16 %v7598
      %v7695 = vunpack.c.l.b16 %v7599
      %v7696 = vunpack.c.h.b16 %v7599
      %v7697 = vunpack.c.l.b16 %v7600
      %v7698 = vunpack.c.h.b16 %v7600
      %v7699 = vunpack.c.l.b16 %v7601
      %v7700 = vunpack.c.h.b16 %v7601
      %v7701 = vunpack.c.l.b16 %v7602
      %v7702 = vunpack.c.h.b16 %v7602
      %v7703 = vunpack.c.l.b16 %v7603
      %v7704 = vunpack.c.h.b16 %v7603
      %v7705 = vunpack.c.l.b16 %v7604
      %v7706 = vunpack.c.h.b16 %v7604
      %v7707 = vunpack.c.l.b16 %v7605
      %v7708 = vunpack.c.h.b16 %v7605
      %v7709 = vunpack.c.l.b16 %v7606
      %v7710 = vunpack.c.h.b16 %v7606
      %v7711 = vpack.c.b16 %v7665, %v7663
      %v7712 = vpack.c.b16 %v7666, %v7664
      %v7713 = vpack.c.b16 %v7669, %v7667
      %v7714 = vpack.c.b16 %v7670, %v7668
      %v7715 = vpack.c.b16 %v7673, %v7671
      %v7716 = vpack.c.b16 %v7674, %v7672
      %v7717 = vpack.c.b16 %v7677, %v7675
      %v7718 = vpack.c.b16 %v7678, %v7676
      %v7719 = vpack.c.b16 %v7681, %v7679
      %v7720 = vpack.c.b16 %v7682, %v7680
      %v7721 = vpack.c.b16 %v7685, %v7683
      %v7722 = vpack.c.b16 %v7686, %v7684
      %v7723 = vpack.c.b16 %v7689, %v7687
      %v7724 = vpack.c.b16 %v7690, %v7688
      %v7725 = vpack.c.b16 %v7693, %v7691
      %v7726 = vpack.c.b16 %v7694, %v7692
      %v7727 = vpack.c.b16 %v7697, %v7695
      %v7728 = vpack.c.b16 %v7698, %v7696
      %v7729 = vpack.c.b16 %v7701, %v7699
      %v7730 = vpack.c.b16 %v7702, %v7700
      %v7731 = vpack.c.b16 %v7705, %v7703
      %v7732 = vpack.c.b16 %v7706, %v7704
      %v7733 = vpack.c.b16 %v7709, %v7707
      %v7734 = vpack.c.b16 %v7710, %v7708
      %v7760 = vsel %vm3640, %v7630, 0
      %v7763 = vsel %vm3640, %v7636, 0
      %7765 = vmatprep.subr.bf16.mxu0 %v7712
      %7766 = vmatpush1.bf16.msra.mxu0 %v7711
      %7767 = vmatprep.subr.bf16.mxu0 %v7714
      %7768 = vmatpush1.bf16.msra.mxu0 %v7713
      %7769 = vmatprep.subr.bf16.mxu0 %v7716
      %7770 = vmatpush1.bf16.msra.mxu0 %v7715
      %7771 = vmatprep.subr.bf16.mxu0 %v7718
      %7772 = vmatpush1.bf16.msra.mxu0 %v7717
      %7773 = vmatprep.subr.bf16.mxu0 %v7720
      %7774 = vmatpush1.bf16.msra.mxu0 %v7719
      %7775 = vmatprep.subr.bf16.mxu0 %v7722
      %7776 = vmatpush1.bf16.msra.mxu0 %v7721
      %7777 = vmatprep.subr.bf16.mxu0 %v7724
      %7778 = vmatpush1.bf16.msra.mxu0 %v7723
      %7779 = vmatprep.subr.bf16.mxu0 %v7726
      %7780 = vmatpush1.bf16.msra.mxu0 %v7725
      %7781 = vmatprep.subr.bf16.mxu0 %v7728
      %7782 = vmatpush1.bf16.msra.mxu0 %v7727
      %7783 = vmatprep.subr.bf16.mxu0 %v7730
      %7784 = vmatpush1.bf16.msra.mxu0 %v7729
      %7785 = vmatprep.subr.bf16.mxu0 %v7732
      %7786 = vmatpush1.bf16.msra.mxu0 %v7731
      %7787 = vmatprep.subr.bf16.mxu0 %v7734
      %7788 = vmatpush1.bf16.msra.mxu0 %v7733
      %7789 = vmatprep.subr.bf16.mxu0 0
      %7790 = vmatpush1.bf16.msra.mxu0 0
      %7791 = vmatprep.subr.bf16.mxu0 0
      %7792 = vmatpush1.bf16.msra.mxu0 0
      %7793 = vmatprep.subr.bf16.mxu0 0
      %7794 = vmatpush1.bf16.msra.mxu0 0
      %7795 = vmatprep.subr.bf16.mxu0 0
      %7796 = vmatpush1.bf16.msra.mxu0 0
      %7797 = vmatprep.mubr.bf16.mxu0 %v7760
      %7798 = vmatmul.mubr.bf16.gmra.mrb[0].mxu0 %v7618
      %v7799 = vpop.f32.mrb[0].mxu0
      %v7800 = vadd.f32 0.0, %v7799
      %v7801 = vpop.f32.mrb[0].mxu0
      %v7802 = vadd.f32 0.0, %v7801
      %v7803 = vpop.f32.mrb[0].mxu0
      %v7804 = vadd.f32 0.0, %v7803
      %v7805 = vpop.f32.mrb[0].mxu0
      %v7806 = vadd.f32 0.0, %v7805
      %7807 = vmatprep.mubr.bf16.mxu0 %v7763
      %7808 = vmatmul.mubr.bf16.gmra.mrb[0].mxu0 %v7633
      %v7809 = vpop.f32.mrb[0].mxu0
      %v7810 = vadd.f32 0.0, %v7809
      %v7811 = vpop.f32.mrb[0].mxu0
      %v7812 = vadd.f32 0.0, %v7811
      %v7813 = vpop.f32.mrb[0].mxu0
      %v7814 = vadd.f32 0.0, %v7813
      %v7815 = vpop.f32.mrb[0].mxu0
      %v7816 = vadd.f32 0.0, %v7815
      %7817 = vdwg.mxu0
      %v7842 = vunpack.c.l.b16 %v7558
      %v7843 = vunpack.c.h.b16 %v7558
      %v7844 = vunpack.c.l.b16 %v7559
      %v7845 = vunpack.c.h.b16 %v7559
      %v7846 = vunpack.c.l.b16 %v7560
      %v7847 = vunpack.c.h.b16 %v7560
      %v7848 = vunpack.c.l.b16 %v7561
      %v7849 = vunpack.c.h.b16 %v7561
      %v7850 = vunpack.c.l.b16 %v7562
      %v7851 = vunpack.c.h.b16 %v7562
      %v7852 = vunpack.c.l.b16 %v7563
      %v7853 = vunpack.c.h.b16 %v7563
      %v7854 = vunpack.c.l.b16 %v7564
      %v7855 = vunpack.c.h.b16 %v7564
      %v7856 = vunpack.c.l.b16 %v7565
      %v7857 = vunpack.c.h.b16 %v7565
      %v7858 = vunpack.c.l.b16 %v7566
      %v7859 = vunpack.c.h.b16 %v7566
      %v7860 = vunpack.c.l.b16 %v7567
      %v7861 = vunpack.c.h.b16 %v7567
      %v7862 = vunpack.c.l.b16 %v7568
      %v7863 = vunpack.c.h.b16 %v7568
      %v7864 = vunpack.c.l.b16 %v7569
      %v7865 = vunpack.c.h.b16 %v7569
      %v7866 = vunpack.c.l.b16 %v7570
      %v7867 = vunpack.c.h.b16 %v7570
      %v7868 = vunpack.c.l.b16 %v7571
      %v7869 = vunpack.c.h.b16 %v7571
      %v7870 = vunpack.c.l.b16 %v7572
      %v7871 = vunpack.c.h.b16 %v7572
      %v7872 = vunpack.c.l.b16 %v7573
      %v7873 = vunpack.c.h.b16 %v7573
      %v7874 = vunpack.c.l.b16 %v7574
      %v7875 = vunpack.c.h.b16 %v7574
      %v7876 = vunpack.c.l.b16 %v7575
      %v7877 = vunpack.c.h.b16 %v7575
      %v7878 = vunpack.c.l.b16 %v7576
      %v7879 = vunpack.c.h.b16 %v7576
      %v7880 = vunpack.c.l.b16 %v7577
      %v7881 = vunpack.c.h.b16 %v7577
      %v7882 = vunpack.c.l.b16 %v7578
      %v7883 = vunpack.c.h.b16 %v7578
      %v7884 = vunpack.c.l.b16 %v7579
      %v7885 = vunpack.c.h.b16 %v7579
      %v7886 = vunpack.c.l.b16 %v7580
      %v7887 = vunpack.c.h.b16 %v7580
      %v7888 = vunpack.c.l.b16 %v7581
      %v7889 = vunpack.c.h.b16 %v7581
      %v7890 = vpack.c.b16 %v7844, %v7842
      %v7891 = vpack.c.b16 %v7845, %v7843
      %v7892 = vpack.c.b16 %v7848, %v7846
      %v7893 = vpack.c.b16 %v7849, %v7847
      %v7894 = vpack.c.b16 %v7852, %v7850
      %v7895 = vpack.c.b16 %v7853, %v7851
      %v7896 = vpack.c.b16 %v7856, %v7854
      %v7897 = vpack.c.b16 %v7857, %v7855
      %v7898 = vpack.c.b16 %v7860, %v7858
      %v7899 = vpack.c.b16 %v7861, %v7859
      %v7900 = vpack.c.b16 %v7864, %v7862
      %v7901 = vpack.c.b16 %v7865, %v7863
      %v7902 = vpack.c.b16 %v7868, %v7866
      %v7903 = vpack.c.b16 %v7869, %v7867
      %v7904 = vpack.c.b16 %v7872, %v7870
      %v7905 = vpack.c.b16 %v7873, %v7871
      %v7906 = vpack.c.b16 %v7876, %v7874
      %v7907 = vpack.c.b16 %v7877, %v7875
      %v7908 = vpack.c.b16 %v7880, %v7878
      %v7909 = vpack.c.b16 %v7881, %v7879
      %v7910 = vpack.c.b16 %v7884, %v7882
      %v7911 = vpack.c.b16 %v7885, %v7883
      %v7912 = vpack.c.b16 %v7888, %v7886
      %v7913 = vpack.c.b16 %v7889, %v7887
      %v7938 = vsel %vm3640, %v7555, 0
      %v7940 = vsel %vm3640, %v7557, 0
      %7942 = vmatprep.subr.bf16.mxu0 %v7891
      %7943 = vmatpush1.bf16.msra.mxu0 %v7890
      %7944 = vmatprep.subr.bf16.mxu0 %v7893
      %7945 = vmatpush1.bf16.msra.mxu0 %v7892
      %7946 = vmatprep.subr.bf16.mxu0 %v7895
      %7947 = vmatpush1.bf16.msra.mxu0 %v7894
      %7948 = vmatprep.subr.bf16.mxu0 %v7897
      %7949 = vmatpush1.bf16.msra.mxu0 %v7896
      %7950 = vmatprep.subr.bf16.mxu0 %v7899
      %7951 = vmatpush1.bf16.msra.mxu0 %v7898
      %7952 = vmatprep.subr.bf16.mxu0 %v7901
      %7953 = vmatpush1.bf16.msra.mxu0 %v7900
      %7954 = vmatprep.subr.bf16.mxu0 %v7903
      %7955 = vmatpush1.bf16.msra.mxu0 %v7902
      %7956 = vmatprep.subr.bf16.mxu0 %v7905
      %7957 = vmatpush1.bf16.msra.mxu0 %v7904
      %7958 = vmatprep.subr.bf16.mxu0 %v7907
      %7959 = vmatpush1.bf16.msra.mxu0 %v7906
      %7960 = vmatprep.subr.bf16.mxu0 %v7909
      %7961 = vmatpush1.bf16.msra.mxu0 %v7908
      %7962 = vmatprep.subr.bf16.mxu0 %v7911
      %7963 = vmatpush1.bf16.msra.mxu0 %v7910
      %7964 = vmatprep.subr.bf16.mxu0 %v7913
      %7965 = vmatpush1.bf16.msra.mxu0 %v7912
      %7966 = vmatprep.subr.bf16.mxu0 0
      %7967 = vmatpush1.bf16.msra.mxu0 0
      %7968 = vmatprep.subr.bf16.mxu0 0
      %7969 = vmatpush1.bf16.msra.mxu0 0
      %7970 = vmatprep.subr.bf16.mxu0 0
      %7971 = vmatpush1.bf16.msra.mxu0 0
      %7972 = vmatprep.subr.bf16.mxu0 0
      %7973 = vmatpush1.bf16.msra.mxu0 0
      %7974 = vmatprep.mubr.bf16.mxu0 %v7938
      %7975 = vmatmul.mubr.bf16.gmra.mrb[0].mxu0 %v7554
      %v7976 = vpop.f32.mrb[0].mxu0
      %v7977 = vadd.f32 %v7800, %v7976
      %v7978 = vpop.f32.mrb[0].mxu0
      %v7979 = vadd.f32 %v7802, %v7978
      %v7980 = vpop.f32.mrb[0].mxu0
      %v7981 = vadd.f32 %v7804, %v7980
      %v7982 = vpop.f32.mrb[0].mxu0
      %v7983 = vadd.f32 %v7806, %v7982
      %7984 = vmatprep.mubr.bf16.mxu0 %v7940
      %7985 = vmatmul.mubr.bf16.gmra.mrb[0].mxu0 %v7556
      %v7986 = vpop.f32.mrb[0].mxu0
      %v7987 = vadd.f32 %v7810, %v7986
      %v7988 = vpop.f32.mrb[0].mxu0
      %v7989 = vadd.f32 %v7812, %v7988
      %v7990 = vpop.f32.mrb[0].mxu0
      %v7991 = vadd.f32 %v7814, %v7990
      %v7992 = vpop.f32.mrb[0].mxu0
      %v7993 = vadd.f32 %v7816, %v7992
      %7994 = vdwg.mxu0
      %s7995 = scalar_lea.vmem %s51, 384
      %v7996 = vld [vmem:[%s7995] sm:$0xff]
      %v7997 = vld [vmem:[%s7995 + $0x8] sm:$0xff]
      %v7998 = vld [vmem:[%s7995 + $0x10] sm:$0xff]
      %v7999 = vld [vmem:[%s7995 + $0x18] sm:$0xff]
      %v8000 = vld [vmem:[%s7995 + $0x20] sm:$0xff]
      %v8001 = vld [vmem:[%s7995 + $0x28] sm:$0xff]
      %v8002 = vld [vmem:[%s7995 + $0x30] sm:$0xff]
      %v8003 = vld [vmem:[%s7995 + $0x38] sm:$0xff]
      %v8004 = vld [vmem:[%s7995 + $0x40] sm:$0xff]
      %v8005 = vld [vmem:[%s7995 + $0x48] sm:$0xff]
      %v8006 = vld [vmem:[%s7995 + $0x50] sm:$0xff]
      %v8007 = vld [vmem:[%s7995 + $0x58] sm:$0xff]
      %v8008 = vld [vmem:[%s7995 + $0x60] sm:$0xff]
      %v8009 = vld [vmem:[%s7995 + $0x68] sm:$0xff]
      %v8010 = vld [vmem:[%s7995 + $0x70] sm:$0xff]
      %v8011 = vld [vmem:[%s7995 + $0x78] sm:$0xff]
      %v8012 = vld [vmem:[%s7995 + $0x80] sm:$0xff]
      %v8013 = vld [vmem:[%s7995 + $0x88] sm:$0xff]
      %v8014 = vld [vmem:[%s7995 + $0x90] sm:$0xff]
      %v8015 = vld [vmem:[%s7995 + $0x98] sm:$0xff]
      %v8016 = vld [vmem:[%s7995 + $0xa0] sm:$0xff]
      %v8017 = vld [vmem:[%s7995 + $0xa8] sm:$0xff]
      %v8018 = vld [vmem:[%s7995 + $0xb0] sm:$0xff]
      %v8019 = vld [vmem:[%s7995 + $0xb8] sm:$0xff]
      %v8024 = vrot.slane %v7554, 1
      %v8025 = vrot.slane %v7556, 1
      %v8026 = vsel %vm1203, %v8024, %v8025
      %v8027 = vrot.slane %v7555, 1
      %v8028 = vrot.slane %v7557, 1
      %v8029 = vsel %vm1203, %v8027, %v8028
      %v8056 = vunpack.c.l.b16 %v7996
      %v8057 = vunpack.c.h.b16 %v7996
      %v8058 = vunpack.c.l.b16 %v7997
      %v8059 = vunpack.c.h.b16 %v7997
      %v8060 = vunpack.c.l.b16 %v7998
      %v8061 = vunpack.c.h.b16 %v7998
      %v8062 = vunpack.c.l.b16 %v7999
      %v8063 = vunpack.c.h.b16 %v7999
      %v8064 = vunpack.c.l.b16 %v8000
      %v8065 = vunpack.c.h.b16 %v8000
      %v8066 = vunpack.c.l.b16 %v8001
      %v8067 = vunpack.c.h.b16 %v8001
      %v8068 = vunpack.c.l.b16 %v8002
      %v8069 = vunpack.c.h.b16 %v8002
      %v8070 = vunpack.c.l.b16 %v8003
      %v8071 = vunpack.c.h.b16 %v8003
      %v8072 = vunpack.c.l.b16 %v8004
      %v8073 = vunpack.c.h.b16 %v8004
      %v8074 = vunpack.c.l.b16 %v8005
      %v8075 = vunpack.c.h.b16 %v8005
      %v8076 = vunpack.c.l.b16 %v8006
      %v8077 = vunpack.c.h.b16 %v8006
      %v8078 = vunpack.c.l.b16 %v8007
      %v8079 = vunpack.c.h.b16 %v8007
      %v8080 = vunpack.c.l.b16 %v8008
      %v8081 = vunpack.c.h.b16 %v8008
      %v8082 = vunpack.c.l.b16 %v8009
      %v8083 = vunpack.c.h.b16 %v8009
      %v8084 = vunpack.c.l.b16 %v8010
      %v8085 = vunpack.c.h.b16 %v8010
      %v8086 = vunpack.c.l.b16 %v8011
      %v8087 = vunpack.c.h.b16 %v8011
      %v8088 = vunpack.c.l.b16 %v8012
      %v8089 = vunpack.c.h.b16 %v8012
      %v8090 = vunpack.c.l.b16 %v8013
      %v8091 = vunpack.c.h.b16 %v8013
      %v8092 = vunpack.c.l.b16 %v8014
      %v8093 = vunpack.c.h.b16 %v8014
      %v8094 = vunpack.c.l.b16 %v8015
      %v8095 = vunpack.c.h.b16 %v8015
      %v8096 = vunpack.c.l.b16 %v8016
      %v8097 = vunpack.c.h.b16 %v8016
      %v8098 = vunpack.c.l.b16 %v8017
      %v8099 = vunpack.c.h.b16 %v8017
      %v8100 = vunpack.c.l.b16 %v8018
      %v8101 = vunpack.c.h.b16 %v8018
      %v8102 = vunpack.c.l.b16 %v8019
      %v8103 = vunpack.c.h.b16 %v8019
      %v8104 = vpack.c.b16 %v8058, %v8056
      %v8105 = vpack.c.b16 %v8059, %v8057
      %v8106 = vpack.c.b16 %v8062, %v8060
      %v8107 = vpack.c.b16 %v8063, %v8061
      %v8108 = vpack.c.b16 %v8066, %v8064
      %v8109 = vpack.c.b16 %v8067, %v8065
      %v8110 = vpack.c.b16 %v8070, %v8068
      %v8111 = vpack.c.b16 %v8071, %v8069
      %v8112 = vpack.c.b16 %v8074, %v8072
      %v8113 = vpack.c.b16 %v8075, %v8073
      %v8114 = vpack.c.b16 %v8078, %v8076
      %v8115 = vpack.c.b16 %v8079, %v8077
      %v8116 = vpack.c.b16 %v8082, %v8080
      %v8117 = vpack.c.b16 %v8083, %v8081
      %v8118 = vpack.c.b16 %v8086, %v8084
      %v8119 = vpack.c.b16 %v8087, %v8085
      %v8120 = vpack.c.b16 %v8090, %v8088
      %v8121 = vpack.c.b16 %v8091, %v8089
      %v8122 = vpack.c.b16 %v8094, %v8092
      %v8123 = vpack.c.b16 %v8095, %v8093
      %v8124 = vpack.c.b16 %v8098, %v8096
      %v8125 = vpack.c.b16 %v8099, %v8097
      %v8126 = vpack.c.b16 %v8102, %v8100
      %v8127 = vpack.c.b16 %v8103, %v8101
      %v8153 = vsel %vm3640, %v8029, 0
      %v8156 = vsel %vm3640, %v8028, 0
      %8158 = vmatprep.subr.bf16.mxu0 %v8105
      %8159 = vmatpush1.bf16.msra.mxu0 %v8104
      %8160 = vmatprep.subr.bf16.mxu0 %v8107
      %8161 = vmatpush1.bf16.msra.mxu0 %v8106
      %8162 = vmatprep.subr.bf16.mxu0 %v8109
      %8163 = vmatpush1.bf16.msra.mxu0 %v8108
      %8164 = vmatprep.subr.bf16.mxu0 %v8111
      %8165 = vmatpush1.bf16.msra.mxu0 %v8110
      %8166 = vmatprep.subr.bf16.mxu0 %v8113
      %8167 = vmatpush1.bf16.msra.mxu0 %v8112
      %8168 = vmatprep.subr.bf16.mxu0 %v8115
      %8169 = vmatpush1.bf16.msra.mxu0 %v8114
      %8170 = vmatprep.subr.bf16.mxu0 %v8117
      %8171 = vmatpush1.bf16.msra.mxu0 %v8116
      %8172 = vmatprep.subr.bf16.mxu0 %v8119
      %8173 = vmatpush1.bf16.msra.mxu0 %v8118
      %8174 = vmatprep.subr.bf16.mxu0 %v8121
      %8175 = vmatpush1.bf16.msra.mxu0 %v8120
      %8176 = vmatprep.subr.bf16.mxu0 %v8123
      %8177 = vmatpush1.bf16.msra.mxu0 %v8122
      %8178 = vmatprep.subr.bf16.mxu0 %v8125
      %8179 = vmatpush1.bf16.msra.mxu0 %v8124
      %8180 = vmatprep.subr.bf16.mxu0 %v8127
      %8181 = vmatpush1.bf16.msra.mxu0 %v8126
      %8182 = vmatprep.subr.bf16.mxu0 0
      %8183 = vmatpush1.bf16.msra.mxu0 0
      %8184 = vmatprep.subr.bf16.mxu0 0
      %8185 = vmatpush1.bf16.msra.mxu0 0
      %8186 = vmatprep.subr.bf16.mxu0 0
      %8187 = vmatpush1.bf16.msra.mxu0 0
      %8188 = vmatprep.subr.bf16.mxu0 0
      %8189 = vmatpush1.bf16.msra.mxu0 0
      %8190 = vmatprep.mubr.bf16.mxu0 %v8153
      %8191 = vmatmul.mubr.bf16.gmra.mrb[0].mxu0 %v8026
      %v8192 = vpop.f32.mrb[0].mxu0
      %v8193 = vadd.f32 0.0, %v8192
      %v8194 = vpop.f32.mrb[0].mxu0
      %v8195 = vadd.f32 0.0, %v8194
      %v8196 = vpop.f32.mrb[0].mxu0
      %v8197 = vadd.f32 0.0, %v8196
      %v8198 = vpop.f32.mrb[0].mxu0
      %v8199 = vadd.f32 0.0, %v8198
      %8200 = vmatprep.mubr.bf16.mxu0 %v8156
      %8201 = vmatmul.mubr.bf16.gmra.mrb[0].mxu0 %v8025
      %v8202 = vpop.f32.mrb[0].mxu0
      %v8203 = vadd.f32 0.0, %v8202
      %v8204 = vpop.f32.mrb[0].mxu0
      %v8205 = vadd.f32 0.0, %v8204
      %v8206 = vpop.f32.mrb[0].mxu0
      %v8207 = vadd.f32 0.0, %v8206
      %v8208 = vpop.f32.mrb[0].mxu0
      %v8209 = vadd.f32 0.0, %v8208
      %8210 = vdwg.mxu0
      %v8211 = vadd.f32 %v7977, %v8193
      %v8212 = vadd.f32 %v7979, %v8195
      %v8213 = vadd.f32 %v7981, %v8197
      %v8214 = vadd.f32 %v7983, %v8199
      %v8215 = vadd.f32 %v7987, %v8203
      %v8216 = vadd.f32 %v7989, %v8205
      %v8217 = vadd.f32 %v7991, %v8207
      %v8218 = vadd.f32 %v7993, %v8209
      %v8219 = vld [vmem:[%s53] sm:$0x3]
      %v8221 = vlaneseq
      %v8222 = vshrl.u32 %v8221, 7
      %v8223 = vsub.s32 0, %v8222
      %v8224 = vrot.slane %v8219, %v8223
      %v8225 = vlaneseq
      %v8226 = vshrl.u32 %v8225, 7
      %v8227 = vsub.s32 1, %v8226
      %v8228 = vrot.slane %v8219, %v8227
      %v8231 = vadd.f32 %v8211, %v8224
      %v8232 = vadd.f32 %v8212, %v8228
      %v8233 = vadd.f32 %v8213, %v8224
      %v8234 = vadd.f32 %v8214, %v8228
      %v8235 = vadd.f32 %v8215, %v8224
      %v8236 = vadd.f32 %v8216, %v8228
      %v8237 = vadd.f32 %v8217, %v8224
      %v8238 = vadd.f32 %v8218, %v8228
      %v8239 = vmax.f32 %v8231, 0.0
      %v8240 = vmax.f32 %v8232, 0.0
      %v8241 = vmax.f32 %v8233, 0.0
      %v8242 = vmax.f32 %v8234, 0.0
      %v8243 = vmax.f32 %v8235, 0.0
      %v8244 = vmax.f32 %v8236, 0.0
      %v8245 = vmax.f32 %v8237, 0.0
      %v8246 = vmax.f32 %v8238, 0.0
      %8247 = vst [vmem:[#allocation2] sm:$0x3] 0.0
      %vm8248 = vcmask 648192
      %8249 = vst.msk [vmem:[#allocation2 + $0x8] sm:$0x3] %vm8248, 0.0
      %v8258 = vrot.slane %v8239, 6
      %v8259 = vrot.slane %v8240, 6
      %v8260 = vrot.slane %v8241, 6
      %v8261 = vsel %vm1011, %v8258, %v8260
      %v8262 = vrot.slane %v8242, 6
      %v8263 = vsel %vm1011, %v8259, %v8262
      %v8264 = vrot.slane %v8243, 6
      %v8265 = vsel %vm1011, %v8260, %v8264
      %v8266 = vrot.slane %v8244, 6
      %v8267 = vsel %vm1011, %v8262, %v8266
      %v8268 = vrot.slane %v8245, 6
      %v8269 = vsel %vm1011, %v8264, %v8268
      %v8270 = vrot.slane %v8246, 6
      %v8271 = vsel %vm1011, %v8266, %v8270
      %8280 = vst [vmem:[#allocation2] sm:$0xfc] %v8258
      %vm8281 = vcmask 654338
      %8282 = vst.msk [vmem:[#allocation2 + $0x8] sm:$0xfc] %vm8281, %v8259
      %8283 = vst [vmem:[#allocation2 + $0x10] sm:$0xff] %v8261
      %8284 = vst.msk [vmem:[#allocation2 + $0x18] sm:$0xff] %vm1712, %v8263
      %8285 = vst [vmem:[#allocation2 + $0x20] sm:$0xff] %v8265
      %8286 = vst.msk [vmem:[#allocation2 + $0x28] sm:$0xff] %vm1712, %v8267
      %8287 = vst [vmem:[#allocation2 + $0x30] sm:$0xf] %v8269
      %vm8288 = vcmask 650240
      %8289 = vst.msk [vmem:[#allocation2 + $0x38] sm:$0xf] %vm8288, %v8271
      %8290 = vst [vmem:[#allocation2 + $0x30] sm:$0x30] 0.0
      %vm8291 = vcmask 652292
      %8292 = vst.msk [vmem:[#allocation2 + $0x38] sm:$0x30] %vm8291, 0.0
      %v8293 = vld [vmem:[#allocation2] sm:$0xff]
      %v8294 = vld [vmem:[#allocation2 + $0x8] sm:$0xff]
      %v8295 = vld [vmem:[#allocation2 + $0x10] sm:$0xff]
      %v8296 = vld [vmem:[#allocation2 + $0x18] sm:$0xff]
      %v8297 = vld [vmem:[#allocation2 + $0x20] sm:$0xff]
      %v8298 = vld [vmem:[#allocation2 + $0x28] sm:$0xff]
      %v8299 = vld [vmem:[#allocation2 + $0x30] sm:$0x3f]
      %v8300 = vld [vmem:[#allocation2 + $0x38] sm:$0x3f]
      %v8301 = vpack.c.bf16 %v8295, %v8293
      %v8302 = vpack.c.bf16 %v8296, %v8294
      %v8303 = vpack.c.bf16 %v8299, %v8297
      %v8304 = vpack.c.bf16 %v8300, %v8298
      %v8305 = vld [vmem:[%s55] sm:$0xf]
      %v8306 = vld [vmem:[%s55 + $0x4] sm:$0xf]
      %v8307 = vld [vmem:[%s55 + $0x8] sm:$0xf]
      %v8308 = vld [vmem:[%s55 + $0xc] sm:$0xf]
      %v8309 = vld [vmem:[%s55 + $0x10] sm:$0xf]
      %v8310 = vld [vmem:[%s55 + $0x14] sm:$0xf]
      %v8311 = vld [vmem:[%s55 + $0x18] sm:$0xf]
      %v8312 = vld [vmem:[%s55 + $0x1c] sm:$0xf]
      %v8313 = vld [vmem:[%s55 + $0x20] sm:$0xf]
      %v8314 = vld [vmem:[%s55 + $0x24] sm:$0xf]
      %v8315 = vld [vmem:[%s55 + $0x28] sm:$0xf]
      %v8316 = vld [vmem:[%s55 + $0x2c] sm:$0xf]
      %v8317 = vld [vmem:[%s55 + $0x30] sm:$0xf]
      %v8318 = vld [vmem:[%s55 + $0x34] sm:$0xf]
      %v8319 = vld [vmem:[%s55 + $0x38] sm:$0xf]
      %v8320 = vld [vmem:[%s55 + $0x3c] sm:$0xf]
      %v8321 = vld [vmem:[%s55 + $0x40] sm:$0xf]
      %v8322 = vld [vmem:[%s55 + $0x44] sm:$0xf]
      %v8323 = vld [vmem:[%s55 + $0x48] sm:$0xf]
      %v8324 = vld [vmem:[%s55 + $0x4c] sm:$0xf]
      %v8325 = vld [vmem:[%s55 + $0x50] sm:$0xf]
      %v8326 = vld [vmem:[%s55 + $0x54] sm:$0xf]
      %v8327 = vld [vmem:[%s55 + $0x58] sm:$0xf]
      %v8328 = vld [vmem:[%s55 + $0x5c] sm:$0xf]
      %v8329 = vld [vmem:[%s55 + $0x60] sm:$0xf]
      %v8330 = vld [vmem:[%s55 + $0x64] sm:$0xf]
      %s8331 = scalar_lea.vmem %s55, 104
      %v8332 = vld [vmem:[%s8331] sm:$0xf]
      %v8333 = vld [vmem:[%s8331 + $0x4] sm:$0xf]
      %v8334 = vld [vmem:[%s8331 + $0x8] sm:$0xf]
      %v8335 = vld [vmem:[%s8331 + $0xc] sm:$0xf]
      %v8336 = vld [vmem:[%s8331 + $0x10] sm:$0xf]
      %v8337 = vld [vmem:[%s8331 + $0x14] sm:$0xf]
      %v8338 = vld [vmem:[%s8331 + $0x18] sm:$0xf]
      %v8339 = vld [vmem:[%s8331 + $0x1c] sm:$0xf]
      %v8340 = vld [vmem:[%s8331 + $0x20] sm:$0xf]
      %v8341 = vld [vmem:[%s8331 + $0x24] sm:$0xf]
      %v8342 = vld [vmem:[%s8331 + $0x28] sm:$0xf]
      %v8343 = vld [vmem:[%s8331 + $0x2c] sm:$0xf]
      %v8344 = vld [vmem:[%s8331 + $0x30] sm:$0xf]
      %v8345 = vld [vmem:[%s8331 + $0x34] sm:$0xf]
      %v8346 = vld [vmem:[%s8331 + $0x38] sm:$0xf]
      %v8347 = vld [vmem:[%s8331 + $0x3c] sm:$0xf]
      %v8348 = vld [vmem:[%s8331 + $0x40] sm:$0xf]
      %v8349 = vld [vmem:[%s8331 + $0x44] sm:$0xf]
      %v8350 = vld [vmem:[%s8331 + $0x48] sm:$0xf]
      %v8351 = vld [vmem:[%s8331 + $0x4c] sm:$0xf]
      %v8352 = vld [vmem:[%s8331 + $0x50] sm:$0xf]
      %v8353 = vld [vmem:[%s8331 + $0x54] sm:$0xf]
      %v8354 = vld [vmem:[%s8331 + $0x58] sm:$0xf]
      %v8355 = vld [vmem:[%s8331 + $0x5c] sm:$0xf]
      %v8356 = vld [vmem:[%s8331 + $0x60] sm:$0xf]
      %v8357 = vld [vmem:[%s8331 + $0x64] sm:$0xf]
      %v8359 = vshrl.u32 %v8301, 16
      %v8361 = vshll.u32 %v8301, 16
      %v8363 = vrot.slane %v8361, 1
      %v8364 = vor.u32 %v8359, %v8363
      %v8366 = vshll.u32 %v8303, 16
      %v8368 = vrot.slane %v8366, 1
      %v8369 = vsel %vm933, %v8364, %v8368
      %v8371 = vshrl.u32 %v8302, 16
      %v8373 = vshll.u32 %v8302, 16
      %v8375 = vrot.slane %v8373, 1
      %v8376 = vor.u32 %v8371, %v8375
      %v8378 = vshll.u32 %v8304, 16
      %v8380 = vrot.slane %v8378, 1
      %v8381 = vsel %vm933, %v8376, %v8380
      %v8382 = vshrl.u32 %v8303, 16
      %v8384 = vor.u32 %v8382, %v8368
      %v8385 = vshrl.u32 %v8304, 16
      %v8387 = vor.u32 %v8385, %v8380
      %v8416 = vunpack.c.l.b16 %v8332
      %v8417 = vunpack.c.l.b16 %v8333
      %v8418 = vunpack.c.l.b16 %v8334
      %v8419 = vunpack.c.l.b16 %v8335
      %v8420 = vunpack.c.l.b16 %v8336
      %v8421 = vunpack.c.l.b16 %v8337
      %v8422 = vunpack.c.l.b16 %v8338
      %v8423 = vunpack.c.l.b16 %v8339
      %v8424 = vunpack.c.l.b16 %v8340
      %v8425 = vunpack.c.l.b16 %v8341
      %v8426 = vunpack.c.l.b16 %v8342
      %v8427 = vunpack.c.l.b16 %v8343
      %v8428 = vunpack.c.l.b16 %v8344
      %v8429 = vunpack.c.l.b16 %v8345
      %v8430 = vunpack.c.l.b16 %v8346
      %v8431 = vunpack.c.l.b16 %v8347
      %v8432 = vunpack.c.l.b16 %v8348
      %v8433 = vunpack.c.l.b16 %v8349
      %v8434 = vunpack.c.l.b16 %v8350
      %v8435 = vunpack.c.l.b16 %v8351
      %v8436 = vunpack.c.l.b16 %v8352
      %v8437 = vunpack.c.l.b16 %v8353
      %v8438 = vunpack.c.l.b16 %v8354
      %v8439 = vunpack.c.l.b16 %v8355
      %v8440 = vunpack.c.l.b16 %v8356
      %v8441 = vunpack.c.l.b16 %v8357
      %v8442 = vpack.c.b16 %v8417, %v8416
      %v8443 = vpack.c.b16 %v8419, %v8418
      %v8444 = vpack.c.b16 %v8421, %v8420
      %v8445 = vpack.c.b16 %v8423, %v8422
      %v8446 = vpack.c.b16 %v8425, %v8424
      %v8447 = vpack.c.b16 %v8427, %v8426
      %v8448 = vpack.c.b16 %v8429, %v8428
      %v8449 = vpack.c.b16 %v8431, %v8430
      %v8450 = vpack.c.b16 %v8433, %v8432
      %v8451 = vpack.c.b16 %v8435, %v8434
      %v8452 = vpack.c.b16 %v8437, %v8436
      %v8453 = vpack.c.b16 %v8439, %v8438
      %v8454 = vpack.c.b16 %v8441, %v8440
      %v8469 = vsel %vm1712, %v8381, 0
      %v8472 = vsel %vm1712, %v8387, 0
      %8474 = vmatprep.subr.bf16.mxu0 0
      %8475 = vmatpush1.bf16.msra.mxu0 %v8442
      %8476 = vmatprep.subr.bf16.mxu0 0
      %8477 = vmatpush1.bf16.msra.mxu0 %v8443
      %8478 = vmatprep.subr.bf16.mxu0 0
      %8479 = vmatpush1.bf16.msra.mxu0 %v8444
      %8480 = vmatprep.subr.bf16.mxu0 0
      %8481 = vmatpush1.bf16.msra.mxu0 %v8445
      %8482 = vmatprep.subr.bf16.mxu0 0
      %8483 = vmatpush1.bf16.msra.mxu0 %v8446
      %8484 = vmatprep.subr.bf16.mxu0 0
      %8485 = vmatpush1.bf16.msra.mxu0 %v8447
      %8486 = vmatprep.subr.bf16.mxu0 0
      %8487 = vmatpush1.bf16.msra.mxu0 %v8448
      %8488 = vmatprep.subr.bf16.mxu0 0
      %8489 = vmatpush1.bf16.msra.mxu0 %v8449
      %8490 = vmatprep.subr.bf16.mxu0 0
      %8491 = vmatpush1.bf16.msra.mxu0 %v8450
      %8492 = vmatprep.subr.bf16.mxu0 0
      %8493 = vmatpush1.bf16.msra.mxu0 %v8451
      %8494 = vmatprep.subr.bf16.mxu0 0
      %8495 = vmatpush1.bf16.msra.mxu0 %v8452
      %8496 = vmatprep.subr.bf16.mxu0 0
      %8497 = vmatpush1.bf16.msra.mxu0 %v8453
      %8498 = vmatprep.subr.bf16.mxu0 0
      %8499 = vmatpush1.bf16.msra.mxu0 %v8454
      %8500 = vmatprep.subr.bf16.mxu0 0
      %8501 = vmatpush1.bf16.msra.mxu0 0
      %8502 = vmatprep.subr.bf16.mxu0 0
      %8503 = vmatpush1.bf16.msra.mxu0 0
      %8504 = vmatprep.subr.bf16.mxu0 0
      %8505 = vmatpush1.bf16.msra.mxu0 0
      %8506 = vmatprep.mubr.bf16.mxu0 %v8469
      %8507 = vmatmul.mubr.bf16.gmra.mrb[0].mxu0 %v8369
      %v8508 = vpop.f32.mrb[0].mxu0
      %v8509 = vadd.f32 0.0, %v8508
      %v8510 = vpop.f32.mrb[0].mxu0
      %v8511 = vpop.f32.mrb[0].mxu0
      %v8512 = vadd.f32 0.0, %v8511
      %v8513 = vpop.f32.mrb[0].mxu0
      %8514 = vmatprep.mubr.bf16.mxu0 %v8472
      %8515 = vmatmul.mubr.bf16.gmra.mrb[0].mxu0 %v8384
      %v8516 = vpop.f32.mrb[0].mxu0
      %v8517 = vadd.f32 0.0, %v8516
      %v8518 = vpop.f32.mrb[0].mxu0
      %v8519 = vpop.f32.mrb[0].mxu0
      %v8520 = vadd.f32 0.0, %v8519
      %v8521 = vpop.f32.mrb[0].mxu0
      %8522 = vdwg.mxu0
      %v8549 = vunpack.c.l.b16 %v8305
      %v8550 = vunpack.c.l.b16 %v8306
      %v8551 = vunpack.c.l.b16 %v8307
      %v8552 = vunpack.c.l.b16 %v8308
      %v8553 = vunpack.c.l.b16 %v8309
      %v8554 = vunpack.c.l.b16 %v8310
      %v8555 = vunpack.c.l.b16 %v8311
      %v8556 = vunpack.c.l.b16 %v8312
      %v8557 = vunpack.c.l.b16 %v8313
      %v8558 = vunpack.c.l.b16 %v8314
      %v8559 = vunpack.c.l.b16 %v8315
      %v8560 = vunpack.c.l.b16 %v8316
      %v8561 = vunpack.c.l.b16 %v8317
      %v8562 = vunpack.c.l.b16 %v8318
      %v8563 = vunpack.c.l.b16 %v8319
      %v8564 = vunpack.c.l.b16 %v8320
      %v8565 = vunpack.c.l.b16 %v8321
      %v8566 = vunpack.c.l.b16 %v8322
      %v8567 = vunpack.c.l.b16 %v8323
      %v8568 = vunpack.c.l.b16 %v8324
      %v8569 = vunpack.c.l.b16 %v8325
      %v8570 = vunpack.c.l.b16 %v8326
      %v8571 = vunpack.c.l.b16 %v8327
      %v8572 = vunpack.c.l.b16 %v8328
      %v8573 = vunpack.c.l.b16 %v8329
      %v8574 = vunpack.c.l.b16 %v8330
      %v8575 = vpack.c.b16 %v8550, %v8549
      %v8576 = vpack.c.b16 %v8552, %v8551
      %v8577 = vpack.c.b16 %v8554, %v8553
      %v8578 = vpack.c.b16 %v8556, %v8555
      %v8579 = vpack.c.b16 %v8558, %v8557
      %v8580 = vpack.c.b16 %v8560, %v8559
      %v8581 = vpack.c.b16 %v8562, %v8561
      %v8582 = vpack.c.b16 %v8564, %v8563
      %v8583 = vpack.c.b16 %v8566, %v8565
      %v8584 = vpack.c.b16 %v8568, %v8567
      %v8585 = vpack.c.b16 %v8570, %v8569
      %v8586 = vpack.c.b16 %v8572, %v8571
      %v8587 = vpack.c.b16 %v8574, %v8573
      %v8601 = vsel %vm1712, %v8302, 0
      %v8603 = vsel %vm1712, %v8304, 0
      %8605 = vmatprep.subr.bf16.mxu0 0
      %8606 = vmatpush1.bf16.msra.mxu0 %v8575
      %8607 = vmatprep.subr.bf16.mxu0 0
      %8608 = vmatpush1.bf16.msra.mxu0 %v8576
      %8609 = vmatprep.subr.bf16.mxu0 0
      %8610 = vmatpush1.bf16.msra.mxu0 %v8577
      %8611 = vmatprep.subr.bf16.mxu0 0
      %8612 = vmatpush1.bf16.msra.mxu0 %v8578
      %8613 = vmatprep.subr.bf16.mxu0 0
      %8614 = vmatpush1.bf16.msra.mxu0 %v8579
      %8615 = vmatprep.subr.bf16.mxu0 0
      %8616 = vmatpush1.bf16.msra.mxu0 %v8580
      %8617 = vmatprep.subr.bf16.mxu0 0
      %8618 = vmatpush1.bf16.msra.mxu0 %v8581
      %8619 = vmatprep.subr.bf16.mxu0 0
      %8620 = vmatpush1.bf16.msra.mxu0 %v8582
      %8621 = vmatprep.subr.bf16.mxu0 0
      %8622 = vmatpush1.bf16.msra.mxu0 %v8583
      %8623 = vmatprep.subr.bf16.mxu0 0
      %8624 = vmatpush1.bf16.msra.mxu0 %v8584
      %8625 = vmatprep.subr.bf16.mxu0 0
      %8626 = vmatpush1.bf16.msra.mxu0 %v8585
      %8627 = vmatprep.subr.bf16.mxu0 0
      %8628 = vmatpush1.bf16.msra.mxu0 %v8586
      %8629 = vmatprep.subr.bf16.mxu0 0
      %8630 = vmatpush1.bf16.msra.mxu0 %v8587
      %8631 = vmatprep.subr.bf16.mxu0 0
      %8632 = vmatpush1.bf16.msra.mxu0 0
      %8633 = vmatprep.subr.bf16.mxu0 0
      %8634 = vmatpush1.bf16.msra.mxu0 0
      %8635 = vmatprep.subr.bf16.mxu0 0
      %8636 = vmatpush1.bf16.msra.mxu0 0
      %8637 = vmatprep.mubr.bf16.mxu0 %v8601
      %8638 = vmatmul.mubr.bf16.gmra.mrb[0].mxu0 %v8301
      %v8639 = vpop.f32.mrb[0].mxu0
      %v8640 = vadd.f32 %v8509, %v8639
      %v8641 = vpop.f32.mrb[0].mxu0
      %v8642 = vpop.f32.mrb[0].mxu0
      %v8643 = vadd.f32 %v8512, %v8642
      %v8644 = vpop.f32.mrb[0].mxu0
      %8645 = vmatprep.mubr.bf16.mxu0 %v8603
      %8646 = vmatmul.mubr.bf16.gmra.mrb[0].mxu0 %v8303
      %v8647 = vpop.f32.mrb[0].mxu0
      %v8648 = vadd.f32 %v8517, %v8647
      %v8649 = vpop.f32.mrb[0].mxu0
      %v8650 = vpop.f32.mrb[0].mxu0
      %v8651 = vadd.f32 %v8520, %v8650
      %v8652 = vpop.f32.mrb[0].mxu0
      %8653 = vdwg.mxu0
      %s8654 = scalar_lea.vmem %s55, 208
      %v8655 = vld [vmem:[%s8654] sm:$0xf]
      %v8656 = vld [vmem:[%s8654 + $0x4] sm:$0xf]
      %v8657 = vld [vmem:[%s8654 + $0x8] sm:$0xf]
      %v8658 = vld [vmem:[%s8654 + $0xc] sm:$0xf]
      %v8659 = vld [vmem:[%s8654 + $0x10] sm:$0xf]
      %v8660 = vld [vmem:[%s8654 + $0x14] sm:$0xf]
      %v8661 = vld [vmem:[%s8654 + $0x18] sm:$0xf]
      %v8662 = vld [vmem:[%s8654 + $0x1c] sm:$0xf]
      %v8663 = vld [vmem:[%s8654 + $0x20] sm:$0xf]
      %v8664 = vld [vmem:[%s8654 + $0x24] sm:$0xf]
      %v8665 = vld [vmem:[%s8654 + $0x28] sm:$0xf]
      %v8666 = vld [vmem:[%s8654 + $0x2c] sm:$0xf]
      %v8667 = vld [vmem:[%s8654 + $0x30] sm:$0xf]
      %v8668 = vld [vmem:[%s8654 + $0x34] sm:$0xf]
      %v8669 = vld [vmem:[%s8654 + $0x38] sm:$0xf]
      %v8670 = vld [vmem:[%s8654 + $0x3c] sm:$0xf]
      %v8671 = vld [vmem:[%s8654 + $0x40] sm:$0xf]
      %v8672 = vld [vmem:[%s8654 + $0x44] sm:$0xf]
      %v8673 = vld [vmem:[%s8654 + $0x48] sm:$0xf]
      %v8674 = vld [vmem:[%s8654 + $0x4c] sm:$0xf]
      %v8675 = vld [vmem:[%s8654 + $0x50] sm:$0xf]
      %v8676 = vld [vmem:[%s8654 + $0x54] sm:$0xf]
      %v8677 = vld [vmem:[%s8654 + $0x58] sm:$0xf]
      %v8678 = vld [vmem:[%s8654 + $0x5c] sm:$0xf]
      %v8679 = vld [vmem:[%s8654 + $0x60] sm:$0xf]
      %v8680 = vld [vmem:[%s8654 + $0x64] sm:$0xf]
      %v8685 = vrot.slane %v8301, 1
      %v8686 = vrot.slane %v8303, 1
      %v8687 = vsel %vm1203, %v8685, %v8686
      %v8688 = vrot.slane %v8302, 1
      %v8689 = vrot.slane %v8304, 1
      %v8690 = vsel %vm1203, %v8688, %v8689
      %v8719 = vunpack.c.l.b16 %v8655
      %v8720 = vunpack.c.l.b16 %v8656
      %v8721 = vunpack.c.l.b16 %v8657
      %v8722 = vunpack.c.l.b16 %v8658
      %v8723 = vunpack.c.l.b16 %v8659
      %v8724 = vunpack.c.l.b16 %v8660
      %v8725 = vunpack.c.l.b16 %v8661
      %v8726 = vunpack.c.l.b16 %v8662
      %v8727 = vunpack.c.l.b16 %v8663
      %v8728 = vunpack.c.l.b16 %v8664
      %v8729 = vunpack.c.l.b16 %v8665
      %v8730 = vunpack.c.l.b16 %v8666
      %v8731 = vunpack.c.l.b16 %v8667
      %v8732 = vunpack.c.l.b16 %v8668
      %v8733 = vunpack.c.l.b16 %v8669
      %v8734 = vunpack.c.l.b16 %v8670
      %v8735 = vunpack.c.l.b16 %v8671
      %v8736 = vunpack.c.l.b16 %v8672
      %v8737 = vunpack.c.l.b16 %v8673
      %v8738 = vunpack.c.l.b16 %v8674
      %v8739 = vunpack.c.l.b16 %v8675
      %v8740 = vunpack.c.l.b16 %v8676
      %v8741 = vunpack.c.l.b16 %v8677
      %v8742 = vunpack.c.l.b16 %v8678
      %v8743 = vunpack.c.l.b16 %v8679
      %v8744 = vunpack.c.l.b16 %v8680
      %v8745 = vpack.c.b16 %v8720, %v8719
      %v8746 = vpack.c.b16 %v8722, %v8721
      %v8747 = vpack.c.b16 %v8724, %v8723
      %v8748 = vpack.c.b16 %v8726, %v8725
      %v8749 = vpack.c.b16 %v8728, %v8727
      %v8750 = vpack.c.b16 %v8730, %v8729
      %v8751 = vpack.c.b16 %v8732, %v8731
      %v8752 = vpack.c.b16 %v8734, %v8733
      %v8753 = vpack.c.b16 %v8736, %v8735
      %v8754 = vpack.c.b16 %v8738, %v8737
      %v8755 = vpack.c.b16 %v8740, %v8739
      %v8756 = vpack.c.b16 %v8742, %v8741
      %v8757 = vpack.c.b16 %v8744, %v8743
      %v8772 = vsel %vm1712, %v8690, 0
      %v8775 = vsel %vm1712, %v8689, 0
      %8777 = vmatprep.subr.bf16.mxu0 0
      %8778 = vmatpush1.bf16.msra.mxu0 %v8745
      %8779 = vmatprep.subr.bf16.mxu0 0
      %8780 = vmatpush1.bf16.msra.mxu0 %v8746
      %8781 = vmatprep.subr.bf16.mxu0 0
      %8782 = vmatpush1.bf16.msra.mxu0 %v8747
      %8783 = vmatprep.subr.bf16.mxu0 0
      %8784 = vmatpush1.bf16.msra.mxu0 %v8748
      %8785 = vmatprep.subr.bf16.mxu0 0
      %8786 = vmatpush1.bf16.msra.mxu0 %v8749
      %8787 = vmatprep.subr.bf16.mxu0 0
      %8788 = vmatpush1.bf16.msra.mxu0 %v8750
      %8789 = vmatprep.subr.bf16.mxu0 0
      %8790 = vmatpush1.bf16.msra.mxu0 %v8751
      %8791 = vmatprep.subr.bf16.mxu0 0
      %8792 = vmatpush1.bf16.msra.mxu0 %v8752
      %8793 = vmatprep.subr.bf16.mxu0 0
      %8794 = vmatpush1.bf16.msra.mxu0 %v8753
      %8795 = vmatprep.subr.bf16.mxu0 0
      %8796 = vmatpush1.bf16.msra.mxu0 %v8754
      %8797 = vmatprep.subr.bf16.mxu0 0
      %8798 = vmatpush1.bf16.msra.mxu0 %v8755
      %8799 = vmatprep.subr.bf16.mxu0 0
      %8800 = vmatpush1.bf16.msra.mxu0 %v8756
      %8801 = vmatprep.subr.bf16.mxu0 0
      %8802 = vmatpush1.bf16.msra.mxu0 %v8757
      %8803 = vmatprep.subr.bf16.mxu0 0
      %8804 = vmatpush1.bf16.msra.mxu0 0
      %8805 = vmatprep.subr.bf16.mxu0 0
      %8806 = vmatpush1.bf16.msra.mxu0 0
      %8807 = vmatprep.subr.bf16.mxu0 0
      %8808 = vmatpush1.bf16.msra.mxu0 0
      %8809 = vmatprep.mubr.bf16.mxu0 %v8772
      %8810 = vmatmul.mubr.bf16.gmra.mrb[0].mxu0 %v8687
      %v8811 = vpop.f32.mrb[0].mxu0
      %v8812 = vadd.f32 0.0, %v8811
      %v8813 = vpop.f32.mrb[0].mxu0
      %v8814 = vpop.f32.mrb[0].mxu0
      %v8815 = vadd.f32 0.0, %v8814
      %v8816 = vpop.f32.mrb[0].mxu0
      %8817 = vmatprep.mubr.bf16.mxu0 %v8775
      %8818 = vmatmul.mubr.bf16.gmra.mrb[0].mxu0 %v8686
      %v8819 = vpop.f32.mrb[0].mxu0
      %v8820 = vadd.f32 0.0, %v8819
      %v8821 = vpop.f32.mrb[0].mxu0
      %v8822 = vpop.f32.mrb[0].mxu0
      %v8823 = vadd.f32 0.0, %v8822
      %v8824 = vpop.f32.mrb[0].mxu0
      %8825 = vdwg.mxu0
      %v8826 = vadd.f32 %v8640, %v8812
      %v8827 = vadd.f32 %v8643, %v8815
      %v8828 = vadd.f32 %v8648, %v8820
      %v8829 = vadd.f32 %v8651, %v8823
      %v8830 = vld [vmem:[%s57] sm:$0x1]
      %v8832 = vlaneseq
      %v8833 = vshrl.u32 %v8832, 7
      %v8834 = vsub.s32 0, %v8833
      %v8835 = vrot.slane %v8830, %v8834
      %v8837 = vadd.f32 %v8826, %v8835
      %v8838 = vadd.f32 %v8827, %v8835
      %v8839 = vadd.f32 %v8828, %v8835
      %v8840 = vadd.f32 %v8829, %v8835
      %vm8841 = vcmask 228352
      %8842 = vst.msk [vmem:[%s902] sm:$0xff] %vm8841, %v8837
      %8843 = vst.msk [vmem:[%s902 + $0x8] sm:$0xff] %vm8841, %v8838
      %8844 = vst.msk [vmem:[%s902 + $0x10] sm:$0xff] %vm8841, %v8839
      %vm8845 = vcmask 224256
      %8846 = vst.msk [vmem:[%s902 + $0x18] sm:$0xf] %vm8845, %v8840
      %p8847 = scmp.lt.s32.totalorder %s70, 1
      %s8848 = scalar_select %p8847, %s70, 1
      %s8849 = smul.addr %s8848, 4
      %s8850 = smul.addr %s8849, 8
      %s8851 = scalar_lea.vmem %s59, %s8850
      // Predicated region
      $region137: #{neuralnet_forward.1} parent=135 // pred_check
        %p8852 = pneg %p702
      $region138: #{neuralnet_forward.1} parent=135 // pred_check_branch
        %8854 = sbr.rel (%p8852) target = $region140
      $region139: #{neuralnet_forward.1} parent=135 // pred_region
        _
      $region140: #{neuralnet_forward.1} parent=135 // pred_fallthru
        _
    $region136: #{neuralnet_forward.1} parent=5 // pred_fallthru
      _
    %p8855 = scmp.le.s32.totalorder 2, %s65
    // Predicated region
    $region141: #{neuralnet_forward.1} parent=5 // pred_check
      %p8856 = pneg %p8855
    $region142: #{neuralnet_forward.1} parent=5 // pred_check_branch
      %8858 = sbr.rel (%p8856) target = $region144
    $region143: #{neuralnet_forward.1} parent=5 // pred_region
      %s8859 = ssub.s32 %s65, 2
      // Predicated region
      $region145: #{neuralnet_forward.1} parent=143 // pred_check
        %p8860 = pneg %p708
      $region146: #{neuralnet_forward.1} parent=143 // pred_check_branch
        %8862 = sbr.rel (%p8860) target = $region148
      $region147: #{neuralnet_forward.1} parent=143 // pred_region
        %p8863 = scmp.lt.s32.totalorder %s71, 1
        %s8864 = scalar_select %p8863, %s71, 1
        %s8865 = smul.addr %s8864, 4
        %s8866 = smul.addr %s8865, 8
        %s8867 = scalar_lea.vmem %s59, %s8866
      $region148: #{neuralnet_forward.1} parent=143 // pred_fallthru
        _
    $region144: #{neuralnet_forward.1} parent=5 // pred_fallthru
      _
  $region6: #{neuralnet_forward.1} parent=0 // loop_footer
    %s69 = sadd.s32 1, %s65
  $region7: #{neuralnet_forward.1} parent=0 // loop_footer_branch
    %64 = sbr.rel target = $region3
  $region8: #{neuralnet_forward.1} parent=0 // loop_exit
    _

</llo_original>
